<compile_context>
chip_gen: v7x
topology: tpu7x:2x2x1
jax: 0.10.0
libtpu: 0.0.40
codegen_flags: <defaults>
</compile_context>

<pallas_src>
import jax
import jax.numpy as jnp
import numpy as np
from jax.experimental import pallas as pl
from jax.experimental.pallas import tpu as pltpu

_BN_EPS = 1e-5
_LANE = 128


def _round_up(x, m):
    return ((x + m - 1) // m) * m


def _pad_channels_vec(v, cp):
    c = v.shape[0]
    return jnp.pad(v, (0, cp - c)) if cp > c else v


# ----------------------------------------------------------------------------
# Pallas kernels
# ----------------------------------------------------------------------------
def fused_conv_bn_relu(A, Wm, gamma, beta):
    """Fused (per-phase matmul) + BatchNorm(batch stats) + ReLU.

    A : (Pa, M, K)   Pa == P, or Pa == 1 (LHS shared by all phases)
    Wm: (P, K, Cp)   Cp is a multiple of 128 (lane-dense, zero-padded channels)
    gamma, beta: (Cp,)
    returns: (P, M, Cp) float32
    """
    P, K, Cp = Wm.shape
    M = A.shape[1]
    inv_count = 1.0 / float(P * M)
    a_map = (lambda p: (0, 0, 0)) if A.shape[0] == 1 else (lambda p: (p, 0, 0))

    def kernel(a_ref, w_ref, g_ref, b_ref, o_ref, s_ref, q_ref):
        p = pl.program_id(0)

        @pl.when(p == 0)
        def _():
            s_ref[...] = jnp.zeros_like(s_ref)
            q_ref[...] = jnp.zeros_like(q_ref)

        # MXU matmul: bf16 operands, fp32 accumulation.
        y = jnp.dot(a_ref[0], w_ref[0], preferred_element_type=jnp.float32)
        o_ref[p] = y                                     # output stays VMEM-resident
        s_ref[...] += jnp.sum(y, axis=0, keepdims=True)
        q_ref[...] += jnp.sum(y * y, axis=0, keepdims=True)

        # Last phase: finish BN over the resident output and apply ReLU.
        @pl.when(p == pl.num_programs(0) - 1)
        def _():
            mean = s_ref[...] * inv_count                          # (1, Cp)
            var = q_ref[...] * inv_count - mean * mean             # biased, as PyTorch
            scale = g_ref[...] * jax.lax.rsqrt(var + _BN_EPS)
            shift = b_ref[...] - mean * scale
            z = o_ref[...] * scale[None] + shift[None]
            o_ref[...] = jnp.maximum(z, 0.0)

    return pl.pallas_call(
        kernel,
        out_shape=jax.ShapeDtypeStruct((P, M, Cp), jnp.float32),
        grid_spec=pltpu.PrefetchScalarGridSpec(
            num_scalar_prefetch=0,
            grid=(P,),
            in_specs=[pl.BlockSpec((1, M, K), a_map),
                      pl.BlockSpec((1, K, Cp), lambda p: (p, 0, 0)),
                      pl.BlockSpec((1, Cp), lambda p: (0, 0)),
                      pl.BlockSpec((1, Cp), lambda p: (0, 0))],
            out_specs=pl.BlockSpec((P, M, Cp), lambda p: (0, 0, 0)),
            scratch_shapes=[pltpu.VMEM((1, Cp), jnp.float32),
                            pltpu.VMEM((1, Cp), jnp.float32)]),
        compiler_params=pltpu.CompilerParams(
            dimension_semantics=("arbitrary",),          # stats carried across phases
            vmem_limit_bytes=32 * 1024 * 1024),
    )(A.astype(jnp.bfloat16), Wm.astype(jnp.bfloat16),
      gamma.reshape(1, Cp).astype(jnp.float32),
      beta.reshape(1, Cp).astype(jnp.float32))


def fused_conv_tanh(A, Wm):
    """Fused (per-phase matmul) + tanh.  A: (P, M, K), Wm: (P, K, Cp)."""
    P, K, Cp = Wm.shape
    M = A.shape[1]

    def kernel(a_ref, w_ref, o_ref):
        y = jnp.dot(a_ref[0], w_ref[0], preferred_element_type=jnp.float32)
        o_ref[0] = jnp.tanh(y)

    return pl.pallas_call(
        kernel,
        out_shape=jax.ShapeDtypeStruct((P, M, Cp), jnp.float32),
        grid_spec=pltpu.PrefetchScalarGridSpec(
            num_scalar_prefetch=0,
            grid=(P,),
            in_specs=[pl.BlockSpec((1, M, K), lambda p: (p, 0, 0)),
                      pl.BlockSpec((1, K, Cp), lambda p: (p, 0, 0))],
            out_specs=pl.BlockSpec((1, M, Cp), lambda p: (p, 0, 0))),
        compiler_params=pltpu.CompilerParams(
            dimension_semantics=("parallel",),
            vmem_limit_bytes=32 * 1024 * 1024),
    )(A.astype(jnp.bfloat16), Wm.astype(jnp.bfloat16))


# ----------------------------------------------------------------------------
# Pure-JAX references for the same math (used for validation)
# ----------------------------------------------------------------------------
def _ref_conv_bn_relu(A, Wm, gamma, beta):
    P = Wm.shape[0]
    if A.shape[0] != P:
        A = jnp.broadcast_to(A, (P,) + A.shape[1:])
    Y = jnp.einsum("pmk,pkc->pmc", A.astype(jnp.bfloat16), Wm.astype(jnp.bfloat16),
                   preferred_element_type=jnp.float32)
    mean = jnp.mean(Y, axis=(0, 1))
    var = jnp.mean(Y * Y, axis=(0, 1)) - mean * mean
    scale = gamma * jax.lax.rsqrt(var + _BN_EPS)
    shift = beta - mean * scale
    return jnp.maximum(Y * scale + shift, 0.0)


def _ref_conv_tanh(A, Wm):
    P = Wm.shape[0]
    if A.shape[0] != P:
        A = jnp.broadcast_to(A, (P,) + A.shape[1:])
    Y = jnp.einsum("pmk,pkc->pmc", A.astype(jnp.bfloat16), Wm.astype(jnp.bfloat16),
                   preferred_element_type=jnp.float32)
    return jnp.tanh(Y)


# ----------------------------------------------------------------------------
# Sub-pixel (phase) decomposition of ConvTranspose2d(k=4, stride=2, pad=1)
#   out[n, 2m+pi, 2l+pj, co] = sum_{a,b in {0,1}, ci}
#       x_pad(pi,pj)[n, m+a, l+b, ci] * W[ci, co, 3-pi-2a, 3-pj-2b]
# ----------------------------------------------------------------------------
def subpixel_im2col(x):
    """x: (N, H, W, Cin) -> A: (4, N*H*W, 4*Cin)."""
    N, H, Wd, Cin = x.shape
    phases = []
    for pi in (0, 1):
        for pj in (0, 1):
            xp = jnp.pad(x, ((0, 0), (1 - pi, pi), (1 - pj, pj), (0, 0)))
            taps = [xp[:, a:a + H, b:b + Wd, :] for a in (0, 1) for b in (0, 1)]
            phases.append(jnp.concatenate(taps, axis=-1).reshape(N * H * Wd, 4 * Cin))
    return jnp.stack(phases, axis=0)


def subpixel_weights(w, c_pad):
    """w: ConvTranspose2d weight (Cin, Cout, 4, 4) -> (4, 4*Cin, c_pad)."""
    Cout = w.shape[1]
    mats = []
    for pi in (0, 1):
        for pj in (0, 1):
            rows = [w[:, :, 3 - pi - 2 * a, 3 - pj - 2 * b]
                    for a in (0, 1) for b in (0, 1)]
            mats.append(jnp.concatenate(rows, axis=0))          # (4*Cin, Cout)
    Wm = jnp.stack(mats, axis=0)
    if c_pad > Cout:
        Wm = jnp.pad(Wm, ((0, 0), (0, 0), (0, c_pad - Cout)))
    return Wm


def phases_to_nhwc(Yp, N, H, Wd, Cout):
    """Yp: (4, N*H*W, Cp) phase-major -> (N, 2H, 2W, Cout)."""
    Cp = Yp.shape[-1]
    Y = Yp.reshape(2, 2, N, H, Wd, Cp)
    Y = jnp.transpose(Y, (2, 3, 0, 4, 1, 5)).reshape(N, 2 * H, 2 * Wd, Cp)
    return Y[..., :Cout]


# ----------------------------------------------------------------------------
# First layer: ConvTranspose2d(in_dim, 8f, 4, 1, 0) on a 1x1 latent
#   out[n, kh, kw, co] = sum_ci x[n, ci] * W[ci, co, kh, kw]
# ----------------------------------------------------------------------------
def latent_weights(w, c_pad):
    """w: (Cin, Cout, 4, 4) -> (16, Cin, c_pad) (one 'phase' per output pixel)."""
    Cin, Cout, KH, KW = w.shape
    Wm = jnp.transpose(w, (2, 3, 0, 1)).reshape(KH * KW, Cin, Cout)
    if c_pad > Cout:
        Wm = jnp.pad(Wm, ((0, 0), (0, 0), (0, c_pad - Cout)))
    return Wm


def latent_to_nhwc(Yp, N, Cout):
    """Yp: (16, N, Cp) -> (N, 4, 4, Cout)."""
    Y = Yp.reshape(4, 4, N, Yp.shape[-1])
    return jnp.transpose(Y, (2, 0, 1, 3))[..., :Cout]


# ----------------------------------------------------------------------------
# Generator forward
# ----------------------------------------------------------------------------
def dcgan_generator_forward(x_nchw, params, use_pallas=True):
    conv_bn_relu = fused_conv_bn_relu if use_pallas else _ref_conv_bn_relu
    conv_tanh = fused_conv_tanh if use_pallas else _ref_conv_tanh

    x = jnp.transpose(x_nchw, (0, 2, 3, 1)).astype(jnp.float32)      # NCHW -> NHWC
    N, H0, W0, Cin0 = x.shape
    # TODO(synk): only the standard DCGAN (N, in_dim, 1, 1) latent input is
    # supported for the first stride-1 ConvTranspose layer.
    assert H0 == 1 and W0 == 1, "expected a (N, in_dim, 1, 1) latent input"

    # layer 0: ConvTranspose2d(in_dim, 8f, 4, 1, 0) + BN + ReLU
    w0 = params["conv0_w"]
    Cout0 = w0.shape[1]
    Cp0 = _round_up(Cout0, _LANE)
    A0 = x.reshape(1, N, Cin0)                       # LHS shared by all 16 pixels
    Yp = conv_bn_relu(A0, latent_weights(w0, Cp0),
                      _pad_channels_vec(params["bn0_gamma"], Cp0),
                      _pad_channels_vec(params["bn0_beta"], Cp0))
    x = latent_to_nhwc(Yp, N, Cout0)                 # (N, 4, 4, 8f)

    # layers 1..3: ConvTranspose2d(k=4, s=2, p=1) + BN + ReLU
    for li in range(1, 4):
        w = params[f"conv{li}_w"]
        Cout = w.shape[1]
        Cp = _round_up(Cout, _LANE)
        Nb, H, Wd, _ = x.shape
        Yp = conv_bn_relu(subpixel_im2col(x), subpixel_weights(w, Cp),
                          _pad_channels_vec(params[f"bn{li}_gamma"], Cp),
                          _pad_channels_vec(params[f"bn{li}_beta"], Cp))
        x = phases_to_nhwc(Yp, Nb, H, Wd, Cout)

    # layer 4: ConvTranspose2d(f, 3, 4, 2, 1) + Tanh
    w = params["conv4_w"]
    Cout = w.shape[1]
    Cp = _round_up(Cout, _LANE)
    Nb, H, Wd, _ = x.shape
    Yp = conv_tanh(subpixel_im2col(x), subpixel_weights(w, Cp))
    x = phases_to_nhwc(Yp, Nb, H, Wd, Cout)

    return jnp.transpose(x, (0, 3, 1, 2))            # NHWC -> NCHW


# ----------------------------------------------------------------------------
# Deterministic parameter init (matches weights_init: Conv ~ N(0, 0.02),
# BN weight ~ N(1, 0.02), BN bias = 0)
# ----------------------------------------------------------------------------
def init_params(key, in_dim, feature_dim):
    chans = [in_dim, feature_dim * 8, feature_dim * 4, feature_dim * 2,
             feature_dim, 3]
    params = {}
    keys = jax.random.split(key, 2 * 5)
    for li in range(5):
        cin, cout = chans[li], chans[li + 1]
        params[f"conv{li}_w"] = 0.02 * jax.random.normal(
            keys[2 * li], (cin, cout, 4, 4), jnp.float32)
        if li < 4:
            params[f"bn{li}_gamma"] = 1.0 + 0.02 * jax.random.normal(
                keys[2 * li + 1], (cout,), jnp.float32)
            params[f"bn{li}_beta"] = jnp.zeros((cout,), jnp.float32)
    return params


# ----------------------------------------------------------------------------
if __name__ == "__main__":
    batch, in_dim, feature_dim = 2, 16, 16       # small synthetic config

    key = jax.random.PRNGKey(0)
    k_param, k_x = jax.random.split(key)
    params = init_params(k_param, in_dim, feature_dim)
    x = jax.random.normal(k_x, (batch, in_dim, 1, 1), jnp.float32)

    fwd = jax.jit(lambda v: dcgan_generator_forward(v, params, use_pallas=True))
    out = jax.block_until_ready(fwd(x))
    assert out.shape == (batch, 3, 64, 64), out.shape

    # pure-JAX reference of the same math (validates the Pallas kernels)
    ref = jax.block_until_ready(
        jax.jit(lambda v: dcgan_generator_forward(v, params, use_pallas=False))(x))
    np.testing.assert_allclose(np.asarray(out), np.asarray(ref),
                               rtol=2e-2, atol=2e-2)

    print("KERNEL_OK")
</pallas_src>

<mosaic_0001>
module attributes {stable_mosaic.version = 11 : i64} {
  func.func @kernel(%arg0: i32, %arg1: memref<1x2x16xbf16, #tpu.memory_space<vmem>>, %arg2: memref<1x16x128xbf16, #tpu.memory_space<vmem>>, %arg3: memref<1x128xf32, #tpu.memory_space<vmem>>, %arg4: memref<1x128xf32, #tpu.memory_space<vmem>>, %arg5: memref<16x2x128xf32, #tpu.memory_space<vmem>>, %arg6: memref<1x128xf32, #tpu.memory_space<vmem>>, %arg7: memref<1x128xf32, #tpu.memory_space<vmem>>) attributes {dimension_semantics = [#tpu.dimension_semantics<arbitrary>], iteration_bounds = array<i64: 16>, scalar_prefetch = 0 : i64, scratch_operands = 2 : i64, tpu.core_type = #tpu.core_type<tc>, window_params = [{pipeline_mode = #tpu.pipeline_mode<synchronous>, transform_indices = @transform_0, window_bounds = array<i64: 1, 2, 16>}, {transform_indices = @transform_1, window_bounds = array<i64: 1, 16, 128>}, {pipeline_mode = #tpu.pipeline_mode<synchronous>, transform_indices = @transform_2, window_bounds = array<i64: 1, 128>}, {pipeline_mode = #tpu.pipeline_mode<synchronous>, transform_indices = @transform_3, window_bounds = array<i64: 1, 128>}, {pipeline_mode = #tpu.pipeline_mode<synchronous>, transform_indices = @transform_4, window_bounds = array<i64: 16, 2, 128>}]} {
    %c0_i32 = arith.constant 0 : i32
    %0 = arith.cmpi eq, %arg0, %c0_i32 : i32
    %1 = arith.extui %0 : i1 to i32
    %c0_i32_0 = arith.constant 0 : i32
    %2 = arith.cmpi ne, %1, %c0_i32_0 : i32
    scf.if %2 {
      %cst_19 = arith.constant 0.000000e+00 : f32
      %26 = vector.broadcast %cst_19 : f32 to vector<1x128xf32>
      %c0_20 = arith.constant 0 : index
      %c0_21 = arith.constant 0 : index
      %27 = vector.load %arg6[%c0_20, %c0_21] : memref<1x128xf32, #tpu.memory_space<vmem>>, vector<1x128xf32>
      tpu.vector_store %arg6[%c0_20, %c0_21], %26 {strides = array<i32>} : memref<1x128xf32, #tpu.memory_space<vmem>>, vector<1x128xf32>,
      %cst_22 = arith.constant 0.000000e+00 : f32
      %28 = vector.broadcast %cst_22 : f32 to vector<1x128xf32>
      %c0_23 = arith.constant 0 : index
      %c0_24 = arith.constant 0 : index
      %29 = vector.load %arg7[%c0_23, %c0_24] : memref<1x128xf32, #tpu.memory_space<vmem>>, vector<1x128xf32>
      tpu.vector_store %arg7[%c0_23, %c0_24], %28 {strides = array<i32>} : memref<1x128xf32, #tpu.memory_space<vmem>>, vector<1x128xf32>,
    } else {
    }
    %c0 = arith.constant 0 : index
    %c0_1 = arith.constant 0 : index
    %c0_2 = arith.constant 0 : index
    %3 = vector.load %arg1[%c0, %c0_1, %c0_2] : memref<1x2x16xbf16, #tpu.memory_space<vmem>>, vector<1x2x16xbf16>
    %4 = vector.shape_cast %3 : vector<1x2x16xbf16> to vector<2x16xbf16>
    %c0_3 = arith.constant 0 : index
    %c0_4 = arith.constant 0 : index
    %c0_5 = arith.constant 0 : index
    %5 = vector.load %arg2[%c0_3, %c0_4, %c0_5] : memref<1x16x128xbf16, #tpu.memory_space<vmem>>, vector<1x16x128xbf16>
    %6 = vector.shape_cast %5 : vector<1x16x128xbf16> to vector<16x128xbf16>
    %cst = arith.constant dense<0.000000e+00> : vector<2x128xf32>
    %7 = tpu.matmul %4, %6, %cst {dimension_numbers = #tpu.dot_dimension_numbers<[1], [0], [0], [1], [0, 0, 1, 1], [], []>} : vector<2x16xbf16>, vector<16x128xbf16>, vector<2x128xf32> -> vector<2x128xf32>
    %8 = arith.index_cast %arg0 : i32 to index
    %c0_6 = arith.constant 0 : index
    %c0_7 = arith.constant 0 : index
    %9 = vector.load %arg5[%8, %c0_6, %c0_7] : memref<16x2x128xf32, #tpu.memory_space<vmem>>, vector<1x2x128xf32>
    %10 = vector.shape_cast %9 : vector<1x2x128xf32> to vector<2x128xf32>
    %11 = vector.shape_cast %7 : vector<2x128xf32> to vector<1x2x128xf32>
    tpu.vector_store %arg5[%8, %c0_6, %c0_7], %11 {strides = array<i32>} : memref<16x2x128xf32, #tpu.memory_space<vmem>>, vector<1x2x128xf32>,
    %c0_8 = arith.constant 0 : index
    %c0_9 = arith.constant 0 : index
    %12 = vector.load %arg6[%c0_8, %c0_9] : memref<1x128xf32, #tpu.memory_space<vmem>>, vector<1x128xf32>
    %cst_10 = arith.constant dense<0.000000e+00> : vector<128xf32>
    %13 = vector.multi_reduction <add>, %7, %cst_10 [0] : vector<2x128xf32> to vector<128xf32>
    %14 = vector.shape_cast %13 : vector<128xf32> to vector<1x128xf32>
    %15 = arith.addf %12, %14 : vector<1x128xf32>
    %c0_11 = arith.constant 0 : index
    %c0_12 = arith.constant 0 : index
    %16 = vector.load %arg6[%c0_11, %c0_12] : memref<1x128xf32, #tpu.memory_space<vmem>>, vector<1x128xf32>
    tpu.vector_store %arg6[%c0_11, %c0_12], %15 {strides = array<i32>} : memref<1x128xf32, #tpu.memory_space<vmem>>, vector<1x128xf32>,
    %c0_13 = arith.constant 0 : index
    %c0_14 = arith.constant 0 : index
    %17 = vector.load %arg7[%c0_13, %c0_14] : memref<1x128xf32, #tpu.memory_space<vmem>>, vector<1x128xf32>
    %18 = arith.mulf %7, %7 : vector<2x128xf32>
    %cst_15 = arith.constant dense<0.000000e+00> : vector<128xf32>
    %19 = vector.multi_reduction <add>, %18, %cst_15 [0] : vector<2x128xf32> to vector<128xf32>
    %20 = vector.shape_cast %19 : vector<128xf32> to vector<1x128xf32>
    %21 = arith.addf %17, %20 : vector<1x128xf32>
    %c0_16 = arith.constant 0 : index
    %c0_17 = arith.constant 0 : index
    %22 = vector.load %arg7[%c0_16, %c0_17] : memref<1x128xf32, #tpu.memory_space<vmem>>, vector<1x128xf32>
    tpu.vector_store %arg7[%c0_16, %c0_17], %21 {strides = array<i32>} : memref<1x128xf32, #tpu.memory_space<vmem>>, vector<1x128xf32>,
    %c15_i32 = arith.constant 15 : i32
    %23 = arith.cmpi eq, %arg0, %c15_i32 : i32
    %24 = arith.extui %23 : i1 to i32
    %c0_i32_18 = arith.constant 0 : i32
    %25 = arith.cmpi ne, %24, %c0_i32_18 : i32
    scf.if %25 {
      %c0_19 = arith.constant 0 : index
      %c0_20 = arith.constant 0 : index
      %26 = vector.load %arg6[%c0_19, %c0_20] : memref<1x128xf32, #tpu.memory_space<vmem>>, vector<1x128xf32>
      %cst_21 = arith.constant 3.125000e-02 : f32
      %27 = vector.broadcast %cst_21 : f32 to vector<1x128xf32>
      %28 = arith.mulf %26, %27 : vector<1x128xf32>
      %c0_22 = arith.constant 0 : index
      %c0_23 = arith.constant 0 : index
      %29 = vector.load %arg7[%c0_22, %c0_23] : memref<1x128xf32, #tpu.memory_space<vmem>>, vector<1x128xf32>
      %cst_24 = arith.constant 3.125000e-02 : f32
      %30 = vector.broadcast %cst_24 : f32 to vector<1x128xf32>
      %31 = arith.mulf %29, %30 : vector<1x128xf32>
      %32 = arith.mulf %28, %28 : vector<1x128xf32>
      %33 = arith.subf %31, %32 : vector<1x128xf32>
      %c0_25 = arith.constant 0 : index
      %c0_26 = arith.constant 0 : index
      %34 = vector.load %arg3[%c0_25, %c0_26] : memref<1x128xf32, #tpu.memory_space<vmem>>, vector<1x128xf32>
      %cst_27 = arith.constant 9.99999974E-6 : f32
      %35 = vector.broadcast %cst_27 : f32 to vector<1x128xf32>
      %36 = arith.addf %33, %35 : vector<1x128xf32>
      %37 = math.rsqrt %36 : vector<1x128xf32>
      %38 = arith.mulf %34, %37 : vector<1x128xf32>
      %c0_28 = arith.constant 0 : index
      %c0_29 = arith.constant 0 : index
      %39 = vector.load %arg4[%c0_28, %c0_29] : memref<1x128xf32, #tpu.memory_space<vmem>>, vector<1x128xf32>
      %40 = arith.mulf %28, %38 : vector<1x128xf32>
      %41 = arith.subf %39, %40 : vector<1x128xf32>
      %c0_30 = arith.constant 0 : index
      %c0_31 = arith.constant 0 : index
      %c0_32 = arith.constant 0 : index
      %42 = vector.load %arg5[%c0_30, %c0_31, %c0_32] : memref<16x2x128xf32, #tpu.memory_space<vmem>>, vector<16x2x128xf32>
      %43 = vector.shape_cast %38 : vector<1x128xf32> to vector<1x1x128xf32>
      %44 = vector.broadcast %43 : vector<1x1x128xf32> to vector<16x2x128xf32>
      %45 = arith.mulf %42, %44 : vector<16x2x128xf32>
      %46 = vector.shape_cast %41 : vector<1x128xf32> to vector<1x1x128xf32>
      %47 = vector.broadcast %46 : vector<1x1x128xf32> to vector<16x2x128xf32>
      %48 = arith.addf %45, %47 : vector<16x2x128xf32>
      %cst_33 = arith.constant 0.000000e+00 : f32
      %49 = vector.broadcast %cst_33 : f32 to vector<16x2x128xf32>
      %50 = arith.maximumf %48, %49 : vector<16x2x128xf32>
      %c0_34 = arith.constant 0 : index
      %c0_35 = arith.constant 0 : index
      %c0_36 = arith.constant 0 : index
      %51 = vector.load %arg5[%c0_34, %c0_35, %c0_36] : memref<16x2x128xf32, #tpu.memory_space<vmem>>, vector<16x2x128xf32>
      tpu.vector_store %arg5[%c0_34, %c0_35, %c0_36], %50 {strides = array<i32>} : memref<16x2x128xf32, #tpu.memory_space<vmem>>, vector<16x2x128xf32>,
    } else {
    }
    return
  }
  func.func @transform_0(%arg0: i32) -> (i32, i32, i32) {
    %c0_i32 = arith.constant 0 : i32
    %c0_i32_0 = arith.constant 0 : i32
    %c0_i32_1 = arith.constant 0 : i32
    %c0_i32_2 = arith.constant 0 : i32
    return %c0_i32, %c0_i32_0, %c0_i32_1 : i32, i32, i32
  }
  func.func @transform_1(%arg0: i32) -> (i32, i32, i32) {
    %c0_i32 = arith.constant 0 : i32
    %c0_i32_0 = arith.constant 0 : i32
    %c0_i32_1 = arith.constant 0 : i32
    return %arg0, %c0_i32, %c0_i32_0 : i32, i32, i32
  }
  func.func @transform_2(%arg0: i32) -> (i32, i32) {
    %c0_i32 = arith.constant 0 : i32
    %c0_i32_0 = arith.constant 0 : i32
    %c0_i32_1 = arith.constant 0 : i32
    return %c0_i32, %c0_i32_0 : i32, i32
  }
  func.func @transform_3(%arg0: i32) -> (i32, i32) {
    %c0_i32 = arith.constant 0 : i32
    %c0_i32_0 = arith.constant 0 : i32
    %c0_i32_1 = arith.constant 0 : i32
    return %c0_i32, %c0_i32_0 : i32, i32
  }
  func.func @transform_4(%arg0: i32) -> (i32, i32, i32) {
    %c0_i32 = arith.constant 0 : i32
    %c0_i32_0 = arith.constant 0 : i32
    %c0_i32_1 = arith.constant 0 : i32
    %c0_i32_2 = arith.constant 0 : i32
    return %c0_i32, %c0_i32_0, %c0_i32_1 : i32, i32, i32
  }
}

module attributes {stable_mosaic.version = 11 : i64} {
  func.func @kernel(%arg0: i32, %arg1: memref<1x32x512xbf16, #tpu.memory_space<vmem>>, %arg2: memref<1x512x128xbf16, #tpu.memory_space<vmem>>, %arg3: memref<1x128xf32, #tpu.memory_space<vmem>>, %arg4: memref<1x128xf32, #tpu.memory_space<vmem>>, %arg5: memref<4x32x128xf32, #tpu.memory_space<vmem>>, %arg6: memref<1x128xf32, #tpu.memory_space<vmem>>, %arg7: memref<1x128xf32, #tpu.memory_space<vmem>>) attributes {dimension_semantics = [#tpu.dimension_semantics<arbitrary>], iteration_bounds = array<i64: 4>, scalar_prefetch = 0 : i64, scratch_operands = 2 : i64, tpu.core_type = #tpu.core_type<tc>, window_params = [{transform_indices = @transform_0, window_bounds = array<i64: 1, 32, 512>}, {transform_indices = @transform_1, window_bounds = array<i64: 1, 512, 128>}, {pipeline_mode = #tpu.pipeline_mode<synchronous>, transform_indices = @transform_2, window_bounds = array<i64: 1, 128>}, {pipeline_mode = #tpu.pipeline_mode<synchronous>, transform_indices = @transform_3, window_bounds = array<i64: 1, 128>}, {pipeline_mode = #tpu.pipeline_mode<synchronous>, transform_indices = @transform_4, window_bounds = array<i64: 4, 32, 128>}]} {
    %c0_i32 = arith.constant 0 : i32
    %0 = arith.cmpi eq, %arg0, %c0_i32 : i32
    %1 = arith.extui %0 : i1 to i32
    %c0_i32_0 = arith.constant 0 : i32
    %2 = arith.cmpi ne, %1, %c0_i32_0 : i32
    scf.if %2 {
      %cst_19 = arith.constant 0.000000e+00 : f32
      %26 = vector.broadcast %cst_19 : f32 to vector<1x128xf32>
      %c0_20 = arith.constant 0 : index
      %c0_21 = arith.constant 0 : index
      %27 = vector.load %arg6[%c0_20, %c0_21] : memref<1x128xf32, #tpu.memory_space<vmem>>, vector<1x128xf32>
      tpu.vector_store %arg6[%c0_20, %c0_21], %26 {strides = array<i32>} : memref<1x128xf32, #tpu.memory_space<vmem>>, vector<1x128xf32>,
      %cst_22 = arith.constant 0.000000e+00 : f32
      %28 = vector.broadcast %cst_22 : f32 to vector<1x128xf32>
      %c0_23 = arith.constant 0 : index
      %c0_24 = arith.constant 0 : index
      %29 = vector.load %arg7[%c0_23, %c0_24] : memref<1x128xf32, #tpu.memory_space<vmem>>, vector<1x128xf32>
      tpu.vector_store %arg7[%c0_23, %c0_24], %28 {strides = array<i32>} : memref<1x128xf32, #tpu.memory_space<vmem>>, vector<1x128xf32>,
    } else {
    }
    %c0 = arith.constant 0 : index
    %c0_1 = arith.constant 0 : index
    %c0_2 = arith.constant 0 : index
    %3 = vector.load %arg1[%c0, %c0_1, %c0_2] : memref<1x32x512xbf16, #tpu.memory_space<vmem>>, vector<1x32x512xbf16>
    %4 = vector.shape_cast %3 : vector<1x32x512xbf16> to vector<32x512xbf16>
    %c0_3 = arith.constant 0 : index
    %c0_4 = arith.constant 0 : index
    %c0_5 = arith.constant 0 : index
    %5 = vector.load %arg2[%c0_3, %c0_4, %c0_5] : memref<1x512x128xbf16, #tpu.memory_space<vmem>>, vector<1x512x128xbf16>
    %6 = vector.shape_cast %5 : vector<1x512x128xbf16> to vector<512x128xbf16>
    %cst = arith.constant dense<0.000000e+00> : vector<32x128xf32>
    %7 = tpu.matmul %4, %6, %cst {dimension_numbers = #tpu.dot_dimension_numbers<[1], [0], [0], [1], [0, 0, 1, 1], [], []>} : vector<32x512xbf16>, vector<512x128xbf16>, vector<32x128xf32> -> vector<32x128xf32>
    %8 = arith.index_cast %arg0 : i32 to index
    %c0_6 = arith.constant 0 : index
    %c0_7 = arith.constant 0 : index
    %9 = vector.load %arg5[%8, %c0_6, %c0_7] : memref<4x32x128xf32, #tpu.memory_space<vmem>>, vector<1x32x128xf32>
    %10 = vector.shape_cast %9 : vector<1x32x128xf32> to vector<32x128xf32>
    %11 = vector.shape_cast %7 : vector<32x128xf32> to vector<1x32x128xf32>
    tpu.vector_store %arg5[%8, %c0_6, %c0_7], %11 {strides = array<i32>} : memref<4x32x128xf32, #tpu.memory_space<vmem>>, vector<1x32x128xf32>,
    %c0_8 = arith.constant 0 : index
    %c0_9 = arith.constant 0 : index
    %12 = vector.load %arg6[%c0_8, %c0_9] : memref<1x128xf32, #tpu.memory_space<vmem>>, vector<1x128xf32>
    %cst_10 = arith.constant dense<0.000000e+00> : vector<128xf32>
    %13 = vector.multi_reduction <add>, %7, %cst_10 [0] : vector<32x128xf32> to vector<128xf32>
    %14 = vector.shape_cast %13 : vector<128xf32> to vector<1x128xf32>
    %15 = arith.addf %12, %14 : vector<1x128xf32>
    %c0_11 = arith.constant 0 : index
    %c0_12 = arith.constant 0 : index
    %16 = vector.load %arg6[%c0_11, %c0_12] : memref<1x128xf32, #tpu.memory_space<vmem>>, vector<1x128xf32>
    tpu.vector_store %arg6[%c0_11, %c0_12], %15 {strides = array<i32>} : memref<1x128xf32, #tpu.memory_space<vmem>>, vector<1x128xf32>,
    %c0_13 = arith.constant 0 : index
    %c0_14 = arith.constant 0 : index
    %17 = vector.load %arg7[%c0_13, %c0_14] : memref<1x128xf32, #tpu.memory_space<vmem>>, vector<1x128xf32>
    %18 = arith.mulf %7, %7 : vector<32x128xf32>
    %cst_15 = arith.constant dense<0.000000e+00> : vector<128xf32>
    %19 = vector.multi_reduction <add>, %18, %cst_15 [0] : vector<32x128xf32> to vector<128xf32>
    %20 = vector.shape_cast %19 : vector<128xf32> to vector<1x128xf32>
    %21 = arith.addf %17, %20 : vector<1x128xf32>
    %c0_16 = arith.constant 0 : index
    %c0_17 = arith.constant 0 : index
    %22 = vector.load %arg7[%c0_16, %c0_17] : memref<1x128xf32, #tpu.memory_space<vmem>>, vector<1x128xf32>
    tpu.vector_store %arg7[%c0_16, %c0_17], %21 {strides = array<i32>} : memref<1x128xf32, #tpu.memory_space<vmem>>, vector<1x128xf32>,
    %c3_i32 = arith.constant 3 : i32
    %23 = arith.cmpi eq, %arg0, %c3_i32 : i32
    %24 = arith.extui %23 : i1 to i32
    %c0_i32_18 = arith.constant 0 : i32
    %25 = arith.cmpi ne, %24, %c0_i32_18 : i32
    scf.if %25 {
      %c0_19 = arith.constant 0 : index
      %c0_20 = arith.constant 0 : index
      %26 = vector.load %arg6[%c0_19, %c0_20] : memref<1x128xf32, #tpu.memory_space<vmem>>, vector<1x128xf32>
      %cst_21 = arith.constant 7.812500e-03 : f32
      %27 = vector.broadcast %cst_21 : f32 to vector<1x128xf32>
      %28 = arith.mulf %26, %27 : vector<1x128xf32>
      %c0_22 = arith.constant 0 : index
      %c0_23 = arith.constant 0 : index
      %29 = vector.load %arg7[%c0_22, %c0_23] : memref<1x128xf32, #tpu.memory_space<vmem>>, vector<1x128xf32>
      %cst_24 = arith.constant 7.812500e-03 : f32
      %30 = vector.broadcast %cst_24 : f32 to vector<1x128xf32>
      %31 = arith.mulf %29, %30 : vector<1x128xf32>
      %32 = arith.mulf %28, %28 : vector<1x128xf32>
      %33 = arith.subf %31, %32 : vector<1x128xf32>
      %c0_25 = arith.constant 0 : index
      %c0_26 = arith.constant 0 : index
      %34 = vector.load %arg3[%c0_25, %c0_26] : memref<1x128xf32, #tpu.memory_space<vmem>>, vector<1x128xf32>
      %cst_27 = arith.constant 9.99999974E-6 : f32
      %35 = vector.broadcast %cst_27 : f32 to vector<1x128xf32>
      %36 = arith.addf %33, %35 : vector<1x128xf32>
      %37 = math.rsqrt %36 : vector<1x128xf32>
      %38 = arith.mulf %34, %37 : vector<1x128xf32>
      %c0_28 = arith.constant 0 : index
      %c0_29 = arith.constant 0 : index
      %39 = vector.load %arg4[%c0_28, %c0_29] : memref<1x128xf32, #tpu.memory_space<vmem>>, vector<1x128xf32>
      %40 = arith.mulf %28, %38 : vector<1x128xf32>
      %41 = arith.subf %39, %40 : vector<1x128xf32>
      %c0_30 = arith.constant 0 : index
      %c0_31 = arith.constant 0 : index
      %c0_32 = arith.constant 0 : index
      %42 = vector.load %arg5[%c0_30, %c0_31, %c0_32] : memref<4x32x128xf32, #tpu.memory_space<vmem>>, vector<4x32x128xf32>
      %43 = vector.shape_cast %38 : vector<1x128xf32> to vector<1x1x128xf32>
      %44 = vector.broadcast %43 : vector<1x1x128xf32> to vector<4x32x128xf32>
      %45 = arith.mulf %42, %44 : vector<4x32x128xf32>
      %46 = vector.shape_cast %41 : vector<1x128xf32> to vector<1x1x128xf32>
      %47 = vector.broadcast %46 : vector<1x1x128xf32> to vector<4x32x128xf32>
      %48 = arith.addf %45, %47 : vector<4x32x128xf32>
      %cst_33 = arith.constant 0.000000e+00 : f32
      %49 = vector.broadcast %cst_33 : f32 to vector<4x32x128xf32>
      %50 = arith.maximumf %48, %49 : vector<4x32x128xf32>
      %c0_34 = arith.constant 0 : index
      %c0_35 = arith.constant 0 : index
      %c0_36 = arith.constant 0 : index
      %51 = vector.load %arg5[%c0_34, %c0_35, %c0_36] : memref<4x32x128xf32, #tpu.memory_space<vmem>>, vector<4x32x128xf32>
      tpu.vector_store %arg5[%c0_34, %c0_35, %c0_36], %50 {strides = array<i32>} : memref<4x32x128xf32, #tpu.memory_space<vmem>>, vector<4x32x128xf32>,
    } else {
    }
    return
  }
  func.func @transform_0(%arg0: i32) -> (i32, i32, i32) {
    %c0_i32 = arith.constant 0 : i32
    %c0_i32_0 = arith.constant 0 : i32
    %c0_i32_1 = arith.constant 0 : i32
    return %arg0, %c0_i32, %c0_i32_0 : i32, i32, i32
  }
  func.func @transform_1(%arg0: i32) -> (i32, i32, i32) {
    %c0_i32 = arith.constant 0 : i32
    %c0_i32_0 = arith.constant 0 : i32
    %c0_i32_1 = arith.constant 0 : i32
    return %arg0, %c0_i32, %c0_i32_0 : i32, i32, i32
  }
  func.func @transform_2(%arg0: i32) -> (i32, i32) {
    %c0_i32 = arith.constant 0 : i32
    %c0_i32_0 = arith.constant 0 : i32
    %c0_i32_1 = arith.constant 0 : i32
    return %c0_i32, %c0_i32_0 : i32, i32
  }
  func.func @transform_3(%arg0: i32) -> (i32, i32) {
    %c0_i32 = arith.constant 0 : i32
    %c0_i32_0 = arith.constant 0 : i32
    %c0_i32_1 = arith.constant 0 : i32
    return %c0_i32, %c0_i32_0 : i32, i32
  }
  func.func @transform_4(%arg0: i32) -> (i32, i32, i32) {
    %c0_i32 = arith.constant 0 : i32
    %c0_i32_0 = arith.constant 0 : i32
    %c0_i32_1 = arith.constant 0 : i32
    %c0_i32_2 = arith.constant 0 : i32
    return %c0_i32, %c0_i32_0, %c0_i32_1 : i32, i32, i32
  }
}

module attributes {stable_mosaic.version = 11 : i64} {
  func.func @kernel(%arg0: i32, %arg1: memref<1x128x256xbf16, #tpu.memory_space<vmem>>, %arg2: memref<1x256x128xbf16, #tpu.memory_space<vmem>>, %arg3: memref<1x128xf32, #tpu.memory_space<vmem>>, %arg4: memref<1x128xf32, #tpu.memory_space<vmem>>, %arg5: memref<4x128x128xf32, #tpu.memory_space<vmem>>, %arg6: memref<1x128xf32, #tpu.memory_space<vmem>>, %arg7: memref<1x128xf32, #tpu.memory_space<vmem>>) attributes {dimension_semantics = [#tpu.dimension_semantics<arbitrary>], iteration_bounds = array<i64: 4>, scalar_prefetch = 0 : i64, scratch_operands = 2 : i64, tpu.core_type = #tpu.core_type<tc>, window_params = [{transform_indices = @transform_0, window_bounds = array<i64: 1, 128, 256>}, {transform_indices = @transform_1, window_bounds = array<i64: 1, 256, 128>}, {pipeline_mode = #tpu.pipeline_mode<synchronous>, transform_indices = @transform_2, window_bounds = array<i64: 1, 128>}, {pipeline_mode = #tpu.pipeline_mode<synchronous>, transform_indices = @transform_3, window_bounds = array<i64: 1, 128>}, {pipeline_mode = #tpu.pipeline_mode<synchronous>, transform_indices = @transform_4, window_bounds = array<i64: 4, 128, 128>}]} {
    %c0_i32 = arith.constant 0 : i32
    %0 = arith.cmpi eq, %arg0, %c0_i32 : i32
    %1 = arith.extui %0 : i1 to i32
    %c0_i32_0 = arith.constant 0 : i32
    %2 = arith.cmpi ne, %1, %c0_i32_0 : i32
    scf.if %2 {
      %cst_19 = arith.constant 0.000000e+00 : f32
      %26 = vector.broadcast %cst_19 : f32 to vector<1x128xf32>
      %c0_20 = arith.constant 0 : index
      %c0_21 = arith.constant 0 : index
      %27 = vector.load %arg6[%c0_20, %c0_21] : memref<1x128xf32, #tpu.memory_space<vmem>>, vector<1x128xf32>
      tpu.vector_store %arg6[%c0_20, %c0_21], %26 {strides = array<i32>} : memref<1x128xf32, #tpu.memory_space<vmem>>, vector<1x128xf32>,
      %cst_22 = arith.constant 0.000000e+00 : f32
      %28 = vector.broadcast %cst_22 : f32 to vector<1x128xf32>
      %c0_23 = arith.constant 0 : index
      %c0_24 = arith.constant 0 : index
      %29 = vector.load %arg7[%c0_23, %c0_24] : memref<1x128xf32, #tpu.memory_space<vmem>>, vector<1x128xf32>
      tpu.vector_store %arg7[%c0_23, %c0_24], %28 {strides = array<i32>} : memref<1x128xf32, #tpu.memory_space<vmem>>, vector<1x128xf32>,
    } else {
    }
    %c0 = arith.constant 0 : index
    %c0_1 = arith.constant 0 : index
    %c0_2 = arith.constant 0 : index
    %3 = vector.load %arg1[%c0, %c0_1, %c0_2] : memref<1x128x256xbf16, #tpu.memory_space<vmem>>, vector<1x128x256xbf16>
    %4 = vector.shape_cast %3 : vector<1x128x256xbf16> to vector<128x256xbf16>
    %c0_3 = arith.constant 0 : index
    %c0_4 = arith.constant 0 : index
    %c0_5 = arith.constant 0 : index
    %5 = vector.load %arg2[%c0_3, %c0_4, %c0_5] : memref<1x256x128xbf16, #tpu.memory_space<vmem>>, vector<1x256x128xbf16>
    %6 = vector.shape_cast %5 : vector<1x256x128xbf16> to vector<256x128xbf16>
    %cst = arith.constant dense<0.000000e+00> : vector<128x128xf32>
    %7 = tpu.matmul %4, %6, %cst {dimension_numbers = #tpu.dot_dimension_numbers<[1], [0], [0], [1], [0, 0, 1, 1], [], []>} : vector<128x256xbf16>, vector<256x128xbf16>, vector<128x128xf32> -> vector<128x128xf32>
    %8 = arith.index_cast %arg0 : i32 to index
    %c0_6 = arith.constant 0 : index
    %c0_7 = arith.constant 0 : index
    %9 = vector.load %arg5[%8, %c0_6, %c0_7] : memref<4x128x128xf32, #tpu.memory_space<vmem>>, vector<1x128x128xf32>
    %10 = vector.shape_cast %9 : vector<1x128x128xf32> to vector<128x128xf32>
    %11 = vector.shape_cast %7 : vector<128x128xf32> to vector<1x128x128xf32>
    tpu.vector_store %arg5[%8, %c0_6, %c0_7], %11 {strides = array<i32>} : memref<4x128x128xf32, #tpu.memory_space<vmem>>, vector<1x128x128xf32>,
    %c0_8 = arith.constant 0 : index
    %c0_9 = arith.constant 0 : index
    %12 = vector.load %arg6[%c0_8, %c0_9] : memref<1x128xf32, #tpu.memory_space<vmem>>, vector<1x128xf32>
    %cst_10 = arith.constant dense<0.000000e+00> : vector<128xf32>
    %13 = vector.multi_reduction <add>, %7, %cst_10 [0] : vector<128x128xf32> to vector<128xf32>
    %14 = vector.shape_cast %13 : vector<128xf32> to vector<1x128xf32>
    %15 = arith.addf %12, %14 : vector<1x128xf32>
    %c0_11 = arith.constant 0 : index
    %c0_12 = arith.constant 0 : index
    %16 = vector.load %arg6[%c0_11, %c0_12] : memref<1x128xf32, #tpu.memory_space<vmem>>, vector<1x128xf32>
    tpu.vector_store %arg6[%c0_11, %c0_12], %15 {strides = array<i32>} : memref<1x128xf32, #tpu.memory_space<vmem>>, vector<1x128xf32>,
    %c0_13 = arith.constant 0 : index
    %c0_14 = arith.constant 0 : index
    %17 = vector.load %arg7[%c0_13, %c0_14] : memref<1x128xf32, #tpu.memory_space<vmem>>, vector<1x128xf32>
    %18 = arith.mulf %7, %7 : vector<128x128xf32>
    %cst_15 = arith.constant dense<0.000000e+00> : vector<128xf32>
    %19 = vector.multi_reduction <add>, %18, %cst_15 [0] : vector<128x128xf32> to vector<128xf32>
    %20 = vector.shape_cast %19 : vector<128xf32> to vector<1x128xf32>
    %21 = arith.addf %17, %20 : vector<1x128xf32>
    %c0_16 = arith.constant 0 : index
    %c0_17 = arith.constant 0 : index
    %22 = vector.load %arg7[%c0_16, %c0_17] : memref<1x128xf32, #tpu.memory_space<vmem>>, vector<1x128xf32>
    tpu.vector_store %arg7[%c0_16, %c0_17], %21 {strides = array<i32>} : memref<1x128xf32, #tpu.memory_space<vmem>>, vector<1x128xf32>,
    %c3_i32 = arith.constant 3 : i32
    %23 = arith.cmpi eq, %arg0, %c3_i32 : i32
    %24 = arith.extui %23 : i1 to i32
    %c0_i32_18 = arith.constant 0 : i32
    %25 = arith.cmpi ne, %24, %c0_i32_18 : i32
    scf.if %25 {
      %c0_19 = arith.constant 0 : index
      %c0_20 = arith.constant 0 : index
      %26 = vector.load %arg6[%c0_19, %c0_20] : memref<1x128xf32, #tpu.memory_space<vmem>>, vector<1x128xf32>
      %cst_21 = arith.constant 0.001953125 : f32
      %27 = vector.broadcast %cst_21 : f32 to vector<1x128xf32>
      %28 = arith.mulf %26, %27 : vector<1x128xf32>
      %c0_22 = arith.constant 0 : index
      %c0_23 = arith.constant 0 : index
      %29 = vector.load %arg7[%c0_22, %c0_23] : memref<1x128xf32, #tpu.memory_space<vmem>>, vector<1x128xf32>
      %cst_24 = arith.constant 0.001953125 : f32
      %30 = vector.broadcast %cst_24 : f32 to vector<1x128xf32>
      %31 = arith.mulf %29, %30 : vector<1x128xf32>
      %32 = arith.mulf %28, %28 : vector<1x128xf32>
      %33 = arith.subf %31, %32 : vector<1x128xf32>
      %c0_25 = arith.constant 0 : index
      %c0_26 = arith.constant 0 : index
      %34 = vector.load %arg3[%c0_25, %c0_26] : memref<1x128xf32, #tpu.memory_space<vmem>>, vector<1x128xf32>
      %cst_27 = arith.constant 9.99999974E-6 : f32
      %35 = vector.broadcast %cst_27 : f32 to vector<1x128xf32>
      %36 = arith.addf %33, %35 : vector<1x128xf32>
      %37 = math.rsqrt %36 : vector<1x128xf32>
      %38 = arith.mulf %34, %37 : vector<1x128xf32>
      %c0_28 = arith.constant 0 : index
      %c0_29 = arith.constant 0 : index
      %39 = vector.load %arg4[%c0_28, %c0_29] : memref<1x128xf32, #tpu.memory_space<vmem>>, vector<1x128xf32>
      %40 = arith.mulf %28, %38 : vector<1x128xf32>
      %41 = arith.subf %39, %40 : vector<1x128xf32>
      %c0_30 = arith.constant 0 : index
      %c0_31 = arith.constant 0 : index
      %c0_32 = arith.constant 0 : index
      %42 = vector.load %arg5[%c0_30, %c0_31, %c0_32] : memref<4x128x128xf32, #tpu.memory_space<vmem>>, vector<4x128x128xf32>
      %43 = vector.shape_cast %38 : vector<1x128xf32> to vector<1x1x128xf32>
      %44 = vector.broadcast %43 : vector<1x1x128xf32> to vector<4x128x128xf32>
      %45 = arith.mulf %42, %44 : vector<4x128x128xf32>
      %46 = vector.shape_cast %41 : vector<1x128xf32> to vector<1x1x128xf32>
      %47 = vector.broadcast %46 : vector<1x1x128xf32> to vector<4x128x128xf32>
      %48 = arith.addf %45, %47 : vector<4x128x128xf32>
      %cst_33 = arith.constant 0.000000e+00 : f32
      %49 = vector.broadcast %cst_33 : f32 to vector<4x128x128xf32>
      %50 = arith.maximumf %48, %49 : vector<4x128x128xf32>
      %c0_34 = arith.constant 0 : index
      %c0_35 = arith.constant 0 : index
      %c0_36 = arith.constant 0 : index
      %51 = vector.load %arg5[%c0_34, %c0_35, %c0_36] : memref<4x128x128xf32, #tpu.memory_space<vmem>>, vector<4x128x128xf32>
      tpu.vector_store %arg5[%c0_34, %c0_35, %c0_36], %50 {strides = array<i32>} : memref<4x128x128xf32, #tpu.memory_space<vmem>>, vector<4x128x128xf32>,
    } else {
    }
    return
  }
  func.func @transform_0(%arg0: i32) -> (i32, i32, i32) {
    %c0_i32 = arith.constant 0 : i32
    %c0_i32_0 = arith.constant 0 : i32
    %c0_i32_1 = arith.constant 0 : i32
    return %arg0, %c0_i32, %c0_i32_0 : i32, i32, i32
  }
  func.func @transform_1(%arg0: i32) -> (i32, i32, i32) {
    %c0_i32 = arith.constant 0 : i32
    %c0_i32_0 = arith.constant 0 : i32
    %c0_i32_1 = arith.constant 0 : i32
    return %arg0, %c0_i32, %c0_i32_0 : i32, i32, i32
  }
  func.func @transform_2(%arg0: i32) -> (i32, i32) {
    %c0_i32 = arith.constant 0 : i32
    %c0_i32_0 = arith.constant 0 : i32
    %c0_i32_1 = arith.constant 0 : i32
    return %c0_i32, %c0_i32_0 : i32, i32
  }
  func.func @transform_3(%arg0: i32) -> (i32, i32) {
    %c0_i32 = arith.constant 0 : i32
    %c0_i32_0 = arith.constant 0 : i32
    %c0_i32_1 = arith.constant 0 : i32
    return %c0_i32, %c0_i32_0 : i32, i32
  }
  func.func @transform_4(%arg0: i32) -> (i32, i32, i32) {
    %c0_i32 = arith.constant 0 : i32
    %c0_i32_0 = arith.constant 0 : i32
    %c0_i32_1 = arith.constant 0 : i32
    %c0_i32_2 = arith.constant 0 : i32
    return %c0_i32, %c0_i32_0, %c0_i32_1 : i32, i32, i32
  }
}

module attributes {stable_mosaic.version = 11 : i64} {
  func.func @kernel(%arg0: i32, %arg1: memref<1x512x128xbf16, #tpu.memory_space<vmem>>, %arg2: memref<1x128x128xbf16, #tpu.memory_space<vmem>>, %arg3: memref<1x128xf32, #tpu.memory_space<vmem>>, %arg4: memref<1x128xf32, #tpu.memory_space<vmem>>, %arg5: memref<4x512x128xf32, #tpu.memory_space<vmem>>, %arg6: memref<1x128xf32, #tpu.memory_space<vmem>>, %arg7: memref<1x128xf32, #tpu.memory_space<vmem>>) attributes {dimension_semantics = [#tpu.dimension_semantics<arbitrary>], iteration_bounds = array<i64: 4>, scalar_prefetch = 0 : i64, scratch_operands = 2 : i64, tpu.core_type = #tpu.core_type<tc>, window_params = [{transform_indices = @transform_0, window_bounds = array<i64: 1, 512, 128>}, {transform_indices = @transform_1, window_bounds = array<i64: 1, 128, 128>}, {pipeline_mode = #tpu.pipeline_mode<synchronous>, transform_indices = @transform_2, window_bounds = array<i64: 1, 128>}, {pipeline_mode = #tpu.pipeline_mode<synchronous>, transform_indices = @transform_3, window_bounds = array<i64: 1, 128>}, {pipeline_mode = #tpu.pipeline_mode<synchronous>, transform_indices = @transform_4, window_bounds = array<i64: 4, 512, 128>}]} {
    %c0_i32 = arith.constant 0 : i32
    %0 = arith.cmpi eq, %arg0, %c0_i32 : i32
    %1 = arith.extui %0 : i1 to i32
    %c0_i32_0 = arith.constant 0 : i32
    %2 = arith.cmpi ne, %1, %c0_i32_0 : i32
    scf.if %2 {
      %cst_19 = arith.constant 0.000000e+00 : f32
      %26 = vector.broadcast %cst_19 : f32 to vector<1x128xf32>
      %c0_20 = arith.constant 0 : index
      %c0_21 = arith.constant 0 : index
      %27 = vector.load %arg6[%c0_20, %c0_21] : memref<1x128xf32, #tpu.memory_space<vmem>>, vector<1x128xf32>
      tpu.vector_store %arg6[%c0_20, %c0_21], %26 {strides = array<i32>} : memref<1x128xf32, #tpu.memory_space<vmem>>, vector<1x128xf32>,
      %cst_22 = arith.constant 0.000000e+00 : f32
      %28 = vector.broadcast %cst_22 : f32 to vector<1x128xf32>
      %c0_23 = arith.constant 0 : index
      %c0_24 = arith.constant 0 : index
      %29 = vector.load %arg7[%c0_23, %c0_24] : memref<1x128xf32, #tpu.memory_space<vmem>>, vector<1x128xf32>
      tpu.vector_store %arg7[%c0_23, %c0_24], %28 {strides = array<i32>} : memref<1x128xf32, #tpu.memory_space<vmem>>, vector<1x128xf32>,
    } else {
    }
    %c0 = arith.constant 0 : index
    %c0_1 = arith.constant 0 : index
    %c0_2 = arith.constant 0 : index
    %3 = vector.load %arg1[%c0, %c0_1, %c0_2] : memref<1x512x128xbf16, #tpu.memory_space<vmem>>, vector<1x512x128xbf16>
    %4 = vector.shape_cast %3 : vector<1x512x128xbf16> to vector<512x128xbf16>
    %c0_3 = arith.constant 0 : index
    %c0_4 = arith.constant 0 : index
    %c0_5 = arith.constant 0 : index
    %5 = vector.load %arg2[%c0_3, %c0_4, %c0_5] : memref<1x128x128xbf16, #tpu.memory_space<vmem>>, vector<1x128x128xbf16>
    %6 = vector.shape_cast %5 : vector<1x128x128xbf16> to vector<128x128xbf16>
    %cst = arith.constant dense<0.000000e+00> : vector<512x128xf32>
    %7 = tpu.matmul %4, %6, %cst {dimension_numbers = #tpu.dot_dimension_numbers<[1], [0], [0], [1], [0, 0, 1, 1], [], []>} : vector<512x128xbf16>, vector<128x128xbf16>, vector<512x128xf32> -> vector<512x128xf32>
    %8 = arith.index_cast %arg0 : i32 to index
    %c0_6 = arith.constant 0 : index
    %c0_7 = arith.constant 0 : index
    %9 = vector.load %arg5[%8, %c0_6, %c0_7] : memref<4x512x128xf32, #tpu.memory_space<vmem>>, vector<1x512x128xf32>
    %10 = vector.shape_cast %9 : vector<1x512x128xf32> to vector<512x128xf32>
    %11 = vector.shape_cast %7 : vector<512x128xf32> to vector<1x512x128xf32>
    tpu.vector_store %arg5[%8, %c0_6, %c0_7], %11 {strides = array<i32>} : memref<4x512x128xf32, #tpu.memory_space<vmem>>, vector<1x512x128xf32>,
    %c0_8 = arith.constant 0 : index
    %c0_9 = arith.constant 0 : index
    %12 = vector.load %arg6[%c0_8, %c0_9] : memref<1x128xf32, #tpu.memory_space<vmem>>, vector<1x128xf32>
    %cst_10 = arith.constant dense<0.000000e+00> : vector<128xf32>
    %13 = vector.multi_reduction <add>, %7, %cst_10 [0] : vector<512x128xf32> to vector<128xf32>
    %14 = vector.shape_cast %13 : vector<128xf32> to vector<1x128xf32>
    %15 = arith.addf %12, %14 : vector<1x128xf32>
    %c0_11 = arith.constant 0 : index
    %c0_12 = arith.constant 0 : index
    %16 = vector.load %arg6[%c0_11, %c0_12] : memref<1x128xf32, #tpu.memory_space<vmem>>, vector<1x128xf32>
    tpu.vector_store %arg6[%c0_11, %c0_12], %15 {strides = array<i32>} : memref<1x128xf32, #tpu.memory_space<vmem>>, vector<1x128xf32>,
    %c0_13 = arith.constant 0 : index
    %c0_14 = arith.constant 0 : index
    %17 = vector.load %arg7[%c0_13, %c0_14] : memref<1x128xf32, #tpu.memory_space<vmem>>, vector<1x128xf32>
    %18 = arith.mulf %7, %7 : vector<512x128xf32>
    %cst_15 = arith.constant dense<0.000000e+00> : vector<128xf32>
    %19 = vector.multi_reduction <add>, %18, %cst_15 [0] : vector<512x128xf32> to vector<128xf32>
    %20 = vector.shape_cast %19 : vector<128xf32> to vector<1x128xf32>
    %21 = arith.addf %17, %20 : vector<1x128xf32>
    %c0_16 = arith.constant 0 : index
    %c0_17 = arith.constant 0 : index
    %22 = vector.load %arg7[%c0_16, %c0_17] : memref<1x128xf32, #tpu.memory_space<vmem>>, vector<1x128xf32>
    tpu.vector_store %arg7[%c0_16, %c0_17], %21 {strides = array<i32>} : memref<1x128xf32, #tpu.memory_space<vmem>>, vector<1x128xf32>,
    %c3_i32 = arith.constant 3 : i32
    %23 = arith.cmpi eq, %arg0, %c3_i32 : i32
    %24 = arith.extui %23 : i1 to i32
    %c0_i32_18 = arith.constant 0 : i32
    %25 = arith.cmpi ne, %24, %c0_i32_18 : i32
    scf.if %25 {
      %c0_19 = arith.constant 0 : index
      %c0_20 = arith.constant 0 : index
      %26 = vector.load %arg6[%c0_19, %c0_20] : memref<1x128xf32, #tpu.memory_space<vmem>>, vector<1x128xf32>
      %cst_21 = arith.constant 4.8828125E-4 : f32
      %27 = vector.broadcast %cst_21 : f32 to vector<1x128xf32>
      %28 = arith.mulf %26, %27 : vector<1x128xf32>
      %c0_22 = arith.constant 0 : index
      %c0_23 = arith.constant 0 : index
      %29 = vector.load %arg7[%c0_22, %c0_23] : memref<1x128xf32, #tpu.memory_space<vmem>>, vector<1x128xf32>
      %cst_24 = arith.constant 4.8828125E-4 : f32
      %30 = vector.broadcast %cst_24 : f32 to vector<1x128xf32>
      %31 = arith.mulf %29, %30 : vector<1x128xf32>
      %32 = arith.mulf %28, %28 : vector<1x128xf32>
      %33 = arith.subf %31, %32 : vector<1x128xf32>
      %c0_25 = arith.constant 0 : index
      %c0_26 = arith.constant 0 : index
      %34 = vector.load %arg3[%c0_25, %c0_26] : memref<1x128xf32, #tpu.memory_space<vmem>>, vector<1x128xf32>
      %cst_27 = arith.constant 9.99999974E-6 : f32
      %35 = vector.broadcast %cst_27 : f32 to vector<1x128xf32>
      %36 = arith.addf %33, %35 : vector<1x128xf32>
      %37 = math.rsqrt %36 : vector<1x128xf32>
      %38 = arith.mulf %34, %37 : vector<1x128xf32>
      %c0_28 = arith.constant 0 : index
      %c0_29 = arith.constant 0 : index
      %39 = vector.load %arg4[%c0_28, %c0_29] : memref<1x128xf32, #tpu.memory_space<vmem>>, vector<1x128xf32>
      %40 = arith.mulf %28, %38 : vector<1x128xf32>
      %41 = arith.subf %39, %40 : vector<1x128xf32>
      %c0_30 = arith.constant 0 : index
      %c0_31 = arith.constant 0 : index
      %c0_32 = arith.constant 0 : index
      %42 = vector.load %arg5[%c0_30, %c0_31, %c0_32] : memref<4x512x128xf32, #tpu.memory_space<vmem>>, vector<4x512x128xf32>
      %43 = vector.shape_cast %38 : vector<1x128xf32> to vector<1x1x128xf32>
      %44 = vector.broadcast %43 : vector<1x1x128xf32> to vector<4x512x128xf32>
      %45 = arith.mulf %42, %44 : vector<4x512x128xf32>
      %46 = vector.shape_cast %41 : vector<1x128xf32> to vector<1x1x128xf32>
      %47 = vector.broadcast %46 : vector<1x1x128xf32> to vector<4x512x128xf32>
      %48 = arith.addf %45, %47 : vector<4x512x128xf32>
      %cst_33 = arith.constant 0.000000e+00 : f32
      %49 = vector.broadcast %cst_33 : f32 to vector<4x512x128xf32>
      %50 = arith.maximumf %48, %49 : vector<4x512x128xf32>
      %c0_34 = arith.constant 0 : index
      %c0_35 = arith.constant 0 : index
      %c0_36 = arith.constant 0 : index
      %51 = vector.load %arg5[%c0_34, %c0_35, %c0_36] : memref<4x512x128xf32, #tpu.memory_space<vmem>>, vector<4x512x128xf32>
      tpu.vector_store %arg5[%c0_34, %c0_35, %c0_36], %50 {strides = array<i32>} : memref<4x512x128xf32, #tpu.memory_space<vmem>>, vector<4x512x128xf32>,
    } else {
    }
    return
  }
  func.func @transform_0(%arg0: i32) -> (i32, i32, i32) {
    %c0_i32 = arith.constant 0 : i32
    %c0_i32_0 = arith.constant 0 : i32
    %c0_i32_1 = arith.constant 0 : i32
    return %arg0, %c0_i32, %c0_i32_0 : i32, i32, i32
  }
  func.func @transform_1(%arg0: i32) -> (i32, i32, i32) {
    %c0_i32 = arith.constant 0 : i32
    %c0_i32_0 = arith.constant 0 : i32
    %c0_i32_1 = arith.constant 0 : i32
    return %arg0, %c0_i32, %c0_i32_0 : i32, i32, i32
  }
  func.func @transform_2(%arg0: i32) -> (i32, i32) {
    %c0_i32 = arith.constant 0 : i32
    %c0_i32_0 = arith.constant 0 : i32
    %c0_i32_1 = arith.constant 0 : i32
    return %c0_i32, %c0_i32_0 : i32, i32
  }
  func.func @transform_3(%arg0: i32) -> (i32, i32) {
    %c0_i32 = arith.constant 0 : i32
    %c0_i32_0 = arith.constant 0 : i32
    %c0_i32_1 = arith.constant 0 : i32
    return %c0_i32, %c0_i32_0 : i32, i32
  }
  func.func @transform_4(%arg0: i32) -> (i32, i32, i32) {
    %c0_i32 = arith.constant 0 : i32
    %c0_i32_0 = arith.constant 0 : i32
    %c0_i32_1 = arith.constant 0 : i32
    %c0_i32_2 = arith.constant 0 : i32
    return %c0_i32, %c0_i32_0, %c0_i32_1 : i32, i32, i32
  }
}

module attributes {stable_mosaic.version = 11 : i64} {
  func.func @kernel(%arg0: i32, %arg1: memref<1x2048x64xbf16, #tpu.memory_space<vmem>>, %arg2: memref<1x64x128xbf16, #tpu.memory_space<vmem>>, %arg3: memref<1x2048x128xf32, #tpu.memory_space<vmem>>) attributes {dimension_semantics = [#tpu.dimension_semantics<parallel>], iteration_bounds = array<i64: 4>, scalar_prefetch = 0 : i64, scratch_operands = 0 : i64, tpu.core_type = #tpu.core_type<tc>, window_params = [{transform_indices = @transform_0, window_bounds = array<i64: 1, 2048, 64>}, {transform_indices = @transform_1, window_bounds = array<i64: 1, 64, 128>}, {transform_indices = @transform_2, window_bounds = array<i64: 1, 2048, 128>}]} {
    %c0 = arith.constant 0 : index
    %c0_0 = arith.constant 0 : index
    %c0_1 = arith.constant 0 : index
    %0 = vector.load %arg1[%c0, %c0_0, %c0_1] : memref<1x2048x64xbf16, #tpu.memory_space<vmem>>, vector<1x2048x64xbf16>
    %1 = vector.shape_cast %0 : vector<1x2048x64xbf16> to vector<2048x64xbf16>
    %c0_2 = arith.constant 0 : index
    %c0_3 = arith.constant 0 : index
    %c0_4 = arith.constant 0 : index
    %2 = vector.load %arg2[%c0_2, %c0_3, %c0_4] : memref<1x64x128xbf16, #tpu.memory_space<vmem>>, vector<1x64x128xbf16>
    %3 = vector.shape_cast %2 : vector<1x64x128xbf16> to vector<64x128xbf16>
    %cst = arith.constant dense<0.000000e+00> : vector<2048x128xf32>
    %4 = tpu.matmul %1, %3, %cst {dimension_numbers = #tpu.dot_dimension_numbers<[1], [0], [0], [1], [0, 0, 1, 1], [], []>} : vector<2048x64xbf16>, vector<64x128xbf16>, vector<2048x128xf32> -> vector<2048x128xf32>
    %5 = math.tanh %4 : vector<2048x128xf32>
    %c0_5 = arith.constant 0 : index
    %c0_6 = arith.constant 0 : index
    %c0_7 = arith.constant 0 : index
    %6 = vector.load %arg3[%c0_5, %c0_6, %c0_7] : memref<1x2048x128xf32, #tpu.memory_space<vmem>>, vector<1x2048x128xf32>
    %7 = vector.shape_cast %6 : vector<1x2048x128xf32> to vector<2048x128xf32>
    %8 = vector.shape_cast %5 : vector<2048x128xf32> to vector<1x2048x128xf32>
    tpu.vector_store %arg3[%c0_5, %c0_6, %c0_7], %8 {strides = array<i32>} : memref<1x2048x128xf32, #tpu.memory_space<vmem>>, vector<1x2048x128xf32>,
    return
  }
  func.func @transform_0(%arg0: i32) -> (i32, i32, i32) {
    %c0_i32 = arith.constant 0 : i32
    %c0_i32_0 = arith.constant 0 : i32
    %c0_i32_1 = arith.constant 0 : i32
    return %arg0, %c0_i32, %c0_i32_0 : i32, i32, i32
  }
  func.func @transform_1(%arg0: i32) -> (i32, i32, i32) {
    %c0_i32 = arith.constant 0 : i32
    %c0_i32_0 = arith.constant 0 : i32
    %c0_i32_1 = arith.constant 0 : i32
    return %arg0, %c0_i32, %c0_i32_0 : i32, i32, i32
  }
  func.func @transform_2(%arg0: i32) -> (i32, i32, i32) {
    %c0_i32 = arith.constant 0 : i32
    %c0_i32_0 = arith.constant 0 : i32
    %c0_i32_1 = arith.constant 0 : i32
    return %arg0, %c0_i32, %c0_i32_0 : i32, i32, i32
  }
}

</mosaic_0001>

<llo_original>
// kernel: _lambda_.5
$region0: #{_lambda_.5}
  #allocation0 [shape = 'u32[]', space=smem, size = 0x4, offset = 0x4, fixed_abs, tag = 'smem constant byte address 0x4 - core index']
  #allocation1 [shape = 'u32[144,128]{1,0:T(1,128)}', space=vmem, size = 0x12000, scoped, tag = 'internal scratch']
  #allocation2 [shape = 'f32[1,128]{1,0:T(1,128)}', space=vmem, size = 0x200, scoped, tag = 'scratch operand']
  #allocation3 [shape = 'f32[1,128]{1,0:T(1,128)}', space=vmem, size = 0x200, scoped, tag = 'scratch operand']
  %s0 = inlined_call_operand.vmem [shape: bf16[1,2,16], index: 0, kind: input, shape index: {}]
  %s1 = inlined_call_operand.hbm [shape: bf16[16,16,128], index: 1, kind: input, shape index: {}]
  %s2 = inlined_call_operand.hbm [shape: f32[1,128], index: 2, kind: input, shape index: {}]
  %s3 = inlined_call_operand.vmem [shape: f32[1,128], index: 3, kind: input, shape index: {}]
  %s4 = inlined_call_operand.vmem [shape: f32[16,2,128], index: 4, kind: output, shape index: {}]
  %s5 = sld [smem:[#allocation0]]
  $region65: #{_lambda_.5} parent=0
    _
  %s7 = ssub.s32 1, %s5
  %s8 = scalar_select 0, %s7, %s5
  $region1: #{_lambda_.5} parent=0
    #allocation4 [shape = 'u8[8192]{0}', space=vmem, size = 0x2000, scoped, tag = 'input window, operand 1']
    #allocation5 [shape = 's32[2]{0}', space=sflag, size = 0x8, scoped, tag = 'scoped memory for _lambda_.5']
    #allocation6 [shape = 'u8[512]{0}', space=vmem, size = 0x400, scoped, tag = 'input window, operand 2, single buffered']
    #allocation7 [shape = 's32[1]{0}', space=sflag, size = 0x4, scoped, tag = 'scoped memory for _lambda_.5']
    %9 = vsyncpa [#allocation5], 0
    %s10 = scalar_lea.sflag [#allocation5], 1
    %11 = vsyncpa %s10, 0
    %12 = vsyncpa [#allocation7], 0
    loop: start=0, step=1, limit=18
    $region2: #{_lambda_.5} parent=1 // loop_pre_header
      _
    $region3: #{_lambda_.5} parent=1 // loop_header
      %s14 = sphi 0, %s18
      %p15 = scmp.ge.s32.totalorder %s14, 18
      %s22 = sphi 0, %s22
      %s24 = sphi 0, %s22
      %s25 = sphi 0, %s24
      %s39 = sphi 0, %s25
      %s45 = sphi 0, %s47
      %s48 = sphi 0, %s45
      %s49 = sphi 0, %s48
      %s65 = sphi 0, %s49
      %s69 = sphi 0, %s69
      %s71 = sphi 0, %s69
      %s72 = sphi 0, %s71
      %s86 = sphi 0, %s72
      %s90 = sphi 0, %s90
      %s92 = sphi 0, %s90
      %s93 = sphi 0, %s92
      %s107 = sphi 0, %s93
      %s111 = sphi 0, %s111
      %s113 = sphi 0, %s111
      %s114 = sphi 0, %s113
      %s128 = sphi 0, %s114
    $region4: #{_lambda_.5} parent=1 // loop_header_branch
      %17 = sbr.rel (%p15) target = $region8
    $region5: #{_lambda_.5} parent=1 // loop_body
      %s19 = ssub.s32 %s14, 1
      %s20 = ssub.s32 %s14, 2
      %s21 = sadd.s32 %s14, 1
      %s23 = sadd.s32 %s22, 1
      %p26 = scmp.eq.s32.totalorder %s14, 15
      %p27 = scmp.ne.s32.totalorder %s22, %s24
      %p28 = scmp.eq.s32.totalorder %s14, 0
      %p29 = por %p27, %p28
      %p30 = scmp.ne.s32.totalorder %s22, %s24
      %p31 = scmp.eq.s32.totalorder %s19, 15
      %p32 = por %p30, %p31
      %p33 = scmp.ne.s32.totalorder %s24, %s25
      %p34 = scmp.eq.s32.totalorder %s19, 0
      %p35 = por %p33, %p34
      %p36 = scmp.ne.s32.totalorder %s24, %s25
      %p37 = scmp.eq.s32.totalorder %s20, 15
      %p38 = por %p36, %p37
      %p40 = scmp.ne.s32.totalorder %s25, %s39
      %p41 = scmp.eq.s32.totalorder %s20, 0
      %p42 = por %p40, %p41
      %s43 = ssub.s32 %s14, %s21
      %p44 = scmp.eq.s32.totalorder %s43, 0
      %s46 = sadd.s32 %s45, 1
      %s47 = scalar_select %p44, %s45, %s46
      %p50 = pneg %p44
      %p51 = scmp.eq.s32.totalorder %s14, 15
      %p52 = por %p50, %p51
      %p53 = scmp.ne.s32.totalorder %s45, %s48
      %p54 = scmp.eq.s32.totalorder %s14, 0
      %p55 = por %p53, %p54
      %p56 = scmp.ne.s32.totalorder %s45, %s48
      %p57 = scmp.eq.s32.totalorder %s19, 15
      %p58 = por %p56, %p57
      %p59 = scmp.ne.s32.totalorder %s48, %s49
      %p60 = scmp.eq.s32.totalorder %s19, 0
      %p61 = por %p59, %p60
      %p62 = scmp.ne.s32.totalorder %s48, %s49
      %p63 = scmp.eq.s32.totalorder %s20, 15
      %p64 = por %p62, %p63
      %p66 = scmp.ne.s32.totalorder %s49, %s65
      %p67 = scmp.eq.s32.totalorder %s20, 0
      %p68 = por %p66, %p67
      %s70 = sadd.s32 %s69, 1
      %p73 = scmp.eq.s32.totalorder %s14, 15
      %p74 = scmp.ne.s32.totalorder %s69, %s71
      %p75 = scmp.eq.s32.totalorder %s14, 0
      %p76 = por %p74, %p75
      %p77 = scmp.ne.s32.totalorder %s69, %s71
      %p78 = scmp.eq.s32.totalorder %s19, 15
      %p79 = por %p77, %p78
      %p80 = scmp.ne.s32.totalorder %s71, %s72
      %p81 = scmp.eq.s32.totalorder %s19, 0
      %p82 = por %p80, %p81
      %p83 = scmp.ne.s32.totalorder %s71, %s72
      %p84 = scmp.eq.s32.totalorder %s20, 15
      %p85 = por %p83, %p84
      %p87 = scmp.ne.s32.totalorder %s72, %s86
      %p88 = scmp.eq.s32.totalorder %s20, 0
      %p89 = por %p87, %p88
      %s91 = sadd.s32 %s90, 1
      %p94 = scmp.eq.s32.totalorder %s14, 15
      %p95 = scmp.ne.s32.totalorder %s90, %s92
      %p96 = scmp.eq.s32.totalorder %s14, 0
      %p97 = por %p95, %p96
      %p98 = scmp.ne.s32.totalorder %s90, %s92
      %p99 = scmp.eq.s32.totalorder %s19, 15
      %p100 = por %p98, %p99
      %p101 = scmp.ne.s32.totalorder %s92, %s93
      %p102 = scmp.eq.s32.totalorder %s19, 0
      %p103 = por %p101, %p102
      %p104 = scmp.ne.s32.totalorder %s92, %s93
      %p105 = scmp.eq.s32.totalorder %s20, 15
      %p106 = por %p104, %p105
      %p108 = scmp.ne.s32.totalorder %s93, %s107
      %p109 = scmp.eq.s32.totalorder %s20, 0
      %p110 = por %p108, %p109
      %s112 = sadd.s32 %s111, 1
      %p115 = scmp.eq.s32.totalorder %s14, 15
      %p116 = scmp.ne.s32.totalorder %s111, %s113
      %p117 = scmp.eq.s32.totalorder %s14, 0
      %p118 = por %p116, %p117
      %p119 = scmp.ne.s32.totalorder %s111, %s113
      %p120 = scmp.eq.s32.totalorder %s19, 15
      %p121 = por %p119, %p120
      %p122 = scmp.ne.s32.totalorder %s113, %s114
      %p123 = scmp.eq.s32.totalorder %s19, 0
      %p124 = por %p122, %p123
      %p125 = scmp.ne.s32.totalorder %s113, %s114
      %p126 = scmp.eq.s32.totalorder %s20, 15
      %p127 = por %p125, %p126
      %p129 = scmp.ne.s32.totalorder %s114, %s128
      %p130 = scmp.eq.s32.totalorder %s20, 0
      %p131 = por %p129, %p130
      %p132 = scmp.le.s32.totalorder 1, %s14
      %p133 = scmp.lt.s32.totalorder %s14, 17
      %p134 = pnand %p132, %p133
      %p135 = pneg %p134
      // Predicated region
      $region9: #{_lambda_.5} parent=5 // pred_check
        _
      $region10: #{_lambda_.5} parent=5 // pred_check_branch
        %137 = sbr.rel (%p134) target = $region12
      $region11: #{_lambda_.5} parent=5 // pred_region
        %s138 = ssub.s32 %s14, 1
        // Predicated region
        $region13: #{_lambda_.5} parent=11 // pred_check
          %p139 = pneg %p35
        $region14: #{_lambda_.5} parent=11 // pred_check_branch
          %141 = sbr.rel (%p139) target = $region16
        $region15: #{_lambda_.5} parent=11 // pred_region
          _
        $region16: #{_lambda_.5} parent=11 // pred_fallthru
          _
        // Predicated region
        $region17: #{_lambda_.5} parent=11 // pred_check
          %p142 = pneg %p82
        $region18: #{_lambda_.5} parent=11 // pred_check_branch
          %144 = sbr.rel (%p142) target = $region20
        $region19: #{_lambda_.5} parent=11 // pred_region
          %s146 = ssub.s32 16, 16
          %147 = vsyncadd [#allocation7], %s146
          %s149 = sshll.u32 [#allocation6], 4
          %s150 = int_to_ptr.vmem [resolvable:$true] %s149
          %152 = dma.hbm_to_vmem [thread:$0]  %s2, 16, %s150, [#allocation7]
        $region20: #{_lambda_.5} parent=11 // pred_fallthru
          _
        // Predicated region
        $region21: #{_lambda_.5} parent=11 // pred_check
          %p153 = pneg %p103
        $region22: #{_lambda_.5} parent=11 // pred_check_branch
          %155 = sbr.rel (%p153) target = $region24
        $region23: #{_lambda_.5} parent=11 // pred_region
          _
        $region24: #{_lambda_.5} parent=11 // pred_fallthru
          _
      $region12: #{_lambda_.5} parent=5 // pred_fallthru
        _
      %p156 = scmp.lt.s32.totalorder %s14, 16
      // Predicated region
      $region25: #{_lambda_.5} parent=5 // pred_check
        %p157 = pneg %p156
      $region26: #{_lambda_.5} parent=5 // pred_check_branch
        %159 = sbr.rel (%p157) target = $region28
      $region27: #{_lambda_.5} parent=5 // pred_region
        // Predicated region
        $region29: #{_lambda_.5} parent=27 // pred_check
          %p160 = pneg %p55
        $region30: #{_lambda_.5} parent=27 // pred_check_branch
          %162 = sbr.rel (%p160) target = $region32
        $region31: #{_lambda_.5} parent=27 // pred_region
          %s163 = sand.u32 %s45, 1
          %s164 = scalar_lea.sflag [#allocation5], %s163
          %s165 = sand.u32 %s45, 1
          %s166 = smul.addr %s165, 8
          %s167 = scalar_lea.vmem [#allocation4], %s166
          %s169 = ssub.s32 128, 128
          %170 = vsyncadd %s164, %s169
          %s171 = smul.addr %s14, 2
          %s172 = smul.addr %s171, 64
          %s173 = scalar_lea.hbm %s1, %s172
          %s174 = sshll.u32 %s167, 4
          %s175 = int_to_ptr.vmem [resolvable:$true] %s174
          %180 = dma.hbm_to_vmem [thread:$0]  %s173, 128, %s175, %s164, 64, 64, 4
        $region32: #{_lambda_.5} parent=27 // pred_fallthru
          _
      $region28: #{_lambda_.5} parent=5 // pred_fallthru
        _
      %p181 = scmp.le.s32.totalorder 1, %s14
      %p182 = scmp.lt.s32.totalorder %s14, 17
      %p183 = pnand %p181, %p182
      %p184 = pneg %p183
      // Predicated region
      $region33: #{_lambda_.5} parent=5 // pred_check
        _
      $region34: #{_lambda_.5} parent=5 // pred_check_branch
        %186 = sbr.rel (%p183) target = $region36
      $region35: #{_lambda_.5} parent=5 // pred_region
        %s187 = ssub.s32 %s14, 1
        %s188 = sand.u32 %s48, 1
        %s189 = scalar_lea.sflag [#allocation5], %s188
        %s190 = sand.u32 %s48, 1
        %s191 = smul.addr %s190, 8
        %s192 = scalar_lea.vmem [#allocation4], %s191
        // Predicated region
        $region37: #{_lambda_.5} parent=35 // pred_check
          %p193 = pneg %p61
        $region38: #{_lambda_.5} parent=35 // pred_check_branch
          %195 = sbr.rel (%p193) target = $region40
        $region39: #{_lambda_.5} parent=35 // pred_region
          %196 = dma.done %s189, 128
        $region40: #{_lambda_.5} parent=35 // pred_fallthru
          _
        // Predicated region
        $region41: #{_lambda_.5} parent=35 // pred_check
          %p197 = pneg %p82
        $region42: #{_lambda_.5} parent=35 // pred_check_branch
          %199 = sbr.rel (%p197) target = $region44
        $region43: #{_lambda_.5} parent=35 // pred_region
          %200 = dma.done [#allocation7], 16
        $region44: #{_lambda_.5} parent=35 // pred_fallthru
          _
        %p201 = pneg %p35
        %p202 = pneg %p32
        %s203 = sand.u32 %s48, 1
        %s204 = scalar_lea.sflag [#allocation5], %s203
        %s205 = sand.u32 %s48, 1
        %s206 = smul.addr %s205, 8
        %s207 = scalar_lea.vmem [#allocation4], %s206
        %p208 = pneg %p61
        %p209 = pneg %p58
        %p210 = pneg %p82
        %p211 = pneg %p79
        %p212 = pneg %p103
        %p213 = pneg %p100
        %p214 = pneg %p124
        %p215 = pneg %p121
        %p217 = scmp.eq.s32.totalorder %s19, 0
        // Predicated region
        $region45: #{_lambda_.5} parent=35 // pred_check
          %p218 = pneg %p217
        $region46: #{_lambda_.5} parent=35 // pred_check_branch
          %220 = sbr.rel (%p218) target = $region48
        $region47: #{_lambda_.5} parent=35 // pred_region
          %221 = vst [vmem:[#allocation2] sm:$0x1] 0.0
          %222 = vst [vmem:[#allocation3] sm:$0x1] 0.0
        $region48: #{_lambda_.5} parent=35 // pred_fallthru
          _
        %v223 = vld [vmem:[%s0] sm:$0x1]
        %v224 = vld [vmem:[%s192] sm:$0xf]
        %v225 = vld [vmem:[%s192 + $0x4] sm:$0xf]
        %v228 = vunpack.c.l.b16 %v224
        %v229 = vunpack.c.l.b16 %v225
        %v230 = vpack.c.b16 %v229, %v228
        %vm232 = vcmask 130048
        %v234 = vsel %vm232, %v223, 0
        %236 = vmatprep.subr.bf16.mxu0 0
        %237 = vmatpush1.bf16.msra.mxu0 %v230
        %238 = vmatprep.subr.bf16.mxu0 0
        %239 = vmatpush1.bf16.msra.mxu0 0
        %240 = vmatprep.subr.bf16.mxu0 0
        %241 = vmatpush1.bf16.msra.mxu0 0
        %242 = vmatprep.subr.bf16.mxu0 0
        %243 = vmatpush1.bf16.msra.mxu0 0
        %244 = vmatprep.subr.bf16.mxu0 0
        %245 = vmatpush1.bf16.msra.mxu0 0
        %246 = vmatprep.subr.bf16.mxu0 0
        %247 = vmatpush1.bf16.msra.mxu0 0
        %248 = vmatprep.subr.bf16.mxu0 0
        %249 = vmatpush1.bf16.msra.mxu0 0
        %250 = vmatprep.subr.bf16.mxu0 0
        %251 = vmatpush1.bf16.msra.mxu0 0
        %252 = vmatprep.subr.bf16.mxu0 0
        %253 = vmatpush1.bf16.msra.mxu0 0
        %254 = vmatprep.subr.bf16.mxu0 0
        %255 = vmatpush1.bf16.msra.mxu0 0
        %256 = vmatprep.subr.bf16.mxu0 0
        %257 = vmatpush1.bf16.msra.mxu0 0
        %258 = vmatprep.subr.bf16.mxu0 0
        %259 = vmatpush1.bf16.msra.mxu0 0
        %260 = vmatprep.subr.bf16.mxu0 0
        %261 = vmatpush1.bf16.msra.mxu0 0
        %262 = vmatprep.subr.bf16.mxu0 0
        %263 = vmatpush1.bf16.msra.mxu0 0
        %264 = vmatprep.subr.bf16.mxu0 0
        %265 = vmatpush1.bf16.msra.mxu0 0
        %266 = vmatprep.subr.bf16.mxu0 0
        %267 = vmatpush1.bf16.msra.mxu0 0
        %268 = vmatprep.mubr.bf16.mxu0 0
        %269 = vmatmul.mubr.bf16.gmra.mrb[0].mxu0 %v234
        %v270 = vpop.f32.mrb[0].mxu0
        %v271 = vadd.f32 0.0, %v270
        %v272 = vpop.f32.mrb[0].mxu0
        %v273 = vpop.f32.mrb[0].mxu0
        %v274 = vpop.f32.mrb[0].mxu0
        %275 = vdwg.mxu0
        %s276 = smul.u32 %s19, 2
        %s277 = scalar_lea.vmem %s4, %s276
        %278 = vst [vmem:[%s277] sm:$0x3] %v271
        %v279 = vld [vmem:[#allocation2] sm:$0x1]
        %vm280 = vcmask 1041408
        %v281 = vsel %vm280, %v271, 0.0
        %v282 = vrot.slane %v281, 4
        %v283 = vadd.f32 %v281, %v282
        %v284 = vrot.slane %v283, 2
        %v285 = vadd.f32 %v283, %v284
        %v286 = vrot.slane %v285, 1
        %v287 = vadd.f32 %v285, %v286
        %v288 = vadd.f32 %v279, %v287
        %289 = vst [vmem:[#allocation2] sm:$0x1] %v288
        %v290 = vld [vmem:[#allocation3] sm:$0x1]
        %v291 = vmul.f32 %v271, %v271
        %v292 = vsel %vm280, %v291, 0.0
        %v293 = vrot.slane %v292, 4
        %v294 = vadd.f32 %v292, %v293
        %v295 = vrot.slane %v294, 2
        %v296 = vadd.f32 %v294, %v295
        %v297 = vrot.slane %v296, 1
        %v298 = vadd.f32 %v296, %v297
        %v299 = vadd.f32 %v290, %v298
        %300 = vst [vmem:[#allocation3] sm:$0x1] %v299
        %p301 = scmp.eq.s32.totalorder %s19, 15
        // Predicated region
        $region49: #{_lambda_.5} parent=35 // pred_check
          %p302 = pneg %p301
        $region50: #{_lambda_.5} parent=35 // pred_check_branch
          %304 = sbr.rel (%p302) target = $region52
        $region51: #{_lambda_.5} parent=35 // pred_region
          %v305 = vld [vmem:[#allocation2] sm:$0x1]
          %v306 = vmul.f32 %v305, 0.03125
          %v307 = vld [vmem:[#allocation3] sm:$0x1]
          %v308 = vmul.f32 %v307, 0.03125
          %v309 = vmul.f32 %v306, %v306
          %v310 = vsub.f32 %v308, %v309
          %v311 = vld [vmem:[#allocation6] sm:$0x1]
          %v312 = vadd.f32 %v310, 1e-05
          %v313 = vrsqrt.pop %v312
          %v314 = vmul.f32 %v311, %v313
          %v315 = vld [vmem:[%s3] sm:$0x1]
          %v316 = vmul.f32 %v306, %v314
          %v317 = vsub.f32 %v315, %v316
          %v318 = vld [vmem:[%s4] sm:$0x3]
          %v319 = vld [vmem:[%s4 + $0x2] sm:$0x3]
          %v320 = vld [vmem:[%s4 + $0x4] sm:$0x3]
          %v321 = vld [vmem:[%s4 + $0x6] sm:$0x3]
          %v322 = vld [vmem:[%s4 + $0x8] sm:$0x3]
          %v323 = vld [vmem:[%s4 + $0xa] sm:$0x3]
          %v324 = vld [vmem:[%s4 + $0xc] sm:$0x3]
          %v325 = vld [vmem:[%s4 + $0xe] sm:$0x3]
          %v326 = vld [vmem:[%s4 + $0x10] sm:$0x3]
          %v327 = vld [vmem:[%s4 + $0x12] sm:$0x3]
          %v328 = vld [vmem:[%s4 + $0x14] sm:$0x3]
          %v329 = vld [vmem:[%s4 + $0x16] sm:$0x3]
          %v330 = vld [vmem:[%s4 + $0x18] sm:$0x3]
          %v331 = vld [vmem:[%s4 + $0x1a] sm:$0x3]
          %v332 = vld [vmem:[%s4 + $0x1c] sm:$0x3]
          %v333 = vld [vmem:[%s4 + $0x1e] sm:$0x3]
          %v335 = vlaneseq
          %v336 = vshrl.u32 %v335, 7
          %v337 = vsub.s32 0, %v336
          %v338 = vrot.slane %v314, %v337
          %v340 = vmul.f32 %v318, %v338
          %v341 = vmul.f32 %v319, %v338
          %v342 = vmul.f32 %v320, %v338
          %v343 = vmul.f32 %v321, %v338
          %v344 = vmul.f32 %v322, %v338
          %v345 = vmul.f32 %v323, %v338
          %v346 = vmul.f32 %v324, %v338
          %v347 = vmul.f32 %v325, %v338
          %v348 = vmul.f32 %v326, %v338
          %v349 = vmul.f32 %v327, %v338
          %v350 = vmul.f32 %v328, %v338
          %v351 = vmul.f32 %v329, %v338
          %v352 = vmul.f32 %v330, %v338
          %v353 = vmul.f32 %v331, %v338
          %v354 = vmul.f32 %v332, %v338
          %v355 = vmul.f32 %v333, %v338
          %v357 = vlaneseq
          %v358 = vshrl.u32 %v357, 7
          %v359 = vsub.s32 0, %v358
          %v360 = vrot.slane %v317, %v359
          %v362 = vadd.f32 %v340, %v360
          %v363 = vadd.f32 %v341, %v360
          %v364 = vadd.f32 %v342, %v360
          %v365 = vadd.f32 %v343, %v360
          %v366 = vadd.f32 %v344, %v360
          %v367 = vadd.f32 %v345, %v360
          %v368 = vadd.f32 %v346, %v360
          %v369 = vadd.f32 %v347, %v360
          %v370 = vadd.f32 %v348, %v360
          %v371 = vadd.f32 %v349, %v360
          %v372 = vadd.f32 %v350, %v360
          %v373 = vadd.f32 %v351, %v360
          %v374 = vadd.f32 %v352, %v360
          %v375 = vadd.f32 %v353, %v360
          %v376 = vadd.f32 %v354, %v360
          %v377 = vadd.f32 %v355, %v360
          %v378 = vmax.f32 %v362, 0.0
          %v379 = vmax.f32 %v363, 0.0
          %v380 = vmax.f32 %v364, 0.0
          %v381 = vmax.f32 %v365, 0.0
          %v382 = vmax.f32 %v366, 0.0
          %v383 = vmax.f32 %v367, 0.0
          %v384 = vmax.f32 %v368, 0.0
          %v385 = vmax.f32 %v369, 0.0
          %v386 = vmax.f32 %v370, 0.0
          %v387 = vmax.f32 %v371, 0.0
          %v388 = vmax.f32 %v372, 0.0
          %v389 = vmax.f32 %v373, 0.0
          %v390 = vmax.f32 %v374, 0.0
          %v391 = vmax.f32 %v375, 0.0
          %v392 = vmax.f32 %v376, 0.0
          %v393 = vmax.f32 %v377, 0.0
          %394 = vst [vmem:[%s4] sm:$0x3] %v378
          %395 = vst [vmem:[%s4 + $0x2] sm:$0x3] %v379
          %396 = vst [vmem:[%s4 + $0x4] sm:$0x3] %v380
          %397 = vst [vmem:[%s4 + $0x6] sm:$0x3] %v381
          %398 = vst [vmem:[%s4 + $0x8] sm:$0x3] %v382
          %399 = vst [vmem:[%s4 + $0xa] sm:$0x3] %v383
          %400 = vst [vmem:[%s4 + $0xc] sm:$0x3] %v384
          %401 = vst [vmem:[%s4 + $0xe] sm:$0x3] %v385
          %402 = vst [vmem:[%s4 + $0x10] sm:$0x3] %v386
          %403 = vst [vmem:[%s4 + $0x12] sm:$0x3] %v387
          %404 = vst [vmem:[%s4 + $0x14] sm:$0x3] %v388
          %405 = vst [vmem:[%s4 + $0x16] sm:$0x3] %v389
          %406 = vst [vmem:[%s4 + $0x18] sm:$0x3] %v390
          %407 = vst [vmem:[%s4 + $0x1a] sm:$0x3] %v391
          %408 = vst [vmem:[%s4 + $0x1c] sm:$0x3] %v392
          %409 = vst [vmem:[%s4 + $0x1e] sm:$0x3] %v393
        $region52: #{_lambda_.5} parent=35 // pred_fallthru
          _
        // Predicated region
        $region53: #{_lambda_.5} parent=35 // pred_check
          %p410 = pneg %p121
        $region54: #{_lambda_.5} parent=35 // pred_check_branch
          %412 = sbr.rel (%p410) target = $region56
        $region55: #{_lambda_.5} parent=35 // pred_region
          _
        $region56: #{_lambda_.5} parent=35 // pred_fallthru
          _
        // Predicated region
        $region57: #{_lambda_.5} parent=35 // pred_check
          %p413 = pneg %p121
        $region58: #{_lambda_.5} parent=35 // pred_check_branch
          %415 = sbr.rel (%p413) target = $region60
        $region59: #{_lambda_.5} parent=35 // pred_region
          _
        $region60: #{_lambda_.5} parent=35 // pred_fallthru
          _
      $region36: #{_lambda_.5} parent=5 // pred_fallthru
        _
      %p416 = scmp.le.s32.totalorder 2, %s14
      // Predicated region
      $region61: #{_lambda_.5} parent=5 // pred_check
        %p417 = pneg %p416
      $region62: #{_lambda_.5} parent=5 // pred_check_branch
        %419 = sbr.rel (%p417) target = $region64
      $region63: #{_lambda_.5} parent=5 // pred_region
        %s420 = ssub.s32 %s14, 2
      $region64: #{_lambda_.5} parent=5 // pred_fallthru
        _
    $region6: #{_lambda_.5} parent=1 // loop_footer
      %s18 = sadd.s32 1, %s14
    $region7: #{_lambda_.5} parent=1 // loop_footer_branch
      %13 = sbr.rel target = $region3
    $region8: #{_lambda_.5} parent=1 // loop_exit
      _
    %421 = vsyncpa [#allocation5], 1
    %s422 = scalar_lea.sflag [#allocation5], 1
    %423 = vsyncpa %s422, 1
    %424 = vsyncpa [#allocation7], 1

// kernel: _lambda_.6
$region0: #{_lambda_.6}
  #allocation0 [shape = 'u32[]', space=smem, size = 0x4, offset = 0x4, fixed_abs, tag = 'smem constant byte address 0x4 - core index']
  #allocation1 [shape = 'u32[144,128]{1,0:T(1,128)}', space=vmem, size = 0x12000, scoped, tag = 'internal scratch']
  #allocation2 [shape = 'f32[1,128]{1,0:T(1,128)}', space=vmem, size = 0x200, scoped, tag = 'scratch operand']
  #allocation3 [shape = 'f32[1,128]{1,0:T(1,128)}', space=vmem, size = 0x200, scoped, tag = 'scratch operand']
  %s0 = inlined_call_operand.vmem [shape: bf16[4,32,512], index: 0, kind: input, shape index: {}]
  %s1 = inlined_call_operand.hbm [shape: bf16[4,512,128], index: 1, kind: input, shape index: {}]
  %s2 = inlined_call_operand.hbm [shape: f32[1,128], index: 2, kind: input, shape index: {}]
  %s3 = inlined_call_operand.vmem [shape: f32[1,128], index: 3, kind: input, shape index: {}]
  %s4 = inlined_call_operand.vmem [shape: f32[4,32,128], index: 4, kind: output, shape index: {}]
  %s5 = sld [smem:[#allocation0]]
  $region65: #{_lambda_.6} parent=0
    _
  %s7 = ssub.s32 1, %s5
  %s8 = scalar_select 0, %s7, %s5
  $region1: #{_lambda_.6} parent=0
    #allocation4 [shape = 'u8[262144]{0}', space=vmem, size = 0x40000, scoped, tag = 'input window, operand 1']
    #allocation5 [shape = 's32[2]{0}', space=sflag, size = 0x8, scoped, tag = 'scoped memory for _lambda_.6']
    #allocation6 [shape = 'u8[512]{0}', space=vmem, size = 0x400, scoped, tag = 'input window, operand 2, single buffered']
    #allocation7 [shape = 's32[1]{0}', space=sflag, size = 0x4, scoped, tag = 'scoped memory for _lambda_.6']
    %9 = vsyncpa [#allocation5], 0
    %s10 = scalar_lea.sflag [#allocation5], 1
    %11 = vsyncpa %s10, 0
    %12 = vsyncpa [#allocation7], 0
    loop: start=0, step=1, limit=6
    $region2: #{_lambda_.6} parent=1 // loop_pre_header
      _
    $region3: #{_lambda_.6} parent=1 // loop_header
      %s14 = sphi 0, %s18
      %p15 = scmp.ge.s32.totalorder %s14, 6
      %s24 = sphi 0, %s26
      %s27 = sphi 0, %s24
      %s28 = sphi 0, %s27
      %s44 = sphi 0, %s28
      %s50 = sphi 0, %s52
      %s53 = sphi 0, %s50
      %s54 = sphi 0, %s53
      %s70 = sphi 0, %s54
      %s74 = sphi 0, %s74
      %s76 = sphi 0, %s74
      %s77 = sphi 0, %s76
      %s91 = sphi 0, %s77
      %s95 = sphi 0, %s95
      %s97 = sphi 0, %s95
      %s98 = sphi 0, %s97
      %s112 = sphi 0, %s98
      %s116 = sphi 0, %s116
      %s118 = sphi 0, %s116
      %s119 = sphi 0, %s118
      %s133 = sphi 0, %s119
    $region4: #{_lambda_.6} parent=1 // loop_header_branch
      %17 = sbr.rel (%p15) target = $region8
    $region5: #{_lambda_.6} parent=1 // loop_body
      %s19 = ssub.s32 %s14, 1
      %s20 = ssub.s32 %s14, 2
      %s21 = sadd.s32 %s14, 1
      %s22 = ssub.s32 %s14, %s21
      %p23 = scmp.eq.s32.totalorder %s22, 0
      %s25 = sadd.s32 %s24, 1
      %s26 = scalar_select %p23, %s24, %s25
      %p29 = pneg %p23
      %p30 = scmp.eq.s32.totalorder %s14, 3
      %p31 = por %p29, %p30
      %p32 = scmp.ne.s32.totalorder %s24, %s27
      %p33 = scmp.eq.s32.totalorder %s14, 0
      %p34 = por %p32, %p33
      %p35 = scmp.ne.s32.totalorder %s24, %s27
      %p36 = scmp.eq.s32.totalorder %s19, 3
      %p37 = por %p35, %p36
      %p38 = scmp.ne.s32.totalorder %s27, %s28
      %p39 = scmp.eq.s32.totalorder %s19, 0
      %p40 = por %p38, %p39
      %p41 = scmp.ne.s32.totalorder %s27, %s28
      %p42 = scmp.eq.s32.totalorder %s20, 3
      %p43 = por %p41, %p42
      %p45 = scmp.ne.s32.totalorder %s28, %s44
      %p46 = scmp.eq.s32.totalorder %s20, 0
      %p47 = por %p45, %p46
      %s48 = ssub.s32 %s14, %s21
      %p49 = scmp.eq.s32.totalorder %s48, 0
      %s51 = sadd.s32 %s50, 1
      %s52 = scalar_select %p49, %s50, %s51
      %p55 = pneg %p49
      %p56 = scmp.eq.s32.totalorder %s14, 3
      %p57 = por %p55, %p56
      %p58 = scmp.ne.s32.totalorder %s50, %s53
      %p59 = scmp.eq.s32.totalorder %s14, 0
      %p60 = por %p58, %p59
      %p61 = scmp.ne.s32.totalorder %s50, %s53
      %p62 = scmp.eq.s32.totalorder %s19, 3
      %p63 = por %p61, %p62
      %p64 = scmp.ne.s32.totalorder %s53, %s54
      %p65 = scmp.eq.s32.totalorder %s19, 0
      %p66 = por %p64, %p65
      %p67 = scmp.ne.s32.totalorder %s53, %s54
      %p68 = scmp.eq.s32.totalorder %s20, 3
      %p69 = por %p67, %p68
      %p71 = scmp.ne.s32.totalorder %s54, %s70
      %p72 = scmp.eq.s32.totalorder %s20, 0
      %p73 = por %p71, %p72
      %s75 = sadd.s32 %s74, 1
      %p78 = scmp.eq.s32.totalorder %s14, 3
      %p79 = scmp.ne.s32.totalorder %s74, %s76
      %p80 = scmp.eq.s32.totalorder %s14, 0
      %p81 = por %p79, %p80
      %p82 = scmp.ne.s32.totalorder %s74, %s76
      %p83 = scmp.eq.s32.totalorder %s19, 3
      %p84 = por %p82, %p83
      %p85 = scmp.ne.s32.totalorder %s76, %s77
      %p86 = scmp.eq.s32.totalorder %s19, 0
      %p87 = por %p85, %p86
      %p88 = scmp.ne.s32.totalorder %s76, %s77
      %p89 = scmp.eq.s32.totalorder %s20, 3
      %p90 = por %p88, %p89
      %p92 = scmp.ne.s32.totalorder %s77, %s91
      %p93 = scmp.eq.s32.totalorder %s20, 0
      %p94 = por %p92, %p93
      %s96 = sadd.s32 %s95, 1
      %p99 = scmp.eq.s32.totalorder %s14, 3
      %p100 = scmp.ne.s32.totalorder %s95, %s97
      %p101 = scmp.eq.s32.totalorder %s14, 0
      %p102 = por %p100, %p101
      %p103 = scmp.ne.s32.totalorder %s95, %s97
      %p104 = scmp.eq.s32.totalorder %s19, 3
      %p105 = por %p103, %p104
      %p106 = scmp.ne.s32.totalorder %s97, %s98
      %p107 = scmp.eq.s32.totalorder %s19, 0
      %p108 = por %p106, %p107
      %p109 = scmp.ne.s32.totalorder %s97, %s98
      %p110 = scmp.eq.s32.totalorder %s20, 3
      %p111 = por %p109, %p110
      %p113 = scmp.ne.s32.totalorder %s98, %s112
      %p114 = scmp.eq.s32.totalorder %s20, 0
      %p115 = por %p113, %p114
      %s117 = sadd.s32 %s116, 1
      %p120 = scmp.eq.s32.totalorder %s14, 3
      %p121 = scmp.ne.s32.totalorder %s116, %s118
      %p122 = scmp.eq.s32.totalorder %s14, 0
      %p123 = por %p121, %p122
      %p124 = scmp.ne.s32.totalorder %s116, %s118
      %p125 = scmp.eq.s32.totalorder %s19, 3
      %p126 = por %p124, %p125
      %p127 = scmp.ne.s32.totalorder %s118, %s119
      %p128 = scmp.eq.s32.totalorder %s19, 0
      %p129 = por %p127, %p128
      %p130 = scmp.ne.s32.totalorder %s118, %s119
      %p131 = scmp.eq.s32.totalorder %s20, 3
      %p132 = por %p130, %p131
      %p134 = scmp.ne.s32.totalorder %s119, %s133
      %p135 = scmp.eq.s32.totalorder %s20, 0
      %p136 = por %p134, %p135
      %p137 = scmp.le.s32.totalorder 1, %s14
      %p138 = scmp.lt.s32.totalorder %s14, 5
      %p139 = pnand %p137, %p138
      %p140 = pneg %p139
      // Predicated region
      $region9: #{_lambda_.6} parent=5 // pred_check
        _
      $region10: #{_lambda_.6} parent=5 // pred_check_branch
        %142 = sbr.rel (%p139) target = $region12
      $region11: #{_lambda_.6} parent=5 // pred_region
        %s143 = ssub.s32 %s14, 1
        // Predicated region
        $region13: #{_lambda_.6} parent=11 // pred_check
          %p144 = pneg %p87
        $region14: #{_lambda_.6} parent=11 // pred_check_branch
          %146 = sbr.rel (%p144) target = $region16
        $region15: #{_lambda_.6} parent=11 // pred_region
          %s148 = ssub.s32 16, 16
          %149 = vsyncadd [#allocation7], %s148
          %s151 = sshll.u32 [#allocation6], 4
          %s152 = int_to_ptr.vmem [resolvable:$true] %s151
          %154 = dma.hbm_to_vmem [thread:$0]  %s2, 16, %s152, [#allocation7]
        $region16: #{_lambda_.6} parent=11 // pred_fallthru
          _
        // Predicated region
        $region17: #{_lambda_.6} parent=11 // pred_check
          %p155 = pneg %p108
        $region18: #{_lambda_.6} parent=11 // pred_check_branch
          %157 = sbr.rel (%p155) target = $region20
        $region19: #{_lambda_.6} parent=11 // pred_region
          _
        $region20: #{_lambda_.6} parent=11 // pred_fallthru
          _
      $region12: #{_lambda_.6} parent=5 // pred_fallthru
        _
      %p158 = scmp.lt.s32.totalorder %s14, 4
      // Predicated region
      $region21: #{_lambda_.6} parent=5 // pred_check
        %p159 = pneg %p158
      $region22: #{_lambda_.6} parent=5 // pred_check_branch
        %161 = sbr.rel (%p159) target = $region24
      $region23: #{_lambda_.6} parent=5 // pred_region
        // Predicated region
        $region25: #{_lambda_.6} parent=23 // pred_check
          %p162 = pneg %p34
        $region26: #{_lambda_.6} parent=23 // pred_check_branch
          %164 = sbr.rel (%p162) target = $region28
        $region27: #{_lambda_.6} parent=23 // pred_region
          %p165 = scmp.lt.s32.totalorder %s14, 3
          %s166 = scalar_select %p165, %s14, 3
          %s167 = smul.addr %s166, 16
          %s168 = smul.addr %s167, 4
          %s169 = scalar_lea.vmem %s0, %s168
        $region28: #{_lambda_.6} parent=23 // pred_fallthru
          _
        // Predicated region
        $region29: #{_lambda_.6} parent=23 // pred_check
          %p170 = pneg %p60
        $region30: #{_lambda_.6} parent=23 // pred_check_branch
          %172 = sbr.rel (%p170) target = $region32
        $region31: #{_lambda_.6} parent=23 // pred_region
          %s173 = sand.u32 %s50, 1
          %s174 = scalar_lea.sflag [#allocation5], %s173
          %s175 = sand.u32 %s50, 1
          %s176 = smul.addr %s175, 256
          %s177 = scalar_lea.vmem [#allocation4], %s176
          %s179 = ssub.s32 4096, 4096
          %180 = vsyncadd %s174, %s179
          %s181 = smul.addr %s14, 64
          %s182 = smul.addr %s181, 64
          %s183 = scalar_lea.hbm %s1, %s182
          %s184 = sshll.u32 %s177, 4
          %s185 = int_to_ptr.vmem [resolvable:$true] %s184
          %190 = dma.hbm_to_vmem [thread:$0]  %s183, 4096, %s185, %s174, 64, 64, 4
        $region32: #{_lambda_.6} parent=23 // pred_fallthru
          _
      $region24: #{_lambda_.6} parent=5 // pred_fallthru
        _
      %p191 = scmp.le.s32.totalorder 1, %s14
      %p192 = scmp.lt.s32.totalorder %s14, 5
      %p193 = pnand %p191, %p192
      %p194 = pneg %p193
      // Predicated region
      $region33: #{_lambda_.6} parent=5 // pred_check
        _
      $region34: #{_lambda_.6} parent=5 // pred_check_branch
        %196 = sbr.rel (%p193) target = $region36
      $region35: #{_lambda_.6} parent=5 // pred_region
        %s197 = ssub.s32 %s14, 1
        %s198 = sand.u32 %s53, 1
        %s199 = scalar_lea.sflag [#allocation5], %s198
        %s200 = sand.u32 %s53, 1
        %s201 = smul.addr %s200, 256
        %s202 = scalar_lea.vmem [#allocation4], %s201
        // Predicated region
        $region37: #{_lambda_.6} parent=35 // pred_check
          %p203 = pneg %p66
        $region38: #{_lambda_.6} parent=35 // pred_check_branch
          %205 = sbr.rel (%p203) target = $region40
        $region39: #{_lambda_.6} parent=35 // pred_region
          %206 = dma.done %s199, 4096
        $region40: #{_lambda_.6} parent=35 // pred_fallthru
          _
        // Predicated region
        $region41: #{_lambda_.6} parent=35 // pred_check
          %p207 = pneg %p87
        $region42: #{_lambda_.6} parent=35 // pred_check_branch
          %209 = sbr.rel (%p207) target = $region44
        $region43: #{_lambda_.6} parent=35 // pred_region
          %210 = dma.done [#allocation7], 16
        $region44: #{_lambda_.6} parent=35 // pred_fallthru
          _
        %p211 = scmp.lt.s32.totalorder %s19, 3
        %s212 = scalar_select %p211, %s19, 3
        %s213 = smul.addr %s212, 16
        %s214 = smul.addr %s213, 4
        %s215 = scalar_lea.vmem %s0, %s214
        %p216 = pneg %p40
        %p217 = pneg %p37
        %s218 = sand.u32 %s53, 1
        %s219 = scalar_lea.sflag [#allocation5], %s218
        %s220 = sand.u32 %s53, 1
        %s221 = smul.addr %s220, 256
        %s222 = scalar_lea.vmem [#allocation4], %s221
        %p223 = pneg %p66
        %p224 = pneg %p63
        %p225 = pneg %p87
        %p226 = pneg %p84
        %p227 = pneg %p108
        %p228 = pneg %p105
        %p229 = pneg %p129
        %p230 = pneg %p126
        %p231 = scmp.lt.s32.totalorder %s19, 3
        %s232 = scalar_select %p231, %s19, 3
        %s233 = smul.addr %s232, 16
        %s234 = smul.addr %s233, 4
        %s235 = scalar_lea.vmem %s0, %s234
        %p237 = scmp.eq.s32.totalorder %s19, 0
        // Predicated region
        $region45: #{_lambda_.6} parent=35 // pred_check
          %p238 = pneg %p237
        $region46: #{_lambda_.6} parent=35 // pred_check_branch
          %240 = sbr.rel (%p238) target = $region48
        $region47: #{_lambda_.6} parent=35 // pred_region
          %241 = vst [vmem:[#allocation2] sm:$0x1] 0.0
          %242 = vst [vmem:[#allocation3] sm:$0x1] 0.0
        $region48: #{_lambda_.6} parent=35 // pred_fallthru
          _
        %v243 = vld [vmem:[%s235] sm:$0xff]
        %v244 = vld [vmem:[%s235 + $0x8] sm:$0xff]
        %v245 = vld [vmem:[%s235 + $0x10] sm:$0xff]
        %v246 = vld [vmem:[%s235 + $0x18] sm:$0xff]
        %v247 = vld [vmem:[%s235 + $0x20] sm:$0xff]
        %v248 = vld [vmem:[%s235 + $0x28] sm:$0xff]
        %v249 = vld [vmem:[%s235 + $0x30] sm:$0xff]
        %v250 = vld [vmem:[%s235 + $0x38] sm:$0xff]
        %v251 = vld [vmem:[%s202] sm:$0xf]
        %v252 = vld [vmem:[%s202 + $0x4] sm:$0xf]
        %v253 = vld [vmem:[%s202 + $0x8] sm:$0xf]
        %v254 = vld [vmem:[%s202 + $0xc] sm:$0xf]
        %v255 = vld [vmem:[%s202 + $0x10] sm:$0xf]
        %v256 = vld [vmem:[%s202 + $0x14] sm:$0xf]
        %v257 = vld [vmem:[%s202 + $0x18] sm:$0xf]
        %v258 = vld [vmem:[%s202 + $0x1c] sm:$0xf]
        %v259 = vld [vmem:[%s202 + $0x20] sm:$0xf]
        %v260 = vld [vmem:[%s202 + $0x24] sm:$0xf]
        %v261 = vld [vmem:[%s202 + $0x28] sm:$0xf]
        %v262 = vld [vmem:[%s202 + $0x2c] sm:$0xf]
        %v263 = vld [vmem:[%s202 + $0x30] sm:$0xf]
        %v264 = vld [vmem:[%s202 + $0x34] sm:$0xf]
        %v265 = vld [vmem:[%s202 + $0x38] sm:$0xf]
        %v266 = vld [vmem:[%s202 + $0x3c] sm:$0xf]
        %v267 = vld [vmem:[%s202 + $0x40] sm:$0xf]
        %v268 = vld [vmem:[%s202 + $0x44] sm:$0xf]
        %v269 = vld [vmem:[%s202 + $0x48] sm:$0xf]
        %v270 = vld [vmem:[%s202 + $0x4c] sm:$0xf]
        %v271 = vld [vmem:[%s202 + $0x50] sm:$0xf]
        %v272 = vld [vmem:[%s202 + $0x54] sm:$0xf]
        %v273 = vld [vmem:[%s202 + $0x58] sm:$0xf]
        %v274 = vld [vmem:[%s202 + $0x5c] sm:$0xf]
        %v275 = vld [vmem:[%s202 + $0x60] sm:$0xf]
        %v276 = vld [vmem:[%s202 + $0x64] sm:$0xf]
        %v277 = vld [vmem:[%s202 + $0x68] sm:$0xf]
        %v278 = vld [vmem:[%s202 + $0x6c] sm:$0xf]
        %v279 = vld [vmem:[%s202 + $0x70] sm:$0xf]
        %v280 = vld [vmem:[%s202 + $0x74] sm:$0xf]
        %v281 = vld [vmem:[%s202 + $0x78] sm:$0xf]
        %v282 = vld [vmem:[%s202 + $0x7c] sm:$0xf]
        %v283 = vld [vmem:[%s202 + $0x80] sm:$0xf]
        %v284 = vld [vmem:[%s202 + $0x84] sm:$0xf]
        %v285 = vld [vmem:[%s202 + $0x88] sm:$0xf]
        %v286 = vld [vmem:[%s202 + $0x8c] sm:$0xf]
        %v287 = vld [vmem:[%s202 + $0x90] sm:$0xf]
        %v288 = vld [vmem:[%s202 + $0x94] sm:$0xf]
        %v289 = vld [vmem:[%s202 + $0x98] sm:$0xf]
        %v290 = vld [vmem:[%s202 + $0x9c] sm:$0xf]
        %v291 = vld [vmem:[%s202 + $0xa0] sm:$0xf]
        %v292 = vld [vmem:[%s202 + $0xa4] sm:$0xf]
        %v293 = vld [vmem:[%s202 + $0xa8] sm:$0xf]
        %v294 = vld [vmem:[%s202 + $0xac] sm:$0xf]
        %v295 = vld [vmem:[%s202 + $0xb0] sm:$0xf]
        %v296 = vld [vmem:[%s202 + $0xb4] sm:$0xf]
        %v297 = vld [vmem:[%s202 + $0xb8] sm:$0xf]
        %v298 = vld [vmem:[%s202 + $0xbc] sm:$0xf]
        %v299 = vld [vmem:[%s202 + $0xc0] sm:$0xf]
        %v300 = vld [vmem:[%s202 + $0xc4] sm:$0xf]
        %v301 = vld [vmem:[%s202 + $0xc8] sm:$0xf]
        %v302 = vld [vmem:[%s202 + $0xcc] sm:$0xf]
        %v303 = vld [vmem:[%s202 + $0xd0] sm:$0xf]
        %v304 = vld [vmem:[%s202 + $0xd4] sm:$0xf]
        %v305 = vld [vmem:[%s202 + $0xd8] sm:$0xf]
        %v306 = vld [vmem:[%s202 + $0xdc] sm:$0xf]
        %v307 = vld [vmem:[%s202 + $0xe0] sm:$0xf]
        %v308 = vld [vmem:[%s202 + $0xe4] sm:$0xf]
        %v309 = vld [vmem:[%s202 + $0xe8] sm:$0xf]
        %v310 = vld [vmem:[%s202 + $0xec] sm:$0xf]
        %v311 = vld [vmem:[%s202 + $0xf0] sm:$0xf]
        %v312 = vld [vmem:[%s202 + $0xf4] sm:$0xf]
        %v313 = vld [vmem:[%s202 + $0xf8] sm:$0xf]
        %v314 = vld [vmem:[%s202 + $0xfc] sm:$0xf]
        %v323 = vunpack.c.l.b16 %v243
        %v324 = vunpack.c.h.b16 %v243
        %v325 = vunpack.c.l.b16 %v244
        %v326 = vunpack.c.h.b16 %v244
        %v327 = vunpack.c.l.b16 %v245
        %v328 = vunpack.c.h.b16 %v245
        %v329 = vunpack.c.l.b16 %v246
        %v330 = vunpack.c.h.b16 %v246
        %v331 = vunpack.c.l.b16 %v247
        %v332 = vunpack.c.h.b16 %v247
        %v333 = vunpack.c.l.b16 %v248
        %v334 = vunpack.c.h.b16 %v248
        %v335 = vunpack.c.l.b16 %v249
        %v336 = vunpack.c.h.b16 %v249
        %v337 = vunpack.c.l.b16 %v250
        %v338 = vunpack.c.h.b16 %v250
        %v339 = vpack.c.b16 %v327, %v323
        %v340 = vpack.c.b16 %v328, %v324
        %v341 = vpack.c.b16 %v329, %v325
        %v342 = vpack.c.b16 %v330, %v326
        %v343 = vpack.c.b16 %v335, %v331
        %v344 = vpack.c.b16 %v336, %v332
        %v345 = vpack.c.b16 %v337, %v333
        %v346 = vpack.c.b16 %v338, %v334
        %v419 = vunpack.c.l.b16 %v251
        %v420 = vunpack.c.l.b16 %v252
        %v421 = vunpack.c.l.b16 %v253
        %v422 = vunpack.c.l.b16 %v254
        %v423 = vunpack.c.l.b16 %v255
        %v424 = vunpack.c.l.b16 %v256
        %v425 = vunpack.c.l.b16 %v257
        %v426 = vunpack.c.l.b16 %v258
        %v427 = vunpack.c.l.b16 %v259
        %v428 = vunpack.c.l.b16 %v260
        %v429 = vunpack.c.l.b16 %v261
        %v430 = vunpack.c.l.b16 %v262
        %v431 = vunpack.c.l.b16 %v263
        %v432 = vunpack.c.l.b16 %v264
        %v433 = vunpack.c.l.b16 %v265
        %v434 = vunpack.c.l.b16 %v266
        %v435 = vunpack.c.l.b16 %v267
        %v436 = vunpack.c.l.b16 %v268
        %v437 = vunpack.c.l.b16 %v269
        %v438 = vunpack.c.l.b16 %v270
        %v439 = vunpack.c.l.b16 %v271
        %v440 = vunpack.c.l.b16 %v272
        %v441 = vunpack.c.l.b16 %v273
        %v442 = vunpack.c.l.b16 %v274
        %v443 = vunpack.c.l.b16 %v275
        %v444 = vunpack.c.l.b16 %v276
        %v445 = vunpack.c.l.b16 %v277
        %v446 = vunpack.c.l.b16 %v278
        %v447 = vunpack.c.l.b16 %v279
        %v448 = vunpack.c.l.b16 %v280
        %v449 = vunpack.c.l.b16 %v281
        %v450 = vunpack.c.l.b16 %v282
        %v451 = vunpack.c.l.b16 %v283
        %v452 = vunpack.c.l.b16 %v284
        %v453 = vunpack.c.l.b16 %v285
        %v454 = vunpack.c.l.b16 %v286
        %v455 = vunpack.c.l.b16 %v287
        %v456 = vunpack.c.l.b16 %v288
        %v457 = vunpack.c.l.b16 %v289
        %v458 = vunpack.c.l.b16 %v290
        %v459 = vunpack.c.l.b16 %v291
        %v460 = vunpack.c.l.b16 %v292
        %v461 = vunpack.c.l.b16 %v293
        %v462 = vunpack.c.l.b16 %v294
        %v463 = vunpack.c.l.b16 %v295
        %v464 = vunpack.c.l.b16 %v296
        %v465 = vunpack.c.l.b16 %v297
        %v466 = vunpack.c.l.b16 %v298
        %v467 = vunpack.c.l.b16 %v299
        %v468 = vunpack.c.l.b16 %v300
        %v469 = vunpack.c.l.b16 %v301
        %v470 = vunpack.c.l.b16 %v302
        %v471 = vunpack.c.l.b16 %v303
        %v472 = vunpack.c.l.b16 %v304
        %v473 = vunpack.c.l.b16 %v305
        %v474 = vunpack.c.l.b16 %v306
        %v475 = vunpack.c.l.b16 %v307
        %v476 = vunpack.c.l.b16 %v308
        %v477 = vunpack.c.l.b16 %v309
        %v478 = vunpack.c.l.b16 %v310
        %v479 = vunpack.c.l.b16 %v311
        %v480 = vunpack.c.l.b16 %v312
        %v481 = vunpack.c.l.b16 %v313
        %v482 = vunpack.c.l.b16 %v314
        %v483 = vpack.c.b16 %v420, %v419
        %v484 = vpack.c.b16 %v422, %v421
        %v485 = vpack.c.b16 %v424, %v423
        %v486 = vpack.c.b16 %v426, %v425
        %v487 = vpack.c.b16 %v428, %v427
        %v488 = vpack.c.b16 %v430, %v429
        %v489 = vpack.c.b16 %v432, %v431
        %v490 = vpack.c.b16 %v434, %v433
        %v491 = vpack.c.b16 %v436, %v435
        %v492 = vpack.c.b16 %v438, %v437
        %v493 = vpack.c.b16 %v440, %v439
        %v494 = vpack.c.b16 %v442, %v441
        %v495 = vpack.c.b16 %v444, %v443
        %v496 = vpack.c.b16 %v446, %v445
        %v497 = vpack.c.b16 %v448, %v447
        %v498 = vpack.c.b16 %v450, %v449
        %v499 = vpack.c.b16 %v452, %v451
        %v500 = vpack.c.b16 %v454, %v453
        %v501 = vpack.c.b16 %v456, %v455
        %v502 = vpack.c.b16 %v458, %v457
        %v503 = vpack.c.b16 %v460, %v459
        %v504 = vpack.c.b16 %v462, %v461
        %v505 = vpack.c.b16 %v464, %v463
        %v506 = vpack.c.b16 %v466, %v465
        %v507 = vpack.c.b16 %v468, %v467
        %v508 = vpack.c.b16 %v470, %v469
        %v509 = vpack.c.b16 %v472, %v471
        %v510 = vpack.c.b16 %v474, %v473
        %v511 = vpack.c.b16 %v476, %v475
        %v512 = vpack.c.b16 %v478, %v477
        %v513 = vpack.c.b16 %v480, %v479
        %v514 = vpack.c.b16 %v482, %v481
        %547 = vmatprep.subr.bf16.mxu0 0
        %548 = vmatpush1.bf16.msra.mxu0 %v483
        %549 = vmatprep.subr.bf16.mxu0 0
        %550 = vmatpush1.bf16.msra.mxu0 %v484
        %551 = vmatprep.subr.bf16.mxu0 0
        %552 = vmatpush1.bf16.msra.mxu0 %v485
        %553 = vmatprep.subr.bf16.mxu0 0
        %554 = vmatpush1.bf16.msra.mxu0 %v486
        %555 = vmatprep.subr.bf16.mxu0 0
        %556 = vmatpush1.bf16.msra.mxu0 %v487
        %557 = vmatprep.subr.bf16.mxu0 0
        %558 = vmatpush1.bf16.msra.mxu0 %v488
        %559 = vmatprep.subr.bf16.mxu0 0
        %560 = vmatpush1.bf16.msra.mxu0 %v489
        %561 = vmatprep.subr.bf16.mxu0 0
        %562 = vmatpush1.bf16.msra.mxu0 %v490
        %563 = vmatprep.subr.bf16.mxu0 0
        %564 = vmatpush1.bf16.msra.mxu0 %v491
        %565 = vmatprep.subr.bf16.mxu0 0
        %566 = vmatpush1.bf16.msra.mxu0 %v492
        %567 = vmatprep.subr.bf16.mxu0 0
        %568 = vmatpush1.bf16.msra.mxu0 %v493
        %569 = vmatprep.subr.bf16.mxu0 0
        %570 = vmatpush1.bf16.msra.mxu0 %v494
        %571 = vmatprep.subr.bf16.mxu0 0
        %572 = vmatpush1.bf16.msra.mxu0 %v495
        %573 = vmatprep.subr.bf16.mxu0 0
        %574 = vmatpush1.bf16.msra.mxu0 %v496
        %575 = vmatprep.subr.bf16.mxu0 0
        %576 = vmatpush1.bf16.msra.mxu0 %v497
        %577 = vmatprep.subr.bf16.mxu0 0
        %578 = vmatpush1.bf16.msra.mxu0 %v498
        %579 = vmatprep.mubr.bf16.mxu0 %v340
        %580 = vmatmul.mubr.bf16.gmra.mrb[0].mxu0 %v339
        %v581 = vpop.f32.mrb[0].mxu0
        %v582 = vadd.f32 0.0, %v581
        %v583 = vpop.f32.mrb[0].mxu0
        %v584 = vpop.f32.mrb[0].mxu0
        %v585 = vadd.f32 0.0, %v584
        %v586 = vpop.f32.mrb[0].mxu0
        %587 = vmatprep.mubr.bf16.mxu0 %v344
        %588 = vmatmul.mubr.bf16.gmra.mrb[0].mxu0 %v343
        %v589 = vpop.f32.mrb[0].mxu0
        %v590 = vadd.f32 0.0, %v589
        %v591 = vpop.f32.mrb[0].mxu0
        %v592 = vpop.f32.mrb[0].mxu0
        %v593 = vadd.f32 0.0, %v592
        %v594 = vpop.f32.mrb[0].mxu0
        %595 = vdwg.mxu0
        %596 = vmatprep.subr.bf16.mxu0 0
        %597 = vmatpush1.bf16.msra.mxu0 %v499
        %598 = vmatprep.subr.bf16.mxu0 0
        %599 = vmatpush1.bf16.msra.mxu0 %v500
        %600 = vmatprep.subr.bf16.mxu0 0
        %601 = vmatpush1.bf16.msra.mxu0 %v501
        %602 = vmatprep.subr.bf16.mxu0 0
        %603 = vmatpush1.bf16.msra.mxu0 %v502
        %604 = vmatprep.subr.bf16.mxu0 0
        %605 = vmatpush1.bf16.msra.mxu0 %v503
        %606 = vmatprep.subr.bf16.mxu0 0
        %607 = vmatpush1.bf16.msra.mxu0 %v504
        %608 = vmatprep.subr.bf16.mxu0 0
        %609 = vmatpush1.bf16.msra.mxu0 %v505
        %610 = vmatprep.subr.bf16.mxu0 0
        %611 = vmatpush1.bf16.msra.mxu0 %v506
        %612 = vmatprep.subr.bf16.mxu0 0
        %613 = vmatpush1.bf16.msra.mxu0 %v507
        %614 = vmatprep.subr.bf16.mxu0 0
        %615 = vmatpush1.bf16.msra.mxu0 %v508
        %616 = vmatprep.subr.bf16.mxu0 0
        %617 = vmatpush1.bf16.msra.mxu0 %v509
        %618 = vmatprep.subr.bf16.mxu0 0
        %619 = vmatpush1.bf16.msra.mxu0 %v510
        %620 = vmatprep.subr.bf16.mxu0 0
        %621 = vmatpush1.bf16.msra.mxu0 %v511
        %622 = vmatprep.subr.bf16.mxu0 0
        %623 = vmatpush1.bf16.msra.mxu0 %v512
        %624 = vmatprep.subr.bf16.mxu0 0
        %625 = vmatpush1.bf16.msra.mxu0 %v513
        %626 = vmatprep.subr.bf16.mxu0 0
        %627 = vmatpush1.bf16.msra.mxu0 %v514
        %628 = vmatprep.mubr.bf16.mxu0 %v342
        %629 = vmatmul.mubr.bf16.gmra.mrb[0].mxu0 %v341
        %v630 = vpop.f32.mrb[0].mxu0
        %v631 = vadd.f32 %v582, %v630
        %v632 = vpop.f32.mrb[0].mxu0
        %v633 = vpop.f32.mrb[0].mxu0
        %v634 = vadd.f32 %v585, %v633
        %v635 = vpop.f32.mrb[0].mxu0
        %636 = vmatprep.mubr.bf16.mxu0 %v346
        %637 = vmatmul.mubr.bf16.gmra.mrb[0].mxu0 %v345
        %v638 = vpop.f32.mrb[0].mxu0
        %v639 = vadd.f32 %v590, %v638
        %v640 = vpop.f32.mrb[0].mxu0
        %v641 = vpop.f32.mrb[0].mxu0
        %v642 = vadd.f32 %v593, %v641
        %v643 = vpop.f32.mrb[0].mxu0
        %644 = vdwg.mxu0
        %s645 = smul.u32 %s19, 32
        %s646 = scalar_lea.vmem %s4, %s645
        %647 = vst [vmem:[%s646] sm:$0xff] %v631
        %648 = vst [vmem:[%s646 + $0x8] sm:$0xff] %v634
        %649 = vst [vmem:[%s646 + $0x10] sm:$0xff] %v639
        %650 = vst [vmem:[%s646 + $0x18] sm:$0xff] %v642
        %v651 = vld [vmem:[#allocation2] sm:$0x1]
        %v652 = vadd.f32 %v631, %v634
        %v653 = vadd.f32 %v652, %v639
        %v654 = vadd.f32 %v653, %v642
        %v655 = vrot.slane %v654, 4
        %v656 = vadd.f32 %v654, %v655
        %v657 = vrot.slane %v656, 2
        %v658 = vadd.f32 %v656, %v657
        %v659 = vrot.slane %v658, 1
        %v660 = vadd.f32 %v658, %v659
        %v661 = vadd.f32 %v651, %v660
        %662 = vst [vmem:[#allocation2] sm:$0x1] %v661
        %v663 = vld [vmem:[#allocation3] sm:$0x1]
        %v664 = vmul.f32 %v631, %v631
        %v665 = vmul.f32 %v634, %v634
        %v666 = vmul.f32 %v639, %v639
        %v667 = vmul.f32 %v642, %v642
        %v668 = vadd.f32 %v664, %v665
        %v669 = vadd.f32 %v668, %v666
        %v670 = vadd.f32 %v669, %v667
        %v671 = vrot.slane %v670, 4
        %v672 = vadd.f32 %v670, %v671
        %v673 = vrot.slane %v672, 2
        %v674 = vadd.f32 %v672, %v673
        %v675 = vrot.slane %v674, 1
        %v676 = vadd.f32 %v674, %v675
        %v677 = vadd.f32 %v663, %v676
        %678 = vst [vmem:[#allocation3] sm:$0x1] %v677
        %p679 = scmp.eq.s32.totalorder %s19, 3
        // Predicated region
        $region49: #{_lambda_.6} parent=35 // pred_check
          %p680 = pneg %p679
        $region50: #{_lambda_.6} parent=35 // pred_check_branch
          %682 = sbr.rel (%p680) target = $region52
        $region51: #{_lambda_.6} parent=35 // pred_region
          %v683 = vld [vmem:[#allocation2] sm:$0x1]
          %v684 = vmul.f32 %v683, 0.0078125
          %v685 = vld [vmem:[#allocation3] sm:$0x1]
          %v686 = vmul.f32 %v685, 0.0078125
          %v687 = vmul.f32 %v684, %v684
          %v688 = vsub.f32 %v686, %v687
          %v689 = vld [vmem:[#allocation6] sm:$0x1]
          %v690 = vadd.f32 %v688, 1e-05
          %v691 = vrsqrt.pop %v690
          %v692 = vmul.f32 %v689, %v691
          %v693 = vld [vmem:[%s3] sm:$0x1]
          %v694 = vmul.f32 %v684, %v692
          %v695 = vsub.f32 %v693, %v694
          %v696 = vld [vmem:[%s4] sm:$0xff]
          %v697 = vld [vmem:[%s4 + $0x8] sm:$0xff]
          %v698 = vld [vmem:[%s4 + $0x10] sm:$0xff]
          %v699 = vld [vmem:[%s4 + $0x18] sm:$0xff]
          %v700 = vld [vmem:[%s4 + $0x20] sm:$0xff]
          %v701 = vld [vmem:[%s4 + $0x28] sm:$0xff]
          %v702 = vld [vmem:[%s4 + $0x30] sm:$0xff]
          %v703 = vld [vmem:[%s4 + $0x38] sm:$0xff]
          %v704 = vld [vmem:[%s4 + $0x40] sm:$0xff]
          %v705 = vld [vmem:[%s4 + $0x48] sm:$0xff]
          %v706 = vld [vmem:[%s4 + $0x50] sm:$0xff]
          %v707 = vld [vmem:[%s4 + $0x58] sm:$0xff]
          %v708 = vld [vmem:[%s4 + $0x60] sm:$0xff]
          %v709 = vld [vmem:[%s4 + $0x68] sm:$0xff]
          %v710 = vld [vmem:[%s4 + $0x70] sm:$0xff]
          %v711 = vld [vmem:[%s4 + $0x78] sm:$0xff]
          %v713 = vlaneseq
          %v714 = vshrl.u32 %v713, 7
          %v715 = vsub.s32 0, %v714
          %v716 = vrot.slane %v692, %v715
          %v718 = vmul.f32 %v696, %v716
          %v719 = vmul.f32 %v697, %v716
          %v720 = vmul.f32 %v698, %v716
          %v721 = vmul.f32 %v699, %v716
          %v722 = vmul.f32 %v700, %v716
          %v723 = vmul.f32 %v701, %v716
          %v724 = vmul.f32 %v702, %v716
          %v725 = vmul.f32 %v703, %v716
          %v726 = vmul.f32 %v704, %v716
          %v727 = vmul.f32 %v705, %v716
          %v728 = vmul.f32 %v706, %v716
          %v729 = vmul.f32 %v707, %v716
          %v730 = vmul.f32 %v708, %v716
          %v731 = vmul.f32 %v709, %v716
          %v732 = vmul.f32 %v710, %v716
          %v733 = vmul.f32 %v711, %v716
          %v735 = vlaneseq
          %v736 = vshrl.u32 %v735, 7
          %v737 = vsub.s32 0, %v736
          %v738 = vrot.slane %v695, %v737
          %v740 = vadd.f32 %v718, %v738
          %v741 = vadd.f32 %v719, %v738
          %v742 = vadd.f32 %v720, %v738
          %v743 = vadd.f32 %v721, %v738
          %v744 = vadd.f32 %v722, %v738
          %v745 = vadd.f32 %v723, %v738
          %v746 = vadd.f32 %v724, %v738
          %v747 = vadd.f32 %v725, %v738
          %v748 = vadd.f32 %v726, %v738
          %v749 = vadd.f32 %v727, %v738
          %v750 = vadd.f32 %v728, %v738
          %v751 = vadd.f32 %v729, %v738
          %v752 = vadd.f32 %v730, %v738
          %v753 = vadd.f32 %v731, %v738
          %v754 = vadd.f32 %v732, %v738
          %v755 = vadd.f32 %v733, %v738
          %v756 = vmax.f32 %v740, 0.0
          %v757 = vmax.f32 %v741, 0.0
          %v758 = vmax.f32 %v742, 0.0
          %v759 = vmax.f32 %v743, 0.0
          %v760 = vmax.f32 %v744, 0.0
          %v761 = vmax.f32 %v745, 0.0
          %v762 = vmax.f32 %v746, 0.0
          %v763 = vmax.f32 %v747, 0.0
          %v764 = vmax.f32 %v748, 0.0
          %v765 = vmax.f32 %v749, 0.0
          %v766 = vmax.f32 %v750, 0.0
          %v767 = vmax.f32 %v751, 0.0
          %v768 = vmax.f32 %v752, 0.0
          %v769 = vmax.f32 %v753, 0.0
          %v770 = vmax.f32 %v754, 0.0
          %v771 = vmax.f32 %v755, 0.0
          %772 = vst [vmem:[%s4] sm:$0xff] %v756
          %773 = vst [vmem:[%s4 + $0x8] sm:$0xff] %v757
          %774 = vst [vmem:[%s4 + $0x10] sm:$0xff] %v758
          %775 = vst [vmem:[%s4 + $0x18] sm:$0xff] %v759
          %776 = vst [vmem:[%s4 + $0x20] sm:$0xff] %v760
          %777 = vst [vmem:[%s4 + $0x28] sm:$0xff] %v761
          %778 = vst [vmem:[%s4 + $0x30] sm:$0xff] %v762
          %779 = vst [vmem:[%s4 + $0x38] sm:$0xff] %v763
          %780 = vst [vmem:[%s4 + $0x40] sm:$0xff] %v764
          %781 = vst [vmem:[%s4 + $0x48] sm:$0xff] %v765
          %782 = vst [vmem:[%s4 + $0x50] sm:$0xff] %v766
          %783 = vst [vmem:[%s4 + $0x58] sm:$0xff] %v767
          %784 = vst [vmem:[%s4 + $0x60] sm:$0xff] %v768
          %785 = vst [vmem:[%s4 + $0x68] sm:$0xff] %v769
          %786 = vst [vmem:[%s4 + $0x70] sm:$0xff] %v770
          %787 = vst [vmem:[%s4 + $0x78] sm:$0xff] %v771
        $region52: #{_lambda_.6} parent=35 // pred_fallthru
          _
        // Predicated region
        $region53: #{_lambda_.6} parent=35 // pred_check
          %p788 = pneg %p126
        $region54: #{_lambda_.6} parent=35 // pred_check_branch
          %790 = sbr.rel (%p788) target = $region56
        $region55: #{_lambda_.6} parent=35 // pred_region
          _
        $region56: #{_lambda_.6} parent=35 // pred_fallthru
          _
        // Predicated region
        $region57: #{_lambda_.6} parent=35 // pred_check
          %p791 = pneg %p126
        $region58: #{_lambda_.6} parent=35 // pred_check_branch
          %793 = sbr.rel (%p791) target = $region60
        $region59: #{_lambda_.6} parent=35 // pred_region
          _
        $region60: #{_lambda_.6} parent=35 // pred_fallthru
          _
      $region36: #{_lambda_.6} parent=5 // pred_fallthru
        _
      %p794 = scmp.le.s32.totalorder 2, %s14
      // Predicated region
      $region61: #{_lambda_.6} parent=5 // pred_check
        %p795 = pneg %p794
      $region62: #{_lambda_.6} parent=5 // pred_check_branch
        %797 = sbr.rel (%p795) target = $region64
      $region63: #{_lambda_.6} parent=5 // pred_region
        %s798 = ssub.s32 %s14, 2
      $region64: #{_lambda_.6} parent=5 // pred_fallthru
        _
    $region6: #{_lambda_.6} parent=1 // loop_footer
      %s18 = sadd.s32 1, %s14
    $region7: #{_lambda_.6} parent=1 // loop_footer_branch
      %13 = sbr.rel target = $region3
    $region8: #{_lambda_.6} parent=1 // loop_exit
      _
    %799 = vsyncpa [#allocation5], 1
    %s800 = scalar_lea.sflag [#allocation5], 1
    %801 = vsyncpa %s800, 1
    %802 = vsyncpa [#allocation7], 1

// kernel: _lambda_.7
$region0: #{_lambda_.7}
  #allocation0 [shape = 'u32[]', space=smem, size = 0x4, offset = 0x4, fixed_abs, tag = 'smem constant byte address 0x4 - core index']
  #allocation1 [shape = 'u32[144,128]{1,0:T(1,128)}', space=vmem, size = 0x12000, scoped, tag = 'internal scratch']
  #allocation2 [shape = 'f32[1,128]{1,0:T(1,128)}', space=vmem, size = 0x200, scoped, tag = 'scratch operand']
  #allocation3 [shape = 'f32[1,128]{1,0:T(1,128)}', space=vmem, size = 0x200, scoped, tag = 'scratch operand']
  %s0 = inlined_call_operand.vmem [shape: bf16[4,128,256], index: 0, kind: input, shape index: {}]
  %s1 = inlined_call_operand.vmem [shape: bf16[4,256,128], index: 1, kind: input, shape index: {}]
  %s2 = inlined_call_operand.vmem [shape: f32[1,128], index: 2, kind: input, shape index: {}]
  %s3 = inlined_call_operand.vmem [shape: f32[1,128], index: 3, kind: input, shape index: {}]
  %s4 = inlined_call_operand.vmem [shape: f32[4,128,128], index: 4, kind: output, shape index: {}]
  %s5 = sld [smem:[#allocation0]]
  $region57: #{_lambda_.7} parent=0
    _
  %s7 = ssub.s32 1, %s5
  %s8 = scalar_select 0, %s7, %s5
  loop: start=0, step=1, limit=6
  $region2: #{_lambda_.7} parent=0 // loop_pre_header
    _
  $region3: #{_lambda_.7} parent=0 // loop_header
    %s10 = sphi 0, %s14
    %p11 = scmp.ge.s32.totalorder %s10, 6
    %s20 = sphi 0, %s22
    %s23 = sphi 0, %s20
    %s24 = sphi 0, %s23
    %s40 = sphi 0, %s24
    %s46 = sphi 0, %s48
    %s49 = sphi 0, %s46
    %s50 = sphi 0, %s49
    %s66 = sphi 0, %s50
    %s70 = sphi 0, %s70
    %s72 = sphi 0, %s70
    %s73 = sphi 0, %s72
    %s87 = sphi 0, %s73
    %s91 = sphi 0, %s91
    %s93 = sphi 0, %s91
    %s94 = sphi 0, %s93
    %s108 = sphi 0, %s94
    %s112 = sphi 0, %s112
    %s114 = sphi 0, %s112
    %s115 = sphi 0, %s114
    %s129 = sphi 0, %s115
  $region4: #{_lambda_.7} parent=0 // loop_header_branch
    %13 = sbr.rel (%p11) target = $region8
  $region5: #{_lambda_.7} parent=0 // loop_body
    %s15 = ssub.s32 %s10, 1
    %s16 = ssub.s32 %s10, 2
    %s17 = sadd.s32 %s10, 1
    %s18 = ssub.s32 %s10, %s17
    %p19 = scmp.eq.s32.totalorder %s18, 0
    %s21 = sadd.s32 %s20, 1
    %s22 = scalar_select %p19, %s20, %s21
    %p25 = pneg %p19
    %p26 = scmp.eq.s32.totalorder %s10, 3
    %p27 = por %p25, %p26
    %p28 = scmp.ne.s32.totalorder %s20, %s23
    %p29 = scmp.eq.s32.totalorder %s10, 0
    %p30 = por %p28, %p29
    %p31 = scmp.ne.s32.totalorder %s20, %s23
    %p32 = scmp.eq.s32.totalorder %s15, 3
    %p33 = por %p31, %p32
    %p34 = scmp.ne.s32.totalorder %s23, %s24
    %p35 = scmp.eq.s32.totalorder %s15, 0
    %p36 = por %p34, %p35
    %p37 = scmp.ne.s32.totalorder %s23, %s24
    %p38 = scmp.eq.s32.totalorder %s16, 3
    %p39 = por %p37, %p38
    %p41 = scmp.ne.s32.totalorder %s24, %s40
    %p42 = scmp.eq.s32.totalorder %s16, 0
    %p43 = por %p41, %p42
    %s44 = ssub.s32 %s10, %s17
    %p45 = scmp.eq.s32.totalorder %s44, 0
    %s47 = sadd.s32 %s46, 1
    %s48 = scalar_select %p45, %s46, %s47
    %p51 = pneg %p45
    %p52 = scmp.eq.s32.totalorder %s10, 3
    %p53 = por %p51, %p52
    %p54 = scmp.ne.s32.totalorder %s46, %s49
    %p55 = scmp.eq.s32.totalorder %s10, 0
    %p56 = por %p54, %p55
    %p57 = scmp.ne.s32.totalorder %s46, %s49
    %p58 = scmp.eq.s32.totalorder %s15, 3
    %p59 = por %p57, %p58
    %p60 = scmp.ne.s32.totalorder %s49, %s50
    %p61 = scmp.eq.s32.totalorder %s15, 0
    %p62 = por %p60, %p61
    %p63 = scmp.ne.s32.totalorder %s49, %s50
    %p64 = scmp.eq.s32.totalorder %s16, 3
    %p65 = por %p63, %p64
    %p67 = scmp.ne.s32.totalorder %s50, %s66
    %p68 = scmp.eq.s32.totalorder %s16, 0
    %p69 = por %p67, %p68
    %s71 = sadd.s32 %s70, 1
    %p74 = scmp.eq.s32.totalorder %s10, 3
    %p75 = scmp.ne.s32.totalorder %s70, %s72
    %p76 = scmp.eq.s32.totalorder %s10, 0
    %p77 = por %p75, %p76
    %p78 = scmp.ne.s32.totalorder %s70, %s72
    %p79 = scmp.eq.s32.totalorder %s15, 3
    %p80 = por %p78, %p79
    %p81 = scmp.ne.s32.totalorder %s72, %s73
    %p82 = scmp.eq.s32.totalorder %s15, 0
    %p83 = por %p81, %p82
    %p84 = scmp.ne.s32.totalorder %s72, %s73
    %p85 = scmp.eq.s32.totalorder %s16, 3
    %p86 = por %p84, %p85
    %p88 = scmp.ne.s32.totalorder %s73, %s87
    %p89 = scmp.eq.s32.totalorder %s16, 0
    %p90 = por %p88, %p89
    %s92 = sadd.s32 %s91, 1
    %p95 = scmp.eq.s32.totalorder %s10, 3
    %p96 = scmp.ne.s32.totalorder %s91, %s93
    %p97 = scmp.eq.s32.totalorder %s10, 0
    %p98 = por %p96, %p97
    %p99 = scmp.ne.s32.totalorder %s91, %s93
    %p100 = scmp.eq.s32.totalorder %s15, 3
    %p101 = por %p99, %p100
    %p102 = scmp.ne.s32.totalorder %s93, %s94
    %p103 = scmp.eq.s32.totalorder %s15, 0
    %p104 = por %p102, %p103
    %p105 = scmp.ne.s32.totalorder %s93, %s94
    %p106 = scmp.eq.s32.totalorder %s16, 3
    %p107 = por %p105, %p106
    %p109 = scmp.ne.s32.totalorder %s94, %s108
    %p110 = scmp.eq.s32.totalorder %s16, 0
    %p111 = por %p109, %p110
    %s113 = sadd.s32 %s112, 1
    %p116 = scmp.eq.s32.totalorder %s10, 3
    %p117 = scmp.ne.s32.totalorder %s112, %s114
    %p118 = scmp.eq.s32.totalorder %s10, 0
    %p119 = por %p117, %p118
    %p120 = scmp.ne.s32.totalorder %s112, %s114
    %p121 = scmp.eq.s32.totalorder %s15, 3
    %p122 = por %p120, %p121
    %p123 = scmp.ne.s32.totalorder %s114, %s115
    %p124 = scmp.eq.s32.totalorder %s15, 0
    %p125 = por %p123, %p124
    %p126 = scmp.ne.s32.totalorder %s114, %s115
    %p127 = scmp.eq.s32.totalorder %s16, 3
    %p128 = por %p126, %p127
    %p130 = scmp.ne.s32.totalorder %s115, %s129
    %p131 = scmp.eq.s32.totalorder %s16, 0
    %p132 = por %p130, %p131
    %p133 = scmp.le.s32.totalorder 1, %s10
    %p134 = scmp.lt.s32.totalorder %s10, 5
    %p135 = pnand %p133, %p134
    %p136 = pneg %p135
    // Predicated region
    $region9: #{_lambda_.7} parent=5 // pred_check
      _
    $region10: #{_lambda_.7} parent=5 // pred_check_branch
      %138 = sbr.rel (%p135) target = $region12
    $region11: #{_lambda_.7} parent=5 // pred_region
      %s139 = ssub.s32 %s10, 1
      // Predicated region
      $region13: #{_lambda_.7} parent=11 // pred_check
        %p140 = pneg %p83
      $region14: #{_lambda_.7} parent=11 // pred_check_branch
        %142 = sbr.rel (%p140) target = $region16
      $region15: #{_lambda_.7} parent=11 // pred_region
        _
      $region16: #{_lambda_.7} parent=11 // pred_fallthru
        _
      // Predicated region
      $region17: #{_lambda_.7} parent=11 // pred_check
        %p143 = pneg %p104
      $region18: #{_lambda_.7} parent=11 // pred_check_branch
        %145 = sbr.rel (%p143) target = $region20
      $region19: #{_lambda_.7} parent=11 // pred_region
        _
      $region20: #{_lambda_.7} parent=11 // pred_fallthru
        _
    $region12: #{_lambda_.7} parent=5 // pred_fallthru
      _
    %p146 = scmp.lt.s32.totalorder %s10, 4
    // Predicated region
    $region21: #{_lambda_.7} parent=5 // pred_check
      %p147 = pneg %p146
    $region22: #{_lambda_.7} parent=5 // pred_check_branch
      %149 = sbr.rel (%p147) target = $region24
    $region23: #{_lambda_.7} parent=5 // pred_region
      // Predicated region
      $region25: #{_lambda_.7} parent=23 // pred_check
        %p150 = pneg %p30
      $region26: #{_lambda_.7} parent=23 // pred_check_branch
        %152 = sbr.rel (%p150) target = $region28
      $region27: #{_lambda_.7} parent=23 // pred_region
        %p153 = scmp.lt.s32.totalorder %s10, 3
        %s154 = scalar_select %p153, %s10, 3
        %s155 = smul.addr %s154, 32
        %s156 = smul.addr %s155, 4
        %s157 = scalar_lea.vmem %s0, %s156
      $region28: #{_lambda_.7} parent=23 // pred_fallthru
        _
      // Predicated region
      $region29: #{_lambda_.7} parent=23 // pred_check
        %p158 = pneg %p56
      $region30: #{_lambda_.7} parent=23 // pred_check_branch
        %160 = sbr.rel (%p158) target = $region32
      $region31: #{_lambda_.7} parent=23 // pred_region
        %p161 = scmp.lt.s32.totalorder %s10, 3
        %s162 = scalar_select %p161, %s10, 3
        %s163 = smul.addr %s162, 32
        %s164 = smul.addr %s163, 4
        %s165 = scalar_lea.vmem %s1, %s164
      $region32: #{_lambda_.7} parent=23 // pred_fallthru
        _
    $region24: #{_lambda_.7} parent=5 // pred_fallthru
      _
    %p166 = scmp.le.s32.totalorder 1, %s10
    %p167 = scmp.lt.s32.totalorder %s10, 5
    %p168 = pnand %p166, %p167
    %p169 = pneg %p168
    // Predicated region
    $region33: #{_lambda_.7} parent=5 // pred_check
      _
    $region34: #{_lambda_.7} parent=5 // pred_check_branch
      %171 = sbr.rel (%p168) target = $region36
    $region35: #{_lambda_.7} parent=5 // pred_region
      %s172 = ssub.s32 %s10, 1
      %p173 = scmp.lt.s32.totalorder %s15, 3
      %s174 = scalar_select %p173, %s15, 3
      %s175 = smul.addr %s174, 32
      %s176 = smul.addr %s175, 4
      %s177 = scalar_lea.vmem %s0, %s176
      %p178 = pneg %p36
      %p179 = pneg %p33
      %p180 = scmp.lt.s32.totalorder %s15, 3
      %s181 = scalar_select %p180, %s15, 3
      %s182 = smul.addr %s181, 32
      %s183 = smul.addr %s182, 4
      %s184 = scalar_lea.vmem %s1, %s183
      %p185 = pneg %p62
      %p186 = pneg %p59
      %p187 = pneg %p83
      %p188 = pneg %p80
      %p189 = pneg %p104
      %p190 = pneg %p101
      %p191 = pneg %p125
      %p192 = pneg %p122
      %p193 = scmp.lt.s32.totalorder %s15, 3
      %s194 = scalar_select %p193, %s15, 3
      %s195 = smul.addr %s194, 32
      %s196 = smul.addr %s195, 4
      %s197 = scalar_lea.vmem %s0, %s196
      %p198 = scmp.lt.s32.totalorder %s15, 3
      %s199 = scalar_select %p198, %s15, 3
      %s200 = smul.addr %s199, 32
      %s201 = smul.addr %s200, 4
      %s202 = scalar_lea.vmem %s1, %s201
      %p204 = scmp.eq.s32.totalorder %s15, 0
      // Predicated region
      $region37: #{_lambda_.7} parent=35 // pred_check
        %p205 = pneg %p204
      $region38: #{_lambda_.7} parent=35 // pred_check_branch
        %207 = sbr.rel (%p205) target = $region40
      $region39: #{_lambda_.7} parent=35 // pred_region
        %208 = vst [vmem:[#allocation2] sm:$0x1] 0.0
        %209 = vst [vmem:[#allocation3] sm:$0x1] 0.0
      $region40: #{_lambda_.7} parent=35 // pred_fallthru
        _
      %v210 = vld [vmem:[%s197] sm:$0xff]
      %v211 = vld [vmem:[%s197 + $0x8] sm:$0xff]
      %v212 = vld [vmem:[%s197 + $0x10] sm:$0xff]
      %v213 = vld [vmem:[%s197 + $0x18] sm:$0xff]
      %v214 = vld [vmem:[%s197 + $0x20] sm:$0xff]
      %v215 = vld [vmem:[%s197 + $0x28] sm:$0xff]
      %v216 = vld [vmem:[%s197 + $0x30] sm:$0xff]
      %v217 = vld [vmem:[%s197 + $0x38] sm:$0xff]
      %v218 = vld [vmem:[%s197 + $0x40] sm:$0xff]
      %v219 = vld [vmem:[%s197 + $0x48] sm:$0xff]
      %v220 = vld [vmem:[%s197 + $0x50] sm:$0xff]
      %v221 = vld [vmem:[%s197 + $0x58] sm:$0xff]
      %v222 = vld [vmem:[%s197 + $0x60] sm:$0xff]
      %v223 = vld [vmem:[%s197 + $0x68] sm:$0xff]
      %v224 = vld [vmem:[%s197 + $0x70] sm:$0xff]
      %v225 = vld [vmem:[%s197 + $0x78] sm:$0xff]
      %v226 = vld [vmem:[%s202] sm:$0xf]
      %v227 = vld [vmem:[%s202 + $0x4] sm:$0xf]
      %v228 = vld [vmem:[%s202 + $0x8] sm:$0xf]
      %v229 = vld [vmem:[%s202 + $0xc] sm:$0xf]
      %v230 = vld [vmem:[%s202 + $0x10] sm:$0xf]
      %v231 = vld [vmem:[%s202 + $0x14] sm:$0xf]
      %v232 = vld [vmem:[%s202 + $0x18] sm:$0xf]
      %v233 = vld [vmem:[%s202 + $0x1c] sm:$0xf]
      %v234 = vld [vmem:[%s202 + $0x20] sm:$0xf]
      %v235 = vld [vmem:[%s202 + $0x24] sm:$0xf]
      %v236 = vld [vmem:[%s202 + $0x28] sm:$0xf]
      %v237 = vld [vmem:[%s202 + $0x2c] sm:$0xf]
      %v238 = vld [vmem:[%s202 + $0x30] sm:$0xf]
      %v239 = vld [vmem:[%s202 + $0x34] sm:$0xf]
      %v240 = vld [vmem:[%s202 + $0x38] sm:$0xf]
      %v241 = vld [vmem:[%s202 + $0x3c] sm:$0xf]
      %v242 = vld [vmem:[%s202 + $0x40] sm:$0xf]
      %v243 = vld [vmem:[%s202 + $0x44] sm:$0xf]
      %v244 = vld [vmem:[%s202 + $0x48] sm:$0xf]
      %v245 = vld [vmem:[%s202 + $0x4c] sm:$0xf]
      %v246 = vld [vmem:[%s202 + $0x50] sm:$0xf]
      %v247 = vld [vmem:[%s202 + $0x54] sm:$0xf]
      %v248 = vld [vmem:[%s202 + $0x58] sm:$0xf]
      %v249 = vld [vmem:[%s202 + $0x5c] sm:$0xf]
      %v250 = vld [vmem:[%s202 + $0x60] sm:$0xf]
      %v251 = vld [vmem:[%s202 + $0x64] sm:$0xf]
      %v252 = vld [vmem:[%s202 + $0x68] sm:$0xf]
      %v253 = vld [vmem:[%s202 + $0x6c] sm:$0xf]
      %v254 = vld [vmem:[%s202 + $0x70] sm:$0xf]
      %v255 = vld [vmem:[%s202 + $0x74] sm:$0xf]
      %v256 = vld [vmem:[%s202 + $0x78] sm:$0xf]
      %v257 = vld [vmem:[%s202 + $0x7c] sm:$0xf]
      %v274 = vunpack.c.l.b16 %v210
      %v275 = vunpack.c.h.b16 %v210
      %v276 = vunpack.c.l.b16 %v211
      %v277 = vunpack.c.h.b16 %v211
      %v278 = vunpack.c.l.b16 %v212
      %v279 = vunpack.c.h.b16 %v212
      %v280 = vunpack.c.l.b16 %v213
      %v281 = vunpack.c.h.b16 %v213
      %v282 = vunpack.c.l.b16 %v214
      %v283 = vunpack.c.h.b16 %v214
      %v284 = vunpack.c.l.b16 %v215
      %v285 = vunpack.c.h.b16 %v215
      %v286 = vunpack.c.l.b16 %v216
      %v287 = vunpack.c.h.b16 %v216
      %v288 = vunpack.c.l.b16 %v217
      %v289 = vunpack.c.h.b16 %v217
      %v290 = vunpack.c.l.b16 %v218
      %v291 = vunpack.c.h.b16 %v218
      %v292 = vunpack.c.l.b16 %v219
      %v293 = vunpack.c.h.b16 %v219
      %v294 = vunpack.c.l.b16 %v220
      %v295 = vunpack.c.h.b16 %v220
      %v296 = vunpack.c.l.b16 %v221
      %v297 = vunpack.c.h.b16 %v221
      %v298 = vunpack.c.l.b16 %v222
      %v299 = vunpack.c.h.b16 %v222
      %v300 = vunpack.c.l.b16 %v223
      %v301 = vunpack.c.h.b16 %v223
      %v302 = vunpack.c.l.b16 %v224
      %v303 = vunpack.c.h.b16 %v224
      %v304 = vunpack.c.l.b16 %v225
      %v305 = vunpack.c.h.b16 %v225
      %v306 = vpack.c.b16 %v276, %v274
      %v307 = vpack.c.b16 %v277, %v275
      %v308 = vpack.c.b16 %v280, %v278
      %v309 = vpack.c.b16 %v281, %v279
      %v310 = vpack.c.b16 %v284, %v282
      %v311 = vpack.c.b16 %v285, %v283
      %v312 = vpack.c.b16 %v288, %v286
      %v313 = vpack.c.b16 %v289, %v287
      %v314 = vpack.c.b16 %v292, %v290
      %v315 = vpack.c.b16 %v293, %v291
      %v316 = vpack.c.b16 %v296, %v294
      %v317 = vpack.c.b16 %v297, %v295
      %v318 = vpack.c.b16 %v300, %v298
      %v319 = vpack.c.b16 %v301, %v299
      %v320 = vpack.c.b16 %v304, %v302
      %v321 = vpack.c.b16 %v305, %v303
      %v370 = vunpack.c.l.b16 %v226
      %v371 = vunpack.c.l.b16 %v227
      %v372 = vunpack.c.l.b16 %v228
      %v373 = vunpack.c.l.b16 %v229
      %v374 = vunpack.c.l.b16 %v230
      %v375 = vunpack.c.l.b16 %v231
      %v376 = vunpack.c.l.b16 %v232
      %v377 = vunpack.c.l.b16 %v233
      %v378 = vunpack.c.l.b16 %v234
      %v379 = vunpack.c.l.b16 %v235
      %v380 = vunpack.c.l.b16 %v236
      %v381 = vunpack.c.l.b16 %v237
      %v382 = vunpack.c.l.b16 %v238
      %v383 = vunpack.c.l.b16 %v239
      %v384 = vunpack.c.l.b16 %v240
      %v385 = vunpack.c.l.b16 %v241
      %v386 = vunpack.c.l.b16 %v242
      %v387 = vunpack.c.l.b16 %v243
      %v388 = vunpack.c.l.b16 %v244
      %v389 = vunpack.c.l.b16 %v245
      %v390 = vunpack.c.l.b16 %v246
      %v391 = vunpack.c.l.b16 %v247
      %v392 = vunpack.c.l.b16 %v248
      %v393 = vunpack.c.l.b16 %v249
      %v394 = vunpack.c.l.b16 %v250
      %v395 = vunpack.c.l.b16 %v251
      %v396 = vunpack.c.l.b16 %v252
      %v397 = vunpack.c.l.b16 %v253
      %v398 = vunpack.c.l.b16 %v254
      %v399 = vunpack.c.l.b16 %v255
      %v400 = vunpack.c.l.b16 %v256
      %v401 = vunpack.c.l.b16 %v257
      %v402 = vpack.c.b16 %v371, %v370
      %v403 = vpack.c.b16 %v373, %v372
      %v404 = vpack.c.b16 %v375, %v374
      %v405 = vpack.c.b16 %v377, %v376
      %v406 = vpack.c.b16 %v379, %v378
      %v407 = vpack.c.b16 %v381, %v380
      %v408 = vpack.c.b16 %v383, %v382
      %v409 = vpack.c.b16 %v385, %v384
      %v410 = vpack.c.b16 %v387, %v386
      %v411 = vpack.c.b16 %v389, %v388
      %v412 = vpack.c.b16 %v391, %v390
      %v413 = vpack.c.b16 %v393, %v392
      %v414 = vpack.c.b16 %v395, %v394
      %v415 = vpack.c.b16 %v397, %v396
      %v416 = vpack.c.b16 %v399, %v398
      %v417 = vpack.c.b16 %v401, %v400
      %434 = vmatprep.subr.bf16.mxu0 0
      %435 = vmatpush1.bf16.msra.mxu0 %v402
      %436 = vmatprep.subr.bf16.mxu0 0
      %437 = vmatpush1.bf16.msra.mxu0 %v403
      %438 = vmatprep.subr.bf16.mxu0 0
      %439 = vmatpush1.bf16.msra.mxu0 %v404
      %440 = vmatprep.subr.bf16.mxu0 0
      %441 = vmatpush1.bf16.msra.mxu0 %v405
      %442 = vmatprep.subr.bf16.mxu0 0
      %443 = vmatpush1.bf16.msra.mxu0 %v406
      %444 = vmatprep.subr.bf16.mxu0 0
      %445 = vmatpush1.bf16.msra.mxu0 %v407
      %446 = vmatprep.subr.bf16.mxu0 0
      %447 = vmatpush1.bf16.msra.mxu0 %v408
      %448 = vmatprep.subr.bf16.mxu0 0
      %449 = vmatpush1.bf16.msra.mxu0 %v409
      %450 = vmatprep.subr.bf16.mxu0 0
      %451 = vmatpush1.bf16.msra.mxu0 %v410
      %452 = vmatprep.subr.bf16.mxu0 0
      %453 = vmatpush1.bf16.msra.mxu0 %v411
      %454 = vmatprep.subr.bf16.mxu0 0
      %455 = vmatpush1.bf16.msra.mxu0 %v412
      %456 = vmatprep.subr.bf16.mxu0 0
      %457 = vmatpush1.bf16.msra.mxu0 %v413
      %458 = vmatprep.subr.bf16.mxu0 0
      %459 = vmatpush1.bf16.msra.mxu0 %v414
      %460 = vmatprep.subr.bf16.mxu0 0
      %461 = vmatpush1.bf16.msra.mxu0 %v415
      %462 = vmatprep.subr.bf16.mxu0 0
      %463 = vmatpush1.bf16.msra.mxu0 %v416
      %464 = vmatprep.subr.bf16.mxu0 0
      %465 = vmatpush1.bf16.msra.mxu0 %v417
      %466 = vmatprep.mubr.bf16.mxu0 %v307
      %467 = vmatmul.mubr.bf16.gmra.mrb[0].mxu0 %v306
      %v468 = vpop.f32.mrb[0].mxu0
      %v469 = vadd.f32 0.0, %v468
      %v470 = vpop.f32.mrb[0].mxu0
      %v471 = vpop.f32.mrb[0].mxu0
      %v472 = vadd.f32 0.0, %v471
      %v473 = vpop.f32.mrb[0].mxu0
      %474 = vmatprep.mubr.bf16.mxu0 %v309
      %475 = vmatmul.mubr.bf16.gmra.mrb[0].mxu0 %v308
      %v476 = vpop.f32.mrb[0].mxu0
      %v477 = vadd.f32 0.0, %v476
      %v478 = vpop.f32.mrb[0].mxu0
      %v479 = vpop.f32.mrb[0].mxu0
      %v480 = vadd.f32 0.0, %v479
      %v481 = vpop.f32.mrb[0].mxu0
      %482 = vmatprep.mubr.bf16.mxu0 %v311
      %483 = vmatmul.mubr.bf16.gmra.mrb[0].mxu0 %v310
      %v484 = vpop.f32.mrb[0].mxu0
      %v485 = vadd.f32 0.0, %v484
      %v486 = vpop.f32.mrb[0].mxu0
      %v487 = vpop.f32.mrb[0].mxu0
      %v488 = vadd.f32 0.0, %v487
      %v489 = vpop.f32.mrb[0].mxu0
      %490 = vmatprep.mubr.bf16.mxu0 %v313
      %491 = vmatmul.mubr.bf16.gmra.mrb[0].mxu0 %v312
      %v492 = vpop.f32.mrb[0].mxu0
      %v493 = vadd.f32 0.0, %v492
      %v494 = vpop.f32.mrb[0].mxu0
      %v495 = vpop.f32.mrb[0].mxu0
      %v496 = vadd.f32 0.0, %v495
      %v497 = vpop.f32.mrb[0].mxu0
      %498 = vmatprep.mubr.bf16.mxu0 %v315
      %499 = vmatmul.mubr.bf16.gmra.mrb[0].mxu0 %v314
      %v500 = vpop.f32.mrb[0].mxu0
      %v501 = vadd.f32 0.0, %v500
      %v502 = vpop.f32.mrb[0].mxu0
      %v503 = vpop.f32.mrb[0].mxu0
      %v504 = vadd.f32 0.0, %v503
      %v505 = vpop.f32.mrb[0].mxu0
      %506 = vmatprep.mubr.bf16.mxu0 %v317
      %507 = vmatmul.mubr.bf16.gmra.mrb[0].mxu0 %v316
      %v508 = vpop.f32.mrb[0].mxu0
      %v509 = vadd.f32 0.0, %v508
      %v510 = vpop.f32.mrb[0].mxu0
      %v511 = vpop.f32.mrb[0].mxu0
      %v512 = vadd.f32 0.0, %v511
      %v513 = vpop.f32.mrb[0].mxu0
      %514 = vmatprep.mubr.bf16.mxu0 %v319
      %515 = vmatmul.mubr.bf16.gmra.mrb[0].mxu0 %v318
      %v516 = vpop.f32.mrb[0].mxu0
      %v517 = vadd.f32 0.0, %v516
      %v518 = vpop.f32.mrb[0].mxu0
      %v519 = vpop.f32.mrb[0].mxu0
      %v520 = vadd.f32 0.0, %v519
      %v521 = vpop.f32.mrb[0].mxu0
      %522 = vmatprep.mubr.bf16.mxu0 %v321
      %523 = vmatmul.mubr.bf16.gmra.mrb[0].mxu0 %v320
      %v524 = vpop.f32.mrb[0].mxu0
      %v525 = vadd.f32 0.0, %v524
      %v526 = vpop.f32.mrb[0].mxu0
      %v527 = vpop.f32.mrb[0].mxu0
      %v528 = vadd.f32 0.0, %v527
      %v529 = vpop.f32.mrb[0].mxu0
      %530 = vdwg.mxu0
      %s531 = smul.u32 %s15, 128
      %s532 = scalar_lea.vmem %s4, %s531
      %533 = vst [vmem:[%s532] sm:$0xff] %v469
      %534 = vst [vmem:[%s532 + $0x8] sm:$0xff] %v472
      %535 = vst [vmem:[%s532 + $0x10] sm:$0xff] %v477
      %536 = vst [vmem:[%s532 + $0x18] sm:$0xff] %v480
      %537 = vst [vmem:[%s532 + $0x20] sm:$0xff] %v485
      %538 = vst [vmem:[%s532 + $0x28] sm:$0xff] %v488
      %539 = vst [vmem:[%s532 + $0x30] sm:$0xff] %v493
      %540 = vst [vmem:[%s532 + $0x38] sm:$0xff] %v496
      %541 = vst [vmem:[%s532 + $0x40] sm:$0xff] %v501
      %542 = vst [vmem:[%s532 + $0x48] sm:$0xff] %v504
      %543 = vst [vmem:[%s532 + $0x50] sm:$0xff] %v509
      %544 = vst [vmem:[%s532 + $0x58] sm:$0xff] %v512
      %545 = vst [vmem:[%s532 + $0x60] sm:$0xff] %v517
      %546 = vst [vmem:[%s532 + $0x68] sm:$0xff] %v520
      %547 = vst [vmem:[%s532 + $0x70] sm:$0xff] %v525
      %548 = vst [vmem:[%s532 + $0x78] sm:$0xff] %v528
      %v549 = vld [vmem:[#allocation2] sm:$0x1]
      %v550 = vadd.f32 %v469, %v472
      %v551 = vadd.f32 %v550, %v477
      %v552 = vadd.f32 %v551, %v480
      %v553 = vadd.f32 %v552, %v485
      %v554 = vadd.f32 %v553, %v488
      %v555 = vadd.f32 %v554, %v493
      %v556 = vadd.f32 %v555, %v496
      %v557 = vadd.f32 %v556, %v501
      %v558 = vadd.f32 %v557, %v504
      %v559 = vadd.f32 %v558, %v509
      %v560 = vadd.f32 %v559, %v512
      %v561 = vadd.f32 %v560, %v517
      %v562 = vadd.f32 %v561, %v520
      %v563 = vadd.f32 %v562, %v525
      %v564 = vadd.f32 %v563, %v528
      %v565 = vrot.slane %v564, 4
      %v566 = vadd.f32 %v564, %v565
      %v567 = vrot.slane %v566, 2
      %v568 = vadd.f32 %v566, %v567
      %v569 = vrot.slane %v568, 1
      %v570 = vadd.f32 %v568, %v569
      %v571 = vadd.f32 %v549, %v570
      %572 = vst [vmem:[#allocation2] sm:$0x1] %v571
      %v573 = vld [vmem:[#allocation3] sm:$0x1]
      %v574 = vmul.f32 %v469, %v469
      %v575 = vmul.f32 %v472, %v472
      %v576 = vmul.f32 %v477, %v477
      %v577 = vmul.f32 %v480, %v480
      %v578 = vmul.f32 %v485, %v485
      %v579 = vmul.f32 %v488, %v488
      %v580 = vmul.f32 %v493, %v493
      %v581 = vmul.f32 %v496, %v496
      %v582 = vmul.f32 %v501, %v501
      %v583 = vmul.f32 %v504, %v504
      %v584 = vmul.f32 %v509, %v509
      %v585 = vmul.f32 %v512, %v512
      %v586 = vmul.f32 %v517, %v517
      %v587 = vmul.f32 %v520, %v520
      %v588 = vmul.f32 %v525, %v525
      %v589 = vmul.f32 %v528, %v528
      %v590 = vadd.f32 %v574, %v575
      %v591 = vadd.f32 %v590, %v576
      %v592 = vadd.f32 %v591, %v577
      %v593 = vadd.f32 %v592, %v578
      %v594 = vadd.f32 %v593, %v579
      %v595 = vadd.f32 %v594, %v580
      %v596 = vadd.f32 %v595, %v581
      %v597 = vadd.f32 %v596, %v582
      %v598 = vadd.f32 %v597, %v583
      %v599 = vadd.f32 %v598, %v584
      %v600 = vadd.f32 %v599, %v585
      %v601 = vadd.f32 %v600, %v586
      %v602 = vadd.f32 %v601, %v587
      %v603 = vadd.f32 %v602, %v588
      %v604 = vadd.f32 %v603, %v589
      %v605 = vrot.slane %v604, 4
      %v606 = vadd.f32 %v604, %v605
      %v607 = vrot.slane %v606, 2
      %v608 = vadd.f32 %v606, %v607
      %v609 = vrot.slane %v608, 1
      %v610 = vadd.f32 %v608, %v609
      %v611 = vadd.f32 %v573, %v610
      %612 = vst [vmem:[#allocation3] sm:$0x1] %v611
      %p613 = scmp.eq.s32.totalorder %s15, 3
      // Predicated region
      $region41: #{_lambda_.7} parent=35 // pred_check
        %p614 = pneg %p613
      $region42: #{_lambda_.7} parent=35 // pred_check_branch
        %616 = sbr.rel (%p614) target = $region44
      $region43: #{_lambda_.7} parent=35 // pred_region
        %v617 = vld [vmem:[#allocation2] sm:$0x1]
        %v618 = vmul.f32 %v617, 0.001953125
        %v619 = vld [vmem:[#allocation3] sm:$0x1]
        %v620 = vmul.f32 %v619, 0.001953125
        %v621 = vmul.f32 %v618, %v618
        %v622 = vsub.f32 %v620, %v621
        %v623 = vld [vmem:[%s2] sm:$0x1]
        %v624 = vadd.f32 %v622, 1e-05
        %v625 = vrsqrt.pop %v624
        %v626 = vmul.f32 %v623, %v625
        %v627 = vld [vmem:[%s3] sm:$0x1]
        %v628 = vmul.f32 %v618, %v626
        %v629 = vsub.f32 %v627, %v628
        %v630 = vld [vmem:[%s4] sm:$0xff]
        %v631 = vld [vmem:[%s4 + $0x8] sm:$0xff]
        %v632 = vld [vmem:[%s4 + $0x10] sm:$0xff]
        %v633 = vld [vmem:[%s4 + $0x18] sm:$0xff]
        %v634 = vld [vmem:[%s4 + $0x20] sm:$0xff]
        %v635 = vld [vmem:[%s4 + $0x28] sm:$0xff]
        %v636 = vld [vmem:[%s4 + $0x30] sm:$0xff]
        %v637 = vld [vmem:[%s4 + $0x38] sm:$0xff]
        %v638 = vld [vmem:[%s4 + $0x40] sm:$0xff]
        %v639 = vld [vmem:[%s4 + $0x48] sm:$0xff]
        %v640 = vld [vmem:[%s4 + $0x50] sm:$0xff]
        %v641 = vld [vmem:[%s4 + $0x58] sm:$0xff]
        %v642 = vld [vmem:[%s4 + $0x60] sm:$0xff]
        %v643 = vld [vmem:[%s4 + $0x68] sm:$0xff]
        %v644 = vld [vmem:[%s4 + $0x70] sm:$0xff]
        %v645 = vld [vmem:[%s4 + $0x78] sm:$0xff]
        %v646 = vld [vmem:[%s4 + $0x80] sm:$0xff]
        %v647 = vld [vmem:[%s4 + $0x88] sm:$0xff]
        %v648 = vld [vmem:[%s4 + $0x90] sm:$0xff]
        %v649 = vld [vmem:[%s4 + $0x98] sm:$0xff]
        %v650 = vld [vmem:[%s4 + $0xa0] sm:$0xff]
        %v651 = vld [vmem:[%s4 + $0xa8] sm:$0xff]
        %v652 = vld [vmem:[%s4 + $0xb0] sm:$0xff]
        %v653 = vld [vmem:[%s4 + $0xb8] sm:$0xff]
        %v654 = vld [vmem:[%s4 + $0xc0] sm:$0xff]
        %v655 = vld [vmem:[%s4 + $0xc8] sm:$0xff]
        %v656 = vld [vmem:[%s4 + $0xd0] sm:$0xff]
        %v657 = vld [vmem:[%s4 + $0xd8] sm:$0xff]
        %v658 = vld [vmem:[%s4 + $0xe0] sm:$0xff]
        %v659 = vld [vmem:[%s4 + $0xe8] sm:$0xff]
        %v660 = vld [vmem:[%s4 + $0xf0] sm:$0xff]
        %v661 = vld [vmem:[%s4 + $0xf8] sm:$0xff]
        %v662 = vld [vmem:[%s4 + $0x100] sm:$0xff]
        %v663 = vld [vmem:[%s4 + $0x108] sm:$0xff]
        %v664 = vld [vmem:[%s4 + $0x110] sm:$0xff]
        %v665 = vld [vmem:[%s4 + $0x118] sm:$0xff]
        %v666 = vld [vmem:[%s4 + $0x120] sm:$0xff]
        %v667 = vld [vmem:[%s4 + $0x128] sm:$0xff]
        %v668 = vld [vmem:[%s4 + $0x130] sm:$0xff]
        %v669 = vld [vmem:[%s4 + $0x138] sm:$0xff]
        %v670 = vld [vmem:[%s4 + $0x140] sm:$0xff]
        %v671 = vld [vmem:[%s4 + $0x148] sm:$0xff]
        %v672 = vld [vmem:[%s4 + $0x150] sm:$0xff]
        %v673 = vld [vmem:[%s4 + $0x158] sm:$0xff]
        %v674 = vld [vmem:[%s4 + $0x160] sm:$0xff]
        %v675 = vld [vmem:[%s4 + $0x168] sm:$0xff]
        %v676 = vld [vmem:[%s4 + $0x170] sm:$0xff]
        %v677 = vld [vmem:[%s4 + $0x178] sm:$0xff]
        %v678 = vld [vmem:[%s4 + $0x180] sm:$0xff]
        %v679 = vld [vmem:[%s4 + $0x188] sm:$0xff]
        %v680 = vld [vmem:[%s4 + $0x190] sm:$0xff]
        %v681 = vld [vmem:[%s4 + $0x198] sm:$0xff]
        %v682 = vld [vmem:[%s4 + $0x1a0] sm:$0xff]
        %v683 = vld [vmem:[%s4 + $0x1a8] sm:$0xff]
        %v684 = vld [vmem:[%s4 + $0x1b0] sm:$0xff]
        %v685 = vld [vmem:[%s4 + $0x1b8] sm:$0xff]
        %v686 = vld [vmem:[%s4 + $0x1c0] sm:$0xff]
        %v687 = vld [vmem:[%s4 + $0x1c8] sm:$0xff]
        %v688 = vld [vmem:[%s4 + $0x1d0] sm:$0xff]
        %v689 = vld [vmem:[%s4 + $0x1d8] sm:$0xff]
        %v690 = vld [vmem:[%s4 + $0x1e0] sm:$0xff]
        %v691 = vld [vmem:[%s4 + $0x1e8] sm:$0xff]
        %v692 = vld [vmem:[%s4 + $0x1f0] sm:$0xff]
        %v693 = vld [vmem:[%s4 + $0x1f8] sm:$0xff]
        %v695 = vlaneseq
        %v696 = vshrl.u32 %v695, 7
        %v697 = vsub.s32 0, %v696
        %v698 = vrot.slane %v626, %v697
        %v700 = vmul.f32 %v630, %v698
        %v701 = vmul.f32 %v631, %v698
        %v702 = vmul.f32 %v632, %v698
        %v703 = vmul.f32 %v633, %v698
        %v704 = vmul.f32 %v634, %v698
        %v705 = vmul.f32 %v635, %v698
        %v706 = vmul.f32 %v636, %v698
        %v707 = vmul.f32 %v637, %v698
        %v708 = vmul.f32 %v638, %v698
        %v709 = vmul.f32 %v639, %v698
        %v710 = vmul.f32 %v640, %v698
        %v711 = vmul.f32 %v641, %v698
        %v712 = vmul.f32 %v642, %v698
        %v713 = vmul.f32 %v643, %v698
        %v714 = vmul.f32 %v644, %v698
        %v715 = vmul.f32 %v645, %v698
        %v716 = vmul.f32 %v646, %v698
        %v717 = vmul.f32 %v647, %v698
        %v718 = vmul.f32 %v648, %v698
        %v719 = vmul.f32 %v649, %v698
        %v720 = vmul.f32 %v650, %v698
        %v721 = vmul.f32 %v651, %v698
        %v722 = vmul.f32 %v652, %v698
        %v723 = vmul.f32 %v653, %v698
        %v724 = vmul.f32 %v654, %v698
        %v725 = vmul.f32 %v655, %v698
        %v726 = vmul.f32 %v656, %v698
        %v727 = vmul.f32 %v657, %v698
        %v728 = vmul.f32 %v658, %v698
        %v729 = vmul.f32 %v659, %v698
        %v730 = vmul.f32 %v660, %v698
        %v731 = vmul.f32 %v661, %v698
        %v732 = vmul.f32 %v662, %v698
        %v733 = vmul.f32 %v663, %v698
        %v734 = vmul.f32 %v664, %v698
        %v735 = vmul.f32 %v665, %v698
        %v736 = vmul.f32 %v666, %v698
        %v737 = vmul.f32 %v667, %v698
        %v738 = vmul.f32 %v668, %v698
        %v739 = vmul.f32 %v669, %v698
        %v740 = vmul.f32 %v670, %v698
        %v741 = vmul.f32 %v671, %v698
        %v742 = vmul.f32 %v672, %v698
        %v743 = vmul.f32 %v673, %v698
        %v744 = vmul.f32 %v674, %v698
        %v745 = vmul.f32 %v675, %v698
        %v746 = vmul.f32 %v676, %v698
        %v747 = vmul.f32 %v677, %v698
        %v748 = vmul.f32 %v678, %v698
        %v749 = vmul.f32 %v679, %v698
        %v750 = vmul.f32 %v680, %v698
        %v751 = vmul.f32 %v681, %v698
        %v752 = vmul.f32 %v682, %v698
        %v753 = vmul.f32 %v683, %v698
        %v754 = vmul.f32 %v684, %v698
        %v755 = vmul.f32 %v685, %v698
        %v756 = vmul.f32 %v686, %v698
        %v757 = vmul.f32 %v687, %v698
        %v758 = vmul.f32 %v688, %v698
        %v759 = vmul.f32 %v689, %v698
        %v760 = vmul.f32 %v690, %v698
        %v761 = vmul.f32 %v691, %v698
        %v762 = vmul.f32 %v692, %v698
        %v763 = vmul.f32 %v693, %v698
        %v765 = vlaneseq
        %v766 = vshrl.u32 %v765, 7
        %v767 = vsub.s32 0, %v766
        %v768 = vrot.slane %v629, %v767
        %v770 = vadd.f32 %v700, %v768
        %v771 = vadd.f32 %v701, %v768
        %v772 = vadd.f32 %v702, %v768
        %v773 = vadd.f32 %v703, %v768
        %v774 = vadd.f32 %v704, %v768
        %v775 = vadd.f32 %v705, %v768
        %v776 = vadd.f32 %v706, %v768
        %v777 = vadd.f32 %v707, %v768
        %v778 = vadd.f32 %v708, %v768
        %v779 = vadd.f32 %v709, %v768
        %v780 = vadd.f32 %v710, %v768
        %v781 = vadd.f32 %v711, %v768
        %v782 = vadd.f32 %v712, %v768
        %v783 = vadd.f32 %v713, %v768
        %v784 = vadd.f32 %v714, %v768
        %v785 = vadd.f32 %v715, %v768
        %v786 = vadd.f32 %v716, %v768
        %v787 = vadd.f32 %v717, %v768
        %v788 = vadd.f32 %v718, %v768
        %v789 = vadd.f32 %v719, %v768
        %v790 = vadd.f32 %v720, %v768
        %v791 = vadd.f32 %v721, %v768
        %v792 = vadd.f32 %v722, %v768
        %v793 = vadd.f32 %v723, %v768
        %v794 = vadd.f32 %v724, %v768
        %v795 = vadd.f32 %v725, %v768
        %v796 = vadd.f32 %v726, %v768
        %v797 = vadd.f32 %v727, %v768
        %v798 = vadd.f32 %v728, %v768
        %v799 = vadd.f32 %v729, %v768
        %v800 = vadd.f32 %v730, %v768
        %v801 = vadd.f32 %v731, %v768
        %v802 = vadd.f32 %v732, %v768
        %v803 = vadd.f32 %v733, %v768
        %v804 = vadd.f32 %v734, %v768
        %v805 = vadd.f32 %v735, %v768
        %v806 = vadd.f32 %v736, %v768
        %v807 = vadd.f32 %v737, %v768
        %v808 = vadd.f32 %v738, %v768
        %v809 = vadd.f32 %v739, %v768
        %v810 = vadd.f32 %v740, %v768
        %v811 = vadd.f32 %v741, %v768
        %v812 = vadd.f32 %v742, %v768
        %v813 = vadd.f32 %v743, %v768
        %v814 = vadd.f32 %v744, %v768
        %v815 = vadd.f32 %v745, %v768
        %v816 = vadd.f32 %v746, %v768
        %v817 = vadd.f32 %v747, %v768
        %v818 = vadd.f32 %v748, %v768
        %v819 = vadd.f32 %v749, %v768
        %v820 = vadd.f32 %v750, %v768
        %v821 = vadd.f32 %v751, %v768
        %v822 = vadd.f32 %v752, %v768
        %v823 = vadd.f32 %v753, %v768
        %v824 = vadd.f32 %v754, %v768
        %v825 = vadd.f32 %v755, %v768
        %v826 = vadd.f32 %v756, %v768
        %v827 = vadd.f32 %v757, %v768
        %v828 = vadd.f32 %v758, %v768
        %v829 = vadd.f32 %v759, %v768
        %v830 = vadd.f32 %v760, %v768
        %v831 = vadd.f32 %v761, %v768
        %v832 = vadd.f32 %v762, %v768
        %v833 = vadd.f32 %v763, %v768
        %v834 = vmax.f32 %v770, 0.0
        %v835 = vmax.f32 %v771, 0.0
        %v836 = vmax.f32 %v772, 0.0
        %v837 = vmax.f32 %v773, 0.0
        %v838 = vmax.f32 %v774, 0.0
        %v839 = vmax.f32 %v775, 0.0
        %v840 = vmax.f32 %v776, 0.0
        %v841 = vmax.f32 %v777, 0.0
        %v842 = vmax.f32 %v778, 0.0
        %v843 = vmax.f32 %v779, 0.0
        %v844 = vmax.f32 %v780, 0.0
        %v845 = vmax.f32 %v781, 0.0
        %v846 = vmax.f32 %v782, 0.0
        %v847 = vmax.f32 %v783, 0.0
        %v848 = vmax.f32 %v784, 0.0
        %v849 = vmax.f32 %v785, 0.0
        %v850 = vmax.f32 %v786, 0.0
        %v851 = vmax.f32 %v787, 0.0
        %v852 = vmax.f32 %v788, 0.0
        %v853 = vmax.f32 %v789, 0.0
        %v854 = vmax.f32 %v790, 0.0
        %v855 = vmax.f32 %v791, 0.0
        %v856 = vmax.f32 %v792, 0.0
        %v857 = vmax.f32 %v793, 0.0
        %v858 = vmax.f32 %v794, 0.0
        %v859 = vmax.f32 %v795, 0.0
        %v860 = vmax.f32 %v796, 0.0
        %v861 = vmax.f32 %v797, 0.0
        %v862 = vmax.f32 %v798, 0.0
        %v863 = vmax.f32 %v799, 0.0
        %v864 = vmax.f32 %v800, 0.0
        %v865 = vmax.f32 %v801, 0.0
        %v866 = vmax.f32 %v802, 0.0
        %v867 = vmax.f32 %v803, 0.0
        %v868 = vmax.f32 %v804, 0.0
        %v869 = vmax.f32 %v805, 0.0
        %v870 = vmax.f32 %v806, 0.0
        %v871 = vmax.f32 %v807, 0.0
        %v872 = vmax.f32 %v808, 0.0
        %v873 = vmax.f32 %v809, 0.0
        %v874 = vmax.f32 %v810, 0.0
        %v875 = vmax.f32 %v811, 0.0
        %v876 = vmax.f32 %v812, 0.0
        %v877 = vmax.f32 %v813, 0.0
        %v878 = vmax.f32 %v814, 0.0
        %v879 = vmax.f32 %v815, 0.0
        %v880 = vmax.f32 %v816, 0.0
        %v881 = vmax.f32 %v817, 0.0
        %v882 = vmax.f32 %v818, 0.0
        %v883 = vmax.f32 %v819, 0.0
        %v884 = vmax.f32 %v820, 0.0
        %v885 = vmax.f32 %v821, 0.0
        %v886 = vmax.f32 %v822, 0.0
        %v887 = vmax.f32 %v823, 0.0
        %v888 = vmax.f32 %v824, 0.0
        %v889 = vmax.f32 %v825, 0.0
        %v890 = vmax.f32 %v826, 0.0
        %v891 = vmax.f32 %v827, 0.0
        %v892 = vmax.f32 %v828, 0.0
        %v893 = vmax.f32 %v829, 0.0
        %v894 = vmax.f32 %v830, 0.0
        %v895 = vmax.f32 %v831, 0.0
        %v896 = vmax.f32 %v832, 0.0
        %v897 = vmax.f32 %v833, 0.0
        %898 = vst [vmem:[%s4] sm:$0xff] %v834
        %899 = vst [vmem:[%s4 + $0x8] sm:$0xff] %v835
        %900 = vst [vmem:[%s4 + $0x10] sm:$0xff] %v836
        %901 = vst [vmem:[%s4 + $0x18] sm:$0xff] %v837
        %902 = vst [vmem:[%s4 + $0x20] sm:$0xff] %v838
        %903 = vst [vmem:[%s4 + $0x28] sm:$0xff] %v839
        %904 = vst [vmem:[%s4 + $0x30] sm:$0xff] %v840
        %905 = vst [vmem:[%s4 + $0x38] sm:$0xff] %v841
        %906 = vst [vmem:[%s4 + $0x40] sm:$0xff] %v842
        %907 = vst [vmem:[%s4 + $0x48] sm:$0xff] %v843
        %908 = vst [vmem:[%s4 + $0x50] sm:$0xff] %v844
        %909 = vst [vmem:[%s4 + $0x58] sm:$0xff] %v845
        %910 = vst [vmem:[%s4 + $0x60] sm:$0xff] %v846
        %911 = vst [vmem:[%s4 + $0x68] sm:$0xff] %v847
        %912 = vst [vmem:[%s4 + $0x70] sm:$0xff] %v848
        %913 = vst [vmem:[%s4 + $0x78] sm:$0xff] %v849
        %914 = vst [vmem:[%s4 + $0x80] sm:$0xff] %v850
        %915 = vst [vmem:[%s4 + $0x88] sm:$0xff] %v851
        %916 = vst [vmem:[%s4 + $0x90] sm:$0xff] %v852
        %917 = vst [vmem:[%s4 + $0x98] sm:$0xff] %v853
        %918 = vst [vmem:[%s4 + $0xa0] sm:$0xff] %v854
        %919 = vst [vmem:[%s4 + $0xa8] sm:$0xff] %v855
        %920 = vst [vmem:[%s4 + $0xb0] sm:$0xff] %v856
        %921 = vst [vmem:[%s4 + $0xb8] sm:$0xff] %v857
        %922 = vst [vmem:[%s4 + $0xc0] sm:$0xff] %v858
        %923 = vst [vmem:[%s4 + $0xc8] sm:$0xff] %v859
        %924 = vst [vmem:[%s4 + $0xd0] sm:$0xff] %v860
        %925 = vst [vmem:[%s4 + $0xd8] sm:$0xff] %v861
        %926 = vst [vmem:[%s4 + $0xe0] sm:$0xff] %v862
        %927 = vst [vmem:[%s4 + $0xe8] sm:$0xff] %v863
        %928 = vst [vmem:[%s4 + $0xf0] sm:$0xff] %v864
        %929 = vst [vmem:[%s4 + $0xf8] sm:$0xff] %v865
        %930 = vst [vmem:[%s4 + $0x100] sm:$0xff] %v866
        %931 = vst [vmem:[%s4 + $0x108] sm:$0xff] %v867
        %932 = vst [vmem:[%s4 + $0x110] sm:$0xff] %v868
        %933 = vst [vmem:[%s4 + $0x118] sm:$0xff] %v869
        %934 = vst [vmem:[%s4 + $0x120] sm:$0xff] %v870
        %935 = vst [vmem:[%s4 + $0x128] sm:$0xff] %v871
        %936 = vst [vmem:[%s4 + $0x130] sm:$0xff] %v872
        %937 = vst [vmem:[%s4 + $0x138] sm:$0xff] %v873
        %938 = vst [vmem:[%s4 + $0x140] sm:$0xff] %v874
        %939 = vst [vmem:[%s4 + $0x148] sm:$0xff] %v875
        %940 = vst [vmem:[%s4 + $0x150] sm:$0xff] %v876
        %941 = vst [vmem:[%s4 + $0x158] sm:$0xff] %v877
        %942 = vst [vmem:[%s4 + $0x160] sm:$0xff] %v878
        %943 = vst [vmem:[%s4 + $0x168] sm:$0xff] %v879
        %944 = vst [vmem:[%s4 + $0x170] sm:$0xff] %v880
        %945 = vst [vmem:[%s4 + $0x178] sm:$0xff] %v881
        %946 = vst [vmem:[%s4 + $0x180] sm:$0xff] %v882
        %947 = vst [vmem:[%s4 + $0x188] sm:$0xff] %v883
        %948 = vst [vmem:[%s4 + $0x190] sm:$0xff] %v884
        %949 = vst [vmem:[%s4 + $0x198] sm:$0xff] %v885
        %950 = vst [vmem:[%s4 + $0x1a0] sm:$0xff] %v886
        %951 = vst [vmem:[%s4 + $0x1a8] sm:$0xff] %v887
        %952 = vst [vmem:[%s4 + $0x1b0] sm:$0xff] %v888
        %953 = vst [vmem:[%s4 + $0x1b8] sm:$0xff] %v889
        %954 = vst [vmem:[%s4 + $0x1c0] sm:$0xff] %v890
        %955 = vst [vmem:[%s4 + $0x1c8] sm:$0xff] %v891
        %956 = vst [vmem:[%s4 + $0x1d0] sm:$0xff] %v892
        %957 = vst [vmem:[%s4 + $0x1d8] sm:$0xff] %v893
        %958 = vst [vmem:[%s4 + $0x1e0] sm:$0xff] %v894
        %959 = vst [vmem:[%s4 + $0x1e8] sm:$0xff] %v895
        %960 = vst [vmem:[%s4 + $0x1f0] sm:$0xff] %v896
        %961 = vst [vmem:[%s4 + $0x1f8] sm:$0xff] %v897
      $region44: #{_lambda_.7} parent=35 // pred_fallthru
        _
      // Predicated region
      $region45: #{_lambda_.7} parent=35 // pred_check
        %p962 = pneg %p122
      $region46: #{_lambda_.7} parent=35 // pred_check_branch
        %964 = sbr.rel (%p962) target = $region48
      $region47: #{_lambda_.7} parent=35 // pred_region
        _
      $region48: #{_lambda_.7} parent=35 // pred_fallthru
        _
      // Predicated region
      $region49: #{_lambda_.7} parent=35 // pred_check
        %p965 = pneg %p122
      $region50: #{_lambda_.7} parent=35 // pred_check_branch
        %967 = sbr.rel (%p965) target = $region52
      $region51: #{_lambda_.7} parent=35 // pred_region
        _
      $region52: #{_lambda_.7} parent=35 // pred_fallthru
        _
    $region36: #{_lambda_.7} parent=5 // pred_fallthru
      _
    %p968 = scmp.le.s32.totalorder 2, %s10
    // Predicated region
    $region53: #{_lambda_.7} parent=5 // pred_check
      %p969 = pneg %p968
    $region54: #{_lambda_.7} parent=5 // pred_check_branch
      %971 = sbr.rel (%p969) target = $region56
    $region55: #{_lambda_.7} parent=5 // pred_region
      %s972 = ssub.s32 %s10, 2
    $region56: #{_lambda_.7} parent=5 // pred_fallthru
      _
  $region6: #{_lambda_.7} parent=0 // loop_footer
    %s14 = sadd.s32 1, %s10
  $region7: #{_lambda_.7} parent=0 // loop_footer_branch
    %9 = sbr.rel target = $region3
  $region8: #{_lambda_.7} parent=0 // loop_exit
    _

// kernel: _lambda_.8
$region0: #{_lambda_.8}
  #allocation0 [shape = 'u32[]', space=smem, size = 0x4, offset = 0x4, fixed_abs, tag = 'smem constant byte address 0x4 - core index']
  #allocation1 [shape = 'u32[144,128]{1,0:T(1,128)}', space=vmem, size = 0x12000, scoped, tag = 'internal scratch']
  #allocation2 [shape = 'f32[1,128]{1,0:T(1,128)}', space=vmem, size = 0x200, scoped, tag = 'scratch operand']
  #allocation3 [shape = 'f32[1,128]{1,0:T(1,128)}', space=vmem, size = 0x200, scoped, tag = 'scratch operand']
  %s0 = inlined_call_operand.vmem [shape: bf16[4,512,128], index: 0, kind: input, shape index: {}]
  %s1 = inlined_call_operand.vmem [shape: bf16[4,128,128], index: 1, kind: input, shape index: {}]
  %s2 = inlined_call_operand.vmem [shape: f32[1,128], index: 2, kind: input, shape index: {}]
  %s3 = inlined_call_operand.vmem [shape: f32[1,128], index: 3, kind: input, shape index: {}]
  %s4 = inlined_call_operand.vmem [shape: f32[4,512,128], index: 4, kind: output, shape index: {}]
  %s5 = sld [smem:[#allocation0]]
  $region57: #{_lambda_.8} parent=0
    _
  %s7 = ssub.s32 1, %s5
  %s8 = scalar_select 0, %s7, %s5
  loop: start=0, step=1, limit=6
  $region2: #{_lambda_.8} parent=0 // loop_pre_header
    _
  $region3: #{_lambda_.8} parent=0 // loop_header
    %s10 = sphi 0, %s14
    %p11 = scmp.ge.s32.totalorder %s10, 6
    %s20 = sphi 0, %s22
    %s23 = sphi 0, %s20
    %s24 = sphi 0, %s23
    %s40 = sphi 0, %s24
    %s46 = sphi 0, %s48
    %s49 = sphi 0, %s46
    %s50 = sphi 0, %s49
    %s66 = sphi 0, %s50
    %s70 = sphi 0, %s70
    %s72 = sphi 0, %s70
    %s73 = sphi 0, %s72
    %s87 = sphi 0, %s73
    %s91 = sphi 0, %s91
    %s93 = sphi 0, %s91
    %s94 = sphi 0, %s93
    %s108 = sphi 0, %s94
    %s112 = sphi 0, %s112
    %s114 = sphi 0, %s112
    %s115 = sphi 0, %s114
    %s129 = sphi 0, %s115
  $region4: #{_lambda_.8} parent=0 // loop_header_branch
    %13 = sbr.rel (%p11) target = $region8
  $region5: #{_lambda_.8} parent=0 // loop_body
    %s15 = ssub.s32 %s10, 1
    %s16 = ssub.s32 %s10, 2
    %s17 = sadd.s32 %s10, 1
    %s18 = ssub.s32 %s10, %s17
    %p19 = scmp.eq.s32.totalorder %s18, 0
    %s21 = sadd.s32 %s20, 1
    %s22 = scalar_select %p19, %s20, %s21
    %p25 = pneg %p19
    %p26 = scmp.eq.s32.totalorder %s10, 3
    %p27 = por %p25, %p26
    %p28 = scmp.ne.s32.totalorder %s20, %s23
    %p29 = scmp.eq.s32.totalorder %s10, 0
    %p30 = por %p28, %p29
    %p31 = scmp.ne.s32.totalorder %s20, %s23
    %p32 = scmp.eq.s32.totalorder %s15, 3
    %p33 = por %p31, %p32
    %p34 = scmp.ne.s32.totalorder %s23, %s24
    %p35 = scmp.eq.s32.totalorder %s15, 0
    %p36 = por %p34, %p35
    %p37 = scmp.ne.s32.totalorder %s23, %s24
    %p38 = scmp.eq.s32.totalorder %s16, 3
    %p39 = por %p37, %p38
    %p41 = scmp.ne.s32.totalorder %s24, %s40
    %p42 = scmp.eq.s32.totalorder %s16, 0
    %p43 = por %p41, %p42
    %s44 = ssub.s32 %s10, %s17
    %p45 = scmp.eq.s32.totalorder %s44, 0
    %s47 = sadd.s32 %s46, 1
    %s48 = scalar_select %p45, %s46, %s47
    %p51 = pneg %p45
    %p52 = scmp.eq.s32.totalorder %s10, 3
    %p53 = por %p51, %p52
    %p54 = scmp.ne.s32.totalorder %s46, %s49
    %p55 = scmp.eq.s32.totalorder %s10, 0
    %p56 = por %p54, %p55
    %p57 = scmp.ne.s32.totalorder %s46, %s49
    %p58 = scmp.eq.s32.totalorder %s15, 3
    %p59 = por %p57, %p58
    %p60 = scmp.ne.s32.totalorder %s49, %s50
    %p61 = scmp.eq.s32.totalorder %s15, 0
    %p62 = por %p60, %p61
    %p63 = scmp.ne.s32.totalorder %s49, %s50
    %p64 = scmp.eq.s32.totalorder %s16, 3
    %p65 = por %p63, %p64
    %p67 = scmp.ne.s32.totalorder %s50, %s66
    %p68 = scmp.eq.s32.totalorder %s16, 0
    %p69 = por %p67, %p68
    %s71 = sadd.s32 %s70, 1
    %p74 = scmp.eq.s32.totalorder %s10, 3
    %p75 = scmp.ne.s32.totalorder %s70, %s72
    %p76 = scmp.eq.s32.totalorder %s10, 0
    %p77 = por %p75, %p76
    %p78 = scmp.ne.s32.totalorder %s70, %s72
    %p79 = scmp.eq.s32.totalorder %s15, 3
    %p80 = por %p78, %p79
    %p81 = scmp.ne.s32.totalorder %s72, %s73
    %p82 = scmp.eq.s32.totalorder %s15, 0
    %p83 = por %p81, %p82
    %p84 = scmp.ne.s32.totalorder %s72, %s73
    %p85 = scmp.eq.s32.totalorder %s16, 3
    %p86 = por %p84, %p85
    %p88 = scmp.ne.s32.totalorder %s73, %s87
    %p89 = scmp.eq.s32.totalorder %s16, 0
    %p90 = por %p88, %p89
    %s92 = sadd.s32 %s91, 1
    %p95 = scmp.eq.s32.totalorder %s10, 3
    %p96 = scmp.ne.s32.totalorder %s91, %s93
    %p97 = scmp.eq.s32.totalorder %s10, 0
    %p98 = por %p96, %p97
    %p99 = scmp.ne.s32.totalorder %s91, %s93
    %p100 = scmp.eq.s32.totalorder %s15, 3
    %p101 = por %p99, %p100
    %p102 = scmp.ne.s32.totalorder %s93, %s94
    %p103 = scmp.eq.s32.totalorder %s15, 0
    %p104 = por %p102, %p103
    %p105 = scmp.ne.s32.totalorder %s93, %s94
    %p106 = scmp.eq.s32.totalorder %s16, 3
    %p107 = por %p105, %p106
    %p109 = scmp.ne.s32.totalorder %s94, %s108
    %p110 = scmp.eq.s32.totalorder %s16, 0
    %p111 = por %p109, %p110
    %s113 = sadd.s32 %s112, 1
    %p116 = scmp.eq.s32.totalorder %s10, 3
    %p117 = scmp.ne.s32.totalorder %s112, %s114
    %p118 = scmp.eq.s32.totalorder %s10, 0
    %p119 = por %p117, %p118
    %p120 = scmp.ne.s32.totalorder %s112, %s114
    %p121 = scmp.eq.s32.totalorder %s15, 3
    %p122 = por %p120, %p121
    %p123 = scmp.ne.s32.totalorder %s114, %s115
    %p124 = scmp.eq.s32.totalorder %s15, 0
    %p125 = por %p123, %p124
    %p126 = scmp.ne.s32.totalorder %s114, %s115
    %p127 = scmp.eq.s32.totalorder %s16, 3
    %p128 = por %p126, %p127
    %p130 = scmp.ne.s32.totalorder %s115, %s129
    %p131 = scmp.eq.s32.totalorder %s16, 0
    %p132 = por %p130, %p131
    %p133 = scmp.le.s32.totalorder 1, %s10
    %p134 = scmp.lt.s32.totalorder %s10, 5
    %p135 = pnand %p133, %p134
    %p136 = pneg %p135
    // Predicated region
    $region9: #{_lambda_.8} parent=5 // pred_check
      _
    $region10: #{_lambda_.8} parent=5 // pred_check_branch
      %138 = sbr.rel (%p135) target = $region12
    $region11: #{_lambda_.8} parent=5 // pred_region
      %s139 = ssub.s32 %s10, 1
      // Predicated region
      $region13: #{_lambda_.8} parent=11 // pred_check
        %p140 = pneg %p83
      $region14: #{_lambda_.8} parent=11 // pred_check_branch
        %142 = sbr.rel (%p140) target = $region16
      $region15: #{_lambda_.8} parent=11 // pred_region
        _
      $region16: #{_lambda_.8} parent=11 // pred_fallthru
        _
      // Predicated region
      $region17: #{_lambda_.8} parent=11 // pred_check
        %p143 = pneg %p104
      $region18: #{_lambda_.8} parent=11 // pred_check_branch
        %145 = sbr.rel (%p143) target = $region20
      $region19: #{_lambda_.8} parent=11 // pred_region
        _
      $region20: #{_lambda_.8} parent=11 // pred_fallthru
        _
    $region12: #{_lambda_.8} parent=5 // pred_fallthru
      _
    %p146 = scmp.lt.s32.totalorder %s10, 4
    // Predicated region
    $region21: #{_lambda_.8} parent=5 // pred_check
      %p147 = pneg %p146
    $region22: #{_lambda_.8} parent=5 // pred_check_branch
      %149 = sbr.rel (%p147) target = $region24
    $region23: #{_lambda_.8} parent=5 // pred_region
      // Predicated region
      $region25: #{_lambda_.8} parent=23 // pred_check
        %p150 = pneg %p30
      $region26: #{_lambda_.8} parent=23 // pred_check_branch
        %152 = sbr.rel (%p150) target = $region28
      $region27: #{_lambda_.8} parent=23 // pred_region
        %p153 = scmp.lt.s32.totalorder %s10, 3
        %s154 = scalar_select %p153, %s10, 3
        %s155 = smul.addr %s154, 64
        %s156 = smul.addr %s155, 4
        %s157 = scalar_lea.vmem %s0, %s156
      $region28: #{_lambda_.8} parent=23 // pred_fallthru
        _
      // Predicated region
      $region29: #{_lambda_.8} parent=23 // pred_check
        %p158 = pneg %p56
      $region30: #{_lambda_.8} parent=23 // pred_check_branch
        %160 = sbr.rel (%p158) target = $region32
      $region31: #{_lambda_.8} parent=23 // pred_region
        %p161 = scmp.lt.s32.totalorder %s10, 3
        %s162 = scalar_select %p161, %s10, 3
        %s163 = smul.addr %s162, 16
        %s164 = smul.addr %s163, 4
        %s165 = scalar_lea.vmem %s1, %s164
      $region32: #{_lambda_.8} parent=23 // pred_fallthru
        _
    $region24: #{_lambda_.8} parent=5 // pred_fallthru
      _
    %p166 = scmp.le.s32.totalorder 1, %s10
    %p167 = scmp.lt.s32.totalorder %s10, 5
    %p168 = pnand %p166, %p167
    %p169 = pneg %p168
    // Predicated region
    $region33: #{_lambda_.8} parent=5 // pred_check
      _
    $region34: #{_lambda_.8} parent=5 // pred_check_branch
      %171 = sbr.rel (%p168) target = $region36
    $region35: #{_lambda_.8} parent=5 // pred_region
      %s172 = ssub.s32 %s10, 1
      %p173 = scmp.lt.s32.totalorder %s15, 3
      %s174 = scalar_select %p173, %s15, 3
      %s175 = smul.addr %s174, 64
      %s176 = smul.addr %s175, 4
      %s177 = scalar_lea.vmem %s0, %s176
      %p178 = pneg %p36
      %p179 = pneg %p33
      %p180 = scmp.lt.s32.totalorder %s15, 3
      %s181 = scalar_select %p180, %s15, 3
      %s182 = smul.addr %s181, 16
      %s183 = smul.addr %s182, 4
      %s184 = scalar_lea.vmem %s1, %s183
      %p185 = pneg %p62
      %p186 = pneg %p59
      %p187 = pneg %p83
      %p188 = pneg %p80
      %p189 = pneg %p104
      %p190 = pneg %p101
      %p191 = pneg %p125
      %p192 = pneg %p122
      %p193 = scmp.lt.s32.totalorder %s15, 3
      %s194 = scalar_select %p193, %s15, 3
      %s195 = smul.addr %s194, 64
      %s196 = smul.addr %s195, 4
      %s197 = scalar_lea.vmem %s0, %s196
      %p198 = scmp.lt.s32.totalorder %s15, 3
      %s199 = scalar_select %p198, %s15, 3
      %s200 = smul.addr %s199, 16
      %s201 = smul.addr %s200, 4
      %s202 = scalar_lea.vmem %s1, %s201
      %p204 = scmp.eq.s32.totalorder %s15, 0
      // Predicated region
      $region37: #{_lambda_.8} parent=35 // pred_check
        %p205 = pneg %p204
      $region38: #{_lambda_.8} parent=35 // pred_check_branch
        %207 = sbr.rel (%p205) target = $region40
      $region39: #{_lambda_.8} parent=35 // pred_region
        %208 = vst [vmem:[#allocation2] sm:$0x1] 0.0
        %209 = vst [vmem:[#allocation3] sm:$0x1] 0.0
      $region40: #{_lambda_.8} parent=35 // pred_fallthru
        _
      %v210 = vld [vmem:[%s197] sm:$0xf]
      %v211 = vld [vmem:[%s197 + $0x4] sm:$0xf]
      %v212 = vld [vmem:[%s197 + $0x8] sm:$0xf]
      %v213 = vld [vmem:[%s197 + $0xc] sm:$0xf]
      %v214 = vld [vmem:[%s197 + $0x10] sm:$0xf]
      %v215 = vld [vmem:[%s197 + $0x14] sm:$0xf]
      %v216 = vld [vmem:[%s197 + $0x18] sm:$0xf]
      %v217 = vld [vmem:[%s197 + $0x1c] sm:$0xf]
      %v218 = vld [vmem:[%s197 + $0x20] sm:$0xf]
      %v219 = vld [vmem:[%s197 + $0x24] sm:$0xf]
      %v220 = vld [vmem:[%s197 + $0x28] sm:$0xf]
      %v221 = vld [vmem:[%s197 + $0x2c] sm:$0xf]
      %v222 = vld [vmem:[%s197 + $0x30] sm:$0xf]
      %v223 = vld [vmem:[%s197 + $0x34] sm:$0xf]
      %v224 = vld [vmem:[%s197 + $0x38] sm:$0xf]
      %v225 = vld [vmem:[%s197 + $0x3c] sm:$0xf]
      %v226 = vld [vmem:[%s197 + $0x40] sm:$0xf]
      %v227 = vld [vmem:[%s197 + $0x44] sm:$0xf]
      %v228 = vld [vmem:[%s197 + $0x48] sm:$0xf]
      %v229 = vld [vmem:[%s197 + $0x4c] sm:$0xf]
      %v230 = vld [vmem:[%s197 + $0x50] sm:$0xf]
      %v231 = vld [vmem:[%s197 + $0x54] sm:$0xf]
      %v232 = vld [vmem:[%s197 + $0x58] sm:$0xf]
      %v233 = vld [vmem:[%s197 + $0x5c] sm:$0xf]
      %v234 = vld [vmem:[%s197 + $0x60] sm:$0xf]
      %v235 = vld [vmem:[%s197 + $0x64] sm:$0xf]
      %v236 = vld [vmem:[%s197 + $0x68] sm:$0xf]
      %v237 = vld [vmem:[%s197 + $0x6c] sm:$0xf]
      %v238 = vld [vmem:[%s197 + $0x70] sm:$0xf]
      %v239 = vld [vmem:[%s197 + $0x74] sm:$0xf]
      %v240 = vld [vmem:[%s197 + $0x78] sm:$0xf]
      %v241 = vld [vmem:[%s197 + $0x7c] sm:$0xf]
      %v242 = vld [vmem:[%s197 + $0x80] sm:$0xf]
      %v243 = vld [vmem:[%s197 + $0x84] sm:$0xf]
      %v244 = vld [vmem:[%s197 + $0x88] sm:$0xf]
      %v245 = vld [vmem:[%s197 + $0x8c] sm:$0xf]
      %v246 = vld [vmem:[%s197 + $0x90] sm:$0xf]
      %v247 = vld [vmem:[%s197 + $0x94] sm:$0xf]
      %v248 = vld [vmem:[%s197 + $0x98] sm:$0xf]
      %v249 = vld [vmem:[%s197 + $0x9c] sm:$0xf]
      %v250 = vld [vmem:[%s197 + $0xa0] sm:$0xf]
      %v251 = vld [vmem:[%s197 + $0xa4] sm:$0xf]
      %v252 = vld [vmem:[%s197 + $0xa8] sm:$0xf]
      %v253 = vld [vmem:[%s197 + $0xac] sm:$0xf]
      %v254 = vld [vmem:[%s197 + $0xb0] sm:$0xf]
      %v255 = vld [vmem:[%s197 + $0xb4] sm:$0xf]
      %v256 = vld [vmem:[%s197 + $0xb8] sm:$0xf]
      %v257 = vld [vmem:[%s197 + $0xbc] sm:$0xf]
      %v258 = vld [vmem:[%s197 + $0xc0] sm:$0xf]
      %v259 = vld [vmem:[%s197 + $0xc4] sm:$0xf]
      %v260 = vld [vmem:[%s197 + $0xc8] sm:$0xf]
      %v261 = vld [vmem:[%s197 + $0xcc] sm:$0xf]
      %v262 = vld [vmem:[%s197 + $0xd0] sm:$0xf]
      %v263 = vld [vmem:[%s197 + $0xd4] sm:$0xf]
      %v264 = vld [vmem:[%s197 + $0xd8] sm:$0xf]
      %v265 = vld [vmem:[%s197 + $0xdc] sm:$0xf]
      %v266 = vld [vmem:[%s197 + $0xe0] sm:$0xf]
      %v267 = vld [vmem:[%s197 + $0xe4] sm:$0xf]
      %v268 = vld [vmem:[%s197 + $0xe8] sm:$0xf]
      %v269 = vld [vmem:[%s197 + $0xec] sm:$0xf]
      %v270 = vld [vmem:[%s197 + $0xf0] sm:$0xf]
      %v271 = vld [vmem:[%s197 + $0xf4] sm:$0xf]
      %v272 = vld [vmem:[%s197 + $0xf8] sm:$0xf]
      %v273 = vld [vmem:[%s197 + $0xfc] sm:$0xf]
      %v274 = vld [vmem:[%s202] sm:$0xf]
      %v275 = vld [vmem:[%s202 + $0x4] sm:$0xf]
      %v276 = vld [vmem:[%s202 + $0x8] sm:$0xf]
      %v277 = vld [vmem:[%s202 + $0xc] sm:$0xf]
      %v278 = vld [vmem:[%s202 + $0x10] sm:$0xf]
      %v279 = vld [vmem:[%s202 + $0x14] sm:$0xf]
      %v280 = vld [vmem:[%s202 + $0x18] sm:$0xf]
      %v281 = vld [vmem:[%s202 + $0x1c] sm:$0xf]
      %v282 = vld [vmem:[%s202 + $0x20] sm:$0xf]
      %v283 = vld [vmem:[%s202 + $0x24] sm:$0xf]
      %v284 = vld [vmem:[%s202 + $0x28] sm:$0xf]
      %v285 = vld [vmem:[%s202 + $0x2c] sm:$0xf]
      %v286 = vld [vmem:[%s202 + $0x30] sm:$0xf]
      %v287 = vld [vmem:[%s202 + $0x34] sm:$0xf]
      %v288 = vld [vmem:[%s202 + $0x38] sm:$0xf]
      %v289 = vld [vmem:[%s202 + $0x3c] sm:$0xf]
      %v354 = vunpack.c.l.b16 %v210
      %v355 = vunpack.c.l.b16 %v211
      %v356 = vunpack.c.l.b16 %v212
      %v357 = vunpack.c.l.b16 %v213
      %v358 = vunpack.c.l.b16 %v214
      %v359 = vunpack.c.l.b16 %v215
      %v360 = vunpack.c.l.b16 %v216
      %v361 = vunpack.c.l.b16 %v217
      %v362 = vunpack.c.l.b16 %v218
      %v363 = vunpack.c.l.b16 %v219
      %v364 = vunpack.c.l.b16 %v220
      %v365 = vunpack.c.l.b16 %v221
      %v366 = vunpack.c.l.b16 %v222
      %v367 = vunpack.c.l.b16 %v223
      %v368 = vunpack.c.l.b16 %v224
      %v369 = vunpack.c.l.b16 %v225
      %v370 = vunpack.c.l.b16 %v226
      %v371 = vunpack.c.l.b16 %v227
      %v372 = vunpack.c.l.b16 %v228
      %v373 = vunpack.c.l.b16 %v229
      %v374 = vunpack.c.l.b16 %v230
      %v375 = vunpack.c.l.b16 %v231
      %v376 = vunpack.c.l.b16 %v232
      %v377 = vunpack.c.l.b16 %v233
      %v378 = vunpack.c.l.b16 %v234
      %v379 = vunpack.c.l.b16 %v235
      %v380 = vunpack.c.l.b16 %v236
      %v381 = vunpack.c.l.b16 %v237
      %v382 = vunpack.c.l.b16 %v238
      %v383 = vunpack.c.l.b16 %v239
      %v384 = vunpack.c.l.b16 %v240
      %v385 = vunpack.c.l.b16 %v241
      %v386 = vunpack.c.l.b16 %v242
      %v387 = vunpack.c.l.b16 %v243
      %v388 = vunpack.c.l.b16 %v244
      %v389 = vunpack.c.l.b16 %v245
      %v390 = vunpack.c.l.b16 %v246
      %v391 = vunpack.c.l.b16 %v247
      %v392 = vunpack.c.l.b16 %v248
      %v393 = vunpack.c.l.b16 %v249
      %v394 = vunpack.c.l.b16 %v250
      %v395 = vunpack.c.l.b16 %v251
      %v396 = vunpack.c.l.b16 %v252
      %v397 = vunpack.c.l.b16 %v253
      %v398 = vunpack.c.l.b16 %v254
      %v399 = vunpack.c.l.b16 %v255
      %v400 = vunpack.c.l.b16 %v256
      %v401 = vunpack.c.l.b16 %v257
      %v402 = vunpack.c.l.b16 %v258
      %v403 = vunpack.c.l.b16 %v259
      %v404 = vunpack.c.l.b16 %v260
      %v405 = vunpack.c.l.b16 %v261
      %v406 = vunpack.c.l.b16 %v262
      %v407 = vunpack.c.l.b16 %v263
      %v408 = vunpack.c.l.b16 %v264
      %v409 = vunpack.c.l.b16 %v265
      %v410 = vunpack.c.l.b16 %v266
      %v411 = vunpack.c.l.b16 %v267
      %v412 = vunpack.c.l.b16 %v268
      %v413 = vunpack.c.l.b16 %v269
      %v414 = vunpack.c.l.b16 %v270
      %v415 = vunpack.c.l.b16 %v271
      %v416 = vunpack.c.l.b16 %v272
      %v417 = vunpack.c.l.b16 %v273
      %v418 = vpack.c.b16 %v355, %v354
      %v419 = vpack.c.b16 %v357, %v356
      %v420 = vpack.c.b16 %v359, %v358
      %v421 = vpack.c.b16 %v361, %v360
      %v422 = vpack.c.b16 %v363, %v362
      %v423 = vpack.c.b16 %v365, %v364
      %v424 = vpack.c.b16 %v367, %v366
      %v425 = vpack.c.b16 %v369, %v368
      %v426 = vpack.c.b16 %v371, %v370
      %v427 = vpack.c.b16 %v373, %v372
      %v428 = vpack.c.b16 %v375, %v374
      %v429 = vpack.c.b16 %v377, %v376
      %v430 = vpack.c.b16 %v379, %v378
      %v431 = vpack.c.b16 %v381, %v380
      %v432 = vpack.c.b16 %v383, %v382
      %v433 = vpack.c.b16 %v385, %v384
      %v434 = vpack.c.b16 %v387, %v386
      %v435 = vpack.c.b16 %v389, %v388
      %v436 = vpack.c.b16 %v391, %v390
      %v437 = vpack.c.b16 %v393, %v392
      %v438 = vpack.c.b16 %v395, %v394
      %v439 = vpack.c.b16 %v397, %v396
      %v440 = vpack.c.b16 %v399, %v398
      %v441 = vpack.c.b16 %v401, %v400
      %v442 = vpack.c.b16 %v403, %v402
      %v443 = vpack.c.b16 %v405, %v404
      %v444 = vpack.c.b16 %v407, %v406
      %v445 = vpack.c.b16 %v409, %v408
      %v446 = vpack.c.b16 %v411, %v410
      %v447 = vpack.c.b16 %v413, %v412
      %v448 = vpack.c.b16 %v415, %v414
      %v449 = vpack.c.b16 %v417, %v416
      %v498 = vunpack.c.l.b16 %v274
      %v499 = vunpack.c.l.b16 %v275
      %v500 = vunpack.c.l.b16 %v276
      %v501 = vunpack.c.l.b16 %v277
      %v502 = vunpack.c.l.b16 %v278
      %v503 = vunpack.c.l.b16 %v279
      %v504 = vunpack.c.l.b16 %v280
      %v505 = vunpack.c.l.b16 %v281
      %v506 = vunpack.c.l.b16 %v282
      %v507 = vunpack.c.l.b16 %v283
      %v508 = vunpack.c.l.b16 %v284
      %v509 = vunpack.c.l.b16 %v285
      %v510 = vunpack.c.l.b16 %v286
      %v511 = vunpack.c.l.b16 %v287
      %v512 = vunpack.c.l.b16 %v288
      %v513 = vunpack.c.l.b16 %v289
      %v514 = vpack.c.b16 %v499, %v498
      %v515 = vpack.c.b16 %v501, %v500
      %v516 = vpack.c.b16 %v503, %v502
      %v517 = vpack.c.b16 %v505, %v504
      %v518 = vpack.c.b16 %v507, %v506
      %v519 = vpack.c.b16 %v509, %v508
      %v520 = vpack.c.b16 %v511, %v510
      %v521 = vpack.c.b16 %v513, %v512
      %530 = vmatprep.subr.bf16.mxu0 0
      %531 = vmatpush1.bf16.msra.mxu0 %v514
      %532 = vmatprep.subr.bf16.mxu0 0
      %533 = vmatpush1.bf16.msra.mxu0 %v515
      %534 = vmatprep.subr.bf16.mxu0 0
      %535 = vmatpush1.bf16.msra.mxu0 %v516
      %536 = vmatprep.subr.bf16.mxu0 0
      %537 = vmatpush1.bf16.msra.mxu0 %v517
      %538 = vmatprep.subr.bf16.mxu0 0
      %539 = vmatpush1.bf16.msra.mxu0 %v518
      %540 = vmatprep.subr.bf16.mxu0 0
      %541 = vmatpush1.bf16.msra.mxu0 %v519
      %542 = vmatprep.subr.bf16.mxu0 0
      %543 = vmatpush1.bf16.msra.mxu0 %v520
      %544 = vmatprep.subr.bf16.mxu0 0
      %545 = vmatpush1.bf16.msra.mxu0 %v521
      %546 = vmatprep.subr.bf16.mxu0 0
      %547 = vmatpush1.bf16.msra.mxu0 0
      %548 = vmatprep.subr.bf16.mxu0 0
      %549 = vmatpush1.bf16.msra.mxu0 0
      %550 = vmatprep.subr.bf16.mxu0 0
      %551 = vmatpush1.bf16.msra.mxu0 0
      %552 = vmatprep.subr.bf16.mxu0 0
      %553 = vmatpush1.bf16.msra.mxu0 0
      %554 = vmatprep.subr.bf16.mxu0 0
      %555 = vmatpush1.bf16.msra.mxu0 0
      %556 = vmatprep.subr.bf16.mxu0 0
      %557 = vmatpush1.bf16.msra.mxu0 0
      %558 = vmatprep.subr.bf16.mxu0 0
      %559 = vmatpush1.bf16.msra.mxu0 0
      %560 = vmatprep.subr.bf16.mxu0 0
      %561 = vmatpush1.bf16.msra.mxu0 0
      %562 = vmatprep.mubr.bf16.mxu0 0
      %563 = vmatmul.mubr.bf16.gmra.mrb[0].mxu0 %v418
      %v564 = vpop.f32.mrb[0].mxu0
      %v565 = vadd.f32 0.0, %v564
      %v566 = vpop.f32.mrb[0].mxu0
      %v567 = vpop.f32.mrb[0].mxu0
      %v568 = vadd.f32 0.0, %v567
      %v569 = vpop.f32.mrb[0].mxu0
      %570 = vmatprep.mubr.bf16.mxu0 0
      %571 = vmatmul.mubr.bf16.gmra.mrb[0].mxu0 %v419
      %v572 = vpop.f32.mrb[0].mxu0
      %v573 = vadd.f32 0.0, %v572
      %v574 = vpop.f32.mrb[0].mxu0
      %v575 = vpop.f32.mrb[0].mxu0
      %v576 = vadd.f32 0.0, %v575
      %v577 = vpop.f32.mrb[0].mxu0
      %578 = vmatprep.mubr.bf16.mxu0 0
      %579 = vmatmul.mubr.bf16.gmra.mrb[0].mxu0 %v420
      %v580 = vpop.f32.mrb[0].mxu0
      %v581 = vadd.f32 0.0, %v580
      %v582 = vpop.f32.mrb[0].mxu0
      %v583 = vpop.f32.mrb[0].mxu0
      %v584 = vadd.f32 0.0, %v583
      %v585 = vpop.f32.mrb[0].mxu0
      %586 = vmatprep.mubr.bf16.mxu0 0
      %587 = vmatmul.mubr.bf16.gmra.mrb[0].mxu0 %v421
      %v588 = vpop.f32.mrb[0].mxu0
      %v589 = vadd.f32 0.0, %v588
      %v590 = vpop.f32.mrb[0].mxu0
      %v591 = vpop.f32.mrb[0].mxu0
      %v592 = vadd.f32 0.0, %v591
      %v593 = vpop.f32.mrb[0].mxu0
      %594 = vmatprep.mubr.bf16.mxu0 0
      %595 = vmatmul.mubr.bf16.gmra.mrb[0].mxu0 %v422
      %v596 = vpop.f32.mrb[0].mxu0
      %v597 = vadd.f32 0.0, %v596
      %v598 = vpop.f32.mrb[0].mxu0
      %v599 = vpop.f32.mrb[0].mxu0
      %v600 = vadd.f32 0.0, %v599
      %v601 = vpop.f32.mrb[0].mxu0
      %602 = vmatprep.mubr.bf16.mxu0 0
      %603 = vmatmul.mubr.bf16.gmra.mrb[0].mxu0 %v423
      %v604 = vpop.f32.mrb[0].mxu0
      %v605 = vadd.f32 0.0, %v604
      %v606 = vpop.f32.mrb[0].mxu0
      %v607 = vpop.f32.mrb[0].mxu0
      %v608 = vadd.f32 0.0, %v607
      %v609 = vpop.f32.mrb[0].mxu0
      %610 = vmatprep.mubr.bf16.mxu0 0
      %611 = vmatmul.mubr.bf16.gmra.mrb[0].mxu0 %v424
      %v612 = vpop.f32.mrb[0].mxu0
      %v613 = vadd.f32 0.0, %v612
      %v614 = vpop.f32.mrb[0].mxu0
      %v615 = vpop.f32.mrb[0].mxu0
      %v616 = vadd.f32 0.0, %v615
      %v617 = vpop.f32.mrb[0].mxu0
      %618 = vmatprep.mubr.bf16.mxu0 0
      %619 = vmatmul.mubr.bf16.gmra.mrb[0].mxu0 %v425
      %v620 = vpop.f32.mrb[0].mxu0
      %v621 = vadd.f32 0.0, %v620
      %v622 = vpop.f32.mrb[0].mxu0
      %v623 = vpop.f32.mrb[0].mxu0
      %v624 = vadd.f32 0.0, %v623
      %v625 = vpop.f32.mrb[0].mxu0
      %626 = vmatprep.mubr.bf16.mxu0 0
      %627 = vmatmul.mubr.bf16.gmra.mrb[0].mxu0 %v426
      %v628 = vpop.f32.mrb[0].mxu0
      %v629 = vadd.f32 0.0, %v628
      %v630 = vpop.f32.mrb[0].mxu0
      %v631 = vpop.f32.mrb[0].mxu0
      %v632 = vadd.f32 0.0, %v631
      %v633 = vpop.f32.mrb[0].mxu0
      %634 = vmatprep.mubr.bf16.mxu0 0
      %635 = vmatmul.mubr.bf16.gmra.mrb[0].mxu0 %v427
      %v636 = vpop.f32.mrb[0].mxu0
      %v637 = vadd.f32 0.0, %v636
      %v638 = vpop.f32.mrb[0].mxu0
      %v639 = vpop.f32.mrb[0].mxu0
      %v640 = vadd.f32 0.0, %v639
      %v641 = vpop.f32.mrb[0].mxu0
      %642 = vmatprep.mubr.bf16.mxu0 0
      %643 = vmatmul.mubr.bf16.gmra.mrb[0].mxu0 %v428
      %v644 = vpop.f32.mrb[0].mxu0
      %v645 = vadd.f32 0.0, %v644
      %v646 = vpop.f32.mrb[0].mxu0
      %v647 = vpop.f32.mrb[0].mxu0
      %v648 = vadd.f32 0.0, %v647
      %v649 = vpop.f32.mrb[0].mxu0
      %650 = vmatprep.mubr.bf16.mxu0 0
      %651 = vmatmul.mubr.bf16.gmra.mrb[0].mxu0 %v429
      %v652 = vpop.f32.mrb[0].mxu0
      %v653 = vadd.f32 0.0, %v652
      %v654 = vpop.f32.mrb[0].mxu0
      %v655 = vpop.f32.mrb[0].mxu0
      %v656 = vadd.f32 0.0, %v655
      %v657 = vpop.f32.mrb[0].mxu0
      %658 = vmatprep.mubr.bf16.mxu0 0
      %659 = vmatmul.mubr.bf16.gmra.mrb[0].mxu0 %v430
      %v660 = vpop.f32.mrb[0].mxu0
      %v661 = vadd.f32 0.0, %v660
      %v662 = vpop.f32.mrb[0].mxu0
      %v663 = vpop.f32.mrb[0].mxu0
      %v664 = vadd.f32 0.0, %v663
      %v665 = vpop.f32.mrb[0].mxu0
      %666 = vmatprep.mubr.bf16.mxu0 0
      %667 = vmatmul.mubr.bf16.gmra.mrb[0].mxu0 %v431
      %v668 = vpop.f32.mrb[0].mxu0
      %v669 = vadd.f32 0.0, %v668
      %v670 = vpop.f32.mrb[0].mxu0
      %v671 = vpop.f32.mrb[0].mxu0
      %v672 = vadd.f32 0.0, %v671
      %v673 = vpop.f32.mrb[0].mxu0
      %674 = vmatprep.mubr.bf16.mxu0 0
      %675 = vmatmul.mubr.bf16.gmra.mrb[0].mxu0 %v432
      %v676 = vpop.f32.mrb[0].mxu0
      %v677 = vadd.f32 0.0, %v676
      %v678 = vpop.f32.mrb[0].mxu0
      %v679 = vpop.f32.mrb[0].mxu0
      %v680 = vadd.f32 0.0, %v679
      %v681 = vpop.f32.mrb[0].mxu0
      %682 = vmatprep.mubr.bf16.mxu0 0
      %683 = vmatmul.mubr.bf16.gmra.mrb[0].mxu0 %v433
      %v684 = vpop.f32.mrb[0].mxu0
      %v685 = vadd.f32 0.0, %v684
      %v686 = vpop.f32.mrb[0].mxu0
      %v687 = vpop.f32.mrb[0].mxu0
      %v688 = vadd.f32 0.0, %v687
      %v689 = vpop.f32.mrb[0].mxu0
      %690 = vmatprep.mubr.bf16.mxu0 0
      %691 = vmatmul.mubr.bf16.gmra.mrb[0].mxu0 %v434
      %v692 = vpop.f32.mrb[0].mxu0
      %v693 = vadd.f32 0.0, %v692
      %v694 = vpop.f32.mrb[0].mxu0
      %v695 = vpop.f32.mrb[0].mxu0
      %v696 = vadd.f32 0.0, %v695
      %v697 = vpop.f32.mrb[0].mxu0
      %698 = vmatprep.mubr.bf16.mxu0 0
      %699 = vmatmul.mubr.bf16.gmra.mrb[0].mxu0 %v435
      %v700 = vpop.f32.mrb[0].mxu0
      %v701 = vadd.f32 0.0, %v700
      %v702 = vpop.f32.mrb[0].mxu0
      %v703 = vpop.f32.mrb[0].mxu0
      %v704 = vadd.f32 0.0, %v703
      %v705 = vpop.f32.mrb[0].mxu0
      %706 = vmatprep.mubr.bf16.mxu0 0
      %707 = vmatmul.mubr.bf16.gmra.mrb[0].mxu0 %v436
      %v708 = vpop.f32.mrb[0].mxu0
      %v709 = vadd.f32 0.0, %v708
      %v710 = vpop.f32.mrb[0].mxu0
      %v711 = vpop.f32.mrb[0].mxu0
      %v712 = vadd.f32 0.0, %v711
      %v713 = vpop.f32.mrb[0].mxu0
      %714 = vmatprep.mubr.bf16.mxu0 0
      %715 = vmatmul.mubr.bf16.gmra.mrb[0].mxu0 %v437
      %v716 = vpop.f32.mrb[0].mxu0
      %v717 = vadd.f32 0.0, %v716
      %v718 = vpop.f32.mrb[0].mxu0
      %v719 = vpop.f32.mrb[0].mxu0
      %v720 = vadd.f32 0.0, %v719
      %v721 = vpop.f32.mrb[0].mxu0
      %722 = vmatprep.mubr.bf16.mxu0 0
      %723 = vmatmul.mubr.bf16.gmra.mrb[0].mxu0 %v438
      %v724 = vpop.f32.mrb[0].mxu0
      %v725 = vadd.f32 0.0, %v724
      %v726 = vpop.f32.mrb[0].mxu0
      %v727 = vpop.f32.mrb[0].mxu0
      %v728 = vadd.f32 0.0, %v727
      %v729 = vpop.f32.mrb[0].mxu0
      %730 = vmatprep.mubr.bf16.mxu0 0
      %731 = vmatmul.mubr.bf16.gmra.mrb[0].mxu0 %v439
      %v732 = vpop.f32.mrb[0].mxu0
      %v733 = vadd.f32 0.0, %v732
      %v734 = vpop.f32.mrb[0].mxu0
      %v735 = vpop.f32.mrb[0].mxu0
      %v736 = vadd.f32 0.0, %v735
      %v737 = vpop.f32.mrb[0].mxu0
      %738 = vmatprep.mubr.bf16.mxu0 0
      %739 = vmatmul.mubr.bf16.gmra.mrb[0].mxu0 %v440
      %v740 = vpop.f32.mrb[0].mxu0
      %v741 = vadd.f32 0.0, %v740
      %v742 = vpop.f32.mrb[0].mxu0
      %v743 = vpop.f32.mrb[0].mxu0
      %v744 = vadd.f32 0.0, %v743
      %v745 = vpop.f32.mrb[0].mxu0
      %746 = vmatprep.mubr.bf16.mxu0 0
      %747 = vmatmul.mubr.bf16.gmra.mrb[0].mxu0 %v441
      %v748 = vpop.f32.mrb[0].mxu0
      %v749 = vadd.f32 0.0, %v748
      %v750 = vpop.f32.mrb[0].mxu0
      %v751 = vpop.f32.mrb[0].mxu0
      %v752 = vadd.f32 0.0, %v751
      %v753 = vpop.f32.mrb[0].mxu0
      %754 = vmatprep.mubr.bf16.mxu0 0
      %755 = vmatmul.mubr.bf16.gmra.mrb[0].mxu0 %v442
      %v756 = vpop.f32.mrb[0].mxu0
      %v757 = vadd.f32 0.0, %v756
      %v758 = vpop.f32.mrb[0].mxu0
      %v759 = vpop.f32.mrb[0].mxu0
      %v760 = vadd.f32 0.0, %v759
      %v761 = vpop.f32.mrb[0].mxu0
      %762 = vmatprep.mubr.bf16.mxu0 0
      %763 = vmatmul.mubr.bf16.gmra.mrb[0].mxu0 %v443
      %v764 = vpop.f32.mrb[0].mxu0
      %v765 = vadd.f32 0.0, %v764
      %v766 = vpop.f32.mrb[0].mxu0
      %v767 = vpop.f32.mrb[0].mxu0
      %v768 = vadd.f32 0.0, %v767
      %v769 = vpop.f32.mrb[0].mxu0
      %770 = vmatprep.mubr.bf16.mxu0 0
      %771 = vmatmul.mubr.bf16.gmra.mrb[0].mxu0 %v444
      %v772 = vpop.f32.mrb[0].mxu0
      %v773 = vadd.f32 0.0, %v772
      %v774 = vpop.f32.mrb[0].mxu0
      %v775 = vpop.f32.mrb[0].mxu0
      %v776 = vadd.f32 0.0, %v775
      %v777 = vpop.f32.mrb[0].mxu0
      %778 = vmatprep.mubr.bf16.mxu0 0
      %779 = vmatmul.mubr.bf16.gmra.mrb[0].mxu0 %v445
      %v780 = vpop.f32.mrb[0].mxu0
      %v781 = vadd.f32 0.0, %v780
      %v782 = vpop.f32.mrb[0].mxu0
      %v783 = vpop.f32.mrb[0].mxu0
      %v784 = vadd.f32 0.0, %v783
      %v785 = vpop.f32.mrb[0].mxu0
      %786 = vmatprep.mubr.bf16.mxu0 0
      %787 = vmatmul.mubr.bf16.gmra.mrb[0].mxu0 %v446
      %v788 = vpop.f32.mrb[0].mxu0
      %v789 = vadd.f32 0.0, %v788
      %v790 = vpop.f32.mrb[0].mxu0
      %v791 = vpop.f32.mrb[0].mxu0
      %v792 = vadd.f32 0.0, %v791
      %v793 = vpop.f32.mrb[0].mxu0
      %794 = vmatprep.mubr.bf16.mxu0 0
      %795 = vmatmul.mubr.bf16.gmra.mrb[0].mxu0 %v447
      %v796 = vpop.f32.mrb[0].mxu0
      %v797 = vadd.f32 0.0, %v796
      %v798 = vpop.f32.mrb[0].mxu0
      %v799 = vpop.f32.mrb[0].mxu0
      %v800 = vadd.f32 0.0, %v799
      %v801 = vpop.f32.mrb[0].mxu0
      %802 = vmatprep.mubr.bf16.mxu0 0
      %803 = vmatmul.mubr.bf16.gmra.mrb[0].mxu0 %v448
      %v804 = vpop.f32.mrb[0].mxu0
      %v805 = vadd.f32 0.0, %v804
      %v806 = vpop.f32.mrb[0].mxu0
      %v807 = vpop.f32.mrb[0].mxu0
      %v808 = vadd.f32 0.0, %v807
      %v809 = vpop.f32.mrb[0].mxu0
      %810 = vmatprep.mubr.bf16.mxu0 0
      %811 = vmatmul.mubr.bf16.gmra.mrb[0].mxu0 %v449
      %v812 = vpop.f32.mrb[0].mxu0
      %v813 = vadd.f32 0.0, %v812
      %v814 = vpop.f32.mrb[0].mxu0
      %v815 = vpop.f32.mrb[0].mxu0
      %v816 = vadd.f32 0.0, %v815
      %v817 = vpop.f32.mrb[0].mxu0
      %818 = vdwg.mxu0
      %s819 = smul.u32 %s15, 512
      %s820 = scalar_lea.vmem %s4, %s819
      %821 = vst [vmem:[%s820] sm:$0xff] %v565
      %822 = vst [vmem:[%s820 + $0x8] sm:$0xff] %v568
      %823 = vst [vmem:[%s820 + $0x10] sm:$0xff] %v573
      %824 = vst [vmem:[%s820 + $0x18] sm:$0xff] %v576
      %825 = vst [vmem:[%s820 + $0x20] sm:$0xff] %v581
      %826 = vst [vmem:[%s820 + $0x28] sm:$0xff] %v584
      %827 = vst [vmem:[%s820 + $0x30] sm:$0xff] %v589
      %828 = vst [vmem:[%s820 + $0x38] sm:$0xff] %v592
      %829 = vst [vmem:[%s820 + $0x40] sm:$0xff] %v597
      %830 = vst [vmem:[%s820 + $0x48] sm:$0xff] %v600
      %831 = vst [vmem:[%s820 + $0x50] sm:$0xff] %v605
      %832 = vst [vmem:[%s820 + $0x58] sm:$0xff] %v608
      %833 = vst [vmem:[%s820 + $0x60] sm:$0xff] %v613
      %834 = vst [vmem:[%s820 + $0x68] sm:$0xff] %v616
      %835 = vst [vmem:[%s820 + $0x70] sm:$0xff] %v621
      %836 = vst [vmem:[%s820 + $0x78] sm:$0xff] %v624
      %837 = vst [vmem:[%s820 + $0x80] sm:$0xff] %v629
      %838 = vst [vmem:[%s820 + $0x88] sm:$0xff] %v632
      %839 = vst [vmem:[%s820 + $0x90] sm:$0xff] %v637
      %840 = vst [vmem:[%s820 + $0x98] sm:$0xff] %v640
      %841 = vst [vmem:[%s820 + $0xa0] sm:$0xff] %v645
      %842 = vst [vmem:[%s820 + $0xa8] sm:$0xff] %v648
      %843 = vst [vmem:[%s820 + $0xb0] sm:$0xff] %v653
      %844 = vst [vmem:[%s820 + $0xb8] sm:$0xff] %v656
      %845 = vst [vmem:[%s820 + $0xc0] sm:$0xff] %v661
      %846 = vst [vmem:[%s820 + $0xc8] sm:$0xff] %v664
      %847 = vst [vmem:[%s820 + $0xd0] sm:$0xff] %v669
      %848 = vst [vmem:[%s820 + $0xd8] sm:$0xff] %v672
      %849 = vst [vmem:[%s820 + $0xe0] sm:$0xff] %v677
      %850 = vst [vmem:[%s820 + $0xe8] sm:$0xff] %v680
      %851 = vst [vmem:[%s820 + $0xf0] sm:$0xff] %v685
      %852 = vst [vmem:[%s820 + $0xf8] sm:$0xff] %v688
      %853 = vst [vmem:[%s820 + $0x100] sm:$0xff] %v693
      %854 = vst [vmem:[%s820 + $0x108] sm:$0xff] %v696
      %855 = vst [vmem:[%s820 + $0x110] sm:$0xff] %v701
      %856 = vst [vmem:[%s820 + $0x118] sm:$0xff] %v704
      %857 = vst [vmem:[%s820 + $0x120] sm:$0xff] %v709
      %858 = vst [vmem:[%s820 + $0x128] sm:$0xff] %v712
      %859 = vst [vmem:[%s820 + $0x130] sm:$0xff] %v717
      %860 = vst [vmem:[%s820 + $0x138] sm:$0xff] %v720
      %861 = vst [vmem:[%s820 + $0x140] sm:$0xff] %v725
      %862 = vst [vmem:[%s820 + $0x148] sm:$0xff] %v728
      %863 = vst [vmem:[%s820 + $0x150] sm:$0xff] %v733
      %864 = vst [vmem:[%s820 + $0x158] sm:$0xff] %v736
      %865 = vst [vmem:[%s820 + $0x160] sm:$0xff] %v741
      %866 = vst [vmem:[%s820 + $0x168] sm:$0xff] %v744
      %867 = vst [vmem:[%s820 + $0x170] sm:$0xff] %v749
      %868 = vst [vmem:[%s820 + $0x178] sm:$0xff] %v752
      %869 = vst [vmem:[%s820 + $0x180] sm:$0xff] %v757
      %870 = vst [vmem:[%s820 + $0x188] sm:$0xff] %v760
      %871 = vst [vmem:[%s820 + $0x190] sm:$0xff] %v765
      %872 = vst [vmem:[%s820 + $0x198] sm:$0xff] %v768
      %873 = vst [vmem:[%s820 + $0x1a0] sm:$0xff] %v773
      %874 = vst [vmem:[%s820 + $0x1a8] sm:$0xff] %v776
      %875 = vst [vmem:[%s820 + $0x1b0] sm:$0xff] %v781
      %876 = vst [vmem:[%s820 + $0x1b8] sm:$0xff] %v784
      %877 = vst [vmem:[%s820 + $0x1c0] sm:$0xff] %v789
      %878 = vst [vmem:[%s820 + $0x1c8] sm:$0xff] %v792
      %879 = vst [vmem:[%s820 + $0x1d0] sm:$0xff] %v797
      %880 = vst [vmem:[%s820 + $0x1d8] sm:$0xff] %v800
      %881 = vst [vmem:[%s820 + $0x1e0] sm:$0xff] %v805
      %882 = vst [vmem:[%s820 + $0x1e8] sm:$0xff] %v808
      %883 = vst [vmem:[%s820 + $0x1f0] sm:$0xff] %v813
      %884 = vst [vmem:[%s820 + $0x1f8] sm:$0xff] %v816
      %v885 = vld [vmem:[#allocation2] sm:$0x1]
      %v886 = vadd.f32 %v565, %v568
      %v887 = vadd.f32 %v886, %v573
      %v888 = vadd.f32 %v887, %v576
      %v889 = vadd.f32 %v888, %v581
      %v890 = vadd.f32 %v889, %v584
      %v891 = vadd.f32 %v890, %v589
      %v892 = vadd.f32 %v891, %v592
      %v893 = vadd.f32 %v892, %v597
      %v894 = vadd.f32 %v893, %v600
      %v895 = vadd.f32 %v894, %v605
      %v896 = vadd.f32 %v895, %v608
      %v897 = vadd.f32 %v896, %v613
      %v898 = vadd.f32 %v897, %v616
      %v899 = vadd.f32 %v898, %v621
      %v900 = vadd.f32 %v899, %v624
      %v901 = vadd.f32 %v900, %v629
      %v902 = vadd.f32 %v901, %v632
      %v903 = vadd.f32 %v902, %v637
      %v904 = vadd.f32 %v903, %v640
      %v905 = vadd.f32 %v904, %v645
      %v906 = vadd.f32 %v905, %v648
      %v907 = vadd.f32 %v906, %v653
      %v908 = vadd.f32 %v907, %v656
      %v909 = vadd.f32 %v908, %v661
      %v910 = vadd.f32 %v909, %v664
      %v911 = vadd.f32 %v910, %v669
      %v912 = vadd.f32 %v911, %v672
      %v913 = vadd.f32 %v912, %v677
      %v914 = vadd.f32 %v913, %v680
      %v915 = vadd.f32 %v914, %v685
      %v916 = vadd.f32 %v915, %v688
      %v917 = vadd.f32 %v916, %v693
      %v918 = vadd.f32 %v917, %v696
      %v919 = vadd.f32 %v918, %v701
      %v920 = vadd.f32 %v919, %v704
      %v921 = vadd.f32 %v920, %v709
      %v922 = vadd.f32 %v921, %v712
      %v923 = vadd.f32 %v922, %v717
      %v924 = vadd.f32 %v923, %v720
      %v925 = vadd.f32 %v924, %v725
      %v926 = vadd.f32 %v925, %v728
      %v927 = vadd.f32 %v926, %v733
      %v928 = vadd.f32 %v927, %v736
      %v929 = vadd.f32 %v928, %v741
      %v930 = vadd.f32 %v929, %v744
      %v931 = vadd.f32 %v930, %v749
      %v932 = vadd.f32 %v931, %v752
      %v933 = vadd.f32 %v932, %v757
      %v934 = vadd.f32 %v933, %v760
      %v935 = vadd.f32 %v934, %v765
      %v936 = vadd.f32 %v935, %v768
      %v937 = vadd.f32 %v936, %v773
      %v938 = vadd.f32 %v937, %v776
      %v939 = vadd.f32 %v938, %v781
      %v940 = vadd.f32 %v939, %v784
      %v941 = vadd.f32 %v940, %v789
      %v942 = vadd.f32 %v941, %v792
      %v943 = vadd.f32 %v942, %v797
      %v944 = vadd.f32 %v943, %v800
      %v945 = vadd.f32 %v944, %v805
      %v946 = vadd.f32 %v945, %v808
      %v947 = vadd.f32 %v946, %v813
      %v948 = vadd.f32 %v947, %v816
      %v949 = vrot.slane %v948, 4
      %v950 = vadd.f32 %v948, %v949
      %v951 = vrot.slane %v950, 2
      %v952 = vadd.f32 %v950, %v951
      %v953 = vrot.slane %v952, 1
      %v954 = vadd.f32 %v952, %v953
      %v955 = vadd.f32 %v885, %v954
      %956 = vst [vmem:[#allocation2] sm:$0x1] %v955
      %v957 = vld [vmem:[#allocation3] sm:$0x1]
      %v958 = vmul.f32 %v565, %v565
      %v959 = vmul.f32 %v568, %v568
      %v960 = vmul.f32 %v573, %v573
      %v961 = vmul.f32 %v576, %v576
      %v962 = vmul.f32 %v581, %v581
      %v963 = vmul.f32 %v584, %v584
      %v964 = vmul.f32 %v589, %v589
      %v965 = vmul.f32 %v592, %v592
      %v966 = vmul.f32 %v597, %v597
      %v967 = vmul.f32 %v600, %v600
      %v968 = vmul.f32 %v605, %v605
      %v969 = vmul.f32 %v608, %v608
      %v970 = vmul.f32 %v613, %v613
      %v971 = vmul.f32 %v616, %v616
      %v972 = vmul.f32 %v621, %v621
      %v973 = vmul.f32 %v624, %v624
      %v974 = vmul.f32 %v629, %v629
      %v975 = vmul.f32 %v632, %v632
      %v976 = vmul.f32 %v637, %v637
      %v977 = vmul.f32 %v640, %v640
      %v978 = vmul.f32 %v645, %v645
      %v979 = vmul.f32 %v648, %v648
      %v980 = vmul.f32 %v653, %v653
      %v981 = vmul.f32 %v656, %v656
      %v982 = vmul.f32 %v661, %v661
      %v983 = vmul.f32 %v664, %v664
      %v984 = vmul.f32 %v669, %v669
      %v985 = vmul.f32 %v672, %v672
      %v986 = vmul.f32 %v677, %v677
      %v987 = vmul.f32 %v680, %v680
      %v988 = vmul.f32 %v685, %v685
      %v989 = vmul.f32 %v688, %v688
      %v990 = vmul.f32 %v693, %v693
      %v991 = vmul.f32 %v696, %v696
      %v992 = vmul.f32 %v701, %v701
      %v993 = vmul.f32 %v704, %v704
      %v994 = vmul.f32 %v709, %v709
      %v995 = vmul.f32 %v712, %v712
      %v996 = vmul.f32 %v717, %v717
      %v997 = vmul.f32 %v720, %v720
      %v998 = vmul.f32 %v725, %v725
      %v999 = vmul.f32 %v728, %v728
      %v1000 = vmul.f32 %v733, %v733
      %v1001 = vmul.f32 %v736, %v736
      %v1002 = vmul.f32 %v741, %v741
      %v1003 = vmul.f32 %v744, %v744
      %v1004 = vmul.f32 %v749, %v749
      %v1005 = vmul.f32 %v752, %v752
      %v1006 = vmul.f32 %v757, %v757
      %v1007 = vmul.f32 %v760, %v760
      %v1008 = vmul.f32 %v765, %v765
      %v1009 = vmul.f32 %v768, %v768
      %v1010 = vmul.f32 %v773, %v773
      %v1011 = vmul.f32 %v776, %v776
      %v1012 = vmul.f32 %v781, %v781
      %v1013 = vmul.f32 %v784, %v784
      %v1014 = vmul.f32 %v789, %v789
      %v1015 = vmul.f32 %v792, %v792
      %v1016 = vmul.f32 %v797, %v797
      %v1017 = vmul.f32 %v800, %v800
      %v1018 = vmul.f32 %v805, %v805
      %v1019 = vmul.f32 %v808, %v808
      %v1020 = vmul.f32 %v813, %v813
      %v1021 = vmul.f32 %v816, %v816
      %v1022 = vadd.f32 %v958, %v959
      %v1023 = vadd.f32 %v1022, %v960
      %v1024 = vadd.f32 %v1023, %v961
      %v1025 = vadd.f32 %v1024, %v962
      %v1026 = vadd.f32 %v1025, %v963
      %v1027 = vadd.f32 %v1026, %v964
      %v1028 = vadd.f32 %v1027, %v965
      %v1029 = vadd.f32 %v1028, %v966
      %v1030 = vadd.f32 %v1029, %v967
      %v1031 = vadd.f32 %v1030, %v968
      %v1032 = vadd.f32 %v1031, %v969
      %v1033 = vadd.f32 %v1032, %v970
      %v1034 = vadd.f32 %v1033, %v971
      %v1035 = vadd.f32 %v1034, %v972
      %v1036 = vadd.f32 %v1035, %v973
      %v1037 = vadd.f32 %v1036, %v974
      %v1038 = vadd.f32 %v1037, %v975
      %v1039 = vadd.f32 %v1038, %v976
      %v1040 = vadd.f32 %v1039, %v977
      %v1041 = vadd.f32 %v1040, %v978
      %v1042 = vadd.f32 %v1041, %v979
      %v1043 = vadd.f32 %v1042, %v980
      %v1044 = vadd.f32 %v1043, %v981
      %v1045 = vadd.f32 %v1044, %v982
      %v1046 = vadd.f32 %v1045, %v983
      %v1047 = vadd.f32 %v1046, %v984
      %v1048 = vadd.f32 %v1047, %v985
      %v1049 = vadd.f32 %v1048, %v986
      %v1050 = vadd.f32 %v1049, %v987
      %v1051 = vadd.f32 %v1050, %v988
      %v1052 = vadd.f32 %v1051, %v989
      %v1053 = vadd.f32 %v1052, %v990
      %v1054 = vadd.f32 %v1053, %v991
      %v1055 = vadd.f32 %v1054, %v992
      %v1056 = vadd.f32 %v1055, %v993
      %v1057 = vadd.f32 %v1056, %v994
      %v1058 = vadd.f32 %v1057, %v995
      %v1059 = vadd.f32 %v1058, %v996
      %v1060 = vadd.f32 %v1059, %v997
      %v1061 = vadd.f32 %v1060, %v998
      %v1062 = vadd.f32 %v1061, %v999
      %v1063 = vadd.f32 %v1062, %v1000
      %v1064 = vadd.f32 %v1063, %v1001
      %v1065 = vadd.f32 %v1064, %v1002
      %v1066 = vadd.f32 %v1065, %v1003
      %v1067 = vadd.f32 %v1066, %v1004
      %v1068 = vadd.f32 %v1067, %v1005
      %v1069 = vadd.f32 %v1068, %v1006
      %v1070 = vadd.f32 %v1069, %v1007
      %v1071 = vadd.f32 %v1070, %v1008
      %v1072 = vadd.f32 %v1071, %v1009
      %v1073 = vadd.f32 %v1072, %v1010
      %v1074 = vadd.f32 %v1073, %v1011
      %v1075 = vadd.f32 %v1074, %v1012
      %v1076 = vadd.f32 %v1075, %v1013
      %v1077 = vadd.f32 %v1076, %v1014
      %v1078 = vadd.f32 %v1077, %v1015
      %v1079 = vadd.f32 %v1078, %v1016
      %v1080 = vadd.f32 %v1079, %v1017
      %v1081 = vadd.f32 %v1080, %v1018
      %v1082 = vadd.f32 %v1081, %v1019
      %v1083 = vadd.f32 %v1082, %v1020
      %v1084 = vadd.f32 %v1083, %v1021
      %v1085 = vrot.slane %v1084, 4
      %v1086 = vadd.f32 %v1084, %v1085
      %v1087 = vrot.slane %v1086, 2
      %v1088 = vadd.f32 %v1086, %v1087
      %v1089 = vrot.slane %v1088, 1
      %v1090 = vadd.f32 %v1088, %v1089
      %v1091 = vadd.f32 %v957, %v1090
      %1092 = vst [vmem:[#allocation3] sm:$0x1] %v1091
      %p1093 = scmp.eq.s32.totalorder %s15, 3
      // Predicated region
      $region41: #{_lambda_.8} parent=35 // pred_check
        %p1094 = pneg %p1093
      $region42: #{_lambda_.8} parent=35 // pred_check_branch
        %1096 = sbr.rel (%p1094) target = $region44
      $region43: #{_lambda_.8} parent=35 // pred_region
        %v1097 = vld [vmem:[#allocation2] sm:$0x1]
        %v1098 = vmul.f32 %v1097, 0.00048828125
        %v1099 = vld [vmem:[#allocation3] sm:$0x1]
        %v1100 = vmul.f32 %v1099, 0.00048828125
        %v1101 = vmul.f32 %v1098, %v1098
        %v1102 = vsub.f32 %v1100, %v1101
        %v1103 = vld [vmem:[%s2] sm:$0x1]
        %v1104 = vadd.f32 %v1102, 1e-05
        %v1105 = vrsqrt.pop %v1104
        %v1106 = vmul.f32 %v1103, %v1105
        %v1107 = vld [vmem:[%s3] sm:$0x1]
        %v1108 = vmul.f32 %v1098, %v1106
        %v1109 = vsub.f32 %v1107, %v1108
        %v1110 = vld [vmem:[%s4] sm:$0xff]
        %v1111 = vld [vmem:[%s4 + $0x8] sm:$0xff]
        %v1112 = vld [vmem:[%s4 + $0x10] sm:$0xff]
        %v1113 = vld [vmem:[%s4 + $0x18] sm:$0xff]
        %v1114 = vld [vmem:[%s4 + $0x20] sm:$0xff]
        %v1115 = vld [vmem:[%s4 + $0x28] sm:$0xff]
        %v1116 = vld [vmem:[%s4 + $0x30] sm:$0xff]
        %v1117 = vld [vmem:[%s4 + $0x38] sm:$0xff]
        %v1118 = vld [vmem:[%s4 + $0x40] sm:$0xff]
        %v1119 = vld [vmem:[%s4 + $0x48] sm:$0xff]
        %v1120 = vld [vmem:[%s4 + $0x50] sm:$0xff]
        %v1121 = vld [vmem:[%s4 + $0x58] sm:$0xff]
        %v1122 = vld [vmem:[%s4 + $0x60] sm:$0xff]
        %v1123 = vld [vmem:[%s4 + $0x68] sm:$0xff]
        %v1124 = vld [vmem:[%s4 + $0x70] sm:$0xff]
        %v1125 = vld [vmem:[%s4 + $0x78] sm:$0xff]
        %v1126 = vld [vmem:[%s4 + $0x80] sm:$0xff]
        %v1127 = vld [vmem:[%s4 + $0x88] sm:$0xff]
        %v1128 = vld [vmem:[%s4 + $0x90] sm:$0xff]
        %v1129 = vld [vmem:[%s4 + $0x98] sm:$0xff]
        %v1130 = vld [vmem:[%s4 + $0xa0] sm:$0xff]
        %v1131 = vld [vmem:[%s4 + $0xa8] sm:$0xff]
        %v1132 = vld [vmem:[%s4 + $0xb0] sm:$0xff]
        %v1133 = vld [vmem:[%s4 + $0xb8] sm:$0xff]
        %v1134 = vld [vmem:[%s4 + $0xc0] sm:$0xff]
        %v1135 = vld [vmem:[%s4 + $0xc8] sm:$0xff]
        %v1136 = vld [vmem:[%s4 + $0xd0] sm:$0xff]
        %v1137 = vld [vmem:[%s4 + $0xd8] sm:$0xff]
        %v1138 = vld [vmem:[%s4 + $0xe0] sm:$0xff]
        %v1139 = vld [vmem:[%s4 + $0xe8] sm:$0xff]
        %v1140 = vld [vmem:[%s4 + $0xf0] sm:$0xff]
        %v1141 = vld [vmem:[%s4 + $0xf8] sm:$0xff]
        %v1142 = vld [vmem:[%s4 + $0x100] sm:$0xff]
        %v1143 = vld [vmem:[%s4 + $0x108] sm:$0xff]
        %v1144 = vld [vmem:[%s4 + $0x110] sm:$0xff]
        %v1145 = vld [vmem:[%s4 + $0x118] sm:$0xff]
        %v1146 = vld [vmem:[%s4 + $0x120] sm:$0xff]
        %v1147 = vld [vmem:[%s4 + $0x128] sm:$0xff]
        %v1148 = vld [vmem:[%s4 + $0x130] sm:$0xff]
        %v1149 = vld [vmem:[%s4 + $0x138] sm:$0xff]
        %v1150 = vld [vmem:[%s4 + $0x140] sm:$0xff]
        %v1151 = vld [vmem:[%s4 + $0x148] sm:$0xff]
        %v1152 = vld [vmem:[%s4 + $0x150] sm:$0xff]
        %v1153 = vld [vmem:[%s4 + $0x158] sm:$0xff]
        %v1154 = vld [vmem:[%s4 + $0x160] sm:$0xff]
        %v1155 = vld [vmem:[%s4 + $0x168] sm:$0xff]
        %v1156 = vld [vmem:[%s4 + $0x170] sm:$0xff]
        %v1157 = vld [vmem:[%s4 + $0x178] sm:$0xff]
        %v1158 = vld [vmem:[%s4 + $0x180] sm:$0xff]
        %v1159 = vld [vmem:[%s4 + $0x188] sm:$0xff]
        %v1160 = vld [vmem:[%s4 + $0x190] sm:$0xff]
        %v1161 = vld [vmem:[%s4 + $0x198] sm:$0xff]
        %v1162 = vld [vmem:[%s4 + $0x1a0] sm:$0xff]
        %v1163 = vld [vmem:[%s4 + $0x1a8] sm:$0xff]
        %v1164 = vld [vmem:[%s4 + $0x1b0] sm:$0xff]
        %v1165 = vld [vmem:[%s4 + $0x1b8] sm:$0xff]
        %v1166 = vld [vmem:[%s4 + $0x1c0] sm:$0xff]
        %v1167 = vld [vmem:[%s4 + $0x1c8] sm:$0xff]
        %v1168 = vld [vmem:[%s4 + $0x1d0] sm:$0xff]
        %v1169 = vld [vmem:[%s4 + $0x1d8] sm:$0xff]
        %v1170 = vld [vmem:[%s4 + $0x1e0] sm:$0xff]
        %v1171 = vld [vmem:[%s4 + $0x1e8] sm:$0xff]
        %v1172 = vld [vmem:[%s4 + $0x1f0] sm:$0xff]
        %v1173 = vld [vmem:[%s4 + $0x1f8] sm:$0xff]
        %v1174 = vld [vmem:[%s4 + $0x200] sm:$0xff]
        %v1175 = vld [vmem:[%s4 + $0x208] sm:$0xff]
        %v1176 = vld [vmem:[%s4 + $0x210] sm:$0xff]
        %v1177 = vld [vmem:[%s4 + $0x218] sm:$0xff]
        %v1178 = vld [vmem:[%s4 + $0x220] sm:$0xff]
        %v1179 = vld [vmem:[%s4 + $0x228] sm:$0xff]
        %v1180 = vld [vmem:[%s4 + $0x230] sm:$0xff]
        %v1181 = vld [vmem:[%s4 + $0x238] sm:$0xff]
        %v1182 = vld [vmem:[%s4 + $0x240] sm:$0xff]
        %v1183 = vld [vmem:[%s4 + $0x248] sm:$0xff]
        %v1184 = vld [vmem:[%s4 + $0x250] sm:$0xff]
        %v1185 = vld [vmem:[%s4 + $0x258] sm:$0xff]
        %v1186 = vld [vmem:[%s4 + $0x260] sm:$0xff]
        %v1187 = vld [vmem:[%s4 + $0x268] sm:$0xff]
        %v1188 = vld [vmem:[%s4 + $0x270] sm:$0xff]
        %v1189 = vld [vmem:[%s4 + $0x278] sm:$0xff]
        %v1190 = vld [vmem:[%s4 + $0x280] sm:$0xff]
        %v1191 = vld [vmem:[%s4 + $0x288] sm:$0xff]
        %v1192 = vld [vmem:[%s4 + $0x290] sm:$0xff]
        %v1193 = vld [vmem:[%s4 + $0x298] sm:$0xff]
        %v1194 = vld [vmem:[%s4 + $0x2a0] sm:$0xff]
        %v1195 = vld [vmem:[%s4 + $0x2a8] sm:$0xff]
        %v1196 = vld [vmem:[%s4 + $0x2b0] sm:$0xff]
        %v1197 = vld [vmem:[%s4 + $0x2b8] sm:$0xff]
        %v1198 = vld [vmem:[%s4 + $0x2c0] sm:$0xff]
        %v1199 = vld [vmem:[%s4 + $0x2c8] sm:$0xff]
        %v1200 = vld [vmem:[%s4 + $0x2d0] sm:$0xff]
        %v1201 = vld [vmem:[%s4 + $0x2d8] sm:$0xff]
        %v1202 = vld [vmem:[%s4 + $0x2e0] sm:$0xff]
        %v1203 = vld [vmem:[%s4 + $0x2e8] sm:$0xff]
        %v1204 = vld [vmem:[%s4 + $0x2f0] sm:$0xff]
        %v1205 = vld [vmem:[%s4 + $0x2f8] sm:$0xff]
        %v1206 = vld [vmem:[%s4 + $0x300] sm:$0xff]
        %v1207 = vld [vmem:[%s4 + $0x308] sm:$0xff]
        %v1208 = vld [vmem:[%s4 + $0x310] sm:$0xff]
        %v1209 = vld [vmem:[%s4 + $0x318] sm:$0xff]
        %v1210 = vld [vmem:[%s4 + $0x320] sm:$0xff]
        %v1211 = vld [vmem:[%s4 + $0x328] sm:$0xff]
        %v1212 = vld [vmem:[%s4 + $0x330] sm:$0xff]
        %v1213 = vld [vmem:[%s4 + $0x338] sm:$0xff]
        %v1214 = vld [vmem:[%s4 + $0x340] sm:$0xff]
        %v1215 = vld [vmem:[%s4 + $0x348] sm:$0xff]
        %v1216 = vld [vmem:[%s4 + $0x350] sm:$0xff]
        %v1217 = vld [vmem:[%s4 + $0x358] sm:$0xff]
        %v1218 = vld [vmem:[%s4 + $0x360] sm:$0xff]
        %v1219 = vld [vmem:[%s4 + $0x368] sm:$0xff]
        %v1220 = vld [vmem:[%s4 + $0x370] sm:$0xff]
        %v1221 = vld [vmem:[%s4 + $0x378] sm:$0xff]
        %v1222 = vld [vmem:[%s4 + $0x380] sm:$0xff]
        %v1223 = vld [vmem:[%s4 + $0x388] sm:$0xff]
        %v1224 = vld [vmem:[%s4 + $0x390] sm:$0xff]
        %v1225 = vld [vmem:[%s4 + $0x398] sm:$0xff]
        %v1226 = vld [vmem:[%s4 + $0x3a0] sm:$0xff]
        %v1227 = vld [vmem:[%s4 + $0x3a8] sm:$0xff]
        %v1228 = vld [vmem:[%s4 + $0x3b0] sm:$0xff]
        %v1229 = vld [vmem:[%s4 + $0x3b8] sm:$0xff]
        %v1230 = vld [vmem:[%s4 + $0x3c0] sm:$0xff]
        %v1231 = vld [vmem:[%s4 + $0x3c8] sm:$0xff]
        %v1232 = vld [vmem:[%s4 + $0x3d0] sm:$0xff]
        %v1233 = vld [vmem:[%s4 + $0x3d8] sm:$0xff]
        %v1234 = vld [vmem:[%s4 + $0x3e0] sm:$0xff]
        %v1235 = vld [vmem:[%s4 + $0x3e8] sm:$0xff]
        %v1236 = vld [vmem:[%s4 + $0x3f0] sm:$0xff]
        %v1237 = vld [vmem:[%s4 + $0x3f8] sm:$0xff]
        %v1238 = vld [vmem:[%s4 + $0x400] sm:$0xff]
        %v1239 = vld [vmem:[%s4 + $0x408] sm:$0xff]
        %v1240 = vld [vmem:[%s4 + $0x410] sm:$0xff]
        %v1241 = vld [vmem:[%s4 + $0x418] sm:$0xff]
        %v1242 = vld [vmem:[%s4 + $0x420] sm:$0xff]
        %v1243 = vld [vmem:[%s4 + $0x428] sm:$0xff]
        %v1244 = vld [vmem:[%s4 + $0x430] sm:$0xff]
        %v1245 = vld [vmem:[%s4 + $0x438] sm:$0xff]
        %v1246 = vld [vmem:[%s4 + $0x440] sm:$0xff]
        %v1247 = vld [vmem:[%s4 + $0x448] sm:$0xff]
        %v1248 = vld [vmem:[%s4 + $0x450] sm:$0xff]
        %v1249 = vld [vmem:[%s4 + $0x458] sm:$0xff]
        %v1250 = vld [vmem:[%s4 + $0x460] sm:$0xff]
        %v1251 = vld [vmem:[%s4 + $0x468] sm:$0xff]
        %v1252 = vld [vmem:[%s4 + $0x470] sm:$0xff]
        %v1253 = vld [vmem:[%s4 + $0x478] sm:$0xff]
        %v1254 = vld [vmem:[%s4 + $0x480] sm:$0xff]
        %v1255 = vld [vmem:[%s4 + $0x488] sm:$0xff]
        %v1256 = vld [vmem:[%s4 + $0x490] sm:$0xff]
        %v1257 = vld [vmem:[%s4 + $0x498] sm:$0xff]
        %v1258 = vld [vmem:[%s4 + $0x4a0] sm:$0xff]
        %v1259 = vld [vmem:[%s4 + $0x4a8] sm:$0xff]
        %v1260 = vld [vmem:[%s4 + $0x4b0] sm:$0xff]
        %v1261 = vld [vmem:[%s4 + $0x4b8] sm:$0xff]
        %v1262 = vld [vmem:[%s4 + $0x4c0] sm:$0xff]
        %v1263 = vld [vmem:[%s4 + $0x4c8] sm:$0xff]
        %v1264 = vld [vmem:[%s4 + $0x4d0] sm:$0xff]
        %v1265 = vld [vmem:[%s4 + $0x4d8] sm:$0xff]
        %v1266 = vld [vmem:[%s4 + $0x4e0] sm:$0xff]
        %v1267 = vld [vmem:[%s4 + $0x4e8] sm:$0xff]
        %v1268 = vld [vmem:[%s4 + $0x4f0] sm:$0xff]
        %v1269 = vld [vmem:[%s4 + $0x4f8] sm:$0xff]
        %v1270 = vld [vmem:[%s4 + $0x500] sm:$0xff]
        %v1271 = vld [vmem:[%s4 + $0x508] sm:$0xff]
        %v1272 = vld [vmem:[%s4 + $0x510] sm:$0xff]
        %v1273 = vld [vmem:[%s4 + $0x518] sm:$0xff]
        %v1274 = vld [vmem:[%s4 + $0x520] sm:$0xff]
        %v1275 = vld [vmem:[%s4 + $0x528] sm:$0xff]
        %v1276 = vld [vmem:[%s4 + $0x530] sm:$0xff]
        %v1277 = vld [vmem:[%s4 + $0x538] sm:$0xff]
        %v1278 = vld [vmem:[%s4 + $0x540] sm:$0xff]
        %v1279 = vld [vmem:[%s4 + $0x548] sm:$0xff]
        %v1280 = vld [vmem:[%s4 + $0x550] sm:$0xff]
        %v1281 = vld [vmem:[%s4 + $0x558] sm:$0xff]
        %v1282 = vld [vmem:[%s4 + $0x560] sm:$0xff]
        %v1283 = vld [vmem:[%s4 + $0x568] sm:$0xff]
        %v1284 = vld [vmem:[%s4 + $0x570] sm:$0xff]
        %v1285 = vld [vmem:[%s4 + $0x578] sm:$0xff]
        %v1286 = vld [vmem:[%s4 + $0x580] sm:$0xff]
        %v1287 = vld [vmem:[%s4 + $0x588] sm:$0xff]
        %v1288 = vld [vmem:[%s4 + $0x590] sm:$0xff]
        %v1289 = vld [vmem:[%s4 + $0x598] sm:$0xff]
        %v1290 = vld [vmem:[%s4 + $0x5a0] sm:$0xff]
        %v1291 = vld [vmem:[%s4 + $0x5a8] sm:$0xff]
        %v1292 = vld [vmem:[%s4 + $0x5b0] sm:$0xff]
        %v1293 = vld [vmem:[%s4 + $0x5b8] sm:$0xff]
        %v1294 = vld [vmem:[%s4 + $0x5c0] sm:$0xff]
        %v1295 = vld [vmem:[%s4 + $0x5c8] sm:$0xff]
        %v1296 = vld [vmem:[%s4 + $0x5d0] sm:$0xff]
        %v1297 = vld [vmem:[%s4 + $0x5d8] sm:$0xff]
        %v1298 = vld [vmem:[%s4 + $0x5e0] sm:$0xff]
        %v1299 = vld [vmem:[%s4 + $0x5e8] sm:$0xff]
        %v1300 = vld [vmem:[%s4 + $0x5f0] sm:$0xff]
        %v1301 = vld [vmem:[%s4 + $0x5f8] sm:$0xff]
        %v1302 = vld [vmem:[%s4 + $0x600] sm:$0xff]
        %v1303 = vld [vmem:[%s4 + $0x608] sm:$0xff]
        %v1304 = vld [vmem:[%s4 + $0x610] sm:$0xff]
        %v1305 = vld [vmem:[%s4 + $0x618] sm:$0xff]
        %v1306 = vld [vmem:[%s4 + $0x620] sm:$0xff]
        %v1307 = vld [vmem:[%s4 + $0x628] sm:$0xff]
        %v1308 = vld [vmem:[%s4 + $0x630] sm:$0xff]
        %v1309 = vld [vmem:[%s4 + $0x638] sm:$0xff]
        %v1310 = vld [vmem:[%s4 + $0x640] sm:$0xff]
        %v1311 = vld [vmem:[%s4 + $0x648] sm:$0xff]
        %v1312 = vld [vmem:[%s4 + $0x650] sm:$0xff]
        %v1313 = vld [vmem:[%s4 + $0x658] sm:$0xff]
        %v1314 = vld [vmem:[%s4 + $0x660] sm:$0xff]
        %v1315 = vld [vmem:[%s4 + $0x668] sm:$0xff]
        %v1316 = vld [vmem:[%s4 + $0x670] sm:$0xff]
        %v1317 = vld [vmem:[%s4 + $0x678] sm:$0xff]
        %v1318 = vld [vmem:[%s4 + $0x680] sm:$0xff]
        %v1319 = vld [vmem:[%s4 + $0x688] sm:$0xff]
        %v1320 = vld [vmem:[%s4 + $0x690] sm:$0xff]
        %v1321 = vld [vmem:[%s4 + $0x698] sm:$0xff]
        %v1322 = vld [vmem:[%s4 + $0x6a0] sm:$0xff]
        %v1323 = vld [vmem:[%s4 + $0x6a8] sm:$0xff]
        %v1324 = vld [vmem:[%s4 + $0x6b0] sm:$0xff]
        %v1325 = vld [vmem:[%s4 + $0x6b8] sm:$0xff]
        %v1326 = vld [vmem:[%s4 + $0x6c0] sm:$0xff]
        %v1327 = vld [vmem:[%s4 + $0x6c8] sm:$0xff]
        %v1328 = vld [vmem:[%s4 + $0x6d0] sm:$0xff]
        %v1329 = vld [vmem:[%s4 + $0x6d8] sm:$0xff]
        %v1330 = vld [vmem:[%s4 + $0x6e0] sm:$0xff]
        %v1331 = vld [vmem:[%s4 + $0x6e8] sm:$0xff]
        %v1332 = vld [vmem:[%s4 + $0x6f0] sm:$0xff]
        %v1333 = vld [vmem:[%s4 + $0x6f8] sm:$0xff]
        %v1334 = vld [vmem:[%s4 + $0x700] sm:$0xff]
        %v1335 = vld [vmem:[%s4 + $0x708] sm:$0xff]
        %v1336 = vld [vmem:[%s4 + $0x710] sm:$0xff]
        %v1337 = vld [vmem:[%s4 + $0x718] sm:$0xff]
        %v1338 = vld [vmem:[%s4 + $0x720] sm:$0xff]
        %v1339 = vld [vmem:[%s4 + $0x728] sm:$0xff]
        %v1340 = vld [vmem:[%s4 + $0x730] sm:$0xff]
        %v1341 = vld [vmem:[%s4 + $0x738] sm:$0xff]
        %v1342 = vld [vmem:[%s4 + $0x740] sm:$0xff]
        %v1343 = vld [vmem:[%s4 + $0x748] sm:$0xff]
        %v1344 = vld [vmem:[%s4 + $0x750] sm:$0xff]
        %v1345 = vld [vmem:[%s4 + $0x758] sm:$0xff]
        %v1346 = vld [vmem:[%s4 + $0x760] sm:$0xff]
        %v1347 = vld [vmem:[%s4 + $0x768] sm:$0xff]
        %v1348 = vld [vmem:[%s4 + $0x770] sm:$0xff]
        %v1349 = vld [vmem:[%s4 + $0x778] sm:$0xff]
        %v1350 = vld [vmem:[%s4 + $0x780] sm:$0xff]
        %v1351 = vld [vmem:[%s4 + $0x788] sm:$0xff]
        %v1352 = vld [vmem:[%s4 + $0x790] sm:$0xff]
        %v1353 = vld [vmem:[%s4 + $0x798] sm:$0xff]
        %v1354 = vld [vmem:[%s4 + $0x7a0] sm:$0xff]
        %v1355 = vld [vmem:[%s4 + $0x7a8] sm:$0xff]
        %v1356 = vld [vmem:[%s4 + $0x7b0] sm:$0xff]
        %v1357 = vld [vmem:[%s4 + $0x7b8] sm:$0xff]
        %v1358 = vld [vmem:[%s4 + $0x7c0] sm:$0xff]
        %v1359 = vld [vmem:[%s4 + $0x7c8] sm:$0xff]
        %v1360 = vld [vmem:[%s4 + $0x7d0] sm:$0xff]
        %v1361 = vld [vmem:[%s4 + $0x7d8] sm:$0xff]
        %v1362 = vld [vmem:[%s4 + $0x7e0] sm:$0xff]
        %v1363 = vld [vmem:[%s4 + $0x7e8] sm:$0xff]
        %v1364 = vld [vmem:[%s4 + $0x7f0] sm:$0xff]
        %v1365 = vld [vmem:[%s4 + $0x7f8] sm:$0xff]
        %v1367 = vlaneseq
        %v1368 = vshrl.u32 %v1367, 7
        %v1369 = vsub.s32 0, %v1368
        %v1370 = vrot.slane %v1106, %v1369
        %v1372 = vmul.f32 %v1110, %v1370
        %v1373 = vmul.f32 %v1111, %v1370
        %v1374 = vmul.f32 %v1112, %v1370
        %v1375 = vmul.f32 %v1113, %v1370
        %v1376 = vmul.f32 %v1114, %v1370
        %v1377 = vmul.f32 %v1115, %v1370
        %v1378 = vmul.f32 %v1116, %v1370
        %v1379 = vmul.f32 %v1117, %v1370
        %v1380 = vmul.f32 %v1118, %v1370
        %v1381 = vmul.f32 %v1119, %v1370
        %v1382 = vmul.f32 %v1120, %v1370
        %v1383 = vmul.f32 %v1121, %v1370
        %v1384 = vmul.f32 %v1122, %v1370
        %v1385 = vmul.f32 %v1123, %v1370
        %v1386 = vmul.f32 %v1124, %v1370
        %v1387 = vmul.f32 %v1125, %v1370
        %v1388 = vmul.f32 %v1126, %v1370
        %v1389 = vmul.f32 %v1127, %v1370
        %v1390 = vmul.f32 %v1128, %v1370
        %v1391 = vmul.f32 %v1129, %v1370
        %v1392 = vmul.f32 %v1130, %v1370
        %v1393 = vmul.f32 %v1131, %v1370
        %v1394 = vmul.f32 %v1132, %v1370
        %v1395 = vmul.f32 %v1133, %v1370
        %v1396 = vmul.f32 %v1134, %v1370
        %v1397 = vmul.f32 %v1135, %v1370
        %v1398 = vmul.f32 %v1136, %v1370
        %v1399 = vmul.f32 %v1137, %v1370
        %v1400 = vmul.f32 %v1138, %v1370
        %v1401 = vmul.f32 %v1139, %v1370
        %v1402 = vmul.f32 %v1140, %v1370
        %v1403 = vmul.f32 %v1141, %v1370
        %v1404 = vmul.f32 %v1142, %v1370
        %v1405 = vmul.f32 %v1143, %v1370
        %v1406 = vmul.f32 %v1144, %v1370
        %v1407 = vmul.f32 %v1145, %v1370
        %v1408 = vmul.f32 %v1146, %v1370
        %v1409 = vmul.f32 %v1147, %v1370
        %v1410 = vmul.f32 %v1148, %v1370
        %v1411 = vmul.f32 %v1149, %v1370
        %v1412 = vmul.f32 %v1150, %v1370
        %v1413 = vmul.f32 %v1151, %v1370
        %v1414 = vmul.f32 %v1152, %v1370
        %v1415 = vmul.f32 %v1153, %v1370
        %v1416 = vmul.f32 %v1154, %v1370
        %v1417 = vmul.f32 %v1155, %v1370
        %v1418 = vmul.f32 %v1156, %v1370
        %v1419 = vmul.f32 %v1157, %v1370
        %v1420 = vmul.f32 %v1158, %v1370
        %v1421 = vmul.f32 %v1159, %v1370
        %v1422 = vmul.f32 %v1160, %v1370
        %v1423 = vmul.f32 %v1161, %v1370
        %v1424 = vmul.f32 %v1162, %v1370
        %v1425 = vmul.f32 %v1163, %v1370
        %v1426 = vmul.f32 %v1164, %v1370
        %v1427 = vmul.f32 %v1165, %v1370
        %v1428 = vmul.f32 %v1166, %v1370
        %v1429 = vmul.f32 %v1167, %v1370
        %v1430 = vmul.f32 %v1168, %v1370
        %v1431 = vmul.f32 %v1169, %v1370
        %v1432 = vmul.f32 %v1170, %v1370
        %v1433 = vmul.f32 %v1171, %v1370
        %v1434 = vmul.f32 %v1172, %v1370
        %v1435 = vmul.f32 %v1173, %v1370
        %v1436 = vmul.f32 %v1174, %v1370
        %v1437 = vmul.f32 %v1175, %v1370
        %v1438 = vmul.f32 %v1176, %v1370
        %v1439 = vmul.f32 %v1177, %v1370
        %v1440 = vmul.f32 %v1178, %v1370
        %v1441 = vmul.f32 %v1179, %v1370
        %v1442 = vmul.f32 %v1180, %v1370
        %v1443 = vmul.f32 %v1181, %v1370
        %v1444 = vmul.f32 %v1182, %v1370
        %v1445 = vmul.f32 %v1183, %v1370
        %v1446 = vmul.f32 %v1184, %v1370
        %v1447 = vmul.f32 %v1185, %v1370
        %v1448 = vmul.f32 %v1186, %v1370
        %v1449 = vmul.f32 %v1187, %v1370
        %v1450 = vmul.f32 %v1188, %v1370
        %v1451 = vmul.f32 %v1189, %v1370
        %v1452 = vmul.f32 %v1190, %v1370
        %v1453 = vmul.f32 %v1191, %v1370
        %v1454 = vmul.f32 %v1192, %v1370
        %v1455 = vmul.f32 %v1193, %v1370
        %v1456 = vmul.f32 %v1194, %v1370
        %v1457 = vmul.f32 %v1195, %v1370
        %v1458 = vmul.f32 %v1196, %v1370
        %v1459 = vmul.f32 %v1197, %v1370
        %v1460 = vmul.f32 %v1198, %v1370
        %v1461 = vmul.f32 %v1199, %v1370
        %v1462 = vmul.f32 %v1200, %v1370
        %v1463 = vmul.f32 %v1201, %v1370
        %v1464 = vmul.f32 %v1202, %v1370
        %v1465 = vmul.f32 %v1203, %v1370
        %v1466 = vmul.f32 %v1204, %v1370
        %v1467 = vmul.f32 %v1205, %v1370
        %v1468 = vmul.f32 %v1206, %v1370
        %v1469 = vmul.f32 %v1207, %v1370
        %v1470 = vmul.f32 %v1208, %v1370
        %v1471 = vmul.f32 %v1209, %v1370
        %v1472 = vmul.f32 %v1210, %v1370
        %v1473 = vmul.f32 %v1211, %v1370
        %v1474 = vmul.f32 %v1212, %v1370
        %v1475 = vmul.f32 %v1213, %v1370
        %v1476 = vmul.f32 %v1214, %v1370
        %v1477 = vmul.f32 %v1215, %v1370
        %v1478 = vmul.f32 %v1216, %v1370
        %v1479 = vmul.f32 %v1217, %v1370
        %v1480 = vmul.f32 %v1218, %v1370
        %v1481 = vmul.f32 %v1219, %v1370
        %v1482 = vmul.f32 %v1220, %v1370
        %v1483 = vmul.f32 %v1221, %v1370
        %v1484 = vmul.f32 %v1222, %v1370
        %v1485 = vmul.f32 %v1223, %v1370
        %v1486 = vmul.f32 %v1224, %v1370
        %v1487 = vmul.f32 %v1225, %v1370
        %v1488 = vmul.f32 %v1226, %v1370
        %v1489 = vmul.f32 %v1227, %v1370
        %v1490 = vmul.f32 %v1228, %v1370
        %v1491 = vmul.f32 %v1229, %v1370
        %v1492 = vmul.f32 %v1230, %v1370
        %v1493 = vmul.f32 %v1231, %v1370
        %v1494 = vmul.f32 %v1232, %v1370
        %v1495 = vmul.f32 %v1233, %v1370
        %v1496 = vmul.f32 %v1234, %v1370
        %v1497 = vmul.f32 %v1235, %v1370
        %v1498 = vmul.f32 %v1236, %v1370
        %v1499 = vmul.f32 %v1237, %v1370
        %v1500 = vmul.f32 %v1238, %v1370
        %v1501 = vmul.f32 %v1239, %v1370
        %v1502 = vmul.f32 %v1240, %v1370
        %v1503 = vmul.f32 %v1241, %v1370
        %v1504 = vmul.f32 %v1242, %v1370
        %v1505 = vmul.f32 %v1243, %v1370
        %v1506 = vmul.f32 %v1244, %v1370
        %v1507 = vmul.f32 %v1245, %v1370
        %v1508 = vmul.f32 %v1246, %v1370
        %v1509 = vmul.f32 %v1247, %v1370
        %v1510 = vmul.f32 %v1248, %v1370
        %v1511 = vmul.f32 %v1249, %v1370
        %v1512 = vmul.f32 %v1250, %v1370
        %v1513 = vmul.f32 %v1251, %v1370
        %v1514 = vmul.f32 %v1252, %v1370
        %v1515 = vmul.f32 %v1253, %v1370
        %v1516 = vmul.f32 %v1254, %v1370
        %v1517 = vmul.f32 %v1255, %v1370
        %v1518 = vmul.f32 %v1256, %v1370
        %v1519 = vmul.f32 %v1257, %v1370
        %v1520 = vmul.f32 %v1258, %v1370
        %v1521 = vmul.f32 %v1259, %v1370
        %v1522 = vmul.f32 %v1260, %v1370
        %v1523 = vmul.f32 %v1261, %v1370
        %v1524 = vmul.f32 %v1262, %v1370
        %v1525 = vmul.f32 %v1263, %v1370
        %v1526 = vmul.f32 %v1264, %v1370
        %v1527 = vmul.f32 %v1265, %v1370
        %v1528 = vmul.f32 %v1266, %v1370
        %v1529 = vmul.f32 %v1267, %v1370
        %v1530 = vmul.f32 %v1268, %v1370
        %v1531 = vmul.f32 %v1269, %v1370
        %v1532 = vmul.f32 %v1270, %v1370
        %v1533 = vmul.f32 %v1271, %v1370
        %v1534 = vmul.f32 %v1272, %v1370
        %v1535 = vmul.f32 %v1273, %v1370
        %v1536 = vmul.f32 %v1274, %v1370
        %v1537 = vmul.f32 %v1275, %v1370
        %v1538 = vmul.f32 %v1276, %v1370
        %v1539 = vmul.f32 %v1277, %v1370
        %v1540 = vmul.f32 %v1278, %v1370
        %v1541 = vmul.f32 %v1279, %v1370
        %v1542 = vmul.f32 %v1280, %v1370
        %v1543 = vmul.f32 %v1281, %v1370
        %v1544 = vmul.f32 %v1282, %v1370
        %v1545 = vmul.f32 %v1283, %v1370
        %v1546 = vmul.f32 %v1284, %v1370
        %v1547 = vmul.f32 %v1285, %v1370
        %v1548 = vmul.f32 %v1286, %v1370
        %v1549 = vmul.f32 %v1287, %v1370
        %v1550 = vmul.f32 %v1288, %v1370
        %v1551 = vmul.f32 %v1289, %v1370
        %v1552 = vmul.f32 %v1290, %v1370
        %v1553 = vmul.f32 %v1291, %v1370
        %v1554 = vmul.f32 %v1292, %v1370
        %v1555 = vmul.f32 %v1293, %v1370
        %v1556 = vmul.f32 %v1294, %v1370
        %v1557 = vmul.f32 %v1295, %v1370
        %v1558 = vmul.f32 %v1296, %v1370
        %v1559 = vmul.f32 %v1297, %v1370
        %v1560 = vmul.f32 %v1298, %v1370
        %v1561 = vmul.f32 %v1299, %v1370
        %v1562 = vmul.f32 %v1300, %v1370
        %v1563 = vmul.f32 %v1301, %v1370
        %v1564 = vmul.f32 %v1302, %v1370
        %v1565 = vmul.f32 %v1303, %v1370
        %v1566 = vmul.f32 %v1304, %v1370
        %v1567 = vmul.f32 %v1305, %v1370
        %v1568 = vmul.f32 %v1306, %v1370
        %v1569 = vmul.f32 %v1307, %v1370
        %v1570 = vmul.f32 %v1308, %v1370
        %v1571 = vmul.f32 %v1309, %v1370
        %v1572 = vmul.f32 %v1310, %v1370
        %v1573 = vmul.f32 %v1311, %v1370
        %v1574 = vmul.f32 %v1312, %v1370
        %v1575 = vmul.f32 %v1313, %v1370
        %v1576 = vmul.f32 %v1314, %v1370
        %v1577 = vmul.f32 %v1315, %v1370
        %v1578 = vmul.f32 %v1316, %v1370
        %v1579 = vmul.f32 %v1317, %v1370
        %v1580 = vmul.f32 %v1318, %v1370
        %v1581 = vmul.f32 %v1319, %v1370
        %v1582 = vmul.f32 %v1320, %v1370
        %v1583 = vmul.f32 %v1321, %v1370
        %v1584 = vmul.f32 %v1322, %v1370
        %v1585 = vmul.f32 %v1323, %v1370
        %v1586 = vmul.f32 %v1324, %v1370
        %v1587 = vmul.f32 %v1325, %v1370
        %v1588 = vmul.f32 %v1326, %v1370
        %v1589 = vmul.f32 %v1327, %v1370
        %v1590 = vmul.f32 %v1328, %v1370
        %v1591 = vmul.f32 %v1329, %v1370
        %v1592 = vmul.f32 %v1330, %v1370
        %v1593 = vmul.f32 %v1331, %v1370
        %v1594 = vmul.f32 %v1332, %v1370
        %v1595 = vmul.f32 %v1333, %v1370
        %v1596 = vmul.f32 %v1334, %v1370
        %v1597 = vmul.f32 %v1335, %v1370
        %v1598 = vmul.f32 %v1336, %v1370
        %v1599 = vmul.f32 %v1337, %v1370
        %v1600 = vmul.f32 %v1338, %v1370
        %v1601 = vmul.f32 %v1339, %v1370
        %v1602 = vmul.f32 %v1340, %v1370
        %v1603 = vmul.f32 %v1341, %v1370
        %v1604 = vmul.f32 %v1342, %v1370
        %v1605 = vmul.f32 %v1343, %v1370
        %v1606 = vmul.f32 %v1344, %v1370
        %v1607 = vmul.f32 %v1345, %v1370
        %v1608 = vmul.f32 %v1346, %v1370
        %v1609 = vmul.f32 %v1347, %v1370
        %v1610 = vmul.f32 %v1348, %v1370
        %v1611 = vmul.f32 %v1349, %v1370
        %v1612 = vmul.f32 %v1350, %v1370
        %v1613 = vmul.f32 %v1351, %v1370
        %v1614 = vmul.f32 %v1352, %v1370
        %v1615 = vmul.f32 %v1353, %v1370
        %v1616 = vmul.f32 %v1354, %v1370
        %v1617 = vmul.f32 %v1355, %v1370
        %v1618 = vmul.f32 %v1356, %v1370
        %v1619 = vmul.f32 %v1357, %v1370
        %v1620 = vmul.f32 %v1358, %v1370
        %v1621 = vmul.f32 %v1359, %v1370
        %v1622 = vmul.f32 %v1360, %v1370
        %v1623 = vmul.f32 %v1361, %v1370
        %v1624 = vmul.f32 %v1362, %v1370
        %v1625 = vmul.f32 %v1363, %v1370
        %v1626 = vmul.f32 %v1364, %v1370
        %v1627 = vmul.f32 %v1365, %v1370
        %v1629 = vlaneseq
        %v1630 = vshrl.u32 %v1629, 7
        %v1631 = vsub.s32 0, %v1630
        %v1632 = vrot.slane %v1109, %v1631
        %v1634 = vadd.f32 %v1372, %v1632
        %v1635 = vadd.f32 %v1373, %v1632
        %v1636 = vadd.f32 %v1374, %v1632
        %v1637 = vadd.f32 %v1375, %v1632
        %v1638 = vadd.f32 %v1376, %v1632
        %v1639 = vadd.f32 %v1377, %v1632
        %v1640 = vadd.f32 %v1378, %v1632
        %v1641 = vadd.f32 %v1379, %v1632
        %v1642 = vadd.f32 %v1380, %v1632
        %v1643 = vadd.f32 %v1381, %v1632
        %v1644 = vadd.f32 %v1382, %v1632
        %v1645 = vadd.f32 %v1383, %v1632
        %v1646 = vadd.f32 %v1384, %v1632
        %v1647 = vadd.f32 %v1385, %v1632
        %v1648 = vadd.f32 %v1386, %v1632
        %v1649 = vadd.f32 %v1387, %v1632
        %v1650 = vadd.f32 %v1388, %v1632
        %v1651 = vadd.f32 %v1389, %v1632
        %v1652 = vadd.f32 %v1390, %v1632
        %v1653 = vadd.f32 %v1391, %v1632
        %v1654 = vadd.f32 %v1392, %v1632
        %v1655 = vadd.f32 %v1393, %v1632
        %v1656 = vadd.f32 %v1394, %v1632
        %v1657 = vadd.f32 %v1395, %v1632
        %v1658 = vadd.f32 %v1396, %v1632
        %v1659 = vadd.f32 %v1397, %v1632
        %v1660 = vadd.f32 %v1398, %v1632
        %v1661 = vadd.f32 %v1399, %v1632
        %v1662 = vadd.f32 %v1400, %v1632
        %v1663 = vadd.f32 %v1401, %v1632
        %v1664 = vadd.f32 %v1402, %v1632
        %v1665 = vadd.f32 %v1403, %v1632
        %v1666 = vadd.f32 %v1404, %v1632
        %v1667 = vadd.f32 %v1405, %v1632
        %v1668 = vadd.f32 %v1406, %v1632
        %v1669 = vadd.f32 %v1407, %v1632
        %v1670 = vadd.f32 %v1408, %v1632
        %v1671 = vadd.f32 %v1409, %v1632
        %v1672 = vadd.f32 %v1410, %v1632
        %v1673 = vadd.f32 %v1411, %v1632
        %v1674 = vadd.f32 %v1412, %v1632
        %v1675 = vadd.f32 %v1413, %v1632
        %v1676 = vadd.f32 %v1414, %v1632
        %v1677 = vadd.f32 %v1415, %v1632
        %v1678 = vadd.f32 %v1416, %v1632
        %v1679 = vadd.f32 %v1417, %v1632
        %v1680 = vadd.f32 %v1418, %v1632
        %v1681 = vadd.f32 %v1419, %v1632
        %v1682 = vadd.f32 %v1420, %v1632
        %v1683 = vadd.f32 %v1421, %v1632
        %v1684 = vadd.f32 %v1422, %v1632
        %v1685 = vadd.f32 %v1423, %v1632
        %v1686 = vadd.f32 %v1424, %v1632
        %v1687 = vadd.f32 %v1425, %v1632
        %v1688 = vadd.f32 %v1426, %v1632
        %v1689 = vadd.f32 %v1427, %v1632
        %v1690 = vadd.f32 %v1428, %v1632
        %v1691 = vadd.f32 %v1429, %v1632
        %v1692 = vadd.f32 %v1430, %v1632
        %v1693 = vadd.f32 %v1431, %v1632
        %v1694 = vadd.f32 %v1432, %v1632
        %v1695 = vadd.f32 %v1433, %v1632
        %v1696 = vadd.f32 %v1434, %v1632
        %v1697 = vadd.f32 %v1435, %v1632
        %v1698 = vadd.f32 %v1436, %v1632
        %v1699 = vadd.f32 %v1437, %v1632
        %v1700 = vadd.f32 %v1438, %v1632
        %v1701 = vadd.f32 %v1439, %v1632
        %v1702 = vadd.f32 %v1440, %v1632
        %v1703 = vadd.f32 %v1441, %v1632
        %v1704 = vadd.f32 %v1442, %v1632
        %v1705 = vadd.f32 %v1443, %v1632
        %v1706 = vadd.f32 %v1444, %v1632
        %v1707 = vadd.f32 %v1445, %v1632
        %v1708 = vadd.f32 %v1446, %v1632
        %v1709 = vadd.f32 %v1447, %v1632
        %v1710 = vadd.f32 %v1448, %v1632
        %v1711 = vadd.f32 %v1449, %v1632
        %v1712 = vadd.f32 %v1450, %v1632
        %v1713 = vadd.f32 %v1451, %v1632
        %v1714 = vadd.f32 %v1452, %v1632
        %v1715 = vadd.f32 %v1453, %v1632
        %v1716 = vadd.f32 %v1454, %v1632
        %v1717 = vadd.f32 %v1455, %v1632
        %v1718 = vadd.f32 %v1456, %v1632
        %v1719 = vadd.f32 %v1457, %v1632
        %v1720 = vadd.f32 %v1458, %v1632
        %v1721 = vadd.f32 %v1459, %v1632
        %v1722 = vadd.f32 %v1460, %v1632
        %v1723 = vadd.f32 %v1461, %v1632
        %v1724 = vadd.f32 %v1462, %v1632
        %v1725 = vadd.f32 %v1463, %v1632
        %v1726 = vadd.f32 %v1464, %v1632
        %v1727 = vadd.f32 %v1465, %v1632
        %v1728 = vadd.f32 %v1466, %v1632
        %v1729 = vadd.f32 %v1467, %v1632
        %v1730 = vadd.f32 %v1468, %v1632
        %v1731 = vadd.f32 %v1469, %v1632
        %v1732 = vadd.f32 %v1470, %v1632
        %v1733 = vadd.f32 %v1471, %v1632
        %v1734 = vadd.f32 %v1472, %v1632
        %v1735 = vadd.f32 %v1473, %v1632
        %v1736 = vadd.f32 %v1474, %v1632
        %v1737 = vadd.f32 %v1475, %v1632
        %v1738 = vadd.f32 %v1476, %v1632
        %v1739 = vadd.f32 %v1477, %v1632
        %v1740 = vadd.f32 %v1478, %v1632
        %v1741 = vadd.f32 %v1479, %v1632
        %v1742 = vadd.f32 %v1480, %v1632
        %v1743 = vadd.f32 %v1481, %v1632
        %v1744 = vadd.f32 %v1482, %v1632
        %v1745 = vadd.f32 %v1483, %v1632
        %v1746 = vadd.f32 %v1484, %v1632
        %v1747 = vadd.f32 %v1485, %v1632
        %v1748 = vadd.f32 %v1486, %v1632
        %v1749 = vadd.f32 %v1487, %v1632
        %v1750 = vadd.f32 %v1488, %v1632
        %v1751 = vadd.f32 %v1489, %v1632
        %v1752 = vadd.f32 %v1490, %v1632
        %v1753 = vadd.f32 %v1491, %v1632
        %v1754 = vadd.f32 %v1492, %v1632
        %v1755 = vadd.f32 %v1493, %v1632
        %v1756 = vadd.f32 %v1494, %v1632
        %v1757 = vadd.f32 %v1495, %v1632
        %v1758 = vadd.f32 %v1496, %v1632
        %v1759 = vadd.f32 %v1497, %v1632
        %v1760 = vadd.f32 %v1498, %v1632
        %v1761 = vadd.f32 %v1499, %v1632
        %v1762 = vadd.f32 %v1500, %v1632
        %v1763 = vadd.f32 %v1501, %v1632
        %v1764 = vadd.f32 %v1502, %v1632
        %v1765 = vadd.f32 %v1503, %v1632
        %v1766 = vadd.f32 %v1504, %v1632
        %v1767 = vadd.f32 %v1505, %v1632
        %v1768 = vadd.f32 %v1506, %v1632
        %v1769 = vadd.f32 %v1507, %v1632
        %v1770 = vadd.f32 %v1508, %v1632
        %v1771 = vadd.f32 %v1509, %v1632
        %v1772 = vadd.f32 %v1510, %v1632
        %v1773 = vadd.f32 %v1511, %v1632
        %v1774 = vadd.f32 %v1512, %v1632
        %v1775 = vadd.f32 %v1513, %v1632
        %v1776 = vadd.f32 %v1514, %v1632
        %v1777 = vadd.f32 %v1515, %v1632
        %v1778 = vadd.f32 %v1516, %v1632
        %v1779 = vadd.f32 %v1517, %v1632
        %v1780 = vadd.f32 %v1518, %v1632
        %v1781 = vadd.f32 %v1519, %v1632
        %v1782 = vadd.f32 %v1520, %v1632
        %v1783 = vadd.f32 %v1521, %v1632
        %v1784 = vadd.f32 %v1522, %v1632
        %v1785 = vadd.f32 %v1523, %v1632
        %v1786 = vadd.f32 %v1524, %v1632
        %v1787 = vadd.f32 %v1525, %v1632
        %v1788 = vadd.f32 %v1526, %v1632
        %v1789 = vadd.f32 %v1527, %v1632
        %v1790 = vadd.f32 %v1528, %v1632
        %v1791 = vadd.f32 %v1529, %v1632
        %v1792 = vadd.f32 %v1530, %v1632
        %v1793 = vadd.f32 %v1531, %v1632
        %v1794 = vadd.f32 %v1532, %v1632
        %v1795 = vadd.f32 %v1533, %v1632
        %v1796 = vadd.f32 %v1534, %v1632
        %v1797 = vadd.f32 %v1535, %v1632
        %v1798 = vadd.f32 %v1536, %v1632
        %v1799 = vadd.f32 %v1537, %v1632
        %v1800 = vadd.f32 %v1538, %v1632
        %v1801 = vadd.f32 %v1539, %v1632
        %v1802 = vadd.f32 %v1540, %v1632
        %v1803 = vadd.f32 %v1541, %v1632
        %v1804 = vadd.f32 %v1542, %v1632
        %v1805 = vadd.f32 %v1543, %v1632
        %v1806 = vadd.f32 %v1544, %v1632
        %v1807 = vadd.f32 %v1545, %v1632
        %v1808 = vadd.f32 %v1546, %v1632
        %v1809 = vadd.f32 %v1547, %v1632
        %v1810 = vadd.f32 %v1548, %v1632
        %v1811 = vadd.f32 %v1549, %v1632
        %v1812 = vadd.f32 %v1550, %v1632
        %v1813 = vadd.f32 %v1551, %v1632
        %v1814 = vadd.f32 %v1552, %v1632
        %v1815 = vadd.f32 %v1553, %v1632
        %v1816 = vadd.f32 %v1554, %v1632
        %v1817 = vadd.f32 %v1555, %v1632
        %v1818 = vadd.f32 %v1556, %v1632
        %v1819 = vadd.f32 %v1557, %v1632
        %v1820 = vadd.f32 %v1558, %v1632
        %v1821 = vadd.f32 %v1559, %v1632
        %v1822 = vadd.f32 %v1560, %v1632
        %v1823 = vadd.f32 %v1561, %v1632
        %v1824 = vadd.f32 %v1562, %v1632
        %v1825 = vadd.f32 %v1563, %v1632
        %v1826 = vadd.f32 %v1564, %v1632
        %v1827 = vadd.f32 %v1565, %v1632
        %v1828 = vadd.f32 %v1566, %v1632
        %v1829 = vadd.f32 %v1567, %v1632
        %v1830 = vadd.f32 %v1568, %v1632
        %v1831 = vadd.f32 %v1569, %v1632
        %v1832 = vadd.f32 %v1570, %v1632
        %v1833 = vadd.f32 %v1571, %v1632
        %v1834 = vadd.f32 %v1572, %v1632
        %v1835 = vadd.f32 %v1573, %v1632
        %v1836 = vadd.f32 %v1574, %v1632
        %v1837 = vadd.f32 %v1575, %v1632
        %v1838 = vadd.f32 %v1576, %v1632
        %v1839 = vadd.f32 %v1577, %v1632
        %v1840 = vadd.f32 %v1578, %v1632
        %v1841 = vadd.f32 %v1579, %v1632
        %v1842 = vadd.f32 %v1580, %v1632
        %v1843 = vadd.f32 %v1581, %v1632
        %v1844 = vadd.f32 %v1582, %v1632
        %v1845 = vadd.f32 %v1583, %v1632
        %v1846 = vadd.f32 %v1584, %v1632
        %v1847 = vadd.f32 %v1585, %v1632
        %v1848 = vadd.f32 %v1586, %v1632
        %v1849 = vadd.f32 %v1587, %v1632
        %v1850 = vadd.f32 %v1588, %v1632
        %v1851 = vadd.f32 %v1589, %v1632
        %v1852 = vadd.f32 %v1590, %v1632
        %v1853 = vadd.f32 %v1591, %v1632
        %v1854 = vadd.f32 %v1592, %v1632
        %v1855 = vadd.f32 %v1593, %v1632
        %v1856 = vadd.f32 %v1594, %v1632
        %v1857 = vadd.f32 %v1595, %v1632
        %v1858 = vadd.f32 %v1596, %v1632
        %v1859 = vadd.f32 %v1597, %v1632
        %v1860 = vadd.f32 %v1598, %v1632
        %v1861 = vadd.f32 %v1599, %v1632
        %v1862 = vadd.f32 %v1600, %v1632
        %v1863 = vadd.f32 %v1601, %v1632
        %v1864 = vadd.f32 %v1602, %v1632
        %v1865 = vadd.f32 %v1603, %v1632
        %v1866 = vadd.f32 %v1604, %v1632
        %v1867 = vadd.f32 %v1605, %v1632
        %v1868 = vadd.f32 %v1606, %v1632
        %v1869 = vadd.f32 %v1607, %v1632
        %v1870 = vadd.f32 %v1608, %v1632
        %v1871 = vadd.f32 %v1609, %v1632
        %v1872 = vadd.f32 %v1610, %v1632
        %v1873 = vadd.f32 %v1611, %v1632
        %v1874 = vadd.f32 %v1612, %v1632
        %v1875 = vadd.f32 %v1613, %v1632
        %v1876 = vadd.f32 %v1614, %v1632
        %v1877 = vadd.f32 %v1615, %v1632
        %v1878 = vadd.f32 %v1616, %v1632
        %v1879 = vadd.f32 %v1617, %v1632
        %v1880 = vadd.f32 %v1618, %v1632
        %v1881 = vadd.f32 %v1619, %v1632
        %v1882 = vadd.f32 %v1620, %v1632
        %v1883 = vadd.f32 %v1621, %v1632
        %v1884 = vadd.f32 %v1622, %v1632
        %v1885 = vadd.f32 %v1623, %v1632
        %v1886 = vadd.f32 %v1624, %v1632
        %v1887 = vadd.f32 %v1625, %v1632
        %v1888 = vadd.f32 %v1626, %v1632
        %v1889 = vadd.f32 %v1627, %v1632
        %v1890 = vmax.f32 %v1634, 0.0
        %v1891 = vmax.f32 %v1635, 0.0
        %v1892 = vmax.f32 %v1636, 0.0
        %v1893 = vmax.f32 %v1637, 0.0
        %v1894 = vmax.f32 %v1638, 0.0
        %v1895 = vmax.f32 %v1639, 0.0
        %v1896 = vmax.f32 %v1640, 0.0
        %v1897 = vmax.f32 %v1641, 0.0
        %v1898 = vmax.f32 %v1642, 0.0
        %v1899 = vmax.f32 %v1643, 0.0
        %v1900 = vmax.f32 %v1644, 0.0
        %v1901 = vmax.f32 %v1645, 0.0
        %v1902 = vmax.f32 %v1646, 0.0
        %v1903 = vmax.f32 %v1647, 0.0
        %v1904 = vmax.f32 %v1648, 0.0
        %v1905 = vmax.f32 %v1649, 0.0
        %v1906 = vmax.f32 %v1650, 0.0
        %v1907 = vmax.f32 %v1651, 0.0
        %v1908 = vmax.f32 %v1652, 0.0
        %v1909 = vmax.f32 %v1653, 0.0
        %v1910 = vmax.f32 %v1654, 0.0
        %v1911 = vmax.f32 %v1655, 0.0
        %v1912 = vmax.f32 %v1656, 0.0
        %v1913 = vmax.f32 %v1657, 0.0
        %v1914 = vmax.f32 %v1658, 0.0
        %v1915 = vmax.f32 %v1659, 0.0
        %v1916 = vmax.f32 %v1660, 0.0
        %v1917 = vmax.f32 %v1661, 0.0
        %v1918 = vmax.f32 %v1662, 0.0
        %v1919 = vmax.f32 %v1663, 0.0
        %v1920 = vmax.f32 %v1664, 0.0
        %v1921 = vmax.f32 %v1665, 0.0
        %v1922 = vmax.f32 %v1666, 0.0
        %v1923 = vmax.f32 %v1667, 0.0
        %v1924 = vmax.f32 %v1668, 0.0
        %v1925 = vmax.f32 %v1669, 0.0
        %v1926 = vmax.f32 %v1670, 0.0
        %v1927 = vmax.f32 %v1671, 0.0
        %v1928 = vmax.f32 %v1672, 0.0
        %v1929 = vmax.f32 %v1673, 0.0
        %v1930 = vmax.f32 %v1674, 0.0
        %v1931 = vmax.f32 %v1675, 0.0
        %v1932 = vmax.f32 %v1676, 0.0
        %v1933 = vmax.f32 %v1677, 0.0
        %v1934 = vmax.f32 %v1678, 0.0
        %v1935 = vmax.f32 %v1679, 0.0
        %v1936 = vmax.f32 %v1680, 0.0
        %v1937 = vmax.f32 %v1681, 0.0
        %v1938 = vmax.f32 %v1682, 0.0
        %v1939 = vmax.f32 %v1683, 0.0
        %v1940 = vmax.f32 %v1684, 0.0
        %v1941 = vmax.f32 %v1685, 0.0
        %v1942 = vmax.f32 %v1686, 0.0
        %v1943 = vmax.f32 %v1687, 0.0
        %v1944 = vmax.f32 %v1688, 0.0
        %v1945 = vmax.f32 %v1689, 0.0
        %v1946 = vmax.f32 %v1690, 0.0
        %v1947 = vmax.f32 %v1691, 0.0
        %v1948 = vmax.f32 %v1692, 0.0
        %v1949 = vmax.f32 %v1693, 0.0
        %v1950 = vmax.f32 %v1694, 0.0
        %v1951 = vmax.f32 %v1695, 0.0
        %v1952 = vmax.f32 %v1696, 0.0
        %v1953 = vmax.f32 %v1697, 0.0
        %v1954 = vmax.f32 %v1698, 0.0
        %v1955 = vmax.f32 %v1699, 0.0
        %v1956 = vmax.f32 %v1700, 0.0
        %v1957 = vmax.f32 %v1701, 0.0
        %v1958 = vmax.f32 %v1702, 0.0
        %v1959 = vmax.f32 %v1703, 0.0
        %v1960 = vmax.f32 %v1704, 0.0
        %v1961 = vmax.f32 %v1705, 0.0
        %v1962 = vmax.f32 %v1706, 0.0
        %v1963 = vmax.f32 %v1707, 0.0
        %v1964 = vmax.f32 %v1708, 0.0
        %v1965 = vmax.f32 %v1709, 0.0
        %v1966 = vmax.f32 %v1710, 0.0
        %v1967 = vmax.f32 %v1711, 0.0
        %v1968 = vmax.f32 %v1712, 0.0
        %v1969 = vmax.f32 %v1713, 0.0
        %v1970 = vmax.f32 %v1714, 0.0
        %v1971 = vmax.f32 %v1715, 0.0
        %v1972 = vmax.f32 %v1716, 0.0
        %v1973 = vmax.f32 %v1717, 0.0
        %v1974 = vmax.f32 %v1718, 0.0
        %v1975 = vmax.f32 %v1719, 0.0
        %v1976 = vmax.f32 %v1720, 0.0
        %v1977 = vmax.f32 %v1721, 0.0
        %v1978 = vmax.f32 %v1722, 0.0
        %v1979 = vmax.f32 %v1723, 0.0
        %v1980 = vmax.f32 %v1724, 0.0
        %v1981 = vmax.f32 %v1725, 0.0
        %v1982 = vmax.f32 %v1726, 0.0
        %v1983 = vmax.f32 %v1727, 0.0
        %v1984 = vmax.f32 %v1728, 0.0
        %v1985 = vmax.f32 %v1729, 0.0
        %v1986 = vmax.f32 %v1730, 0.0
        %v1987 = vmax.f32 %v1731, 0.0
        %v1988 = vmax.f32 %v1732, 0.0
        %v1989 = vmax.f32 %v1733, 0.0
        %v1990 = vmax.f32 %v1734, 0.0
        %v1991 = vmax.f32 %v1735, 0.0
        %v1992 = vmax.f32 %v1736, 0.0
        %v1993 = vmax.f32 %v1737, 0.0
        %v1994 = vmax.f32 %v1738, 0.0
        %v1995 = vmax.f32 %v1739, 0.0
        %v1996 = vmax.f32 %v1740, 0.0
        %v1997 = vmax.f32 %v1741, 0.0
        %v1998 = vmax.f32 %v1742, 0.0
        %v1999 = vmax.f32 %v1743, 0.0
        %v2000 = vmax.f32 %v1744, 0.0
        %v2001 = vmax.f32 %v1745, 0.0
        %v2002 = vmax.f32 %v1746, 0.0
        %v2003 = vmax.f32 %v1747, 0.0
        %v2004 = vmax.f32 %v1748, 0.0
        %v2005 = vmax.f32 %v1749, 0.0
        %v2006 = vmax.f32 %v1750, 0.0
        %v2007 = vmax.f32 %v1751, 0.0
        %v2008 = vmax.f32 %v1752, 0.0
        %v2009 = vmax.f32 %v1753, 0.0
        %v2010 = vmax.f32 %v1754, 0.0
        %v2011 = vmax.f32 %v1755, 0.0
        %v2012 = vmax.f32 %v1756, 0.0
        %v2013 = vmax.f32 %v1757, 0.0
        %v2014 = vmax.f32 %v1758, 0.0
        %v2015 = vmax.f32 %v1759, 0.0
        %v2016 = vmax.f32 %v1760, 0.0
        %v2017 = vmax.f32 %v1761, 0.0
        %v2018 = vmax.f32 %v1762, 0.0
        %v2019 = vmax.f32 %v1763, 0.0
        %v2020 = vmax.f32 %v1764, 0.0
        %v2021 = vmax.f32 %v1765, 0.0
        %v2022 = vmax.f32 %v1766, 0.0
        %v2023 = vmax.f32 %v1767, 0.0
        %v2024 = vmax.f32 %v1768, 0.0
        %v2025 = vmax.f32 %v1769, 0.0
        %v2026 = vmax.f32 %v1770, 0.0
        %v2027 = vmax.f32 %v1771, 0.0
        %v2028 = vmax.f32 %v1772, 0.0
        %v2029 = vmax.f32 %v1773, 0.0
        %v2030 = vmax.f32 %v1774, 0.0
        %v2031 = vmax.f32 %v1775, 0.0
        %v2032 = vmax.f32 %v1776, 0.0
        %v2033 = vmax.f32 %v1777, 0.0
        %v2034 = vmax.f32 %v1778, 0.0
        %v2035 = vmax.f32 %v1779, 0.0
        %v2036 = vmax.f32 %v1780, 0.0
        %v2037 = vmax.f32 %v1781, 0.0
        %v2038 = vmax.f32 %v1782, 0.0
        %v2039 = vmax.f32 %v1783, 0.0
        %v2040 = vmax.f32 %v1784, 0.0
        %v2041 = vmax.f32 %v1785, 0.0
        %v2042 = vmax.f32 %v1786, 0.0
        %v2043 = vmax.f32 %v1787, 0.0
        %v2044 = vmax.f32 %v1788, 0.0
        %v2045 = vmax.f32 %v1789, 0.0
        %v2046 = vmax.f32 %v1790, 0.0
        %v2047 = vmax.f32 %v1791, 0.0
        %v2048 = vmax.f32 %v1792, 0.0
        %v2049 = vmax.f32 %v1793, 0.0
        %v2050 = vmax.f32 %v1794, 0.0
        %v2051 = vmax.f32 %v1795, 0.0
        %v2052 = vmax.f32 %v1796, 0.0
        %v2053 = vmax.f32 %v1797, 0.0
        %v2054 = vmax.f32 %v1798, 0.0
        %v2055 = vmax.f32 %v1799, 0.0
        %v2056 = vmax.f32 %v1800, 0.0
        %v2057 = vmax.f32 %v1801, 0.0
        %v2058 = vmax.f32 %v1802, 0.0
        %v2059 = vmax.f32 %v1803, 0.0
        %v2060 = vmax.f32 %v1804, 0.0
        %v2061 = vmax.f32 %v1805, 0.0
        %v2062 = vmax.f32 %v1806, 0.0
        %v2063 = vmax.f32 %v1807, 0.0
        %v2064 = vmax.f32 %v1808, 0.0
        %v2065 = vmax.f32 %v1809, 0.0
        %v2066 = vmax.f32 %v1810, 0.0
        %v2067 = vmax.f32 %v1811, 0.0
        %v2068 = vmax.f32 %v1812, 0.0
        %v2069 = vmax.f32 %v1813, 0.0
        %v2070 = vmax.f32 %v1814, 0.0
        %v2071 = vmax.f32 %v1815, 0.0
        %v2072 = vmax.f32 %v1816, 0.0
        %v2073 = vmax.f32 %v1817, 0.0
        %v2074 = vmax.f32 %v1818, 0.0
        %v2075 = vmax.f32 %v1819, 0.0
        %v2076 = vmax.f32 %v1820, 0.0
        %v2077 = vmax.f32 %v1821, 0.0
        %v2078 = vmax.f32 %v1822, 0.0
        %v2079 = vmax.f32 %v1823, 0.0
        %v2080 = vmax.f32 %v1824, 0.0
        %v2081 = vmax.f32 %v1825, 0.0
        %v2082 = vmax.f32 %v1826, 0.0
        %v2083 = vmax.f32 %v1827, 0.0
        %v2084 = vmax.f32 %v1828, 0.0
        %v2085 = vmax.f32 %v1829, 0.0
        %v2086 = vmax.f32 %v1830, 0.0
        %v2087 = vmax.f32 %v1831, 0.0
        %v2088 = vmax.f32 %v1832, 0.0
        %v2089 = vmax.f32 %v1833, 0.0
        %v2090 = vmax.f32 %v1834, 0.0
        %v2091 = vmax.f32 %v1835, 0.0
        %v2092 = vmax.f32 %v1836, 0.0
        %v2093 = vmax.f32 %v1837, 0.0
        %v2094 = vmax.f32 %v1838, 0.0
        %v2095 = vmax.f32 %v1839, 0.0
        %v2096 = vmax.f32 %v1840, 0.0
        %v2097 = vmax.f32 %v1841, 0.0
        %v2098 = vmax.f32 %v1842, 0.0
        %v2099 = vmax.f32 %v1843, 0.0
        %v2100 = vmax.f32 %v1844, 0.0
        %v2101 = vmax.f32 %v1845, 0.0
        %v2102 = vmax.f32 %v1846, 0.0
        %v2103 = vmax.f32 %v1847, 0.0
        %v2104 = vmax.f32 %v1848, 0.0
        %v2105 = vmax.f32 %v1849, 0.0
        %v2106 = vmax.f32 %v1850, 0.0
        %v2107 = vmax.f32 %v1851, 0.0
        %v2108 = vmax.f32 %v1852, 0.0
        %v2109 = vmax.f32 %v1853, 0.0
        %v2110 = vmax.f32 %v1854, 0.0
        %v2111 = vmax.f32 %v1855, 0.0
        %v2112 = vmax.f32 %v1856, 0.0
        %v2113 = vmax.f32 %v1857, 0.0
        %v2114 = vmax.f32 %v1858, 0.0
        %v2115 = vmax.f32 %v1859, 0.0
        %v2116 = vmax.f32 %v1860, 0.0
        %v2117 = vmax.f32 %v1861, 0.0
        %v2118 = vmax.f32 %v1862, 0.0
        %v2119 = vmax.f32 %v1863, 0.0
        %v2120 = vmax.f32 %v1864, 0.0
        %v2121 = vmax.f32 %v1865, 0.0
        %v2122 = vmax.f32 %v1866, 0.0
        %v2123 = vmax.f32 %v1867, 0.0
        %v2124 = vmax.f32 %v1868, 0.0
        %v2125 = vmax.f32 %v1869, 0.0
        %v2126 = vmax.f32 %v1870, 0.0
        %v2127 = vmax.f32 %v1871, 0.0
        %v2128 = vmax.f32 %v1872, 0.0
        %v2129 = vmax.f32 %v1873, 0.0
        %v2130 = vmax.f32 %v1874, 0.0
        %v2131 = vmax.f32 %v1875, 0.0
        %v2132 = vmax.f32 %v1876, 0.0
        %v2133 = vmax.f32 %v1877, 0.0
        %v2134 = vmax.f32 %v1878, 0.0
        %v2135 = vmax.f32 %v1879, 0.0
        %v2136 = vmax.f32 %v1880, 0.0
        %v2137 = vmax.f32 %v1881, 0.0
        %v2138 = vmax.f32 %v1882, 0.0
        %v2139 = vmax.f32 %v1883, 0.0
        %v2140 = vmax.f32 %v1884, 0.0
        %v2141 = vmax.f32 %v1885, 0.0
        %v2142 = vmax.f32 %v1886, 0.0
        %v2143 = vmax.f32 %v1887, 0.0
        %v2144 = vmax.f32 %v1888, 0.0
        %v2145 = vmax.f32 %v1889, 0.0
        %2146 = vst [vmem:[%s4] sm:$0xff] %v1890
        %2147 = vst [vmem:[%s4 + $0x8] sm:$0xff] %v1891
        %2148 = vst [vmem:[%s4 + $0x10] sm:$0xff] %v1892
        %2149 = vst [vmem:[%s4 + $0x18] sm:$0xff] %v1893
        %2150 = vst [vmem:[%s4 + $0x20] sm:$0xff] %v1894
        %2151 = vst [vmem:[%s4 + $0x28] sm:$0xff] %v1895
        %2152 = vst [vmem:[%s4 + $0x30] sm:$0xff] %v1896
        %2153 = vst [vmem:[%s4 + $0x38] sm:$0xff] %v1897
        %2154 = vst [vmem:[%s4 + $0x40] sm:$0xff] %v1898
        %2155 = vst [vmem:[%s4 + $0x48] sm:$0xff] %v1899
        %2156 = vst [vmem:[%s4 + $0x50] sm:$0xff] %v1900
        %2157 = vst [vmem:[%s4 + $0x58] sm:$0xff] %v1901
        %2158 = vst [vmem:[%s4 + $0x60] sm:$0xff] %v1902
        %2159 = vst [vmem:[%s4 + $0x68] sm:$0xff] %v1903
        %2160 = vst [vmem:[%s4 + $0x70] sm:$0xff] %v1904
        %2161 = vst [vmem:[%s4 + $0x78] sm:$0xff] %v1905
        %2162 = vst [vmem:[%s4 + $0x80] sm:$0xff] %v1906
        %2163 = vst [vmem:[%s4 + $0x88] sm:$0xff] %v1907
        %2164 = vst [vmem:[%s4 + $0x90] sm:$0xff] %v1908
        %2165 = vst [vmem:[%s4 + $0x98] sm:$0xff] %v1909
        %2166 = vst [vmem:[%s4 + $0xa0] sm:$0xff] %v1910
        %2167 = vst [vmem:[%s4 + $0xa8] sm:$0xff] %v1911
        %2168 = vst [vmem:[%s4 + $0xb0] sm:$0xff] %v1912
        %2169 = vst [vmem:[%s4 + $0xb8] sm:$0xff] %v1913
        %2170 = vst [vmem:[%s4 + $0xc0] sm:$0xff] %v1914
        %2171 = vst [vmem:[%s4 + $0xc8] sm:$0xff] %v1915
        %2172 = vst [vmem:[%s4 + $0xd0] sm:$0xff] %v1916
        %2173 = vst [vmem:[%s4 + $0xd8] sm:$0xff] %v1917
        %2174 = vst [vmem:[%s4 + $0xe0] sm:$0xff] %v1918
        %2175 = vst [vmem:[%s4 + $0xe8] sm:$0xff] %v1919
        %2176 = vst [vmem:[%s4 + $0xf0] sm:$0xff] %v1920
        %2177 = vst [vmem:[%s4 + $0xf8] sm:$0xff] %v1921
        %2178 = vst [vmem:[%s4 + $0x100] sm:$0xff] %v1922
        %2179 = vst [vmem:[%s4 + $0x108] sm:$0xff] %v1923
        %2180 = vst [vmem:[%s4 + $0x110] sm:$0xff] %v1924
        %2181 = vst [vmem:[%s4 + $0x118] sm:$0xff] %v1925
        %2182 = vst [vmem:[%s4 + $0x120] sm:$0xff] %v1926
        %2183 = vst [vmem:[%s4 + $0x128] sm:$0xff] %v1927
        %2184 = vst [vmem:[%s4 + $0x130] sm:$0xff] %v1928
        %2185 = vst [vmem:[%s4 + $0x138] sm:$0xff] %v1929
        %2186 = vst [vmem:[%s4 + $0x140] sm:$0xff] %v1930
        %2187 = vst [vmem:[%s4 + $0x148] sm:$0xff] %v1931
        %2188 = vst [vmem:[%s4 + $0x150] sm:$0xff] %v1932
        %2189 = vst [vmem:[%s4 + $0x158] sm:$0xff] %v1933
        %2190 = vst [vmem:[%s4 + $0x160] sm:$0xff] %v1934
        %2191 = vst [vmem:[%s4 + $0x168] sm:$0xff] %v1935
        %2192 = vst [vmem:[%s4 + $0x170] sm:$0xff] %v1936
        %2193 = vst [vmem:[%s4 + $0x178] sm:$0xff] %v1937
        %2194 = vst [vmem:[%s4 + $0x180] sm:$0xff] %v1938
        %2195 = vst [vmem:[%s4 + $0x188] sm:$0xff] %v1939
        %2196 = vst [vmem:[%s4 + $0x190] sm:$0xff] %v1940
        %2197 = vst [vmem:[%s4 + $0x198] sm:$0xff] %v1941
        %2198 = vst [vmem:[%s4 + $0x1a0] sm:$0xff] %v1942
        %2199 = vst [vmem:[%s4 + $0x1a8] sm:$0xff] %v1943
        %2200 = vst [vmem:[%s4 + $0x1b0] sm:$0xff] %v1944
        %2201 = vst [vmem:[%s4 + $0x1b8] sm:$0xff] %v1945
        %2202 = vst [vmem:[%s4 + $0x1c0] sm:$0xff] %v1946
        %2203 = vst [vmem:[%s4 + $0x1c8] sm:$0xff] %v1947
        %2204 = vst [vmem:[%s4 + $0x1d0] sm:$0xff] %v1948
        %2205 = vst [vmem:[%s4 + $0x1d8] sm:$0xff] %v1949
        %2206 = vst [vmem:[%s4 + $0x1e0] sm:$0xff] %v1950
        %2207 = vst [vmem:[%s4 + $0x1e8] sm:$0xff] %v1951
        %2208 = vst [vmem:[%s4 + $0x1f0] sm:$0xff] %v1952
        %2209 = vst [vmem:[%s4 + $0x1f8] sm:$0xff] %v1953
        %2210 = vst [vmem:[%s4 + $0x200] sm:$0xff] %v1954
        %2211 = vst [vmem:[%s4 + $0x208] sm:$0xff] %v1955
        %2212 = vst [vmem:[%s4 + $0x210] sm:$0xff] %v1956
        %2213 = vst [vmem:[%s4 + $0x218] sm:$0xff] %v1957
        %2214 = vst [vmem:[%s4 + $0x220] sm:$0xff] %v1958
        %2215 = vst [vmem:[%s4 + $0x228] sm:$0xff] %v1959
        %2216 = vst [vmem:[%s4 + $0x230] sm:$0xff] %v1960
        %2217 = vst [vmem:[%s4 + $0x238] sm:$0xff] %v1961
        %2218 = vst [vmem:[%s4 + $0x240] sm:$0xff] %v1962
        %2219 = vst [vmem:[%s4 + $0x248] sm:$0xff] %v1963
        %2220 = vst [vmem:[%s4 + $0x250] sm:$0xff] %v1964
        %2221 = vst [vmem:[%s4 + $0x258] sm:$0xff] %v1965
        %2222 = vst [vmem:[%s4 + $0x260] sm:$0xff] %v1966
        %2223 = vst [vmem:[%s4 + $0x268] sm:$0xff] %v1967
        %2224 = vst [vmem:[%s4 + $0x270] sm:$0xff] %v1968
        %2225 = vst [vmem:[%s4 + $0x278] sm:$0xff] %v1969
        %2226 = vst [vmem:[%s4 + $0x280] sm:$0xff] %v1970
        %2227 = vst [vmem:[%s4 + $0x288] sm:$0xff] %v1971
        %2228 = vst [vmem:[%s4 + $0x290] sm:$0xff] %v1972
        %2229 = vst [vmem:[%s4 + $0x298] sm:$0xff] %v1973
        %2230 = vst [vmem:[%s4 + $0x2a0] sm:$0xff] %v1974
        %2231 = vst [vmem:[%s4 + $0x2a8] sm:$0xff] %v1975
        %2232 = vst [vmem:[%s4 + $0x2b0] sm:$0xff] %v1976
        %2233 = vst [vmem:[%s4 + $0x2b8] sm:$0xff] %v1977
        %2234 = vst [vmem:[%s4 + $0x2c0] sm:$0xff] %v1978
        %2235 = vst [vmem:[%s4 + $0x2c8] sm:$0xff] %v1979
        %2236 = vst [vmem:[%s4 + $0x2d0] sm:$0xff] %v1980
        %2237 = vst [vmem:[%s4 + $0x2d8] sm:$0xff] %v1981
        %2238 = vst [vmem:[%s4 + $0x2e0] sm:$0xff] %v1982
        %2239 = vst [vmem:[%s4 + $0x2e8] sm:$0xff] %v1983
        %2240 = vst [vmem:[%s4 + $0x2f0] sm:$0xff] %v1984
        %2241 = vst [vmem:[%s4 + $0x2f8] sm:$0xff] %v1985
        %2242 = vst [vmem:[%s4 + $0x300] sm:$0xff] %v1986
        %2243 = vst [vmem:[%s4 + $0x308] sm:$0xff] %v1987
        %2244 = vst [vmem:[%s4 + $0x310] sm:$0xff] %v1988
        %2245 = vst [vmem:[%s4 + $0x318] sm:$0xff] %v1989
        %2246 = vst [vmem:[%s4 + $0x320] sm:$0xff] %v1990
        %2247 = vst [vmem:[%s4 + $0x328] sm:$0xff] %v1991
        %2248 = vst [vmem:[%s4 + $0x330] sm:$0xff] %v1992
        %2249 = vst [vmem:[%s4 + $0x338] sm:$0xff] %v1993
        %2250 = vst [vmem:[%s4 + $0x340] sm:$0xff] %v1994
        %2251 = vst [vmem:[%s4 + $0x348] sm:$0xff] %v1995
        %2252 = vst [vmem:[%s4 + $0x350] sm:$0xff] %v1996
        %2253 = vst [vmem:[%s4 + $0x358] sm:$0xff] %v1997
        %2254 = vst [vmem:[%s4 + $0x360] sm:$0xff] %v1998
        %2255 = vst [vmem:[%s4 + $0x368] sm:$0xff] %v1999
        %2256 = vst [vmem:[%s4 + $0x370] sm:$0xff] %v2000
        %2257 = vst [vmem:[%s4 + $0x378] sm:$0xff] %v2001
        %2258 = vst [vmem:[%s4 + $0x380] sm:$0xff] %v2002
        %2259 = vst [vmem:[%s4 + $0x388] sm:$0xff] %v2003
        %2260 = vst [vmem:[%s4 + $0x390] sm:$0xff] %v2004
        %2261 = vst [vmem:[%s4 + $0x398] sm:$0xff] %v2005
        %2262 = vst [vmem:[%s4 + $0x3a0] sm:$0xff] %v2006
        %2263 = vst [vmem:[%s4 + $0x3a8] sm:$0xff] %v2007
        %2264 = vst [vmem:[%s4 + $0x3b0] sm:$0xff] %v2008
        %2265 = vst [vmem:[%s4 + $0x3b8] sm:$0xff] %v2009
        %2266 = vst [vmem:[%s4 + $0x3c0] sm:$0xff] %v2010
        %2267 = vst [vmem:[%s4 + $0x3c8] sm:$0xff] %v2011
        %2268 = vst [vmem:[%s4 + $0x3d0] sm:$0xff] %v2012
        %2269 = vst [vmem:[%s4 + $0x3d8] sm:$0xff] %v2013
        %2270 = vst [vmem:[%s4 + $0x3e0] sm:$0xff] %v2014
        %2271 = vst [vmem:[%s4 + $0x3e8] sm:$0xff] %v2015
        %2272 = vst [vmem:[%s4 + $0x3f0] sm:$0xff] %v2016
        %2273 = vst [vmem:[%s4 + $0x3f8] sm:$0xff] %v2017
        %2274 = vst [vmem:[%s4 + $0x400] sm:$0xff] %v2018
        %2275 = vst [vmem:[%s4 + $0x408] sm:$0xff] %v2019
        %2276 = vst [vmem:[%s4 + $0x410] sm:$0xff] %v2020
        %2277 = vst [vmem:[%s4 + $0x418] sm:$0xff] %v2021
        %2278 = vst [vmem:[%s4 + $0x420] sm:$0xff] %v2022
        %2279 = vst [vmem:[%s4 + $0x428] sm:$0xff] %v2023
        %2280 = vst [vmem:[%s4 + $0x430] sm:$0xff] %v2024
        %2281 = vst [vmem:[%s4 + $0x438] sm:$0xff] %v2025
        %2282 = vst [vmem:[%s4 + $0x440] sm:$0xff] %v2026
        %2283 = vst [vmem:[%s4 + $0x448] sm:$0xff] %v2027
        %2284 = vst [vmem:[%s4 + $0x450] sm:$0xff] %v2028
        %2285 = vst [vmem:[%s4 + $0x458] sm:$0xff] %v2029
        %2286 = vst [vmem:[%s4 + $0x460] sm:$0xff] %v2030
        %2287 = vst [vmem:[%s4 + $0x468] sm:$0xff] %v2031
        %2288 = vst [vmem:[%s4 + $0x470] sm:$0xff] %v2032
        %2289 = vst [vmem:[%s4 + $0x478] sm:$0xff] %v2033
        %2290 = vst [vmem:[%s4 + $0x480] sm:$0xff] %v2034
        %2291 = vst [vmem:[%s4 + $0x488] sm:$0xff] %v2035
        %2292 = vst [vmem:[%s4 + $0x490] sm:$0xff] %v2036
        %2293 = vst [vmem:[%s4 + $0x498] sm:$0xff] %v2037
        %2294 = vst [vmem:[%s4 + $0x4a0] sm:$0xff] %v2038
        %2295 = vst [vmem:[%s4 + $0x4a8] sm:$0xff] %v2039
        %2296 = vst [vmem:[%s4 + $0x4b0] sm:$0xff] %v2040
        %2297 = vst [vmem:[%s4 + $0x4b8] sm:$0xff] %v2041
        %2298 = vst [vmem:[%s4 + $0x4c0] sm:$0xff] %v2042
        %2299 = vst [vmem:[%s4 + $0x4c8] sm:$0xff] %v2043
        %2300 = vst [vmem:[%s4 + $0x4d0] sm:$0xff] %v2044
        %2301 = vst [vmem:[%s4 + $0x4d8] sm:$0xff] %v2045
        %2302 = vst [vmem:[%s4 + $0x4e0] sm:$0xff] %v2046
        %2303 = vst [vmem:[%s4 + $0x4e8] sm:$0xff] %v2047
        %2304 = vst [vmem:[%s4 + $0x4f0] sm:$0xff] %v2048
        %2305 = vst [vmem:[%s4 + $0x4f8] sm:$0xff] %v2049
        %2306 = vst [vmem:[%s4 + $0x500] sm:$0xff] %v2050
        %2307 = vst [vmem:[%s4 + $0x508] sm:$0xff] %v2051
        %2308 = vst [vmem:[%s4 + $0x510] sm:$0xff] %v2052
        %2309 = vst [vmem:[%s4 + $0x518] sm:$0xff] %v2053
        %2310 = vst [vmem:[%s4 + $0x520] sm:$0xff] %v2054
        %2311 = vst [vmem:[%s4 + $0x528] sm:$0xff] %v2055
        %2312 = vst [vmem:[%s4 + $0x530] sm:$0xff] %v2056
        %2313 = vst [vmem:[%s4 + $0x538] sm:$0xff] %v2057
        %2314 = vst [vmem:[%s4 + $0x540] sm:$0xff] %v2058
        %2315 = vst [vmem:[%s4 + $0x548] sm:$0xff] %v2059
        %2316 = vst [vmem:[%s4 + $0x550] sm:$0xff] %v2060
        %2317 = vst [vmem:[%s4 + $0x558] sm:$0xff] %v2061
        %2318 = vst [vmem:[%s4 + $0x560] sm:$0xff] %v2062
        %2319 = vst [vmem:[%s4 + $0x568] sm:$0xff] %v2063
        %2320 = vst [vmem:[%s4 + $0x570] sm:$0xff] %v2064
        %2321 = vst [vmem:[%s4 + $0x578] sm:$0xff] %v2065
        %2322 = vst [vmem:[%s4 + $0x580] sm:$0xff] %v2066
        %2323 = vst [vmem:[%s4 + $0x588] sm:$0xff] %v2067
        %2324 = vst [vmem:[%s4 + $0x590] sm:$0xff] %v2068
        %2325 = vst [vmem:[%s4 + $0x598] sm:$0xff] %v2069
        %2326 = vst [vmem:[%s4 + $0x5a0] sm:$0xff] %v2070
        %2327 = vst [vmem:[%s4 + $0x5a8] sm:$0xff] %v2071
        %2328 = vst [vmem:[%s4 + $0x5b0] sm:$0xff] %v2072
        %2329 = vst [vmem:[%s4 + $0x5b8] sm:$0xff] %v2073
        %2330 = vst [vmem:[%s4 + $0x5c0] sm:$0xff] %v2074
        %2331 = vst [vmem:[%s4 + $0x5c8] sm:$0xff] %v2075
        %2332 = vst [vmem:[%s4 + $0x5d0] sm:$0xff] %v2076
        %2333 = vst [vmem:[%s4 + $0x5d8] sm:$0xff] %v2077
        %2334 = vst [vmem:[%s4 + $0x5e0] sm:$0xff] %v2078
        %2335 = vst [vmem:[%s4 + $0x5e8] sm:$0xff] %v2079
        %2336 = vst [vmem:[%s4 + $0x5f0] sm:$0xff] %v2080
        %2337 = vst [vmem:[%s4 + $0x5f8] sm:$0xff] %v2081
        %2338 = vst [vmem:[%s4 + $0x600] sm:$0xff] %v2082
        %2339 = vst [vmem:[%s4 + $0x608] sm:$0xff] %v2083
        %2340 = vst [vmem:[%s4 + $0x610] sm:$0xff] %v2084
        %2341 = vst [vmem:[%s4 + $0x618] sm:$0xff] %v2085
        %2342 = vst [vmem:[%s4 + $0x620] sm:$0xff] %v2086
        %2343 = vst [vmem:[%s4 + $0x628] sm:$0xff] %v2087
        %2344 = vst [vmem:[%s4 + $0x630] sm:$0xff] %v2088
        %2345 = vst [vmem:[%s4 + $0x638] sm:$0xff] %v2089
        %2346 = vst [vmem:[%s4 + $0x640] sm:$0xff] %v2090
        %2347 = vst [vmem:[%s4 + $0x648] sm:$0xff] %v2091
        %2348 = vst [vmem:[%s4 + $0x650] sm:$0xff] %v2092
        %2349 = vst [vmem:[%s4 + $0x658] sm:$0xff] %v2093
        %2350 = vst [vmem:[%s4 + $0x660] sm:$0xff] %v2094
        %2351 = vst [vmem:[%s4 + $0x668] sm:$0xff] %v2095
        %2352 = vst [vmem:[%s4 + $0x670] sm:$0xff] %v2096
        %2353 = vst [vmem:[%s4 + $0x678] sm:$0xff] %v2097
        %2354 = vst [vmem:[%s4 + $0x680] sm:$0xff] %v2098
        %2355 = vst [vmem:[%s4 + $0x688] sm:$0xff] %v2099
        %2356 = vst [vmem:[%s4 + $0x690] sm:$0xff] %v2100
        %2357 = vst [vmem:[%s4 + $0x698] sm:$0xff] %v2101
        %2358 = vst [vmem:[%s4 + $0x6a0] sm:$0xff] %v2102
        %2359 = vst [vmem:[%s4 + $0x6a8] sm:$0xff] %v2103
        %2360 = vst [vmem:[%s4 + $0x6b0] sm:$0xff] %v2104
        %2361 = vst [vmem:[%s4 + $0x6b8] sm:$0xff] %v2105
        %2362 = vst [vmem:[%s4 + $0x6c0] sm:$0xff] %v2106
        %2363 = vst [vmem:[%s4 + $0x6c8] sm:$0xff] %v2107
        %2364 = vst [vmem:[%s4 + $0x6d0] sm:$0xff] %v2108
        %2365 = vst [vmem:[%s4 + $0x6d8] sm:$0xff] %v2109
        %2366 = vst [vmem:[%s4 + $0x6e0] sm:$0xff] %v2110
        %2367 = vst [vmem:[%s4 + $0x6e8] sm:$0xff] %v2111
        %2368 = vst [vmem:[%s4 + $0x6f0] sm:$0xff] %v2112
        %2369 = vst [vmem:[%s4 + $0x6f8] sm:$0xff] %v2113
        %2370 = vst [vmem:[%s4 + $0x700] sm:$0xff] %v2114
        %2371 = vst [vmem:[%s4 + $0x708] sm:$0xff] %v2115
        %2372 = vst [vmem:[%s4 + $0x710] sm:$0xff] %v2116
        %2373 = vst [vmem:[%s4 + $0x718] sm:$0xff] %v2117
        %2374 = vst [vmem:[%s4 + $0x720] sm:$0xff] %v2118
        %2375 = vst [vmem:[%s4 + $0x728] sm:$0xff] %v2119
        %2376 = vst [vmem:[%s4 + $0x730] sm:$0xff] %v2120
        %2377 = vst [vmem:[%s4 + $0x738] sm:$0xff] %v2121
        %2378 = vst [vmem:[%s4 + $0x740] sm:$0xff] %v2122
        %2379 = vst [vmem:[%s4 + $0x748] sm:$0xff] %v2123
        %2380 = vst [vmem:[%s4 + $0x750] sm:$0xff] %v2124
        %2381 = vst [vmem:[%s4 + $0x758] sm:$0xff] %v2125
        %2382 = vst [vmem:[%s4 + $0x760] sm:$0xff] %v2126
        %2383 = vst [vmem:[%s4 + $0x768] sm:$0xff] %v2127
        %2384 = vst [vmem:[%s4 + $0x770] sm:$0xff] %v2128
        %2385 = vst [vmem:[%s4 + $0x778] sm:$0xff] %v2129
        %2386 = vst [vmem:[%s4 + $0x780] sm:$0xff] %v2130
        %2387 = vst [vmem:[%s4 + $0x788] sm:$0xff] %v2131
        %2388 = vst [vmem:[%s4 + $0x790] sm:$0xff] %v2132
        %2389 = vst [vmem:[%s4 + $0x798] sm:$0xff] %v2133
        %2390 = vst [vmem:[%s4 + $0x7a0] sm:$0xff] %v2134
        %2391 = vst [vmem:[%s4 + $0x7a8] sm:$0xff] %v2135
        %2392 = vst [vmem:[%s4 + $0x7b0] sm:$0xff] %v2136
        %2393 = vst [vmem:[%s4 + $0x7b8] sm:$0xff] %v2137
        %2394 = vst [vmem:[%s4 + $0x7c0] sm:$0xff] %v2138
        %2395 = vst [vmem:[%s4 + $0x7c8] sm:$0xff] %v2139
        %2396 = vst [vmem:[%s4 + $0x7d0] sm:$0xff] %v2140
        %2397 = vst [vmem:[%s4 + $0x7d8] sm:$0xff] %v2141
        %2398 = vst [vmem:[%s4 + $0x7e0] sm:$0xff] %v2142
        %2399 = vst [vmem:[%s4 + $0x7e8] sm:$0xff] %v2143
        %2400 = vst [vmem:[%s4 + $0x7f0] sm:$0xff] %v2144
        %2401 = vst [vmem:[%s4 + $0x7f8] sm:$0xff] %v2145
      $region44: #{_lambda_.8} parent=35 // pred_fallthru
        _
      // Predicated region
      $region45: #{_lambda_.8} parent=35 // pred_check
        %p2402 = pneg %p122
      $region46: #{_lambda_.8} parent=35 // pred_check_branch
        %2404 = sbr.rel (%p2402) target = $region48
      $region47: #{_lambda_.8} parent=35 // pred_region
        _
      $region48: #{_lambda_.8} parent=35 // pred_fallthru
        _
      // Predicated region
      $region49: #{_lambda_.8} parent=35 // pred_check
        %p2405 = pneg %p122
      $region50: #{_lambda_.8} parent=35 // pred_check_branch
        %2407 = sbr.rel (%p2405) target = $region52
      $region51: #{_lambda_.8} parent=35 // pred_region
        _
      $region52: #{_lambda_.8} parent=35 // pred_fallthru
        _
    $region36: #{_lambda_.8} parent=5 // pred_fallthru
      _
    %p2408 = scmp.le.s32.totalorder 2, %s10
    // Predicated region
    $region53: #{_lambda_.8} parent=5 // pred_check
      %p2409 = pneg %p2408
    $region54: #{_lambda_.8} parent=5 // pred_check_branch
      %2411 = sbr.rel (%p2409) target = $region56
    $region55: #{_lambda_.8} parent=5 // pred_region
      %s2412 = ssub.s32 %s10, 2
    $region56: #{_lambda_.8} parent=5 // pred_fallthru
      _
  $region6: #{_lambda_.8} parent=0 // loop_footer
    %s14 = sadd.s32 1, %s10
  $region7: #{_lambda_.8} parent=0 // loop_footer_branch
    %9 = sbr.rel target = $region3
  $region8: #{_lambda_.8} parent=0 // loop_exit
    _

// kernel: _lambda_.9
$region0: #{_lambda_.9}
  #allocation0 [shape = 'u32[]', space=smem, size = 0x4, offset = 0x4, fixed_abs, tag = 'smem constant byte address 0x4 - core index']
  #allocation1 [shape = 'u32[144,128]{1,0:T(1,128)}', space=vmem, size = 0x12000, scoped, tag = 'internal scratch']
  %s0 = inlined_call_operand.vmem [shape: bf16[4,2048,64], index: 0, kind: input, shape index: {}]
  %s1 = inlined_call_operand.vmem [shape: bf16[4,64,128], index: 1, kind: input, shape index: {}]
  %s2 = inlined_call_operand.vmem [shape: f32[4,2048,128], index: 2, kind: output, shape index: {}]
  %s3 = sld [smem:[#allocation0]]
  $region41: #{_lambda_.9} parent=0
    _
  %s5 = ssub.s32 1, %s3
  %s6 = scalar_select 0, %s5, %s3
  loop: start=0, step=1, limit=6
  $region2: #{_lambda_.9} parent=0 // loop_pre_header
    _
  $region3: #{_lambda_.9} parent=0 // loop_header
    %s8 = sphi 0, %s12
    %p9 = scmp.ge.s32.totalorder %s8, 6
    %s18 = sphi 0, %s20
    %s21 = sphi 0, %s18
    %s22 = sphi 0, %s21
    %s38 = sphi 0, %s22
    %s44 = sphi 0, %s46
    %s47 = sphi 0, %s44
    %s48 = sphi 0, %s47
    %s64 = sphi 0, %s48
    %s70 = sphi 0, %s72
    %s73 = sphi 0, %s70
    %s74 = sphi 0, %s73
    %s90 = sphi 0, %s74
  $region4: #{_lambda_.9} parent=0 // loop_header_branch
    %11 = sbr.rel (%p9) target = $region8
  $region5: #{_lambda_.9} parent=0 // loop_body
    %s13 = ssub.s32 %s8, 1
    %s14 = ssub.s32 %s8, 2
    %s15 = sadd.s32 %s8, 1
    %s16 = ssub.s32 %s8, %s15
    %p17 = scmp.eq.s32.totalorder %s16, 0
    %s19 = sadd.s32 %s18, 1
    %s20 = scalar_select %p17, %s18, %s19
    %p23 = pneg %p17
    %p24 = scmp.eq.s32.totalorder %s8, 3
    %p25 = por %p23, %p24
    %p26 = scmp.ne.s32.totalorder %s18, %s21
    %p27 = scmp.eq.s32.totalorder %s8, 0
    %p28 = por %p26, %p27
    %p29 = scmp.ne.s32.totalorder %s18, %s21
    %p30 = scmp.eq.s32.totalorder %s13, 3
    %p31 = por %p29, %p30
    %p32 = scmp.ne.s32.totalorder %s21, %s22
    %p33 = scmp.eq.s32.totalorder %s13, 0
    %p34 = por %p32, %p33
    %p35 = scmp.ne.s32.totalorder %s21, %s22
    %p36 = scmp.eq.s32.totalorder %s14, 3
    %p37 = por %p35, %p36
    %p39 = scmp.ne.s32.totalorder %s22, %s38
    %p40 = scmp.eq.s32.totalorder %s14, 0
    %p41 = por %p39, %p40
    %s42 = ssub.s32 %s8, %s15
    %p43 = scmp.eq.s32.totalorder %s42, 0
    %s45 = sadd.s32 %s44, 1
    %s46 = scalar_select %p43, %s44, %s45
    %p49 = pneg %p43
    %p50 = scmp.eq.s32.totalorder %s8, 3
    %p51 = por %p49, %p50
    %p52 = scmp.ne.s32.totalorder %s44, %s47
    %p53 = scmp.eq.s32.totalorder %s8, 0
    %p54 = por %p52, %p53
    %p55 = scmp.ne.s32.totalorder %s44, %s47
    %p56 = scmp.eq.s32.totalorder %s13, 3
    %p57 = por %p55, %p56
    %p58 = scmp.ne.s32.totalorder %s47, %s48
    %p59 = scmp.eq.s32.totalorder %s13, 0
    %p60 = por %p58, %p59
    %p61 = scmp.ne.s32.totalorder %s47, %s48
    %p62 = scmp.eq.s32.totalorder %s14, 3
    %p63 = por %p61, %p62
    %p65 = scmp.ne.s32.totalorder %s48, %s64
    %p66 = scmp.eq.s32.totalorder %s14, 0
    %p67 = por %p65, %p66
    %s68 = ssub.s32 %s8, %s15
    %p69 = scmp.eq.s32.totalorder %s68, 0
    %s71 = sadd.s32 %s70, 1
    %s72 = scalar_select %p69, %s70, %s71
    %p75 = pneg %p69
    %p76 = scmp.eq.s32.totalorder %s8, 3
    %p77 = por %p75, %p76
    %p78 = scmp.ne.s32.totalorder %s70, %s73
    %p79 = scmp.eq.s32.totalorder %s8, 0
    %p80 = por %p78, %p79
    %p81 = scmp.ne.s32.totalorder %s70, %s73
    %p82 = scmp.eq.s32.totalorder %s13, 3
    %p83 = por %p81, %p82
    %p84 = scmp.ne.s32.totalorder %s73, %s74
    %p85 = scmp.eq.s32.totalorder %s13, 0
    %p86 = por %p84, %p85
    %p87 = scmp.ne.s32.totalorder %s73, %s74
    %p88 = scmp.eq.s32.totalorder %s14, 3
    %p89 = por %p87, %p88
    %p91 = scmp.ne.s32.totalorder %s74, %s90
    %p92 = scmp.eq.s32.totalorder %s14, 0
    %p93 = por %p91, %p92
    %p94 = scmp.le.s32.totalorder 1, %s8
    %p95 = scmp.lt.s32.totalorder %s8, 5
    %p96 = pnand %p94, %p95
    %p97 = pneg %p96
    // Predicated region
    $region9: #{_lambda_.9} parent=5 // pred_check
      _
    $region10: #{_lambda_.9} parent=5 // pred_check_branch
      %99 = sbr.rel (%p96) target = $region12
    $region11: #{_lambda_.9} parent=5 // pred_region
      %s100 = ssub.s32 %s8, 1
    $region12: #{_lambda_.9} parent=5 // pred_fallthru
      _
    %p101 = scmp.lt.s32.totalorder %s8, 4
    // Predicated region
    $region13: #{_lambda_.9} parent=5 // pred_check
      %p102 = pneg %p101
    $region14: #{_lambda_.9} parent=5 // pred_check_branch
      %104 = sbr.rel (%p102) target = $region16
    $region15: #{_lambda_.9} parent=5 // pred_region
      // Predicated region
      $region17: #{_lambda_.9} parent=15 // pred_check
        %p105 = pneg %p28
      $region18: #{_lambda_.9} parent=15 // pred_check_branch
        %107 = sbr.rel (%p105) target = $region20
      $region19: #{_lambda_.9} parent=15 // pred_region
        %p108 = scmp.lt.s32.totalorder %s8, 3
        %s109 = scalar_select %p108, %s8, 3
        %s110 = smul.addr %s109, 256
        %s111 = smul.addr %s110, 4
        %s112 = scalar_lea.vmem %s0, %s111
      $region20: #{_lambda_.9} parent=15 // pred_fallthru
        _
      // Predicated region
      $region21: #{_lambda_.9} parent=15 // pred_check
        %p113 = pneg %p54
      $region22: #{_lambda_.9} parent=15 // pred_check_branch
        %115 = sbr.rel (%p113) target = $region24
      $region23: #{_lambda_.9} parent=15 // pred_region
        %p116 = scmp.lt.s32.totalorder %s8, 3
        %s117 = scalar_select %p116, %s8, 3
        %s118 = smul.addr %s117, 8
        %s119 = smul.addr %s118, 4
        %s120 = scalar_lea.vmem %s1, %s119
      $region24: #{_lambda_.9} parent=15 // pred_fallthru
        _
    $region16: #{_lambda_.9} parent=5 // pred_fallthru
      _
    %p121 = scmp.le.s32.totalorder 1, %s8
    %p122 = scmp.lt.s32.totalorder %s8, 5
    %p123 = pnand %p121, %p122
    %p124 = pneg %p123
    // Predicated region
    $region25: #{_lambda_.9} parent=5 // pred_check
      _
    $region26: #{_lambda_.9} parent=5 // pred_check_branch
      %126 = sbr.rel (%p123) target = $region28
    $region27: #{_lambda_.9} parent=5 // pred_region
      %s127 = ssub.s32 %s8, 1
      %p128 = scmp.lt.s32.totalorder %s13, 3
      %s129 = scalar_select %p128, %s13, 3
      %s130 = smul.addr %s129, 256
      %s131 = smul.addr %s130, 4
      %s132 = scalar_lea.vmem %s0, %s131
      %p133 = pneg %p34
      %p134 = pneg %p31
      %p135 = scmp.lt.s32.totalorder %s13, 3
      %s136 = scalar_select %p135, %s13, 3
      %s137 = smul.addr %s136, 8
      %s138 = smul.addr %s137, 4
      %s139 = scalar_lea.vmem %s1, %s138
      %p140 = pneg %p60
      %p141 = pneg %p57
      %p142 = pneg %p86
      %p143 = pneg %p83
      %p144 = scmp.lt.s32.totalorder %s13, 3
      %s145 = scalar_select %p144, %s13, 3
      %s146 = smul.addr %s145, 256
      %s147 = smul.addr %s146, 8
      %s148 = scalar_lea.vmem %s2, %s147
      %p149 = scmp.lt.s32.totalorder %s13, 3
      %s150 = scalar_select %p149, %s13, 3
      %s151 = smul.addr %s150, 256
      %s152 = smul.addr %s151, 4
      %s153 = scalar_lea.vmem %s0, %s152
      %p154 = scmp.lt.s32.totalorder %s13, 3
      %s155 = scalar_select %p154, %s13, 3
      %s156 = smul.addr %s155, 8
      %s157 = smul.addr %s156, 4
      %s158 = scalar_lea.vmem %s1, %s157
      %p159 = scmp.lt.s32.totalorder %s13, 3
      %s160 = scalar_select %p159, %s13, 3
      %s161 = smul.addr %s160, 256
      %s162 = smul.addr %s161, 8
      %s163 = scalar_lea.vmem %s2, %s162
      %v165 = vld [vmem:[%s153] sm:$0xf]
      %v166 = vld [vmem:[%s153 + $0x4] sm:$0xf]
      %v167 = vld [vmem:[%s153 + $0x8] sm:$0xf]
      %v168 = vld [vmem:[%s153 + $0xc] sm:$0xf]
      %v169 = vld [vmem:[%s153 + $0x10] sm:$0xf]
      %v170 = vld [vmem:[%s153 + $0x14] sm:$0xf]
      %v171 = vld [vmem:[%s153 + $0x18] sm:$0xf]
      %v172 = vld [vmem:[%s153 + $0x1c] sm:$0xf]
      %v173 = vld [vmem:[%s153 + $0x20] sm:$0xf]
      %v174 = vld [vmem:[%s153 + $0x24] sm:$0xf]
      %v175 = vld [vmem:[%s153 + $0x28] sm:$0xf]
      %v176 = vld [vmem:[%s153 + $0x2c] sm:$0xf]
      %v177 = vld [vmem:[%s153 + $0x30] sm:$0xf]
      %v178 = vld [vmem:[%s153 + $0x34] sm:$0xf]
      %v179 = vld [vmem:[%s153 + $0x38] sm:$0xf]
      %v180 = vld [vmem:[%s153 + $0x3c] sm:$0xf]
      %v181 = vld [vmem:[%s153 + $0x40] sm:$0xf]
      %v182 = vld [vmem:[%s153 + $0x44] sm:$0xf]
      %v183 = vld [vmem:[%s153 + $0x48] sm:$0xf]
      %v184 = vld [vmem:[%s153 + $0x4c] sm:$0xf]
      %v185 = vld [vmem:[%s153 + $0x50] sm:$0xf]
      %v186 = vld [vmem:[%s153 + $0x54] sm:$0xf]
      %v187 = vld [vmem:[%s153 + $0x58] sm:$0xf]
      %v188 = vld [vmem:[%s153 + $0x5c] sm:$0xf]
      %v189 = vld [vmem:[%s153 + $0x60] sm:$0xf]
      %v190 = vld [vmem:[%s153 + $0x64] sm:$0xf]
      %v191 = vld [vmem:[%s153 + $0x68] sm:$0xf]
      %v192 = vld [vmem:[%s153 + $0x6c] sm:$0xf]
      %v193 = vld [vmem:[%s153 + $0x70] sm:$0xf]
      %v194 = vld [vmem:[%s153 + $0x74] sm:$0xf]
      %v195 = vld [vmem:[%s153 + $0x78] sm:$0xf]
      %v196 = vld [vmem:[%s153 + $0x7c] sm:$0xf]
      %v197 = vld [vmem:[%s153 + $0x80] sm:$0xf]
      %v198 = vld [vmem:[%s153 + $0x84] sm:$0xf]
      %v199 = vld [vmem:[%s153 + $0x88] sm:$0xf]
      %v200 = vld [vmem:[%s153 + $0x8c] sm:$0xf]
      %v201 = vld [vmem:[%s153 + $0x90] sm:$0xf]
      %v202 = vld [vmem:[%s153 + $0x94] sm:$0xf]
      %v203 = vld [vmem:[%s153 + $0x98] sm:$0xf]
      %v204 = vld [vmem:[%s153 + $0x9c] sm:$0xf]
      %v205 = vld [vmem:[%s153 + $0xa0] sm:$0xf]
      %v206 = vld [vmem:[%s153 + $0xa4] sm:$0xf]
      %v207 = vld [vmem:[%s153 + $0xa8] sm:$0xf]
      %v208 = vld [vmem:[%s153 + $0xac] sm:$0xf]
      %v209 = vld [vmem:[%s153 + $0xb0] sm:$0xf]
      %v210 = vld [vmem:[%s153 + $0xb4] sm:$0xf]
      %v211 = vld [vmem:[%s153 + $0xb8] sm:$0xf]
      %v212 = vld [vmem:[%s153 + $0xbc] sm:$0xf]
      %v213 = vld [vmem:[%s153 + $0xc0] sm:$0xf]
      %v214 = vld [vmem:[%s153 + $0xc4] sm:$0xf]
      %v215 = vld [vmem:[%s153 + $0xc8] sm:$0xf]
      %v216 = vld [vmem:[%s153 + $0xcc] sm:$0xf]
      %v217 = vld [vmem:[%s153 + $0xd0] sm:$0xf]
      %v218 = vld [vmem:[%s153 + $0xd4] sm:$0xf]
      %v219 = vld [vmem:[%s153 + $0xd8] sm:$0xf]
      %v220 = vld [vmem:[%s153 + $0xdc] sm:$0xf]
      %v221 = vld [vmem:[%s153 + $0xe0] sm:$0xf]
      %v222 = vld [vmem:[%s153 + $0xe4] sm:$0xf]
      %v223 = vld [vmem:[%s153 + $0xe8] sm:$0xf]
      %v224 = vld [vmem:[%s153 + $0xec] sm:$0xf]
      %v225 = vld [vmem:[%s153 + $0xf0] sm:$0xf]
      %v226 = vld [vmem:[%s153 + $0xf4] sm:$0xf]
      %v227 = vld [vmem:[%s153 + $0xf8] sm:$0xf]
      %v228 = vld [vmem:[%s153 + $0xfc] sm:$0xf]
      %v229 = vld [vmem:[%s153 + $0x100] sm:$0xf]
      %v230 = vld [vmem:[%s153 + $0x104] sm:$0xf]
      %v231 = vld [vmem:[%s153 + $0x108] sm:$0xf]
      %v232 = vld [vmem:[%s153 + $0x10c] sm:$0xf]
      %v233 = vld [vmem:[%s153 + $0x110] sm:$0xf]
      %v234 = vld [vmem:[%s153 + $0x114] sm:$0xf]
      %v235 = vld [vmem:[%s153 + $0x118] sm:$0xf]
      %v236 = vld [vmem:[%s153 + $0x11c] sm:$0xf]
      %v237 = vld [vmem:[%s153 + $0x120] sm:$0xf]
      %v238 = vld [vmem:[%s153 + $0x124] sm:$0xf]
      %v239 = vld [vmem:[%s153 + $0x128] sm:$0xf]
      %v240 = vld [vmem:[%s153 + $0x12c] sm:$0xf]
      %v241 = vld [vmem:[%s153 + $0x130] sm:$0xf]
      %v242 = vld [vmem:[%s153 + $0x134] sm:$0xf]
      %v243 = vld [vmem:[%s153 + $0x138] sm:$0xf]
      %v244 = vld [vmem:[%s153 + $0x13c] sm:$0xf]
      %v245 = vld [vmem:[%s153 + $0x140] sm:$0xf]
      %v246 = vld [vmem:[%s153 + $0x144] sm:$0xf]
      %v247 = vld [vmem:[%s153 + $0x148] sm:$0xf]
      %v248 = vld [vmem:[%s153 + $0x14c] sm:$0xf]
      %v249 = vld [vmem:[%s153 + $0x150] sm:$0xf]
      %v250 = vld [vmem:[%s153 + $0x154] sm:$0xf]
      %v251 = vld [vmem:[%s153 + $0x158] sm:$0xf]
      %v252 = vld [vmem:[%s153 + $0x15c] sm:$0xf]
      %v253 = vld [vmem:[%s153 + $0x160] sm:$0xf]
      %v254 = vld [vmem:[%s153 + $0x164] sm:$0xf]
      %v255 = vld [vmem:[%s153 + $0x168] sm:$0xf]
      %v256 = vld [vmem:[%s153 + $0x16c] sm:$0xf]
      %v257 = vld [vmem:[%s153 + $0x170] sm:$0xf]
      %v258 = vld [vmem:[%s153 + $0x174] sm:$0xf]
      %v259 = vld [vmem:[%s153 + $0x178] sm:$0xf]
      %v260 = vld [vmem:[%s153 + $0x17c] sm:$0xf]
      %v261 = vld [vmem:[%s153 + $0x180] sm:$0xf]
      %v262 = vld [vmem:[%s153 + $0x184] sm:$0xf]
      %v263 = vld [vmem:[%s153 + $0x188] sm:$0xf]
      %v264 = vld [vmem:[%s153 + $0x18c] sm:$0xf]
      %v265 = vld [vmem:[%s153 + $0x190] sm:$0xf]
      %v266 = vld [vmem:[%s153 + $0x194] sm:$0xf]
      %v267 = vld [vmem:[%s153 + $0x198] sm:$0xf]
      %v268 = vld [vmem:[%s153 + $0x19c] sm:$0xf]
      %v269 = vld [vmem:[%s153 + $0x1a0] sm:$0xf]
      %v270 = vld [vmem:[%s153 + $0x1a4] sm:$0xf]
      %v271 = vld [vmem:[%s153 + $0x1a8] sm:$0xf]
      %v272 = vld [vmem:[%s153 + $0x1ac] sm:$0xf]
      %v273 = vld [vmem:[%s153 + $0x1b0] sm:$0xf]
      %v274 = vld [vmem:[%s153 + $0x1b4] sm:$0xf]
      %v275 = vld [vmem:[%s153 + $0x1b8] sm:$0xf]
      %v276 = vld [vmem:[%s153 + $0x1bc] sm:$0xf]
      %v277 = vld [vmem:[%s153 + $0x1c0] sm:$0xf]
      %v278 = vld [vmem:[%s153 + $0x1c4] sm:$0xf]
      %v279 = vld [vmem:[%s153 + $0x1c8] sm:$0xf]
      %v280 = vld [vmem:[%s153 + $0x1cc] sm:$0xf]
      %v281 = vld [vmem:[%s153 + $0x1d0] sm:$0xf]
      %v282 = vld [vmem:[%s153 + $0x1d4] sm:$0xf]
      %v283 = vld [vmem:[%s153 + $0x1d8] sm:$0xf]
      %v284 = vld [vmem:[%s153 + $0x1dc] sm:$0xf]
      %v285 = vld [vmem:[%s153 + $0x1e0] sm:$0xf]
      %v286 = vld [vmem:[%s153 + $0x1e4] sm:$0xf]
      %v287 = vld [vmem:[%s153 + $0x1e8] sm:$0xf]
      %v288 = vld [vmem:[%s153 + $0x1ec] sm:$0xf]
      %v289 = vld [vmem:[%s153 + $0x1f0] sm:$0xf]
      %v290 = vld [vmem:[%s153 + $0x1f4] sm:$0xf]
      %v291 = vld [vmem:[%s153 + $0x1f8] sm:$0xf]
      %v292 = vld [vmem:[%s153 + $0x1fc] sm:$0xf]
      %v293 = vld [vmem:[%s153 + $0x200] sm:$0xf]
      %v294 = vld [vmem:[%s153 + $0x204] sm:$0xf]
      %v295 = vld [vmem:[%s153 + $0x208] sm:$0xf]
      %v296 = vld [vmem:[%s153 + $0x20c] sm:$0xf]
      %v297 = vld [vmem:[%s153 + $0x210] sm:$0xf]
      %v298 = vld [vmem:[%s153 + $0x214] sm:$0xf]
      %v299 = vld [vmem:[%s153 + $0x218] sm:$0xf]
      %v300 = vld [vmem:[%s153 + $0x21c] sm:$0xf]
      %v301 = vld [vmem:[%s153 + $0x220] sm:$0xf]
      %v302 = vld [vmem:[%s153 + $0x224] sm:$0xf]
      %v303 = vld [vmem:[%s153 + $0x228] sm:$0xf]
      %v304 = vld [vmem:[%s153 + $0x22c] sm:$0xf]
      %v305 = vld [vmem:[%s153 + $0x230] sm:$0xf]
      %v306 = vld [vmem:[%s153 + $0x234] sm:$0xf]
      %v307 = vld [vmem:[%s153 + $0x238] sm:$0xf]
      %v308 = vld [vmem:[%s153 + $0x23c] sm:$0xf]
      %v309 = vld [vmem:[%s153 + $0x240] sm:$0xf]
      %v310 = vld [vmem:[%s153 + $0x244] sm:$0xf]
      %v311 = vld [vmem:[%s153 + $0x248] sm:$0xf]
      %v312 = vld [vmem:[%s153 + $0x24c] sm:$0xf]
      %v313 = vld [vmem:[%s153 + $0x250] sm:$0xf]
      %v314 = vld [vmem:[%s153 + $0x254] sm:$0xf]
      %v315 = vld [vmem:[%s153 + $0x258] sm:$0xf]
      %v316 = vld [vmem:[%s153 + $0x25c] sm:$0xf]
      %v317 = vld [vmem:[%s153 + $0x260] sm:$0xf]
      %v318 = vld [vmem:[%s153 + $0x264] sm:$0xf]
      %v319 = vld [vmem:[%s153 + $0x268] sm:$0xf]
      %v320 = vld [vmem:[%s153 + $0x26c] sm:$0xf]
      %v321 = vld [vmem:[%s153 + $0x270] sm:$0xf]
      %v322 = vld [vmem:[%s153 + $0x274] sm:$0xf]
      %v323 = vld [vmem:[%s153 + $0x278] sm:$0xf]
      %v324 = vld [vmem:[%s153 + $0x27c] sm:$0xf]
      %v325 = vld [vmem:[%s153 + $0x280] sm:$0xf]
      %v326 = vld [vmem:[%s153 + $0x284] sm:$0xf]
      %v327 = vld [vmem:[%s153 + $0x288] sm:$0xf]
      %v328 = vld [vmem:[%s153 + $0x28c] sm:$0xf]
      %v329 = vld [vmem:[%s153 + $0x290] sm:$0xf]
      %v330 = vld [vmem:[%s153 + $0x294] sm:$0xf]
      %v331 = vld [vmem:[%s153 + $0x298] sm:$0xf]
      %v332 = vld [vmem:[%s153 + $0x29c] sm:$0xf]
      %v333 = vld [vmem:[%s153 + $0x2a0] sm:$0xf]
      %v334 = vld [vmem:[%s153 + $0x2a4] sm:$0xf]
      %v335 = vld [vmem:[%s153 + $0x2a8] sm:$0xf]
      %v336 = vld [vmem:[%s153 + $0x2ac] sm:$0xf]
      %v337 = vld [vmem:[%s153 + $0x2b0] sm:$0xf]
      %v338 = vld [vmem:[%s153 + $0x2b4] sm:$0xf]
      %v339 = vld [vmem:[%s153 + $0x2b8] sm:$0xf]
      %v340 = vld [vmem:[%s153 + $0x2bc] sm:$0xf]
      %v341 = vld [vmem:[%s153 + $0x2c0] sm:$0xf]
      %v342 = vld [vmem:[%s153 + $0x2c4] sm:$0xf]
      %v343 = vld [vmem:[%s153 + $0x2c8] sm:$0xf]
      %v344 = vld [vmem:[%s153 + $0x2cc] sm:$0xf]
      %v345 = vld [vmem:[%s153 + $0x2d0] sm:$0xf]
      %v346 = vld [vmem:[%s153 + $0x2d4] sm:$0xf]
      %v347 = vld [vmem:[%s153 + $0x2d8] sm:$0xf]
      %v348 = vld [vmem:[%s153 + $0x2dc] sm:$0xf]
      %v349 = vld [vmem:[%s153 + $0x2e0] sm:$0xf]
      %v350 = vld [vmem:[%s153 + $0x2e4] sm:$0xf]
      %v351 = vld [vmem:[%s153 + $0x2e8] sm:$0xf]
      %v352 = vld [vmem:[%s153 + $0x2ec] sm:$0xf]
      %v353 = vld [vmem:[%s153 + $0x2f0] sm:$0xf]
      %v354 = vld [vmem:[%s153 + $0x2f4] sm:$0xf]
      %v355 = vld [vmem:[%s153 + $0x2f8] sm:$0xf]
      %v356 = vld [vmem:[%s153 + $0x2fc] sm:$0xf]
      %v357 = vld [vmem:[%s153 + $0x300] sm:$0xf]
      %v358 = vld [vmem:[%s153 + $0x304] sm:$0xf]
      %v359 = vld [vmem:[%s153 + $0x308] sm:$0xf]
      %v360 = vld [vmem:[%s153 + $0x30c] sm:$0xf]
      %v361 = vld [vmem:[%s153 + $0x310] sm:$0xf]
      %v362 = vld [vmem:[%s153 + $0x314] sm:$0xf]
      %v363 = vld [vmem:[%s153 + $0x318] sm:$0xf]
      %v364 = vld [vmem:[%s153 + $0x31c] sm:$0xf]
      %v365 = vld [vmem:[%s153 + $0x320] sm:$0xf]
      %v366 = vld [vmem:[%s153 + $0x324] sm:$0xf]
      %v367 = vld [vmem:[%s153 + $0x328] sm:$0xf]
      %v368 = vld [vmem:[%s153 + $0x32c] sm:$0xf]
      %v369 = vld [vmem:[%s153 + $0x330] sm:$0xf]
      %v370 = vld [vmem:[%s153 + $0x334] sm:$0xf]
      %v371 = vld [vmem:[%s153 + $0x338] sm:$0xf]
      %v372 = vld [vmem:[%s153 + $0x33c] sm:$0xf]
      %v373 = vld [vmem:[%s153 + $0x340] sm:$0xf]
      %v374 = vld [vmem:[%s153 + $0x344] sm:$0xf]
      %v375 = vld [vmem:[%s153 + $0x348] sm:$0xf]
      %v376 = vld [vmem:[%s153 + $0x34c] sm:$0xf]
      %v377 = vld [vmem:[%s153 + $0x350] sm:$0xf]
      %v378 = vld [vmem:[%s153 + $0x354] sm:$0xf]
      %v379 = vld [vmem:[%s153 + $0x358] sm:$0xf]
      %v380 = vld [vmem:[%s153 + $0x35c] sm:$0xf]
      %v381 = vld [vmem:[%s153 + $0x360] sm:$0xf]
      %v382 = vld [vmem:[%s153 + $0x364] sm:$0xf]
      %v383 = vld [vmem:[%s153 + $0x368] sm:$0xf]
      %v384 = vld [vmem:[%s153 + $0x36c] sm:$0xf]
      %v385 = vld [vmem:[%s153 + $0x370] sm:$0xf]
      %v386 = vld [vmem:[%s153 + $0x374] sm:$0xf]
      %v387 = vld [vmem:[%s153 + $0x378] sm:$0xf]
      %v388 = vld [vmem:[%s153 + $0x37c] sm:$0xf]
      %v389 = vld [vmem:[%s153 + $0x380] sm:$0xf]
      %v390 = vld [vmem:[%s153 + $0x384] sm:$0xf]
      %v391 = vld [vmem:[%s153 + $0x388] sm:$0xf]
      %v392 = vld [vmem:[%s153 + $0x38c] sm:$0xf]
      %v393 = vld [vmem:[%s153 + $0x390] sm:$0xf]
      %v394 = vld [vmem:[%s153 + $0x394] sm:$0xf]
      %v395 = vld [vmem:[%s153 + $0x398] sm:$0xf]
      %v396 = vld [vmem:[%s153 + $0x39c] sm:$0xf]
      %v397 = vld [vmem:[%s153 + $0x3a0] sm:$0xf]
      %v398 = vld [vmem:[%s153 + $0x3a4] sm:$0xf]
      %v399 = vld [vmem:[%s153 + $0x3a8] sm:$0xf]
      %v400 = vld [vmem:[%s153 + $0x3ac] sm:$0xf]
      %v401 = vld [vmem:[%s153 + $0x3b0] sm:$0xf]
      %v402 = vld [vmem:[%s153 + $0x3b4] sm:$0xf]
      %v403 = vld [vmem:[%s153 + $0x3b8] sm:$0xf]
      %v404 = vld [vmem:[%s153 + $0x3bc] sm:$0xf]
      %v405 = vld [vmem:[%s153 + $0x3c0] sm:$0xf]
      %v406 = vld [vmem:[%s153 + $0x3c4] sm:$0xf]
      %v407 = vld [vmem:[%s153 + $0x3c8] sm:$0xf]
      %v408 = vld [vmem:[%s153 + $0x3cc] sm:$0xf]
      %v409 = vld [vmem:[%s153 + $0x3d0] sm:$0xf]
      %v410 = vld [vmem:[%s153 + $0x3d4] sm:$0xf]
      %v411 = vld [vmem:[%s153 + $0x3d8] sm:$0xf]
      %v412 = vld [vmem:[%s153 + $0x3dc] sm:$0xf]
      %v413 = vld [vmem:[%s153 + $0x3e0] sm:$0xf]
      %v414 = vld [vmem:[%s153 + $0x3e4] sm:$0xf]
      %v415 = vld [vmem:[%s153 + $0x3e8] sm:$0xf]
      %v416 = vld [vmem:[%s153 + $0x3ec] sm:$0xf]
      %v417 = vld [vmem:[%s153 + $0x3f0] sm:$0xf]
      %v418 = vld [vmem:[%s153 + $0x3f4] sm:$0xf]
      %v419 = vld [vmem:[%s153 + $0x3f8] sm:$0xf]
      %v420 = vld [vmem:[%s153 + $0x3fc] sm:$0xf]
      %v421 = vld [vmem:[%s158] sm:$0xf]
      %v422 = vld [vmem:[%s158 + $0x4] sm:$0xf]
      %v423 = vld [vmem:[%s158 + $0x8] sm:$0xf]
      %v424 = vld [vmem:[%s158 + $0xc] sm:$0xf]
      %v425 = vld [vmem:[%s158 + $0x10] sm:$0xf]
      %v426 = vld [vmem:[%s158 + $0x14] sm:$0xf]
      %v427 = vld [vmem:[%s158 + $0x18] sm:$0xf]
      %v428 = vld [vmem:[%s158 + $0x1c] sm:$0xf]
      %v685 = vunpack.c.l.b16 %v165
      %v686 = vunpack.c.l.b16 %v166
      %v687 = vunpack.c.l.b16 %v167
      %v688 = vunpack.c.l.b16 %v168
      %v689 = vunpack.c.l.b16 %v169
      %v690 = vunpack.c.l.b16 %v170
      %v691 = vunpack.c.l.b16 %v171
      %v692 = vunpack.c.l.b16 %v172
      %v693 = vunpack.c.l.b16 %v173
      %v694 = vunpack.c.l.b16 %v174
      %v695 = vunpack.c.l.b16 %v175
      %v696 = vunpack.c.l.b16 %v176
      %v697 = vunpack.c.l.b16 %v177
      %v698 = vunpack.c.l.b16 %v178
      %v699 = vunpack.c.l.b16 %v179
      %v700 = vunpack.c.l.b16 %v180
      %v701 = vunpack.c.l.b16 %v181
      %v702 = vunpack.c.l.b16 %v182
      %v703 = vunpack.c.l.b16 %v183
      %v704 = vunpack.c.l.b16 %v184
      %v705 = vunpack.c.l.b16 %v185
      %v706 = vunpack.c.l.b16 %v186
      %v707 = vunpack.c.l.b16 %v187
      %v708 = vunpack.c.l.b16 %v188
      %v709 = vunpack.c.l.b16 %v189
      %v710 = vunpack.c.l.b16 %v190
      %v711 = vunpack.c.l.b16 %v191
      %v712 = vunpack.c.l.b16 %v192
      %v713 = vunpack.c.l.b16 %v193
      %v714 = vunpack.c.l.b16 %v194
      %v715 = vunpack.c.l.b16 %v195
      %v716 = vunpack.c.l.b16 %v196
      %v717 = vunpack.c.l.b16 %v197
      %v718 = vunpack.c.l.b16 %v198
      %v719 = vunpack.c.l.b16 %v199
      %v720 = vunpack.c.l.b16 %v200
      %v721 = vunpack.c.l.b16 %v201
      %v722 = vunpack.c.l.b16 %v202
      %v723 = vunpack.c.l.b16 %v203
      %v724 = vunpack.c.l.b16 %v204
      %v725 = vunpack.c.l.b16 %v205
      %v726 = vunpack.c.l.b16 %v206
      %v727 = vunpack.c.l.b16 %v207
      %v728 = vunpack.c.l.b16 %v208
      %v729 = vunpack.c.l.b16 %v209
      %v730 = vunpack.c.l.b16 %v210
      %v731 = vunpack.c.l.b16 %v211
      %v732 = vunpack.c.l.b16 %v212
      %v733 = vunpack.c.l.b16 %v213
      %v734 = vunpack.c.l.b16 %v214
      %v735 = vunpack.c.l.b16 %v215
      %v736 = vunpack.c.l.b16 %v216
      %v737 = vunpack.c.l.b16 %v217
      %v738 = vunpack.c.l.b16 %v218
      %v739 = vunpack.c.l.b16 %v219
      %v740 = vunpack.c.l.b16 %v220
      %v741 = vunpack.c.l.b16 %v221
      %v742 = vunpack.c.l.b16 %v222
      %v743 = vunpack.c.l.b16 %v223
      %v744 = vunpack.c.l.b16 %v224
      %v745 = vunpack.c.l.b16 %v225
      %v746 = vunpack.c.l.b16 %v226
      %v747 = vunpack.c.l.b16 %v227
      %v748 = vunpack.c.l.b16 %v228
      %v749 = vunpack.c.l.b16 %v229
      %v750 = vunpack.c.l.b16 %v230
      %v751 = vunpack.c.l.b16 %v231
      %v752 = vunpack.c.l.b16 %v232
      %v753 = vunpack.c.l.b16 %v233
      %v754 = vunpack.c.l.b16 %v234
      %v755 = vunpack.c.l.b16 %v235
      %v756 = vunpack.c.l.b16 %v236
      %v757 = vunpack.c.l.b16 %v237
      %v758 = vunpack.c.l.b16 %v238
      %v759 = vunpack.c.l.b16 %v239
      %v760 = vunpack.c.l.b16 %v240
      %v761 = vunpack.c.l.b16 %v241
      %v762 = vunpack.c.l.b16 %v242
      %v763 = vunpack.c.l.b16 %v243
      %v764 = vunpack.c.l.b16 %v244
      %v765 = vunpack.c.l.b16 %v245
      %v766 = vunpack.c.l.b16 %v246
      %v767 = vunpack.c.l.b16 %v247
      %v768 = vunpack.c.l.b16 %v248
      %v769 = vunpack.c.l.b16 %v249
      %v770 = vunpack.c.l.b16 %v250
      %v771 = vunpack.c.l.b16 %v251
      %v772 = vunpack.c.l.b16 %v252
      %v773 = vunpack.c.l.b16 %v253
      %v774 = vunpack.c.l.b16 %v254
      %v775 = vunpack.c.l.b16 %v255
      %v776 = vunpack.c.l.b16 %v256
      %v777 = vunpack.c.l.b16 %v257
      %v778 = vunpack.c.l.b16 %v258
      %v779 = vunpack.c.l.b16 %v259
      %v780 = vunpack.c.l.b16 %v260
      %v781 = vunpack.c.l.b16 %v261
      %v782 = vunpack.c.l.b16 %v262
      %v783 = vunpack.c.l.b16 %v263
      %v784 = vunpack.c.l.b16 %v264
      %v785 = vunpack.c.l.b16 %v265
      %v786 = vunpack.c.l.b16 %v266
      %v787 = vunpack.c.l.b16 %v267
      %v788 = vunpack.c.l.b16 %v268
      %v789 = vunpack.c.l.b16 %v269
      %v790 = vunpack.c.l.b16 %v270
      %v791 = vunpack.c.l.b16 %v271
      %v792 = vunpack.c.l.b16 %v272
      %v793 = vunpack.c.l.b16 %v273
      %v794 = vunpack.c.l.b16 %v274
      %v795 = vunpack.c.l.b16 %v275
      %v796 = vunpack.c.l.b16 %v276
      %v797 = vunpack.c.l.b16 %v277
      %v798 = vunpack.c.l.b16 %v278
      %v799 = vunpack.c.l.b16 %v279
      %v800 = vunpack.c.l.b16 %v280
      %v801 = vunpack.c.l.b16 %v281
      %v802 = vunpack.c.l.b16 %v282
      %v803 = vunpack.c.l.b16 %v283
      %v804 = vunpack.c.l.b16 %v284
      %v805 = vunpack.c.l.b16 %v285
      %v806 = vunpack.c.l.b16 %v286
      %v807 = vunpack.c.l.b16 %v287
      %v808 = vunpack.c.l.b16 %v288
      %v809 = vunpack.c.l.b16 %v289
      %v810 = vunpack.c.l.b16 %v290
      %v811 = vunpack.c.l.b16 %v291
      %v812 = vunpack.c.l.b16 %v292
      %v813 = vunpack.c.l.b16 %v293
      %v814 = vunpack.c.l.b16 %v294
      %v815 = vunpack.c.l.b16 %v295
      %v816 = vunpack.c.l.b16 %v296
      %v817 = vunpack.c.l.b16 %v297
      %v818 = vunpack.c.l.b16 %v298
      %v819 = vunpack.c.l.b16 %v299
      %v820 = vunpack.c.l.b16 %v300
      %v821 = vunpack.c.l.b16 %v301
      %v822 = vunpack.c.l.b16 %v302
      %v823 = vunpack.c.l.b16 %v303
      %v824 = vunpack.c.l.b16 %v304
      %v825 = vunpack.c.l.b16 %v305
      %v826 = vunpack.c.l.b16 %v306
      %v827 = vunpack.c.l.b16 %v307
      %v828 = vunpack.c.l.b16 %v308
      %v829 = vunpack.c.l.b16 %v309
      %v830 = vunpack.c.l.b16 %v310
      %v831 = vunpack.c.l.b16 %v311
      %v832 = vunpack.c.l.b16 %v312
      %v833 = vunpack.c.l.b16 %v313
      %v834 = vunpack.c.l.b16 %v314
      %v835 = vunpack.c.l.b16 %v315
      %v836 = vunpack.c.l.b16 %v316
      %v837 = vunpack.c.l.b16 %v317
      %v838 = vunpack.c.l.b16 %v318
      %v839 = vunpack.c.l.b16 %v319
      %v840 = vunpack.c.l.b16 %v320
      %v841 = vunpack.c.l.b16 %v321
      %v842 = vunpack.c.l.b16 %v322
      %v843 = vunpack.c.l.b16 %v323
      %v844 = vunpack.c.l.b16 %v324
      %v845 = vunpack.c.l.b16 %v325
      %v846 = vunpack.c.l.b16 %v326
      %v847 = vunpack.c.l.b16 %v327
      %v848 = vunpack.c.l.b16 %v328
      %v849 = vunpack.c.l.b16 %v329
      %v850 = vunpack.c.l.b16 %v330
      %v851 = vunpack.c.l.b16 %v331
      %v852 = vunpack.c.l.b16 %v332
      %v853 = vunpack.c.l.b16 %v333
      %v854 = vunpack.c.l.b16 %v334
      %v855 = vunpack.c.l.b16 %v335
      %v856 = vunpack.c.l.b16 %v336
      %v857 = vunpack.c.l.b16 %v337
      %v858 = vunpack.c.l.b16 %v338
      %v859 = vunpack.c.l.b16 %v339
      %v860 = vunpack.c.l.b16 %v340
      %v861 = vunpack.c.l.b16 %v341
      %v862 = vunpack.c.l.b16 %v342
      %v863 = vunpack.c.l.b16 %v343
      %v864 = vunpack.c.l.b16 %v344
      %v865 = vunpack.c.l.b16 %v345
      %v866 = vunpack.c.l.b16 %v346
      %v867 = vunpack.c.l.b16 %v347
      %v868 = vunpack.c.l.b16 %v348
      %v869 = vunpack.c.l.b16 %v349
      %v870 = vunpack.c.l.b16 %v350
      %v871 = vunpack.c.l.b16 %v351
      %v872 = vunpack.c.l.b16 %v352
      %v873 = vunpack.c.l.b16 %v353
      %v874 = vunpack.c.l.b16 %v354
      %v875 = vunpack.c.l.b16 %v355
      %v876 = vunpack.c.l.b16 %v356
      %v877 = vunpack.c.l.b16 %v357
      %v878 = vunpack.c.l.b16 %v358
      %v879 = vunpack.c.l.b16 %v359
      %v880 = vunpack.c.l.b16 %v360
      %v881 = vunpack.c.l.b16 %v361
      %v882 = vunpack.c.l.b16 %v362
      %v883 = vunpack.c.l.b16 %v363
      %v884 = vunpack.c.l.b16 %v364
      %v885 = vunpack.c.l.b16 %v365
      %v886 = vunpack.c.l.b16 %v366
      %v887 = vunpack.c.l.b16 %v367
      %v888 = vunpack.c.l.b16 %v368
      %v889 = vunpack.c.l.b16 %v369
      %v890 = vunpack.c.l.b16 %v370
      %v891 = vunpack.c.l.b16 %v371
      %v892 = vunpack.c.l.b16 %v372
      %v893 = vunpack.c.l.b16 %v373
      %v894 = vunpack.c.l.b16 %v374
      %v895 = vunpack.c.l.b16 %v375
      %v896 = vunpack.c.l.b16 %v376
      %v897 = vunpack.c.l.b16 %v377
      %v898 = vunpack.c.l.b16 %v378
      %v899 = vunpack.c.l.b16 %v379
      %v900 = vunpack.c.l.b16 %v380
      %v901 = vunpack.c.l.b16 %v381
      %v902 = vunpack.c.l.b16 %v382
      %v903 = vunpack.c.l.b16 %v383
      %v904 = vunpack.c.l.b16 %v384
      %v905 = vunpack.c.l.b16 %v385
      %v906 = vunpack.c.l.b16 %v386
      %v907 = vunpack.c.l.b16 %v387
      %v908 = vunpack.c.l.b16 %v388
      %v909 = vunpack.c.l.b16 %v389
      %v910 = vunpack.c.l.b16 %v390
      %v911 = vunpack.c.l.b16 %v391
      %v912 = vunpack.c.l.b16 %v392
      %v913 = vunpack.c.l.b16 %v393
      %v914 = vunpack.c.l.b16 %v394
      %v915 = vunpack.c.l.b16 %v395
      %v916 = vunpack.c.l.b16 %v396
      %v917 = vunpack.c.l.b16 %v397
      %v918 = vunpack.c.l.b16 %v398
      %v919 = vunpack.c.l.b16 %v399
      %v920 = vunpack.c.l.b16 %v400
      %v921 = vunpack.c.l.b16 %v401
      %v922 = vunpack.c.l.b16 %v402
      %v923 = vunpack.c.l.b16 %v403
      %v924 = vunpack.c.l.b16 %v404
      %v925 = vunpack.c.l.b16 %v405
      %v926 = vunpack.c.l.b16 %v406
      %v927 = vunpack.c.l.b16 %v407
      %v928 = vunpack.c.l.b16 %v408
      %v929 = vunpack.c.l.b16 %v409
      %v930 = vunpack.c.l.b16 %v410
      %v931 = vunpack.c.l.b16 %v411
      %v932 = vunpack.c.l.b16 %v412
      %v933 = vunpack.c.l.b16 %v413
      %v934 = vunpack.c.l.b16 %v414
      %v935 = vunpack.c.l.b16 %v415
      %v936 = vunpack.c.l.b16 %v416
      %v937 = vunpack.c.l.b16 %v417
      %v938 = vunpack.c.l.b16 %v418
      %v939 = vunpack.c.l.b16 %v419
      %v940 = vunpack.c.l.b16 %v420
      %v941 = vpack.c.b16 %v686, %v685
      %v942 = vpack.c.b16 %v688, %v687
      %v943 = vpack.c.b16 %v690, %v689
      %v944 = vpack.c.b16 %v692, %v691
      %v945 = vpack.c.b16 %v694, %v693
      %v946 = vpack.c.b16 %v696, %v695
      %v947 = vpack.c.b16 %v698, %v697
      %v948 = vpack.c.b16 %v700, %v699
      %v949 = vpack.c.b16 %v702, %v701
      %v950 = vpack.c.b16 %v704, %v703
      %v951 = vpack.c.b16 %v706, %v705
      %v952 = vpack.c.b16 %v708, %v707
      %v953 = vpack.c.b16 %v710, %v709
      %v954 = vpack.c.b16 %v712, %v711
      %v955 = vpack.c.b16 %v714, %v713
      %v956 = vpack.c.b16 %v716, %v715
      %v957 = vpack.c.b16 %v718, %v717
      %v958 = vpack.c.b16 %v720, %v719
      %v959 = vpack.c.b16 %v722, %v721
      %v960 = vpack.c.b16 %v724, %v723
      %v961 = vpack.c.b16 %v726, %v725
      %v962 = vpack.c.b16 %v728, %v727
      %v963 = vpack.c.b16 %v730, %v729
      %v964 = vpack.c.b16 %v732, %v731
      %v965 = vpack.c.b16 %v734, %v733
      %v966 = vpack.c.b16 %v736, %v735
      %v967 = vpack.c.b16 %v738, %v737
      %v968 = vpack.c.b16 %v740, %v739
      %v969 = vpack.c.b16 %v742, %v741
      %v970 = vpack.c.b16 %v744, %v743
      %v971 = vpack.c.b16 %v746, %v745
      %v972 = vpack.c.b16 %v748, %v747
      %v973 = vpack.c.b16 %v750, %v749
      %v974 = vpack.c.b16 %v752, %v751
      %v975 = vpack.c.b16 %v754, %v753
      %v976 = vpack.c.b16 %v756, %v755
      %v977 = vpack.c.b16 %v758, %v757
      %v978 = vpack.c.b16 %v760, %v759
      %v979 = vpack.c.b16 %v762, %v761
      %v980 = vpack.c.b16 %v764, %v763
      %v981 = vpack.c.b16 %v766, %v765
      %v982 = vpack.c.b16 %v768, %v767
      %v983 = vpack.c.b16 %v770, %v769
      %v984 = vpack.c.b16 %v772, %v771
      %v985 = vpack.c.b16 %v774, %v773
      %v986 = vpack.c.b16 %v776, %v775
      %v987 = vpack.c.b16 %v778, %v777
      %v988 = vpack.c.b16 %v780, %v779
      %v989 = vpack.c.b16 %v782, %v781
      %v990 = vpack.c.b16 %v784, %v783
      %v991 = vpack.c.b16 %v786, %v785
      %v992 = vpack.c.b16 %v788, %v787
      %v993 = vpack.c.b16 %v790, %v789
      %v994 = vpack.c.b16 %v792, %v791
      %v995 = vpack.c.b16 %v794, %v793
      %v996 = vpack.c.b16 %v796, %v795
      %v997 = vpack.c.b16 %v798, %v797
      %v998 = vpack.c.b16 %v800, %v799
      %v999 = vpack.c.b16 %v802, %v801
      %v1000 = vpack.c.b16 %v804, %v803
      %v1001 = vpack.c.b16 %v806, %v805
      %v1002 = vpack.c.b16 %v808, %v807
      %v1003 = vpack.c.b16 %v810, %v809
      %v1004 = vpack.c.b16 %v812, %v811
      %v1005 = vpack.c.b16 %v814, %v813
      %v1006 = vpack.c.b16 %v816, %v815
      %v1007 = vpack.c.b16 %v818, %v817
      %v1008 = vpack.c.b16 %v820, %v819
      %v1009 = vpack.c.b16 %v822, %v821
      %v1010 = vpack.c.b16 %v824, %v823
      %v1011 = vpack.c.b16 %v826, %v825
      %v1012 = vpack.c.b16 %v828, %v827
      %v1013 = vpack.c.b16 %v830, %v829
      %v1014 = vpack.c.b16 %v832, %v831
      %v1015 = vpack.c.b16 %v834, %v833
      %v1016 = vpack.c.b16 %v836, %v835
      %v1017 = vpack.c.b16 %v838, %v837
      %v1018 = vpack.c.b16 %v840, %v839
      %v1019 = vpack.c.b16 %v842, %v841
      %v1020 = vpack.c.b16 %v844, %v843
      %v1021 = vpack.c.b16 %v846, %v845
      %v1022 = vpack.c.b16 %v848, %v847
      %v1023 = vpack.c.b16 %v850, %v849
      %v1024 = vpack.c.b16 %v852, %v851
      %v1025 = vpack.c.b16 %v854, %v853
      %v1026 = vpack.c.b16 %v856, %v855
      %v1027 = vpack.c.b16 %v858, %v857
      %v1028 = vpack.c.b16 %v860, %v859
      %v1029 = vpack.c.b16 %v862, %v861
      %v1030 = vpack.c.b16 %v864, %v863
      %v1031 = vpack.c.b16 %v866, %v865
      %v1032 = vpack.c.b16 %v868, %v867
      %v1033 = vpack.c.b16 %v870, %v869
      %v1034 = vpack.c.b16 %v872, %v871
      %v1035 = vpack.c.b16 %v874, %v873
      %v1036 = vpack.c.b16 %v876, %v875
      %v1037 = vpack.c.b16 %v878, %v877
      %v1038 = vpack.c.b16 %v880, %v879
      %v1039 = vpack.c.b16 %v882, %v881
      %v1040 = vpack.c.b16 %v884, %v883
      %v1041 = vpack.c.b16 %v886, %v885
      %v1042 = vpack.c.b16 %v888, %v887
      %v1043 = vpack.c.b16 %v890, %v889
      %v1044 = vpack.c.b16 %v892, %v891
      %v1045 = vpack.c.b16 %v894, %v893
      %v1046 = vpack.c.b16 %v896, %v895
      %v1047 = vpack.c.b16 %v898, %v897
      %v1048 = vpack.c.b16 %v900, %v899
      %v1049 = vpack.c.b16 %v902, %v901
      %v1050 = vpack.c.b16 %v904, %v903
      %v1051 = vpack.c.b16 %v906, %v905
      %v1052 = vpack.c.b16 %v908, %v907
      %v1053 = vpack.c.b16 %v910, %v909
      %v1054 = vpack.c.b16 %v912, %v911
      %v1055 = vpack.c.b16 %v914, %v913
      %v1056 = vpack.c.b16 %v916, %v915
      %v1057 = vpack.c.b16 %v918, %v917
      %v1058 = vpack.c.b16 %v920, %v919
      %v1059 = vpack.c.b16 %v922, %v921
      %v1060 = vpack.c.b16 %v924, %v923
      %v1061 = vpack.c.b16 %v926, %v925
      %v1062 = vpack.c.b16 %v928, %v927
      %v1063 = vpack.c.b16 %v930, %v929
      %v1064 = vpack.c.b16 %v932, %v931
      %v1065 = vpack.c.b16 %v934, %v933
      %v1066 = vpack.c.b16 %v936, %v935
      %v1067 = vpack.c.b16 %v938, %v937
      %v1068 = vpack.c.b16 %v940, %v939
      %v1077 = vunpack.c.l.b16 %v421
      %v1078 = vunpack.c.l.b16 %v422
      %v1079 = vunpack.c.l.b16 %v423
      %v1080 = vunpack.c.l.b16 %v424
      %v1081 = vunpack.c.l.b16 %v425
      %v1082 = vunpack.c.l.b16 %v426
      %v1083 = vunpack.c.l.b16 %v427
      %v1084 = vunpack.c.l.b16 %v428
      %v1085 = vpack.c.b16 %v1078, %v1077
      %v1086 = vpack.c.b16 %v1080, %v1079
      %v1087 = vpack.c.b16 %v1082, %v1081
      %v1088 = vpack.c.b16 %v1084, %v1083
      %vm1093 = vcmask 523264
      %v1095 = vsel %vm1093, %v941, 0
      %v1098 = vsel %vm1093, %v942, 0
      %v1101 = vsel %vm1093, %v943, 0
      %v1104 = vsel %vm1093, %v944, 0
      %v1107 = vsel %vm1093, %v945, 0
      %v1110 = vsel %vm1093, %v946, 0
      %v1113 = vsel %vm1093, %v947, 0
      %v1116 = vsel %vm1093, %v948, 0
      %v1119 = vsel %vm1093, %v949, 0
      %v1122 = vsel %vm1093, %v950, 0
      %v1125 = vsel %vm1093, %v951, 0
      %v1128 = vsel %vm1093, %v952, 0
      %v1131 = vsel %vm1093, %v953, 0
      %v1134 = vsel %vm1093, %v954, 0
      %v1137 = vsel %vm1093, %v955, 0
      %v1140 = vsel %vm1093, %v956, 0
      %v1143 = vsel %vm1093, %v957, 0
      %v1146 = vsel %vm1093, %v958, 0
      %v1149 = vsel %vm1093, %v959, 0
      %v1152 = vsel %vm1093, %v960, 0
      %v1155 = vsel %vm1093, %v961, 0
      %v1158 = vsel %vm1093, %v962, 0
      %v1161 = vsel %vm1093, %v963, 0
      %v1164 = vsel %vm1093, %v964, 0
      %v1167 = vsel %vm1093, %v965, 0
      %v1170 = vsel %vm1093, %v966, 0
      %v1173 = vsel %vm1093, %v967, 0
      %v1176 = vsel %vm1093, %v968, 0
      %v1179 = vsel %vm1093, %v969, 0
      %v1182 = vsel %vm1093, %v970, 0
      %v1185 = vsel %vm1093, %v971, 0
      %v1188 = vsel %vm1093, %v972, 0
      %v1191 = vsel %vm1093, %v973, 0
      %v1194 = vsel %vm1093, %v974, 0
      %v1197 = vsel %vm1093, %v975, 0
      %v1200 = vsel %vm1093, %v976, 0
      %v1203 = vsel %vm1093, %v977, 0
      %v1206 = vsel %vm1093, %v978, 0
      %v1209 = vsel %vm1093, %v979, 0
      %v1212 = vsel %vm1093, %v980, 0
      %v1215 = vsel %vm1093, %v981, 0
      %v1218 = vsel %vm1093, %v982, 0
      %v1221 = vsel %vm1093, %v983, 0
      %v1224 = vsel %vm1093, %v984, 0
      %v1227 = vsel %vm1093, %v985, 0
      %v1230 = vsel %vm1093, %v986, 0
      %v1233 = vsel %vm1093, %v987, 0
      %v1236 = vsel %vm1093, %v988, 0
      %v1239 = vsel %vm1093, %v989, 0
      %v1242 = vsel %vm1093, %v990, 0
      %v1245 = vsel %vm1093, %v991, 0
      %v1248 = vsel %vm1093, %v992, 0
      %v1251 = vsel %vm1093, %v993, 0
      %v1254 = vsel %vm1093, %v994, 0
      %v1257 = vsel %vm1093, %v995, 0
      %v1260 = vsel %vm1093, %v996, 0
      %v1263 = vsel %vm1093, %v997, 0
      %v1266 = vsel %vm1093, %v998, 0
      %v1269 = vsel %vm1093, %v999, 0
      %v1272 = vsel %vm1093, %v1000, 0
      %v1275 = vsel %vm1093, %v1001, 0
      %v1278 = vsel %vm1093, %v1002, 0
      %v1281 = vsel %vm1093, %v1003, 0
      %v1284 = vsel %vm1093, %v1004, 0
      %v1287 = vsel %vm1093, %v1005, 0
      %v1290 = vsel %vm1093, %v1006, 0
      %v1293 = vsel %vm1093, %v1007, 0
      %v1296 = vsel %vm1093, %v1008, 0
      %v1299 = vsel %vm1093, %v1009, 0
      %v1302 = vsel %vm1093, %v1010, 0
      %v1305 = vsel %vm1093, %v1011, 0
      %v1308 = vsel %vm1093, %v1012, 0
      %v1311 = vsel %vm1093, %v1013, 0
      %v1314 = vsel %vm1093, %v1014, 0
      %v1317 = vsel %vm1093, %v1015, 0
      %v1320 = vsel %vm1093, %v1016, 0
      %v1323 = vsel %vm1093, %v1017, 0
      %v1326 = vsel %vm1093, %v1018, 0
      %v1329 = vsel %vm1093, %v1019, 0
      %v1332 = vsel %vm1093, %v1020, 0
      %v1335 = vsel %vm1093, %v1021, 0
      %v1338 = vsel %vm1093, %v1022, 0
      %v1341 = vsel %vm1093, %v1023, 0
      %v1344 = vsel %vm1093, %v1024, 0
      %v1347 = vsel %vm1093, %v1025, 0
      %v1350 = vsel %vm1093, %v1026, 0
      %v1353 = vsel %vm1093, %v1027, 0
      %v1356 = vsel %vm1093, %v1028, 0
      %v1359 = vsel %vm1093, %v1029, 0
      %v1362 = vsel %vm1093, %v1030, 0
      %v1365 = vsel %vm1093, %v1031, 0
      %v1368 = vsel %vm1093, %v1032, 0
      %v1371 = vsel %vm1093, %v1033, 0
      %v1374 = vsel %vm1093, %v1034, 0
      %v1377 = vsel %vm1093, %v1035, 0
      %v1380 = vsel %vm1093, %v1036, 0
      %v1383 = vsel %vm1093, %v1037, 0
      %v1386 = vsel %vm1093, %v1038, 0
      %v1389 = vsel %vm1093, %v1039, 0
      %v1392 = vsel %vm1093, %v1040, 0
      %v1395 = vsel %vm1093, %v1041, 0
      %v1398 = vsel %vm1093, %v1042, 0
      %v1401 = vsel %vm1093, %v1043, 0
      %v1404 = vsel %vm1093, %v1044, 0
      %v1407 = vsel %vm1093, %v1045, 0
      %v1410 = vsel %vm1093, %v1046, 0
      %v1413 = vsel %vm1093, %v1047, 0
      %v1416 = vsel %vm1093, %v1048, 0
      %v1419 = vsel %vm1093, %v1049, 0
      %v1422 = vsel %vm1093, %v1050, 0
      %v1425 = vsel %vm1093, %v1051, 0
      %v1428 = vsel %vm1093, %v1052, 0
      %v1431 = vsel %vm1093, %v1053, 0
      %v1434 = vsel %vm1093, %v1054, 0
      %v1437 = vsel %vm1093, %v1055, 0
      %v1440 = vsel %vm1093, %v1056, 0
      %v1443 = vsel %vm1093, %v1057, 0
      %v1446 = vsel %vm1093, %v1058, 0
      %v1449 = vsel %vm1093, %v1059, 0
      %v1452 = vsel %vm1093, %v1060, 0
      %v1455 = vsel %vm1093, %v1061, 0
      %v1458 = vsel %vm1093, %v1062, 0
      %v1461 = vsel %vm1093, %v1063, 0
      %v1464 = vsel %vm1093, %v1064, 0
      %v1467 = vsel %vm1093, %v1065, 0
      %v1470 = vsel %vm1093, %v1066, 0
      %v1473 = vsel %vm1093, %v1067, 0
      %v1476 = vsel %vm1093, %v1068, 0
      %1478 = vmatprep.subr.bf16.mxu0 0
      %1479 = vmatpush1.bf16.msra.mxu0 %v1085
      %1480 = vmatprep.subr.bf16.mxu0 0
      %1481 = vmatpush1.bf16.msra.mxu0 %v1086
      %1482 = vmatprep.subr.bf16.mxu0 0
      %1483 = vmatpush1.bf16.msra.mxu0 %v1087
      %1484 = vmatprep.subr.bf16.mxu0 0
      %1485 = vmatpush1.bf16.msra.mxu0 %v1088
      %1486 = vmatprep.subr.bf16.mxu0 0
      %1487 = vmatpush1.bf16.msra.mxu0 0
      %1488 = vmatprep.subr.bf16.mxu0 0
      %1489 = vmatpush1.bf16.msra.mxu0 0
      %1490 = vmatprep.subr.bf16.mxu0 0
      %1491 = vmatpush1.bf16.msra.mxu0 0
      %1492 = vmatprep.subr.bf16.mxu0 0
      %1493 = vmatpush1.bf16.msra.mxu0 0
      %1494 = vmatprep.subr.bf16.mxu0 0
      %1495 = vmatpush1.bf16.msra.mxu0 0
      %1496 = vmatprep.subr.bf16.mxu0 0
      %1497 = vmatpush1.bf16.msra.mxu0 0
      %1498 = vmatprep.subr.bf16.mxu0 0
      %1499 = vmatpush1.bf16.msra.mxu0 0
      %1500 = vmatprep.subr.bf16.mxu0 0
      %1501 = vmatpush1.bf16.msra.mxu0 0
      %1502 = vmatprep.subr.bf16.mxu0 0
      %1503 = vmatpush1.bf16.msra.mxu0 0
      %1504 = vmatprep.subr.bf16.mxu0 0
      %1505 = vmatpush1.bf16.msra.mxu0 0
      %1506 = vmatprep.subr.bf16.mxu0 0
      %1507 = vmatpush1.bf16.msra.mxu0 0
      %1508 = vmatprep.subr.bf16.mxu0 0
      %1509 = vmatpush1.bf16.msra.mxu0 0
      %1510 = vmatprep.mubr.bf16.mxu0 0
      %1511 = vmatmul.mubr.bf16.gmra.mrb[0].mxu0 %v1095
      %v1512 = vpop.f32.mrb[0].mxu0
      %v1513 = vadd.f32 0.0, %v1512
      %v1514 = vpop.f32.mrb[0].mxu0
      %v1515 = vpop.f32.mrb[0].mxu0
      %v1516 = vadd.f32 0.0, %v1515
      %v1517 = vpop.f32.mrb[0].mxu0
      %1518 = vmatprep.mubr.bf16.mxu0 0
      %1519 = vmatmul.mubr.bf16.gmra.mrb[0].mxu0 %v1098
      %v1520 = vpop.f32.mrb[0].mxu0
      %v1521 = vadd.f32 0.0, %v1520
      %v1522 = vpop.f32.mrb[0].mxu0
      %v1523 = vpop.f32.mrb[0].mxu0
      %v1524 = vadd.f32 0.0, %v1523
      %v1525 = vpop.f32.mrb[0].mxu0
      %1526 = vmatprep.mubr.bf16.mxu0 0
      %1527 = vmatmul.mubr.bf16.gmra.mrb[0].mxu0 %v1101
      %v1528 = vpop.f32.mrb[0].mxu0
      %v1529 = vadd.f32 0.0, %v1528
      %v1530 = vpop.f32.mrb[0].mxu0
      %v1531 = vpop.f32.mrb[0].mxu0
      %v1532 = vadd.f32 0.0, %v1531
      %v1533 = vpop.f32.mrb[0].mxu0
      %1534 = vmatprep.mubr.bf16.mxu0 0
      %1535 = vmatmul.mubr.bf16.gmra.mrb[0].mxu0 %v1104
      %v1536 = vpop.f32.mrb[0].mxu0
      %v1537 = vadd.f32 0.0, %v1536
      %v1538 = vpop.f32.mrb[0].mxu0
      %v1539 = vpop.f32.mrb[0].mxu0
      %v1540 = vadd.f32 0.0, %v1539
      %v1541 = vpop.f32.mrb[0].mxu0
      %1542 = vmatprep.mubr.bf16.mxu0 0
      %1543 = vmatmul.mubr.bf16.gmra.mrb[0].mxu0 %v1107
      %v1544 = vpop.f32.mrb[0].mxu0
      %v1545 = vadd.f32 0.0, %v1544
      %v1546 = vpop.f32.mrb[0].mxu0
      %v1547 = vpop.f32.mrb[0].mxu0
      %v1548 = vadd.f32 0.0, %v1547
      %v1549 = vpop.f32.mrb[0].mxu0
      %1550 = vmatprep.mubr.bf16.mxu0 0
      %1551 = vmatmul.mubr.bf16.gmra.mrb[0].mxu0 %v1110
      %v1552 = vpop.f32.mrb[0].mxu0
      %v1553 = vadd.f32 0.0, %v1552
      %v1554 = vpop.f32.mrb[0].mxu0
      %v1555 = vpop.f32.mrb[0].mxu0
      %v1556 = vadd.f32 0.0, %v1555
      %v1557 = vpop.f32.mrb[0].mxu0
      %1558 = vmatprep.mubr.bf16.mxu0 0
      %1559 = vmatmul.mubr.bf16.gmra.mrb[0].mxu0 %v1113
      %v1560 = vpop.f32.mrb[0].mxu0
      %v1561 = vadd.f32 0.0, %v1560
      %v1562 = vpop.f32.mrb[0].mxu0
      %v1563 = vpop.f32.mrb[0].mxu0
      %v1564 = vadd.f32 0.0, %v1563
      %v1565 = vpop.f32.mrb[0].mxu0
      %1566 = vmatprep.mubr.bf16.mxu0 0
      %1567 = vmatmul.mubr.bf16.gmra.mrb[0].mxu0 %v1116
      %v1568 = vpop.f32.mrb[0].mxu0
      %v1569 = vadd.f32 0.0, %v1568
      %v1570 = vpop.f32.mrb[0].mxu0
      %v1571 = vpop.f32.mrb[0].mxu0
      %v1572 = vadd.f32 0.0, %v1571
      %v1573 = vpop.f32.mrb[0].mxu0
      %1574 = vmatprep.mubr.bf16.mxu0 0
      %1575 = vmatmul.mubr.bf16.gmra.mrb[0].mxu0 %v1119
      %v1576 = vpop.f32.mrb[0].mxu0
      %v1577 = vadd.f32 0.0, %v1576
      %v1578 = vpop.f32.mrb[0].mxu0
      %v1579 = vpop.f32.mrb[0].mxu0
      %v1580 = vadd.f32 0.0, %v1579
      %v1581 = vpop.f32.mrb[0].mxu0
      %1582 = vmatprep.mubr.bf16.mxu0 0
      %1583 = vmatmul.mubr.bf16.gmra.mrb[0].mxu0 %v1122
      %v1584 = vpop.f32.mrb[0].mxu0
      %v1585 = vadd.f32 0.0, %v1584
      %v1586 = vpop.f32.mrb[0].mxu0
      %v1587 = vpop.f32.mrb[0].mxu0
      %v1588 = vadd.f32 0.0, %v1587
      %v1589 = vpop.f32.mrb[0].mxu0
      %1590 = vmatprep.mubr.bf16.mxu0 0
      %1591 = vmatmul.mubr.bf16.gmra.mrb[0].mxu0 %v1125
      %v1592 = vpop.f32.mrb[0].mxu0
      %v1593 = vadd.f32 0.0, %v1592
      %v1594 = vpop.f32.mrb[0].mxu0
      %v1595 = vpop.f32.mrb[0].mxu0
      %v1596 = vadd.f32 0.0, %v1595
      %v1597 = vpop.f32.mrb[0].mxu0
      %1598 = vmatprep.mubr.bf16.mxu0 0
      %1599 = vmatmul.mubr.bf16.gmra.mrb[0].mxu0 %v1128
      %v1600 = vpop.f32.mrb[0].mxu0
      %v1601 = vadd.f32 0.0, %v1600
      %v1602 = vpop.f32.mrb[0].mxu0
      %v1603 = vpop.f32.mrb[0].mxu0
      %v1604 = vadd.f32 0.0, %v1603
      %v1605 = vpop.f32.mrb[0].mxu0
      %1606 = vmatprep.mubr.bf16.mxu0 0
      %1607 = vmatmul.mubr.bf16.gmra.mrb[0].mxu0 %v1131
      %v1608 = vpop.f32.mrb[0].mxu0
      %v1609 = vadd.f32 0.0, %v1608
      %v1610 = vpop.f32.mrb[0].mxu0
      %v1611 = vpop.f32.mrb[0].mxu0
      %v1612 = vadd.f32 0.0, %v1611
      %v1613 = vpop.f32.mrb[0].mxu0
      %1614 = vmatprep.mubr.bf16.mxu0 0
      %1615 = vmatmul.mubr.bf16.gmra.mrb[0].mxu0 %v1134
      %v1616 = vpop.f32.mrb[0].mxu0
      %v1617 = vadd.f32 0.0, %v1616
      %v1618 = vpop.f32.mrb[0].mxu0
      %v1619 = vpop.f32.mrb[0].mxu0
      %v1620 = vadd.f32 0.0, %v1619
      %v1621 = vpop.f32.mrb[0].mxu0
      %1622 = vmatprep.mubr.bf16.mxu0 0
      %1623 = vmatmul.mubr.bf16.gmra.mrb[0].mxu0 %v1137
      %v1624 = vpop.f32.mrb[0].mxu0
      %v1625 = vadd.f32 0.0, %v1624
      %v1626 = vpop.f32.mrb[0].mxu0
      %v1627 = vpop.f32.mrb[0].mxu0
      %v1628 = vadd.f32 0.0, %v1627
      %v1629 = vpop.f32.mrb[0].mxu0
      %1630 = vmatprep.mubr.bf16.mxu0 0
      %1631 = vmatmul.mubr.bf16.gmra.mrb[0].mxu0 %v1140
      %v1632 = vpop.f32.mrb[0].mxu0
      %v1633 = vadd.f32 0.0, %v1632
      %v1634 = vpop.f32.mrb[0].mxu0
      %v1635 = vpop.f32.mrb[0].mxu0
      %v1636 = vadd.f32 0.0, %v1635
      %v1637 = vpop.f32.mrb[0].mxu0
      %1638 = vmatprep.mubr.bf16.mxu0 0
      %1639 = vmatmul.mubr.bf16.gmra.mrb[0].mxu0 %v1143
      %v1640 = vpop.f32.mrb[0].mxu0
      %v1641 = vadd.f32 0.0, %v1640
      %v1642 = vpop.f32.mrb[0].mxu0
      %v1643 = vpop.f32.mrb[0].mxu0
      %v1644 = vadd.f32 0.0, %v1643
      %v1645 = vpop.f32.mrb[0].mxu0
      %1646 = vmatprep.mubr.bf16.mxu0 0
      %1647 = vmatmul.mubr.bf16.gmra.mrb[0].mxu0 %v1146
      %v1648 = vpop.f32.mrb[0].mxu0
      %v1649 = vadd.f32 0.0, %v1648
      %v1650 = vpop.f32.mrb[0].mxu0
      %v1651 = vpop.f32.mrb[0].mxu0
      %v1652 = vadd.f32 0.0, %v1651
      %v1653 = vpop.f32.mrb[0].mxu0
      %1654 = vmatprep.mubr.bf16.mxu0 0
      %1655 = vmatmul.mubr.bf16.gmra.mrb[0].mxu0 %v1149
      %v1656 = vpop.f32.mrb[0].mxu0
      %v1657 = vadd.f32 0.0, %v1656
      %v1658 = vpop.f32.mrb[0].mxu0
      %v1659 = vpop.f32.mrb[0].mxu0
      %v1660 = vadd.f32 0.0, %v1659
      %v1661 = vpop.f32.mrb[0].mxu0
      %1662 = vmatprep.mubr.bf16.mxu0 0
      %1663 = vmatmul.mubr.bf16.gmra.mrb[0].mxu0 %v1152
      %v1664 = vpop.f32.mrb[0].mxu0
      %v1665 = vadd.f32 0.0, %v1664
      %v1666 = vpop.f32.mrb[0].mxu0
      %v1667 = vpop.f32.mrb[0].mxu0
      %v1668 = vadd.f32 0.0, %v1667
      %v1669 = vpop.f32.mrb[0].mxu0
      %1670 = vmatprep.mubr.bf16.mxu0 0
      %1671 = vmatmul.mubr.bf16.gmra.mrb[0].mxu0 %v1155
      %v1672 = vpop.f32.mrb[0].mxu0
      %v1673 = vadd.f32 0.0, %v1672
      %v1674 = vpop.f32.mrb[0].mxu0
      %v1675 = vpop.f32.mrb[0].mxu0
      %v1676 = vadd.f32 0.0, %v1675
      %v1677 = vpop.f32.mrb[0].mxu0
      %1678 = vmatprep.mubr.bf16.mxu0 0
      %1679 = vmatmul.mubr.bf16.gmra.mrb[0].mxu0 %v1158
      %v1680 = vpop.f32.mrb[0].mxu0
      %v1681 = vadd.f32 0.0, %v1680
      %v1682 = vpop.f32.mrb[0].mxu0
      %v1683 = vpop.f32.mrb[0].mxu0
      %v1684 = vadd.f32 0.0, %v1683
      %v1685 = vpop.f32.mrb[0].mxu0
      %1686 = vmatprep.mubr.bf16.mxu0 0
      %1687 = vmatmul.mubr.bf16.gmra.mrb[0].mxu0 %v1161
      %v1688 = vpop.f32.mrb[0].mxu0
      %v1689 = vadd.f32 0.0, %v1688
      %v1690 = vpop.f32.mrb[0].mxu0
      %v1691 = vpop.f32.mrb[0].mxu0
      %v1692 = vadd.f32 0.0, %v1691
      %v1693 = vpop.f32.mrb[0].mxu0
      %1694 = vmatprep.mubr.bf16.mxu0 0
      %1695 = vmatmul.mubr.bf16.gmra.mrb[0].mxu0 %v1164
      %v1696 = vpop.f32.mrb[0].mxu0
      %v1697 = vadd.f32 0.0, %v1696
      %v1698 = vpop.f32.mrb[0].mxu0
      %v1699 = vpop.f32.mrb[0].mxu0
      %v1700 = vadd.f32 0.0, %v1699
      %v1701 = vpop.f32.mrb[0].mxu0
      %1702 = vmatprep.mubr.bf16.mxu0 0
      %1703 = vmatmul.mubr.bf16.gmra.mrb[0].mxu0 %v1167
      %v1704 = vpop.f32.mrb[0].mxu0
      %v1705 = vadd.f32 0.0, %v1704
      %v1706 = vpop.f32.mrb[0].mxu0
      %v1707 = vpop.f32.mrb[0].mxu0
      %v1708 = vadd.f32 0.0, %v1707
      %v1709 = vpop.f32.mrb[0].mxu0
      %1710 = vmatprep.mubr.bf16.mxu0 0
      %1711 = vmatmul.mubr.bf16.gmra.mrb[0].mxu0 %v1170
      %v1712 = vpop.f32.mrb[0].mxu0
      %v1713 = vadd.f32 0.0, %v1712
      %v1714 = vpop.f32.mrb[0].mxu0
      %v1715 = vpop.f32.mrb[0].mxu0
      %v1716 = vadd.f32 0.0, %v1715
      %v1717 = vpop.f32.mrb[0].mxu0
      %1718 = vmatprep.mubr.bf16.mxu0 0
      %1719 = vmatmul.mubr.bf16.gmra.mrb[0].mxu0 %v1173
      %v1720 = vpop.f32.mrb[0].mxu0
      %v1721 = vadd.f32 0.0, %v1720
      %v1722 = vpop.f32.mrb[0].mxu0
      %v1723 = vpop.f32.mrb[0].mxu0
      %v1724 = vadd.f32 0.0, %v1723
      %v1725 = vpop.f32.mrb[0].mxu0
      %1726 = vmatprep.mubr.bf16.mxu0 0
      %1727 = vmatmul.mubr.bf16.gmra.mrb[0].mxu0 %v1176
      %v1728 = vpop.f32.mrb[0].mxu0
      %v1729 = vadd.f32 0.0, %v1728
      %v1730 = vpop.f32.mrb[0].mxu0
      %v1731 = vpop.f32.mrb[0].mxu0
      %v1732 = vadd.f32 0.0, %v1731
      %v1733 = vpop.f32.mrb[0].mxu0
      %1734 = vmatprep.mubr.bf16.mxu0 0
      %1735 = vmatmul.mubr.bf16.gmra.mrb[0].mxu0 %v1179
      %v1736 = vpop.f32.mrb[0].mxu0
      %v1737 = vadd.f32 0.0, %v1736
      %v1738 = vpop.f32.mrb[0].mxu0
      %v1739 = vpop.f32.mrb[0].mxu0
      %v1740 = vadd.f32 0.0, %v1739
      %v1741 = vpop.f32.mrb[0].mxu0
      %1742 = vmatprep.mubr.bf16.mxu0 0
      %1743 = vmatmul.mubr.bf16.gmra.mrb[0].mxu0 %v1182
      %v1744 = vpop.f32.mrb[0].mxu0
      %v1745 = vadd.f32 0.0, %v1744
      %v1746 = vpop.f32.mrb[0].mxu0
      %v1747 = vpop.f32.mrb[0].mxu0
      %v1748 = vadd.f32 0.0, %v1747
      %v1749 = vpop.f32.mrb[0].mxu0
      %1750 = vmatprep.mubr.bf16.mxu0 0
      %1751 = vmatmul.mubr.bf16.gmra.mrb[0].mxu0 %v1185
      %v1752 = vpop.f32.mrb[0].mxu0
      %v1753 = vadd.f32 0.0, %v1752
      %v1754 = vpop.f32.mrb[0].mxu0
      %v1755 = vpop.f32.mrb[0].mxu0
      %v1756 = vadd.f32 0.0, %v1755
      %v1757 = vpop.f32.mrb[0].mxu0
      %1758 = vmatprep.mubr.bf16.mxu0 0
      %1759 = vmatmul.mubr.bf16.gmra.mrb[0].mxu0 %v1188
      %v1760 = vpop.f32.mrb[0].mxu0
      %v1761 = vadd.f32 0.0, %v1760
      %v1762 = vpop.f32.mrb[0].mxu0
      %v1763 = vpop.f32.mrb[0].mxu0
      %v1764 = vadd.f32 0.0, %v1763
      %v1765 = vpop.f32.mrb[0].mxu0
      %1766 = vmatprep.mubr.bf16.mxu0 0
      %1767 = vmatmul.mubr.bf16.gmra.mrb[0].mxu0 %v1191
      %v1768 = vpop.f32.mrb[0].mxu0
      %v1769 = vadd.f32 0.0, %v1768
      %v1770 = vpop.f32.mrb[0].mxu0
      %v1771 = vpop.f32.mrb[0].mxu0
      %v1772 = vadd.f32 0.0, %v1771
      %v1773 = vpop.f32.mrb[0].mxu0
      %1774 = vmatprep.mubr.bf16.mxu0 0
      %1775 = vmatmul.mubr.bf16.gmra.mrb[0].mxu0 %v1194
      %v1776 = vpop.f32.mrb[0].mxu0
      %v1777 = vadd.f32 0.0, %v1776
      %v1778 = vpop.f32.mrb[0].mxu0
      %v1779 = vpop.f32.mrb[0].mxu0
      %v1780 = vadd.f32 0.0, %v1779
      %v1781 = vpop.f32.mrb[0].mxu0
      %1782 = vmatprep.mubr.bf16.mxu0 0
      %1783 = vmatmul.mubr.bf16.gmra.mrb[0].mxu0 %v1197
      %v1784 = vpop.f32.mrb[0].mxu0
      %v1785 = vadd.f32 0.0, %v1784
      %v1786 = vpop.f32.mrb[0].mxu0
      %v1787 = vpop.f32.mrb[0].mxu0
      %v1788 = vadd.f32 0.0, %v1787
      %v1789 = vpop.f32.mrb[0].mxu0
      %1790 = vmatprep.mubr.bf16.mxu0 0
      %1791 = vmatmul.mubr.bf16.gmra.mrb[0].mxu0 %v1200
      %v1792 = vpop.f32.mrb[0].mxu0
      %v1793 = vadd.f32 0.0, %v1792
      %v1794 = vpop.f32.mrb[0].mxu0
      %v1795 = vpop.f32.mrb[0].mxu0
      %v1796 = vadd.f32 0.0, %v1795
      %v1797 = vpop.f32.mrb[0].mxu0
      %1798 = vmatprep.mubr.bf16.mxu0 0
      %1799 = vmatmul.mubr.bf16.gmra.mrb[0].mxu0 %v1203
      %v1800 = vpop.f32.mrb[0].mxu0
      %v1801 = vadd.f32 0.0, %v1800
      %v1802 = vpop.f32.mrb[0].mxu0
      %v1803 = vpop.f32.mrb[0].mxu0
      %v1804 = vadd.f32 0.0, %v1803
      %v1805 = vpop.f32.mrb[0].mxu0
      %1806 = vmatprep.mubr.bf16.mxu0 0
      %1807 = vmatmul.mubr.bf16.gmra.mrb[0].mxu0 %v1206
      %v1808 = vpop.f32.mrb[0].mxu0
      %v1809 = vadd.f32 0.0, %v1808
      %v1810 = vpop.f32.mrb[0].mxu0
      %v1811 = vpop.f32.mrb[0].mxu0
      %v1812 = vadd.f32 0.0, %v1811
      %v1813 = vpop.f32.mrb[0].mxu0
      %1814 = vmatprep.mubr.bf16.mxu0 0
      %1815 = vmatmul.mubr.bf16.gmra.mrb[0].mxu0 %v1209
      %v1816 = vpop.f32.mrb[0].mxu0
      %v1817 = vadd.f32 0.0, %v1816
      %v1818 = vpop.f32.mrb[0].mxu0
      %v1819 = vpop.f32.mrb[0].mxu0
      %v1820 = vadd.f32 0.0, %v1819
      %v1821 = vpop.f32.mrb[0].mxu0
      %1822 = vmatprep.mubr.bf16.mxu0 0
      %1823 = vmatmul.mubr.bf16.gmra.mrb[0].mxu0 %v1212
      %v1824 = vpop.f32.mrb[0].mxu0
      %v1825 = vadd.f32 0.0, %v1824
      %v1826 = vpop.f32.mrb[0].mxu0
      %v1827 = vpop.f32.mrb[0].mxu0
      %v1828 = vadd.f32 0.0, %v1827
      %v1829 = vpop.f32.mrb[0].mxu0
      %1830 = vmatprep.mubr.bf16.mxu0 0
      %1831 = vmatmul.mubr.bf16.gmra.mrb[0].mxu0 %v1215
      %v1832 = vpop.f32.mrb[0].mxu0
      %v1833 = vadd.f32 0.0, %v1832
      %v1834 = vpop.f32.mrb[0].mxu0
      %v1835 = vpop.f32.mrb[0].mxu0
      %v1836 = vadd.f32 0.0, %v1835
      %v1837 = vpop.f32.mrb[0].mxu0
      %1838 = vmatprep.mubr.bf16.mxu0 0
      %1839 = vmatmul.mubr.bf16.gmra.mrb[0].mxu0 %v1218
      %v1840 = vpop.f32.mrb[0].mxu0
      %v1841 = vadd.f32 0.0, %v1840
      %v1842 = vpop.f32.mrb[0].mxu0
      %v1843 = vpop.f32.mrb[0].mxu0
      %v1844 = vadd.f32 0.0, %v1843
      %v1845 = vpop.f32.mrb[0].mxu0
      %1846 = vmatprep.mubr.bf16.mxu0 0
      %1847 = vmatmul.mubr.bf16.gmra.mrb[0].mxu0 %v1221
      %v1848 = vpop.f32.mrb[0].mxu0
      %v1849 = vadd.f32 0.0, %v1848
      %v1850 = vpop.f32.mrb[0].mxu0
      %v1851 = vpop.f32.mrb[0].mxu0
      %v1852 = vadd.f32 0.0, %v1851
      %v1853 = vpop.f32.mrb[0].mxu0
      %1854 = vmatprep.mubr.bf16.mxu0 0
      %1855 = vmatmul.mubr.bf16.gmra.mrb[0].mxu0 %v1224
      %v1856 = vpop.f32.mrb[0].mxu0
      %v1857 = vadd.f32 0.0, %v1856
      %v1858 = vpop.f32.mrb[0].mxu0
      %v1859 = vpop.f32.mrb[0].mxu0
      %v1860 = vadd.f32 0.0, %v1859
      %v1861 = vpop.f32.mrb[0].mxu0
      %1862 = vmatprep.mubr.bf16.mxu0 0
      %1863 = vmatmul.mubr.bf16.gmra.mrb[0].mxu0 %v1227
      %v1864 = vpop.f32.mrb[0].mxu0
      %v1865 = vadd.f32 0.0, %v1864
      %v1866 = vpop.f32.mrb[0].mxu0
      %v1867 = vpop.f32.mrb[0].mxu0
      %v1868 = vadd.f32 0.0, %v1867
      %v1869 = vpop.f32.mrb[0].mxu0
      %1870 = vmatprep.mubr.bf16.mxu0 0
      %1871 = vmatmul.mubr.bf16.gmra.mrb[0].mxu0 %v1230
      %v1872 = vpop.f32.mrb[0].mxu0
      %v1873 = vadd.f32 0.0, %v1872
      %v1874 = vpop.f32.mrb[0].mxu0
      %v1875 = vpop.f32.mrb[0].mxu0
      %v1876 = vadd.f32 0.0, %v1875
      %v1877 = vpop.f32.mrb[0].mxu0
      %1878 = vmatprep.mubr.bf16.mxu0 0
      %1879 = vmatmul.mubr.bf16.gmra.mrb[0].mxu0 %v1233
      %v1880 = vpop.f32.mrb[0].mxu0
      %v1881 = vadd.f32 0.0, %v1880
      %v1882 = vpop.f32.mrb[0].mxu0
      %v1883 = vpop.f32.mrb[0].mxu0
      %v1884 = vadd.f32 0.0, %v1883
      %v1885 = vpop.f32.mrb[0].mxu0
      %1886 = vmatprep.mubr.bf16.mxu0 0
      %1887 = vmatmul.mubr.bf16.gmra.mrb[0].mxu0 %v1236
      %v1888 = vpop.f32.mrb[0].mxu0
      %v1889 = vadd.f32 0.0, %v1888
      %v1890 = vpop.f32.mrb[0].mxu0
      %v1891 = vpop.f32.mrb[0].mxu0
      %v1892 = vadd.f32 0.0, %v1891
      %v1893 = vpop.f32.mrb[0].mxu0
      %1894 = vmatprep.mubr.bf16.mxu0 0
      %1895 = vmatmul.mubr.bf16.gmra.mrb[0].mxu0 %v1239
      %v1896 = vpop.f32.mrb[0].mxu0
      %v1897 = vadd.f32 0.0, %v1896
      %v1898 = vpop.f32.mrb[0].mxu0
      %v1899 = vpop.f32.mrb[0].mxu0
      %v1900 = vadd.f32 0.0, %v1899
      %v1901 = vpop.f32.mrb[0].mxu0
      %1902 = vmatprep.mubr.bf16.mxu0 0
      %1903 = vmatmul.mubr.bf16.gmra.mrb[0].mxu0 %v1242
      %v1904 = vpop.f32.mrb[0].mxu0
      %v1905 = vadd.f32 0.0, %v1904
      %v1906 = vpop.f32.mrb[0].mxu0
      %v1907 = vpop.f32.mrb[0].mxu0
      %v1908 = vadd.f32 0.0, %v1907
      %v1909 = vpop.f32.mrb[0].mxu0
      %1910 = vmatprep.mubr.bf16.mxu0 0
      %1911 = vmatmul.mubr.bf16.gmra.mrb[0].mxu0 %v1245
      %v1912 = vpop.f32.mrb[0].mxu0
      %v1913 = vadd.f32 0.0, %v1912
      %v1914 = vpop.f32.mrb[0].mxu0
      %v1915 = vpop.f32.mrb[0].mxu0
      %v1916 = vadd.f32 0.0, %v1915
      %v1917 = vpop.f32.mrb[0].mxu0
      %1918 = vmatprep.mubr.bf16.mxu0 0
      %1919 = vmatmul.mubr.bf16.gmra.mrb[0].mxu0 %v1248
      %v1920 = vpop.f32.mrb[0].mxu0
      %v1921 = vadd.f32 0.0, %v1920
      %v1922 = vpop.f32.mrb[0].mxu0
      %v1923 = vpop.f32.mrb[0].mxu0
      %v1924 = vadd.f32 0.0, %v1923
      %v1925 = vpop.f32.mrb[0].mxu0
      %1926 = vmatprep.mubr.bf16.mxu0 0
      %1927 = vmatmul.mubr.bf16.gmra.mrb[0].mxu0 %v1251
      %v1928 = vpop.f32.mrb[0].mxu0
      %v1929 = vadd.f32 0.0, %v1928
      %v1930 = vpop.f32.mrb[0].mxu0
      %v1931 = vpop.f32.mrb[0].mxu0
      %v1932 = vadd.f32 0.0, %v1931
      %v1933 = vpop.f32.mrb[0].mxu0
      %1934 = vmatprep.mubr.bf16.mxu0 0
      %1935 = vmatmul.mubr.bf16.gmra.mrb[0].mxu0 %v1254
      %v1936 = vpop.f32.mrb[0].mxu0
      %v1937 = vadd.f32 0.0, %v1936
      %v1938 = vpop.f32.mrb[0].mxu0
      %v1939 = vpop.f32.mrb[0].mxu0
      %v1940 = vadd.f32 0.0, %v1939
      %v1941 = vpop.f32.mrb[0].mxu0
      %1942 = vmatprep.mubr.bf16.mxu0 0
      %1943 = vmatmul.mubr.bf16.gmra.mrb[0].mxu0 %v1257
      %v1944 = vpop.f32.mrb[0].mxu0
      %v1945 = vadd.f32 0.0, %v1944
      %v1946 = vpop.f32.mrb[0].mxu0
      %v1947 = vpop.f32.mrb[0].mxu0
      %v1948 = vadd.f32 0.0, %v1947
      %v1949 = vpop.f32.mrb[0].mxu0
      %1950 = vmatprep.mubr.bf16.mxu0 0
      %1951 = vmatmul.mubr.bf16.gmra.mrb[0].mxu0 %v1260
      %v1952 = vpop.f32.mrb[0].mxu0
      %v1953 = vadd.f32 0.0, %v1952
      %v1954 = vpop.f32.mrb[0].mxu0
      %v1955 = vpop.f32.mrb[0].mxu0
      %v1956 = vadd.f32 0.0, %v1955
      %v1957 = vpop.f32.mrb[0].mxu0
      %1958 = vmatprep.mubr.bf16.mxu0 0
      %1959 = vmatmul.mubr.bf16.gmra.mrb[0].mxu0 %v1263
      %v1960 = vpop.f32.mrb[0].mxu0
      %v1961 = vadd.f32 0.0, %v1960
      %v1962 = vpop.f32.mrb[0].mxu0
      %v1963 = vpop.f32.mrb[0].mxu0
      %v1964 = vadd.f32 0.0, %v1963
      %v1965 = vpop.f32.mrb[0].mxu0
      %1966 = vmatprep.mubr.bf16.mxu0 0
      %1967 = vmatmul.mubr.bf16.gmra.mrb[0].mxu0 %v1266
      %v1968 = vpop.f32.mrb[0].mxu0
      %v1969 = vadd.f32 0.0, %v1968
      %v1970 = vpop.f32.mrb[0].mxu0
      %v1971 = vpop.f32.mrb[0].mxu0
      %v1972 = vadd.f32 0.0, %v1971
      %v1973 = vpop.f32.mrb[0].mxu0
      %1974 = vmatprep.mubr.bf16.mxu0 0
      %1975 = vmatmul.mubr.bf16.gmra.mrb[0].mxu0 %v1269
      %v1976 = vpop.f32.mrb[0].mxu0
      %v1977 = vadd.f32 0.0, %v1976
      %v1978 = vpop.f32.mrb[0].mxu0
      %v1979 = vpop.f32.mrb[0].mxu0
      %v1980 = vadd.f32 0.0, %v1979
      %v1981 = vpop.f32.mrb[0].mxu0
      %1982 = vmatprep.mubr.bf16.mxu0 0
      %1983 = vmatmul.mubr.bf16.gmra.mrb[0].mxu0 %v1272
      %v1984 = vpop.f32.mrb[0].mxu0
      %v1985 = vadd.f32 0.0, %v1984
      %v1986 = vpop.f32.mrb[0].mxu0
      %v1987 = vpop.f32.mrb[0].mxu0
      %v1988 = vadd.f32 0.0, %v1987
      %v1989 = vpop.f32.mrb[0].mxu0
      %1990 = vmatprep.mubr.bf16.mxu0 0
      %1991 = vmatmul.mubr.bf16.gmra.mrb[0].mxu0 %v1275
      %v1992 = vpop.f32.mrb[0].mxu0
      %v1993 = vadd.f32 0.0, %v1992
      %v1994 = vpop.f32.mrb[0].mxu0
      %v1995 = vpop.f32.mrb[0].mxu0
      %v1996 = vadd.f32 0.0, %v1995
      %v1997 = vpop.f32.mrb[0].mxu0
      %1998 = vmatprep.mubr.bf16.mxu0 0
      %1999 = vmatmul.mubr.bf16.gmra.mrb[0].mxu0 %v1278
      %v2000 = vpop.f32.mrb[0].mxu0
      %v2001 = vadd.f32 0.0, %v2000
      %v2002 = vpop.f32.mrb[0].mxu0
      %v2003 = vpop.f32.mrb[0].mxu0
      %v2004 = vadd.f32 0.0, %v2003
      %v2005 = vpop.f32.mrb[0].mxu0
      %2006 = vmatprep.mubr.bf16.mxu0 0
      %2007 = vmatmul.mubr.bf16.gmra.mrb[0].mxu0 %v1281
      %v2008 = vpop.f32.mrb[0].mxu0
      %v2009 = vadd.f32 0.0, %v2008
      %v2010 = vpop.f32.mrb[0].mxu0
      %v2011 = vpop.f32.mrb[0].mxu0
      %v2012 = vadd.f32 0.0, %v2011
      %v2013 = vpop.f32.mrb[0].mxu0
      %2014 = vmatprep.mubr.bf16.mxu0 0
      %2015 = vmatmul.mubr.bf16.gmra.mrb[0].mxu0 %v1284
      %v2016 = vpop.f32.mrb[0].mxu0
      %v2017 = vadd.f32 0.0, %v2016
      %v2018 = vpop.f32.mrb[0].mxu0
      %v2019 = vpop.f32.mrb[0].mxu0
      %v2020 = vadd.f32 0.0, %v2019
      %v2021 = vpop.f32.mrb[0].mxu0
      %2022 = vmatprep.mubr.bf16.mxu0 0
      %2023 = vmatmul.mubr.bf16.gmra.mrb[0].mxu0 %v1287
      %v2024 = vpop.f32.mrb[0].mxu0
      %v2025 = vadd.f32 0.0, %v2024
      %v2026 = vpop.f32.mrb[0].mxu0
      %v2027 = vpop.f32.mrb[0].mxu0
      %v2028 = vadd.f32 0.0, %v2027
      %v2029 = vpop.f32.mrb[0].mxu0
      %2030 = vmatprep.mubr.bf16.mxu0 0
      %2031 = vmatmul.mubr.bf16.gmra.mrb[0].mxu0 %v1290
      %v2032 = vpop.f32.mrb[0].mxu0
      %v2033 = vadd.f32 0.0, %v2032
      %v2034 = vpop.f32.mrb[0].mxu0
      %v2035 = vpop.f32.mrb[0].mxu0
      %v2036 = vadd.f32 0.0, %v2035
      %v2037 = vpop.f32.mrb[0].mxu0
      %2038 = vmatprep.mubr.bf16.mxu0 0
      %2039 = vmatmul.mubr.bf16.gmra.mrb[0].mxu0 %v1293
      %v2040 = vpop.f32.mrb[0].mxu0
      %v2041 = vadd.f32 0.0, %v2040
      %v2042 = vpop.f32.mrb[0].mxu0
      %v2043 = vpop.f32.mrb[0].mxu0
      %v2044 = vadd.f32 0.0, %v2043
      %v2045 = vpop.f32.mrb[0].mxu0
      %2046 = vmatprep.mubr.bf16.mxu0 0
      %2047 = vmatmul.mubr.bf16.gmra.mrb[0].mxu0 %v1296
      %v2048 = vpop.f32.mrb[0].mxu0
      %v2049 = vadd.f32 0.0, %v2048
      %v2050 = vpop.f32.mrb[0].mxu0
      %v2051 = vpop.f32.mrb[0].mxu0
      %v2052 = vadd.f32 0.0, %v2051
      %v2053 = vpop.f32.mrb[0].mxu0
      %2054 = vmatprep.mubr.bf16.mxu0 0
      %2055 = vmatmul.mubr.bf16.gmra.mrb[0].mxu0 %v1299
      %v2056 = vpop.f32.mrb[0].mxu0
      %v2057 = vadd.f32 0.0, %v2056
      %v2058 = vpop.f32.mrb[0].mxu0
      %v2059 = vpop.f32.mrb[0].mxu0
      %v2060 = vadd.f32 0.0, %v2059
      %v2061 = vpop.f32.mrb[0].mxu0
      %2062 = vmatprep.mubr.bf16.mxu0 0
      %2063 = vmatmul.mubr.bf16.gmra.mrb[0].mxu0 %v1302
      %v2064 = vpop.f32.mrb[0].mxu0
      %v2065 = vadd.f32 0.0, %v2064
      %v2066 = vpop.f32.mrb[0].mxu0
      %v2067 = vpop.f32.mrb[0].mxu0
      %v2068 = vadd.f32 0.0, %v2067
      %v2069 = vpop.f32.mrb[0].mxu0
      %2070 = vmatprep.mubr.bf16.mxu0 0
      %2071 = vmatmul.mubr.bf16.gmra.mrb[0].mxu0 %v1305
      %v2072 = vpop.f32.mrb[0].mxu0
      %v2073 = vadd.f32 0.0, %v2072
      %v2074 = vpop.f32.mrb[0].mxu0
      %v2075 = vpop.f32.mrb[0].mxu0
      %v2076 = vadd.f32 0.0, %v2075
      %v2077 = vpop.f32.mrb[0].mxu0
      %2078 = vmatprep.mubr.bf16.mxu0 0
      %2079 = vmatmul.mubr.bf16.gmra.mrb[0].mxu0 %v1308
      %v2080 = vpop.f32.mrb[0].mxu0
      %v2081 = vadd.f32 0.0, %v2080
      %v2082 = vpop.f32.mrb[0].mxu0
      %v2083 = vpop.f32.mrb[0].mxu0
      %v2084 = vadd.f32 0.0, %v2083
      %v2085 = vpop.f32.mrb[0].mxu0
      %2086 = vmatprep.mubr.bf16.mxu0 0
      %2087 = vmatmul.mubr.bf16.gmra.mrb[0].mxu0 %v1311
      %v2088 = vpop.f32.mrb[0].mxu0
      %v2089 = vadd.f32 0.0, %v2088
      %v2090 = vpop.f32.mrb[0].mxu0
      %v2091 = vpop.f32.mrb[0].mxu0
      %v2092 = vadd.f32 0.0, %v2091
      %v2093 = vpop.f32.mrb[0].mxu0
      %2094 = vmatprep.mubr.bf16.mxu0 0
      %2095 = vmatmul.mubr.bf16.gmra.mrb[0].mxu0 %v1314
      %v2096 = vpop.f32.mrb[0].mxu0
      %v2097 = vadd.f32 0.0, %v2096
      %v2098 = vpop.f32.mrb[0].mxu0
      %v2099 = vpop.f32.mrb[0].mxu0
      %v2100 = vadd.f32 0.0, %v2099
      %v2101 = vpop.f32.mrb[0].mxu0
      %2102 = vmatprep.mubr.bf16.mxu0 0
      %2103 = vmatmul.mubr.bf16.gmra.mrb[0].mxu0 %v1317
      %v2104 = vpop.f32.mrb[0].mxu0
      %v2105 = vadd.f32 0.0, %v2104
      %v2106 = vpop.f32.mrb[0].mxu0
      %v2107 = vpop.f32.mrb[0].mxu0
      %v2108 = vadd.f32 0.0, %v2107
      %v2109 = vpop.f32.mrb[0].mxu0
      %2110 = vmatprep.mubr.bf16.mxu0 0
      %2111 = vmatmul.mubr.bf16.gmra.mrb[0].mxu0 %v1320
      %v2112 = vpop.f32.mrb[0].mxu0
      %v2113 = vadd.f32 0.0, %v2112
      %v2114 = vpop.f32.mrb[0].mxu0
      %v2115 = vpop.f32.mrb[0].mxu0
      %v2116 = vadd.f32 0.0, %v2115
      %v2117 = vpop.f32.mrb[0].mxu0
      %2118 = vmatprep.mubr.bf16.mxu0 0
      %2119 = vmatmul.mubr.bf16.gmra.mrb[0].mxu0 %v1323
      %v2120 = vpop.f32.mrb[0].mxu0
      %v2121 = vadd.f32 0.0, %v2120
      %v2122 = vpop.f32.mrb[0].mxu0
      %v2123 = vpop.f32.mrb[0].mxu0
      %v2124 = vadd.f32 0.0, %v2123
      %v2125 = vpop.f32.mrb[0].mxu0
      %2126 = vmatprep.mubr.bf16.mxu0 0
      %2127 = vmatmul.mubr.bf16.gmra.mrb[0].mxu0 %v1326
      %v2128 = vpop.f32.mrb[0].mxu0
      %v2129 = vadd.f32 0.0, %v2128
      %v2130 = vpop.f32.mrb[0].mxu0
      %v2131 = vpop.f32.mrb[0].mxu0
      %v2132 = vadd.f32 0.0, %v2131
      %v2133 = vpop.f32.mrb[0].mxu0
      %2134 = vmatprep.mubr.bf16.mxu0 0
      %2135 = vmatmul.mubr.bf16.gmra.mrb[0].mxu0 %v1329
      %v2136 = vpop.f32.mrb[0].mxu0
      %v2137 = vadd.f32 0.0, %v2136
      %v2138 = vpop.f32.mrb[0].mxu0
      %v2139 = vpop.f32.mrb[0].mxu0
      %v2140 = vadd.f32 0.0, %v2139
      %v2141 = vpop.f32.mrb[0].mxu0
      %2142 = vmatprep.mubr.bf16.mxu0 0
      %2143 = vmatmul.mubr.bf16.gmra.mrb[0].mxu0 %v1332
      %v2144 = vpop.f32.mrb[0].mxu0
      %v2145 = vadd.f32 0.0, %v2144
      %v2146 = vpop.f32.mrb[0].mxu0
      %v2147 = vpop.f32.mrb[0].mxu0
      %v2148 = vadd.f32 0.0, %v2147
      %v2149 = vpop.f32.mrb[0].mxu0
      %2150 = vmatprep.mubr.bf16.mxu0 0
      %2151 = vmatmul.mubr.bf16.gmra.mrb[0].mxu0 %v1335
      %v2152 = vpop.f32.mrb[0].mxu0
      %v2153 = vadd.f32 0.0, %v2152
      %v2154 = vpop.f32.mrb[0].mxu0
      %v2155 = vpop.f32.mrb[0].mxu0
      %v2156 = vadd.f32 0.0, %v2155
      %v2157 = vpop.f32.mrb[0].mxu0
      %2158 = vmatprep.mubr.bf16.mxu0 0
      %2159 = vmatmul.mubr.bf16.gmra.mrb[0].mxu0 %v1338
      %v2160 = vpop.f32.mrb[0].mxu0
      %v2161 = vadd.f32 0.0, %v2160
      %v2162 = vpop.f32.mrb[0].mxu0
      %v2163 = vpop.f32.mrb[0].mxu0
      %v2164 = vadd.f32 0.0, %v2163
      %v2165 = vpop.f32.mrb[0].mxu0
      %2166 = vmatprep.mubr.bf16.mxu0 0
      %2167 = vmatmul.mubr.bf16.gmra.mrb[0].mxu0 %v1341
      %v2168 = vpop.f32.mrb[0].mxu0
      %v2169 = vadd.f32 0.0, %v2168
      %v2170 = vpop.f32.mrb[0].mxu0
      %v2171 = vpop.f32.mrb[0].mxu0
      %v2172 = vadd.f32 0.0, %v2171
      %v2173 = vpop.f32.mrb[0].mxu0
      %2174 = vmatprep.mubr.bf16.mxu0 0
      %2175 = vmatmul.mubr.bf16.gmra.mrb[0].mxu0 %v1344
      %v2176 = vpop.f32.mrb[0].mxu0
      %v2177 = vadd.f32 0.0, %v2176
      %v2178 = vpop.f32.mrb[0].mxu0
      %v2179 = vpop.f32.mrb[0].mxu0
      %v2180 = vadd.f32 0.0, %v2179
      %v2181 = vpop.f32.mrb[0].mxu0
      %2182 = vmatprep.mubr.bf16.mxu0 0
      %2183 = vmatmul.mubr.bf16.gmra.mrb[0].mxu0 %v1347
      %v2184 = vpop.f32.mrb[0].mxu0
      %v2185 = vadd.f32 0.0, %v2184
      %v2186 = vpop.f32.mrb[0].mxu0
      %v2187 = vpop.f32.mrb[0].mxu0
      %v2188 = vadd.f32 0.0, %v2187
      %v2189 = vpop.f32.mrb[0].mxu0
      %2190 = vmatprep.mubr.bf16.mxu0 0
      %2191 = vmatmul.mubr.bf16.gmra.mrb[0].mxu0 %v1350
      %v2192 = vpop.f32.mrb[0].mxu0
      %v2193 = vadd.f32 0.0, %v2192
      %v2194 = vpop.f32.mrb[0].mxu0
      %v2195 = vpop.f32.mrb[0].mxu0
      %v2196 = vadd.f32 0.0, %v2195
      %v2197 = vpop.f32.mrb[0].mxu0
      %2198 = vmatprep.mubr.bf16.mxu0 0
      %2199 = vmatmul.mubr.bf16.gmra.mrb[0].mxu0 %v1353
      %v2200 = vpop.f32.mrb[0].mxu0
      %v2201 = vadd.f32 0.0, %v2200
      %v2202 = vpop.f32.mrb[0].mxu0
      %v2203 = vpop.f32.mrb[0].mxu0
      %v2204 = vadd.f32 0.0, %v2203
      %v2205 = vpop.f32.mrb[0].mxu0
      %2206 = vmatprep.mubr.bf16.mxu0 0
      %2207 = vmatmul.mubr.bf16.gmra.mrb[0].mxu0 %v1356
      %v2208 = vpop.f32.mrb[0].mxu0
      %v2209 = vadd.f32 0.0, %v2208
      %v2210 = vpop.f32.mrb[0].mxu0
      %v2211 = vpop.f32.mrb[0].mxu0
      %v2212 = vadd.f32 0.0, %v2211
      %v2213 = vpop.f32.mrb[0].mxu0
      %2214 = vmatprep.mubr.bf16.mxu0 0
      %2215 = vmatmul.mubr.bf16.gmra.mrb[0].mxu0 %v1359
      %v2216 = vpop.f32.mrb[0].mxu0
      %v2217 = vadd.f32 0.0, %v2216
      %v2218 = vpop.f32.mrb[0].mxu0
      %v2219 = vpop.f32.mrb[0].mxu0
      %v2220 = vadd.f32 0.0, %v2219
      %v2221 = vpop.f32.mrb[0].mxu0
      %2222 = vmatprep.mubr.bf16.mxu0 0
      %2223 = vmatmul.mubr.bf16.gmra.mrb[0].mxu0 %v1362
      %v2224 = vpop.f32.mrb[0].mxu0
      %v2225 = vadd.f32 0.0, %v2224
      %v2226 = vpop.f32.mrb[0].mxu0
      %v2227 = vpop.f32.mrb[0].mxu0
      %v2228 = vadd.f32 0.0, %v2227
      %v2229 = vpop.f32.mrb[0].mxu0
      %2230 = vmatprep.mubr.bf16.mxu0 0
      %2231 = vmatmul.mubr.bf16.gmra.mrb[0].mxu0 %v1365
      %v2232 = vpop.f32.mrb[0].mxu0
      %v2233 = vadd.f32 0.0, %v2232
      %v2234 = vpop.f32.mrb[0].mxu0
      %v2235 = vpop.f32.mrb[0].mxu0
      %v2236 = vadd.f32 0.0, %v2235
      %v2237 = vpop.f32.mrb[0].mxu0
      %2238 = vmatprep.mubr.bf16.mxu0 0
      %2239 = vmatmul.mubr.bf16.gmra.mrb[0].mxu0 %v1368
      %v2240 = vpop.f32.mrb[0].mxu0
      %v2241 = vadd.f32 0.0, %v2240
      %v2242 = vpop.f32.mrb[0].mxu0
      %v2243 = vpop.f32.mrb[0].mxu0
      %v2244 = vadd.f32 0.0, %v2243
      %v2245 = vpop.f32.mrb[0].mxu0
      %2246 = vmatprep.mubr.bf16.mxu0 0
      %2247 = vmatmul.mubr.bf16.gmra.mrb[0].mxu0 %v1371
      %v2248 = vpop.f32.mrb[0].mxu0
      %v2249 = vadd.f32 0.0, %v2248
      %v2250 = vpop.f32.mrb[0].mxu0
      %v2251 = vpop.f32.mrb[0].mxu0
      %v2252 = vadd.f32 0.0, %v2251
      %v2253 = vpop.f32.mrb[0].mxu0
      %2254 = vmatprep.mubr.bf16.mxu0 0
      %2255 = vmatmul.mubr.bf16.gmra.mrb[0].mxu0 %v1374
      %v2256 = vpop.f32.mrb[0].mxu0
      %v2257 = vadd.f32 0.0, %v2256
      %v2258 = vpop.f32.mrb[0].mxu0
      %v2259 = vpop.f32.mrb[0].mxu0
      %v2260 = vadd.f32 0.0, %v2259
      %v2261 = vpop.f32.mrb[0].mxu0
      %2262 = vmatprep.mubr.bf16.mxu0 0
      %2263 = vmatmul.mubr.bf16.gmra.mrb[0].mxu0 %v1377
      %v2264 = vpop.f32.mrb[0].mxu0
      %v2265 = vadd.f32 0.0, %v2264
      %v2266 = vpop.f32.mrb[0].mxu0
      %v2267 = vpop.f32.mrb[0].mxu0
      %v2268 = vadd.f32 0.0, %v2267
      %v2269 = vpop.f32.mrb[0].mxu0
      %2270 = vmatprep.mubr.bf16.mxu0 0
      %2271 = vmatmul.mubr.bf16.gmra.mrb[0].mxu0 %v1380
      %v2272 = vpop.f32.mrb[0].mxu0
      %v2273 = vadd.f32 0.0, %v2272
      %v2274 = vpop.f32.mrb[0].mxu0
      %v2275 = vpop.f32.mrb[0].mxu0
      %v2276 = vadd.f32 0.0, %v2275
      %v2277 = vpop.f32.mrb[0].mxu0
      %2278 = vmatprep.mubr.bf16.mxu0 0
      %2279 = vmatmul.mubr.bf16.gmra.mrb[0].mxu0 %v1383
      %v2280 = vpop.f32.mrb[0].mxu0
      %v2281 = vadd.f32 0.0, %v2280
      %v2282 = vpop.f32.mrb[0].mxu0
      %v2283 = vpop.f32.mrb[0].mxu0
      %v2284 = vadd.f32 0.0, %v2283
      %v2285 = vpop.f32.mrb[0].mxu0
      %2286 = vmatprep.mubr.bf16.mxu0 0
      %2287 = vmatmul.mubr.bf16.gmra.mrb[0].mxu0 %v1386
      %v2288 = vpop.f32.mrb[0].mxu0
      %v2289 = vadd.f32 0.0, %v2288
      %v2290 = vpop.f32.mrb[0].mxu0
      %v2291 = vpop.f32.mrb[0].mxu0
      %v2292 = vadd.f32 0.0, %v2291
      %v2293 = vpop.f32.mrb[0].mxu0
      %2294 = vmatprep.mubr.bf16.mxu0 0
      %2295 = vmatmul.mubr.bf16.gmra.mrb[0].mxu0 %v1389
      %v2296 = vpop.f32.mrb[0].mxu0
      %v2297 = vadd.f32 0.0, %v2296
      %v2298 = vpop.f32.mrb[0].mxu0
      %v2299 = vpop.f32.mrb[0].mxu0
      %v2300 = vadd.f32 0.0, %v2299
      %v2301 = vpop.f32.mrb[0].mxu0
      %2302 = vmatprep.mubr.bf16.mxu0 0
      %2303 = vmatmul.mubr.bf16.gmra.mrb[0].mxu0 %v1392
      %v2304 = vpop.f32.mrb[0].mxu0
      %v2305 = vadd.f32 0.0, %v2304
      %v2306 = vpop.f32.mrb[0].mxu0
      %v2307 = vpop.f32.mrb[0].mxu0
      %v2308 = vadd.f32 0.0, %v2307
      %v2309 = vpop.f32.mrb[0].mxu0
      %2310 = vmatprep.mubr.bf16.mxu0 0
      %2311 = vmatmul.mubr.bf16.gmra.mrb[0].mxu0 %v1395
      %v2312 = vpop.f32.mrb[0].mxu0
      %v2313 = vadd.f32 0.0, %v2312
      %v2314 = vpop.f32.mrb[0].mxu0
      %v2315 = vpop.f32.mrb[0].mxu0
      %v2316 = vadd.f32 0.0, %v2315
      %v2317 = vpop.f32.mrb[0].mxu0
      %2318 = vmatprep.mubr.bf16.mxu0 0
      %2319 = vmatmul.mubr.bf16.gmra.mrb[0].mxu0 %v1398
      %v2320 = vpop.f32.mrb[0].mxu0
      %v2321 = vadd.f32 0.0, %v2320
      %v2322 = vpop.f32.mrb[0].mxu0
      %v2323 = vpop.f32.mrb[0].mxu0
      %v2324 = vadd.f32 0.0, %v2323
      %v2325 = vpop.f32.mrb[0].mxu0
      %2326 = vmatprep.mubr.bf16.mxu0 0
      %2327 = vmatmul.mubr.bf16.gmra.mrb[0].mxu0 %v1401
      %v2328 = vpop.f32.mrb[0].mxu0
      %v2329 = vadd.f32 0.0, %v2328
      %v2330 = vpop.f32.mrb[0].mxu0
      %v2331 = vpop.f32.mrb[0].mxu0
      %v2332 = vadd.f32 0.0, %v2331
      %v2333 = vpop.f32.mrb[0].mxu0
      %2334 = vmatprep.mubr.bf16.mxu0 0
      %2335 = vmatmul.mubr.bf16.gmra.mrb[0].mxu0 %v1404
      %v2336 = vpop.f32.mrb[0].mxu0
      %v2337 = vadd.f32 0.0, %v2336
      %v2338 = vpop.f32.mrb[0].mxu0
      %v2339 = vpop.f32.mrb[0].mxu0
      %v2340 = vadd.f32 0.0, %v2339
      %v2341 = vpop.f32.mrb[0].mxu0
      %2342 = vmatprep.mubr.bf16.mxu0 0
      %2343 = vmatmul.mubr.bf16.gmra.mrb[0].mxu0 %v1407
      %v2344 = vpop.f32.mrb[0].mxu0
      %v2345 = vadd.f32 0.0, %v2344
      %v2346 = vpop.f32.mrb[0].mxu0
      %v2347 = vpop.f32.mrb[0].mxu0
      %v2348 = vadd.f32 0.0, %v2347
      %v2349 = vpop.f32.mrb[0].mxu0
      %2350 = vmatprep.mubr.bf16.mxu0 0
      %2351 = vmatmul.mubr.bf16.gmra.mrb[0].mxu0 %v1410
      %v2352 = vpop.f32.mrb[0].mxu0
      %v2353 = vadd.f32 0.0, %v2352
      %v2354 = vpop.f32.mrb[0].mxu0
      %v2355 = vpop.f32.mrb[0].mxu0
      %v2356 = vadd.f32 0.0, %v2355
      %v2357 = vpop.f32.mrb[0].mxu0
      %2358 = vmatprep.mubr.bf16.mxu0 0
      %2359 = vmatmul.mubr.bf16.gmra.mrb[0].mxu0 %v1413
      %v2360 = vpop.f32.mrb[0].mxu0
      %v2361 = vadd.f32 0.0, %v2360
      %v2362 = vpop.f32.mrb[0].mxu0
      %v2363 = vpop.f32.mrb[0].mxu0
      %v2364 = vadd.f32 0.0, %v2363
      %v2365 = vpop.f32.mrb[0].mxu0
      %2366 = vmatprep.mubr.bf16.mxu0 0
      %2367 = vmatmul.mubr.bf16.gmra.mrb[0].mxu0 %v1416
      %v2368 = vpop.f32.mrb[0].mxu0
      %v2369 = vadd.f32 0.0, %v2368
      %v2370 = vpop.f32.mrb[0].mxu0
      %v2371 = vpop.f32.mrb[0].mxu0
      %v2372 = vadd.f32 0.0, %v2371
      %v2373 = vpop.f32.mrb[0].mxu0
      %2374 = vmatprep.mubr.bf16.mxu0 0
      %2375 = vmatmul.mubr.bf16.gmra.mrb[0].mxu0 %v1419
      %v2376 = vpop.f32.mrb[0].mxu0
      %v2377 = vadd.f32 0.0, %v2376
      %v2378 = vpop.f32.mrb[0].mxu0
      %v2379 = vpop.f32.mrb[0].mxu0
      %v2380 = vadd.f32 0.0, %v2379
      %v2381 = vpop.f32.mrb[0].mxu0
      %2382 = vmatprep.mubr.bf16.mxu0 0
      %2383 = vmatmul.mubr.bf16.gmra.mrb[0].mxu0 %v1422
      %v2384 = vpop.f32.mrb[0].mxu0
      %v2385 = vadd.f32 0.0, %v2384
      %v2386 = vpop.f32.mrb[0].mxu0
      %v2387 = vpop.f32.mrb[0].mxu0
      %v2388 = vadd.f32 0.0, %v2387
      %v2389 = vpop.f32.mrb[0].mxu0
      %2390 = vmatprep.mubr.bf16.mxu0 0
      %2391 = vmatmul.mubr.bf16.gmra.mrb[0].mxu0 %v1425
      %v2392 = vpop.f32.mrb[0].mxu0
      %v2393 = vadd.f32 0.0, %v2392
      %v2394 = vpop.f32.mrb[0].mxu0
      %v2395 = vpop.f32.mrb[0].mxu0
      %v2396 = vadd.f32 0.0, %v2395
      %v2397 = vpop.f32.mrb[0].mxu0
      %2398 = vmatprep.mubr.bf16.mxu0 0
      %2399 = vmatmul.mubr.bf16.gmra.mrb[0].mxu0 %v1428
      %v2400 = vpop.f32.mrb[0].mxu0
      %v2401 = vadd.f32 0.0, %v2400
      %v2402 = vpop.f32.mrb[0].mxu0
      %v2403 = vpop.f32.mrb[0].mxu0
      %v2404 = vadd.f32 0.0, %v2403
      %v2405 = vpop.f32.mrb[0].mxu0
      %2406 = vmatprep.mubr.bf16.mxu0 0
      %2407 = vmatmul.mubr.bf16.gmra.mrb[0].mxu0 %v1431
      %v2408 = vpop.f32.mrb[0].mxu0
      %v2409 = vadd.f32 0.0, %v2408
      %v2410 = vpop.f32.mrb[0].mxu0
      %v2411 = vpop.f32.mrb[0].mxu0
      %v2412 = vadd.f32 0.0, %v2411
      %v2413 = vpop.f32.mrb[0].mxu0
      %2414 = vmatprep.mubr.bf16.mxu0 0
      %2415 = vmatmul.mubr.bf16.gmra.mrb[0].mxu0 %v1434
      %v2416 = vpop.f32.mrb[0].mxu0
      %v2417 = vadd.f32 0.0, %v2416
      %v2418 = vpop.f32.mrb[0].mxu0
      %v2419 = vpop.f32.mrb[0].mxu0
      %v2420 = vadd.f32 0.0, %v2419
      %v2421 = vpop.f32.mrb[0].mxu0
      %2422 = vmatprep.mubr.bf16.mxu0 0
      %2423 = vmatmul.mubr.bf16.gmra.mrb[0].mxu0 %v1437
      %v2424 = vpop.f32.mrb[0].mxu0
      %v2425 = vadd.f32 0.0, %v2424
      %v2426 = vpop.f32.mrb[0].mxu0
      %v2427 = vpop.f32.mrb[0].mxu0
      %v2428 = vadd.f32 0.0, %v2427
      %v2429 = vpop.f32.mrb[0].mxu0
      %2430 = vmatprep.mubr.bf16.mxu0 0
      %2431 = vmatmul.mubr.bf16.gmra.mrb[0].mxu0 %v1440
      %v2432 = vpop.f32.mrb[0].mxu0
      %v2433 = vadd.f32 0.0, %v2432
      %v2434 = vpop.f32.mrb[0].mxu0
      %v2435 = vpop.f32.mrb[0].mxu0
      %v2436 = vadd.f32 0.0, %v2435
      %v2437 = vpop.f32.mrb[0].mxu0
      %2438 = vmatprep.mubr.bf16.mxu0 0
      %2439 = vmatmul.mubr.bf16.gmra.mrb[0].mxu0 %v1443
      %v2440 = vpop.f32.mrb[0].mxu0
      %v2441 = vadd.f32 0.0, %v2440
      %v2442 = vpop.f32.mrb[0].mxu0
      %v2443 = vpop.f32.mrb[0].mxu0
      %v2444 = vadd.f32 0.0, %v2443
      %v2445 = vpop.f32.mrb[0].mxu0
      %2446 = vmatprep.mubr.bf16.mxu0 0
      %2447 = vmatmul.mubr.bf16.gmra.mrb[0].mxu0 %v1446
      %v2448 = vpop.f32.mrb[0].mxu0
      %v2449 = vadd.f32 0.0, %v2448
      %v2450 = vpop.f32.mrb[0].mxu0
      %v2451 = vpop.f32.mrb[0].mxu0
      %v2452 = vadd.f32 0.0, %v2451
      %v2453 = vpop.f32.mrb[0].mxu0
      %2454 = vmatprep.mubr.bf16.mxu0 0
      %2455 = vmatmul.mubr.bf16.gmra.mrb[0].mxu0 %v1449
      %v2456 = vpop.f32.mrb[0].mxu0
      %v2457 = vadd.f32 0.0, %v2456
      %v2458 = vpop.f32.mrb[0].mxu0
      %v2459 = vpop.f32.mrb[0].mxu0
      %v2460 = vadd.f32 0.0, %v2459
      %v2461 = vpop.f32.mrb[0].mxu0
      %2462 = vmatprep.mubr.bf16.mxu0 0
      %2463 = vmatmul.mubr.bf16.gmra.mrb[0].mxu0 %v1452
      %v2464 = vpop.f32.mrb[0].mxu0
      %v2465 = vadd.f32 0.0, %v2464
      %v2466 = vpop.f32.mrb[0].mxu0
      %v2467 = vpop.f32.mrb[0].mxu0
      %v2468 = vadd.f32 0.0, %v2467
      %v2469 = vpop.f32.mrb[0].mxu0
      %2470 = vmatprep.mubr.bf16.mxu0 0
      %2471 = vmatmul.mubr.bf16.gmra.mrb[0].mxu0 %v1455
      %v2472 = vpop.f32.mrb[0].mxu0
      %v2473 = vadd.f32 0.0, %v2472
      %v2474 = vpop.f32.mrb[0].mxu0
      %v2475 = vpop.f32.mrb[0].mxu0
      %v2476 = vadd.f32 0.0, %v2475
      %v2477 = vpop.f32.mrb[0].mxu0
      %2478 = vmatprep.mubr.bf16.mxu0 0
      %2479 = vmatmul.mubr.bf16.gmra.mrb[0].mxu0 %v1458
      %v2480 = vpop.f32.mrb[0].mxu0
      %v2481 = vadd.f32 0.0, %v2480
      %v2482 = vpop.f32.mrb[0].mxu0
      %v2483 = vpop.f32.mrb[0].mxu0
      %v2484 = vadd.f32 0.0, %v2483
      %v2485 = vpop.f32.mrb[0].mxu0
      %2486 = vmatprep.mubr.bf16.mxu0 0
      %2487 = vmatmul.mubr.bf16.gmra.mrb[0].mxu0 %v1461
      %v2488 = vpop.f32.mrb[0].mxu0
      %v2489 = vadd.f32 0.0, %v2488
      %v2490 = vpop.f32.mrb[0].mxu0
      %v2491 = vpop.f32.mrb[0].mxu0
      %v2492 = vadd.f32 0.0, %v2491
      %v2493 = vpop.f32.mrb[0].mxu0
      %2494 = vmatprep.mubr.bf16.mxu0 0
      %2495 = vmatmul.mubr.bf16.gmra.mrb[0].mxu0 %v1464
      %v2496 = vpop.f32.mrb[0].mxu0
      %v2497 = vadd.f32 0.0, %v2496
      %v2498 = vpop.f32.mrb[0].mxu0
      %v2499 = vpop.f32.mrb[0].mxu0
      %v2500 = vadd.f32 0.0, %v2499
      %v2501 = vpop.f32.mrb[0].mxu0
      %2502 = vmatprep.mubr.bf16.mxu0 0
      %2503 = vmatmul.mubr.bf16.gmra.mrb[0].mxu0 %v1467
      %v2504 = vpop.f32.mrb[0].mxu0
      %v2505 = vadd.f32 0.0, %v2504
      %v2506 = vpop.f32.mrb[0].mxu0
      %v2507 = vpop.f32.mrb[0].mxu0
      %v2508 = vadd.f32 0.0, %v2507
      %v2509 = vpop.f32.mrb[0].mxu0
      %2510 = vmatprep.mubr.bf16.mxu0 0
      %2511 = vmatmul.mubr.bf16.gmra.mrb[0].mxu0 %v1470
      %v2512 = vpop.f32.mrb[0].mxu0
      %v2513 = vadd.f32 0.0, %v2512
      %v2514 = vpop.f32.mrb[0].mxu0
      %v2515 = vpop.f32.mrb[0].mxu0
      %v2516 = vadd.f32 0.0, %v2515
      %v2517 = vpop.f32.mrb[0].mxu0
      %2518 = vmatprep.mubr.bf16.mxu0 0
      %2519 = vmatmul.mubr.bf16.gmra.mrb[0].mxu0 %v1473
      %v2520 = vpop.f32.mrb[0].mxu0
      %v2521 = vadd.f32 0.0, %v2520
      %v2522 = vpop.f32.mrb[0].mxu0
      %v2523 = vpop.f32.mrb[0].mxu0
      %v2524 = vadd.f32 0.0, %v2523
      %v2525 = vpop.f32.mrb[0].mxu0
      %2526 = vmatprep.mubr.bf16.mxu0 0
      %2527 = vmatmul.mubr.bf16.gmra.mrb[0].mxu0 %v1476
      %v2528 = vpop.f32.mrb[0].mxu0
      %v2529 = vadd.f32 0.0, %v2528
      %v2530 = vpop.f32.mrb[0].mxu0
      %v2531 = vpop.f32.mrb[0].mxu0
      %v2532 = vadd.f32 0.0, %v2531
      %v2533 = vpop.f32.mrb[0].mxu0
      %2534 = vdwg.mxu0
      %v2535 = vtanh.pop %v1513
      %v2536 = vtanh.pop %v1516
      %v2537 = vtanh.pop %v1521
      %v2538 = vtanh.pop %v1524
      %v2539 = vtanh.pop %v1529
      %v2540 = vtanh.pop %v1532
      %v2541 = vtanh.pop %v1537
      %v2542 = vtanh.pop %v1540
      %v2543 = vtanh.pop %v1545
      %v2544 = vtanh.pop %v1548
      %v2545 = vtanh.pop %v1553
      %v2546 = vtanh.pop %v1556
      %v2547 = vtanh.pop %v1561
      %v2548 = vtanh.pop %v1564
      %v2549 = vtanh.pop %v1569
      %v2550 = vtanh.pop %v1572
      %v2551 = vtanh.pop %v1577
      %v2552 = vtanh.pop %v1580
      %v2553 = vtanh.pop %v1585
      %v2554 = vtanh.pop %v1588
      %v2555 = vtanh.pop %v1593
      %v2556 = vtanh.pop %v1596
      %v2557 = vtanh.pop %v1601
      %v2558 = vtanh.pop %v1604
      %v2559 = vtanh.pop %v1609
      %v2560 = vtanh.pop %v1612
      %v2561 = vtanh.pop %v1617
      %v2562 = vtanh.pop %v1620
      %v2563 = vtanh.pop %v1625
      %v2564 = vtanh.pop %v1628
      %v2565 = vtanh.pop %v1633
      %v2566 = vtanh.pop %v1636
      %v2567 = vtanh.pop %v1641
      %v2568 = vtanh.pop %v1644
      %v2569 = vtanh.pop %v1649
      %v2570 = vtanh.pop %v1652
      %v2571 = vtanh.pop %v1657
      %v2572 = vtanh.pop %v1660
      %v2573 = vtanh.pop %v1665
      %v2574 = vtanh.pop %v1668
      %v2575 = vtanh.pop %v1673
      %v2576 = vtanh.pop %v1676
      %v2577 = vtanh.pop %v1681
      %v2578 = vtanh.pop %v1684
      %v2579 = vtanh.pop %v1689
      %v2580 = vtanh.pop %v1692
      %v2581 = vtanh.pop %v1697
      %v2582 = vtanh.pop %v1700
      %v2583 = vtanh.pop %v1705
      %v2584 = vtanh.pop %v1708
      %v2585 = vtanh.pop %v1713
      %v2586 = vtanh.pop %v1716
      %v2587 = vtanh.pop %v1721
      %v2588 = vtanh.pop %v1724
      %v2589 = vtanh.pop %v1729
      %v2590 = vtanh.pop %v1732
      %v2591 = vtanh.pop %v1737
      %v2592 = vtanh.pop %v1740
      %v2593 = vtanh.pop %v1745
      %v2594 = vtanh.pop %v1748
      %v2595 = vtanh.pop %v1753
      %v2596 = vtanh.pop %v1756
      %v2597 = vtanh.pop %v1761
      %v2598 = vtanh.pop %v1764
      %v2599 = vtanh.pop %v1769
      %v2600 = vtanh.pop %v1772
      %v2601 = vtanh.pop %v1777
      %v2602 = vtanh.pop %v1780
      %v2603 = vtanh.pop %v1785
      %v2604 = vtanh.pop %v1788
      %v2605 = vtanh.pop %v1793
      %v2606 = vtanh.pop %v1796
      %v2607 = vtanh.pop %v1801
      %v2608 = vtanh.pop %v1804
      %v2609 = vtanh.pop %v1809
      %v2610 = vtanh.pop %v1812
      %v2611 = vtanh.pop %v1817
      %v2612 = vtanh.pop %v1820
      %v2613 = vtanh.pop %v1825
      %v2614 = vtanh.pop %v1828
      %v2615 = vtanh.pop %v1833
      %v2616 = vtanh.pop %v1836
      %v2617 = vtanh.pop %v1841
      %v2618 = vtanh.pop %v1844
      %v2619 = vtanh.pop %v1849
      %v2620 = vtanh.pop %v1852
      %v2621 = vtanh.pop %v1857
      %v2622 = vtanh.pop %v1860
      %v2623 = vtanh.pop %v1865
      %v2624 = vtanh.pop %v1868
      %v2625 = vtanh.pop %v1873
      %v2626 = vtanh.pop %v1876
      %v2627 = vtanh.pop %v1881
      %v2628 = vtanh.pop %v1884
      %v2629 = vtanh.pop %v1889
      %v2630 = vtanh.pop %v1892
      %v2631 = vtanh.pop %v1897
      %v2632 = vtanh.pop %v1900
      %v2633 = vtanh.pop %v1905
      %v2634 = vtanh.pop %v1908
      %v2635 = vtanh.pop %v1913
      %v2636 = vtanh.pop %v1916
      %v2637 = vtanh.pop %v1921
      %v2638 = vtanh.pop %v1924
      %v2639 = vtanh.pop %v1929
      %v2640 = vtanh.pop %v1932
      %v2641 = vtanh.pop %v1937
      %v2642 = vtanh.pop %v1940
      %v2643 = vtanh.pop %v1945
      %v2644 = vtanh.pop %v1948
      %v2645 = vtanh.pop %v1953
      %v2646 = vtanh.pop %v1956
      %v2647 = vtanh.pop %v1961
      %v2648 = vtanh.pop %v1964
      %v2649 = vtanh.pop %v1969
      %v2650 = vtanh.pop %v1972
      %v2651 = vtanh.pop %v1977
      %v2652 = vtanh.pop %v1980
      %v2653 = vtanh.pop %v1985
      %v2654 = vtanh.pop %v1988
      %v2655 = vtanh.pop %v1993
      %v2656 = vtanh.pop %v1996
      %v2657 = vtanh.pop %v2001
      %v2658 = vtanh.pop %v2004
      %v2659 = vtanh.pop %v2009
      %v2660 = vtanh.pop %v2012
      %v2661 = vtanh.pop %v2017
      %v2662 = vtanh.pop %v2020
      %v2663 = vtanh.pop %v2025
      %v2664 = vtanh.pop %v2028
      %v2665 = vtanh.pop %v2033
      %v2666 = vtanh.pop %v2036
      %v2667 = vtanh.pop %v2041
      %v2668 = vtanh.pop %v2044
      %v2669 = vtanh.pop %v2049
      %v2670 = vtanh.pop %v2052
      %v2671 = vtanh.pop %v2057
      %v2672 = vtanh.pop %v2060
      %v2673 = vtanh.pop %v2065
      %v2674 = vtanh.pop %v2068
      %v2675 = vtanh.pop %v2073
      %v2676 = vtanh.pop %v2076
      %v2677 = vtanh.pop %v2081
      %v2678 = vtanh.pop %v2084
      %v2679 = vtanh.pop %v2089
      %v2680 = vtanh.pop %v2092
      %v2681 = vtanh.pop %v2097
      %v2682 = vtanh.pop %v2100
      %v2683 = vtanh.pop %v2105
      %v2684 = vtanh.pop %v2108
      %v2685 = vtanh.pop %v2113
      %v2686 = vtanh.pop %v2116
      %v2687 = vtanh.pop %v2121
      %v2688 = vtanh.pop %v2124
      %v2689 = vtanh.pop %v2129
      %v2690 = vtanh.pop %v2132
      %v2691 = vtanh.pop %v2137
      %v2692 = vtanh.pop %v2140
      %v2693 = vtanh.pop %v2145
      %v2694 = vtanh.pop %v2148
      %v2695 = vtanh.pop %v2153
      %v2696 = vtanh.pop %v2156
      %v2697 = vtanh.pop %v2161
      %v2698 = vtanh.pop %v2164
      %v2699 = vtanh.pop %v2169
      %v2700 = vtanh.pop %v2172
      %v2701 = vtanh.pop %v2177
      %v2702 = vtanh.pop %v2180
      %v2703 = vtanh.pop %v2185
      %v2704 = vtanh.pop %v2188
      %v2705 = vtanh.pop %v2193
      %v2706 = vtanh.pop %v2196
      %v2707 = vtanh.pop %v2201
      %v2708 = vtanh.pop %v2204
      %v2709 = vtanh.pop %v2209
      %v2710 = vtanh.pop %v2212
      %v2711 = vtanh.pop %v2217
      %v2712 = vtanh.pop %v2220
      %v2713 = vtanh.pop %v2225
      %v2714 = vtanh.pop %v2228
      %v2715 = vtanh.pop %v2233
      %v2716 = vtanh.pop %v2236
      %v2717 = vtanh.pop %v2241
      %v2718 = vtanh.pop %v2244
      %v2719 = vtanh.pop %v2249
      %v2720 = vtanh.pop %v2252
      %v2721 = vtanh.pop %v2257
      %v2722 = vtanh.pop %v2260
      %v2723 = vtanh.pop %v2265
      %v2724 = vtanh.pop %v2268
      %v2725 = vtanh.pop %v2273
      %v2726 = vtanh.pop %v2276
      %v2727 = vtanh.pop %v2281
      %v2728 = vtanh.pop %v2284
      %v2729 = vtanh.pop %v2289
      %v2730 = vtanh.pop %v2292
      %v2731 = vtanh.pop %v2297
      %v2732 = vtanh.pop %v2300
      %v2733 = vtanh.pop %v2305
      %v2734 = vtanh.pop %v2308
      %v2735 = vtanh.pop %v2313
      %v2736 = vtanh.pop %v2316
      %v2737 = vtanh.pop %v2321
      %v2738 = vtanh.pop %v2324
      %v2739 = vtanh.pop %v2329
      %v2740 = vtanh.pop %v2332
      %v2741 = vtanh.pop %v2337
      %v2742 = vtanh.pop %v2340
      %v2743 = vtanh.pop %v2345
      %v2744 = vtanh.pop %v2348
      %v2745 = vtanh.pop %v2353
      %v2746 = vtanh.pop %v2356
      %v2747 = vtanh.pop %v2361
      %v2748 = vtanh.pop %v2364
      %v2749 = vtanh.pop %v2369
      %v2750 = vtanh.pop %v2372
      %v2751 = vtanh.pop %v2377
      %v2752 = vtanh.pop %v2380
      %v2753 = vtanh.pop %v2385
      %v2754 = vtanh.pop %v2388
      %v2755 = vtanh.pop %v2393
      %v2756 = vtanh.pop %v2396
      %v2757 = vtanh.pop %v2401
      %v2758 = vtanh.pop %v2404
      %v2759 = vtanh.pop %v2409
      %v2760 = vtanh.pop %v2412
      %v2761 = vtanh.pop %v2417
      %v2762 = vtanh.pop %v2420
      %v2763 = vtanh.pop %v2425
      %v2764 = vtanh.pop %v2428
      %v2765 = vtanh.pop %v2433
      %v2766 = vtanh.pop %v2436
      %v2767 = vtanh.pop %v2441
      %v2768 = vtanh.pop %v2444
      %v2769 = vtanh.pop %v2449
      %v2770 = vtanh.pop %v2452
      %v2771 = vtanh.pop %v2457
      %v2772 = vtanh.pop %v2460
      %v2773 = vtanh.pop %v2465
      %v2774 = vtanh.pop %v2468
      %v2775 = vtanh.pop %v2473
      %v2776 = vtanh.pop %v2476
      %v2777 = vtanh.pop %v2481
      %v2778 = vtanh.pop %v2484
      %v2779 = vtanh.pop %v2489
      %v2780 = vtanh.pop %v2492
      %v2781 = vtanh.pop %v2497
      %v2782 = vtanh.pop %v2500
      %v2783 = vtanh.pop %v2505
      %v2784 = vtanh.pop %v2508
      %v2785 = vtanh.pop %v2513
      %v2786 = vtanh.pop %v2516
      %v2787 = vtanh.pop %v2521
      %v2788 = vtanh.pop %v2524
      %v2789 = vtanh.pop %v2529
      %v2790 = vtanh.pop %v2532
      %2791 = vst [vmem:[%s163] sm:$0xff] %v2535
      %2792 = vst [vmem:[%s163 + $0x8] sm:$0xff] %v2536
      %2793 = vst [vmem:[%s163 + $0x10] sm:$0xff] %v2537
      %2794 = vst [vmem:[%s163 + $0x18] sm:$0xff] %v2538
      %2795 = vst [vmem:[%s163 + $0x20] sm:$0xff] %v2539
      %2796 = vst [vmem:[%s163 + $0x28] sm:$0xff] %v2540
      %2797 = vst [vmem:[%s163 + $0x30] sm:$0xff] %v2541
      %2798 = vst [vmem:[%s163 + $0x38] sm:$0xff] %v2542
      %2799 = vst [vmem:[%s163 + $0x40] sm:$0xff] %v2543
      %2800 = vst [vmem:[%s163 + $0x48] sm:$0xff] %v2544
      %2801 = vst [vmem:[%s163 + $0x50] sm:$0xff] %v2545
      %2802 = vst [vmem:[%s163 + $0x58] sm:$0xff] %v2546
      %2803 = vst [vmem:[%s163 + $0x60] sm:$0xff] %v2547
      %2804 = vst [vmem:[%s163 + $0x68] sm:$0xff] %v2548
      %2805 = vst [vmem:[%s163 + $0x70] sm:$0xff] %v2549
      %2806 = vst [vmem:[%s163 + $0x78] sm:$0xff] %v2550
      %2807 = vst [vmem:[%s163 + $0x80] sm:$0xff] %v2551
      %2808 = vst [vmem:[%s163 + $0x88] sm:$0xff] %v2552
      %2809 = vst [vmem:[%s163 + $0x90] sm:$0xff] %v2553
      %2810 = vst [vmem:[%s163 + $0x98] sm:$0xff] %v2554
      %2811 = vst [vmem:[%s163 + $0xa0] sm:$0xff] %v2555
      %2812 = vst [vmem:[%s163 + $0xa8] sm:$0xff] %v2556
      %2813 = vst [vmem:[%s163 + $0xb0] sm:$0xff] %v2557
      %2814 = vst [vmem:[%s163 + $0xb8] sm:$0xff] %v2558
      %2815 = vst [vmem:[%s163 + $0xc0] sm:$0xff] %v2559
      %2816 = vst [vmem:[%s163 + $0xc8] sm:$0xff] %v2560
      %2817 = vst [vmem:[%s163 + $0xd0] sm:$0xff] %v2561
      %2818 = vst [vmem:[%s163 + $0xd8] sm:$0xff] %v2562
      %2819 = vst [vmem:[%s163 + $0xe0] sm:$0xff] %v2563
      %2820 = vst [vmem:[%s163 + $0xe8] sm:$0xff] %v2564
      %2821 = vst [vmem:[%s163 + $0xf0] sm:$0xff] %v2565
      %2822 = vst [vmem:[%s163 + $0xf8] sm:$0xff] %v2566
      %2823 = vst [vmem:[%s163 + $0x100] sm:$0xff] %v2567
      %2824 = vst [vmem:[%s163 + $0x108] sm:$0xff] %v2568
      %2825 = vst [vmem:[%s163 + $0x110] sm:$0xff] %v2569
      %2826 = vst [vmem:[%s163 + $0x118] sm:$0xff] %v2570
      %2827 = vst [vmem:[%s163 + $0x120] sm:$0xff] %v2571
      %2828 = vst [vmem:[%s163 + $0x128] sm:$0xff] %v2572
      %2829 = vst [vmem:[%s163 + $0x130] sm:$0xff] %v2573
      %2830 = vst [vmem:[%s163 + $0x138] sm:$0xff] %v2574
      %2831 = vst [vmem:[%s163 + $0x140] sm:$0xff] %v2575
      %2832 = vst [vmem:[%s163 + $0x148] sm:$0xff] %v2576
      %2833 = vst [vmem:[%s163 + $0x150] sm:$0xff] %v2577
      %2834 = vst [vmem:[%s163 + $0x158] sm:$0xff] %v2578
      %2835 = vst [vmem:[%s163 + $0x160] sm:$0xff] %v2579
      %2836 = vst [vmem:[%s163 + $0x168] sm:$0xff] %v2580
      %2837 = vst [vmem:[%s163 + $0x170] sm:$0xff] %v2581
      %2838 = vst [vmem:[%s163 + $0x178] sm:$0xff] %v2582
      %2839 = vst [vmem:[%s163 + $0x180] sm:$0xff] %v2583
      %2840 = vst [vmem:[%s163 + $0x188] sm:$0xff] %v2584
      %2841 = vst [vmem:[%s163 + $0x190] sm:$0xff] %v2585
      %2842 = vst [vmem:[%s163 + $0x198] sm:$0xff] %v2586
      %2843 = vst [vmem:[%s163 + $0x1a0] sm:$0xff] %v2587
      %2844 = vst [vmem:[%s163 + $0x1a8] sm:$0xff] %v2588
      %2845 = vst [vmem:[%s163 + $0x1b0] sm:$0xff] %v2589
      %2846 = vst [vmem:[%s163 + $0x1b8] sm:$0xff] %v2590
      %2847 = vst [vmem:[%s163 + $0x1c0] sm:$0xff] %v2591
      %2848 = vst [vmem:[%s163 + $0x1c8] sm:$0xff] %v2592
      %2849 = vst [vmem:[%s163 + $0x1d0] sm:$0xff] %v2593
      %2850 = vst [vmem:[%s163 + $0x1d8] sm:$0xff] %v2594
      %2851 = vst [vmem:[%s163 + $0x1e0] sm:$0xff] %v2595
      %2852 = vst [vmem:[%s163 + $0x1e8] sm:$0xff] %v2596
      %2853 = vst [vmem:[%s163 + $0x1f0] sm:$0xff] %v2597
      %2854 = vst [vmem:[%s163 + $0x1f8] sm:$0xff] %v2598
      %2855 = vst [vmem:[%s163 + $0x200] sm:$0xff] %v2599
      %2856 = vst [vmem:[%s163 + $0x208] sm:$0xff] %v2600
      %2857 = vst [vmem:[%s163 + $0x210] sm:$0xff] %v2601
      %2858 = vst [vmem:[%s163 + $0x218] sm:$0xff] %v2602
      %2859 = vst [vmem:[%s163 + $0x220] sm:$0xff] %v2603
      %2860 = vst [vmem:[%s163 + $0x228] sm:$0xff] %v2604
      %2861 = vst [vmem:[%s163 + $0x230] sm:$0xff] %v2605
      %2862 = vst [vmem:[%s163 + $0x238] sm:$0xff] %v2606
      %2863 = vst [vmem:[%s163 + $0x240] sm:$0xff] %v2607
      %2864 = vst [vmem:[%s163 + $0x248] sm:$0xff] %v2608
      %2865 = vst [vmem:[%s163 + $0x250] sm:$0xff] %v2609
      %2866 = vst [vmem:[%s163 + $0x258] sm:$0xff] %v2610
      %2867 = vst [vmem:[%s163 + $0x260] sm:$0xff] %v2611
      %2868 = vst [vmem:[%s163 + $0x268] sm:$0xff] %v2612
      %2869 = vst [vmem:[%s163 + $0x270] sm:$0xff] %v2613
      %2870 = vst [vmem:[%s163 + $0x278] sm:$0xff] %v2614
      %2871 = vst [vmem:[%s163 + $0x280] sm:$0xff] %v2615
      %2872 = vst [vmem:[%s163 + $0x288] sm:$0xff] %v2616
      %2873 = vst [vmem:[%s163 + $0x290] sm:$0xff] %v2617
      %2874 = vst [vmem:[%s163 + $0x298] sm:$0xff] %v2618
      %2875 = vst [vmem:[%s163 + $0x2a0] sm:$0xff] %v2619
      %2876 = vst [vmem:[%s163 + $0x2a8] sm:$0xff] %v2620
      %2877 = vst [vmem:[%s163 + $0x2b0] sm:$0xff] %v2621
      %2878 = vst [vmem:[%s163 + $0x2b8] sm:$0xff] %v2622
      %2879 = vst [vmem:[%s163 + $0x2c0] sm:$0xff] %v2623
      %2880 = vst [vmem:[%s163 + $0x2c8] sm:$0xff] %v2624
      %2881 = vst [vmem:[%s163 + $0x2d0] sm:$0xff] %v2625
      %2882 = vst [vmem:[%s163 + $0x2d8] sm:$0xff] %v2626
      %2883 = vst [vmem:[%s163 + $0x2e0] sm:$0xff] %v2627
      %2884 = vst [vmem:[%s163 + $0x2e8] sm:$0xff] %v2628
      %2885 = vst [vmem:[%s163 + $0x2f0] sm:$0xff] %v2629
      %2886 = vst [vmem:[%s163 + $0x2f8] sm:$0xff] %v2630
      %2887 = vst [vmem:[%s163 + $0x300] sm:$0xff] %v2631
      %2888 = vst [vmem:[%s163 + $0x308] sm:$0xff] %v2632
      %2889 = vst [vmem:[%s163 + $0x310] sm:$0xff] %v2633
      %2890 = vst [vmem:[%s163 + $0x318] sm:$0xff] %v2634
      %2891 = vst [vmem:[%s163 + $0x320] sm:$0xff] %v2635
      %2892 = vst [vmem:[%s163 + $0x328] sm:$0xff] %v2636
      %2893 = vst [vmem:[%s163 + $0x330] sm:$0xff] %v2637
      %2894 = vst [vmem:[%s163 + $0x338] sm:$0xff] %v2638
      %2895 = vst [vmem:[%s163 + $0x340] sm:$0xff] %v2639
      %2896 = vst [vmem:[%s163 + $0x348] sm:$0xff] %v2640
      %2897 = vst [vmem:[%s163 + $0x350] sm:$0xff] %v2641
      %2898 = vst [vmem:[%s163 + $0x358] sm:$0xff] %v2642
      %2899 = vst [vmem:[%s163 + $0x360] sm:$0xff] %v2643
      %2900 = vst [vmem:[%s163 + $0x368] sm:$0xff] %v2644
      %2901 = vst [vmem:[%s163 + $0x370] sm:$0xff] %v2645
      %2902 = vst [vmem:[%s163 + $0x378] sm:$0xff] %v2646
      %2903 = vst [vmem:[%s163 + $0x380] sm:$0xff] %v2647
      %2904 = vst [vmem:[%s163 + $0x388] sm:$0xff] %v2648
      %2905 = vst [vmem:[%s163 + $0x390] sm:$0xff] %v2649
      %2906 = vst [vmem:[%s163 + $0x398] sm:$0xff] %v2650
      %2907 = vst [vmem:[%s163 + $0x3a0] sm:$0xff] %v2651
      %2908 = vst [vmem:[%s163 + $0x3a8] sm:$0xff] %v2652
      %2909 = vst [vmem:[%s163 + $0x3b0] sm:$0xff] %v2653
      %2910 = vst [vmem:[%s163 + $0x3b8] sm:$0xff] %v2654
      %2911 = vst [vmem:[%s163 + $0x3c0] sm:$0xff] %v2655
      %2912 = vst [vmem:[%s163 + $0x3c8] sm:$0xff] %v2656
      %2913 = vst [vmem:[%s163 + $0x3d0] sm:$0xff] %v2657
      %2914 = vst [vmem:[%s163 + $0x3d8] sm:$0xff] %v2658
      %2915 = vst [vmem:[%s163 + $0x3e0] sm:$0xff] %v2659
      %2916 = vst [vmem:[%s163 + $0x3e8] sm:$0xff] %v2660
      %2917 = vst [vmem:[%s163 + $0x3f0] sm:$0xff] %v2661
      %2918 = vst [vmem:[%s163 + $0x3f8] sm:$0xff] %v2662
      %2919 = vst [vmem:[%s163 + $0x400] sm:$0xff] %v2663
      %2920 = vst [vmem:[%s163 + $0x408] sm:$0xff] %v2664
      %2921 = vst [vmem:[%s163 + $0x410] sm:$0xff] %v2665
      %2922 = vst [vmem:[%s163 + $0x418] sm:$0xff] %v2666
      %2923 = vst [vmem:[%s163 + $0x420] sm:$0xff] %v2667
      %2924 = vst [vmem:[%s163 + $0x428] sm:$0xff] %v2668
      %2925 = vst [vmem:[%s163 + $0x430] sm:$0xff] %v2669
      %2926 = vst [vmem:[%s163 + $0x438] sm:$0xff] %v2670
      %2927 = vst [vmem:[%s163 + $0x440] sm:$0xff] %v2671
      %2928 = vst [vmem:[%s163 + $0x448] sm:$0xff] %v2672
      %2929 = vst [vmem:[%s163 + $0x450] sm:$0xff] %v2673
      %2930 = vst [vmem:[%s163 + $0x458] sm:$0xff] %v2674
      %2931 = vst [vmem:[%s163 + $0x460] sm:$0xff] %v2675
      %2932 = vst [vmem:[%s163 + $0x468] sm:$0xff] %v2676
      %2933 = vst [vmem:[%s163 + $0x470] sm:$0xff] %v2677
      %2934 = vst [vmem:[%s163 + $0x478] sm:$0xff] %v2678
      %2935 = vst [vmem:[%s163 + $0x480] sm:$0xff] %v2679
      %2936 = vst [vmem:[%s163 + $0x488] sm:$0xff] %v2680
      %2937 = vst [vmem:[%s163 + $0x490] sm:$0xff] %v2681
      %2938 = vst [vmem:[%s163 + $0x498] sm:$0xff] %v2682
      %2939 = vst [vmem:[%s163 + $0x4a0] sm:$0xff] %v2683
      %2940 = vst [vmem:[%s163 + $0x4a8] sm:$0xff] %v2684
      %2941 = vst [vmem:[%s163 + $0x4b0] sm:$0xff] %v2685
      %2942 = vst [vmem:[%s163 + $0x4b8] sm:$0xff] %v2686
      %2943 = vst [vmem:[%s163 + $0x4c0] sm:$0xff] %v2687
      %2944 = vst [vmem:[%s163 + $0x4c8] sm:$0xff] %v2688
      %2945 = vst [vmem:[%s163 + $0x4d0] sm:$0xff] %v2689
      %2946 = vst [vmem:[%s163 + $0x4d8] sm:$0xff] %v2690
      %2947 = vst [vmem:[%s163 + $0x4e0] sm:$0xff] %v2691
      %2948 = vst [vmem:[%s163 + $0x4e8] sm:$0xff] %v2692
      %2949 = vst [vmem:[%s163 + $0x4f0] sm:$0xff] %v2693
      %2950 = vst [vmem:[%s163 + $0x4f8] sm:$0xff] %v2694
      %2951 = vst [vmem:[%s163 + $0x500] sm:$0xff] %v2695
      %2952 = vst [vmem:[%s163 + $0x508] sm:$0xff] %v2696
      %2953 = vst [vmem:[%s163 + $0x510] sm:$0xff] %v2697
      %2954 = vst [vmem:[%s163 + $0x518] sm:$0xff] %v2698
      %2955 = vst [vmem:[%s163 + $0x520] sm:$0xff] %v2699
      %2956 = vst [vmem:[%s163 + $0x528] sm:$0xff] %v2700
      %2957 = vst [vmem:[%s163 + $0x530] sm:$0xff] %v2701
      %2958 = vst [vmem:[%s163 + $0x538] sm:$0xff] %v2702
      %2959 = vst [vmem:[%s163 + $0x540] sm:$0xff] %v2703
      %2960 = vst [vmem:[%s163 + $0x548] sm:$0xff] %v2704
      %2961 = vst [vmem:[%s163 + $0x550] sm:$0xff] %v2705
      %2962 = vst [vmem:[%s163 + $0x558] sm:$0xff] %v2706
      %2963 = vst [vmem:[%s163 + $0x560] sm:$0xff] %v2707
      %2964 = vst [vmem:[%s163 + $0x568] sm:$0xff] %v2708
      %2965 = vst [vmem:[%s163 + $0x570] sm:$0xff] %v2709
      %2966 = vst [vmem:[%s163 + $0x578] sm:$0xff] %v2710
      %2967 = vst [vmem:[%s163 + $0x580] sm:$0xff] %v2711
      %2968 = vst [vmem:[%s163 + $0x588] sm:$0xff] %v2712
      %2969 = vst [vmem:[%s163 + $0x590] sm:$0xff] %v2713
      %2970 = vst [vmem:[%s163 + $0x598] sm:$0xff] %v2714
      %2971 = vst [vmem:[%s163 + $0x5a0] sm:$0xff] %v2715
      %2972 = vst [vmem:[%s163 + $0x5a8] sm:$0xff] %v2716
      %2973 = vst [vmem:[%s163 + $0x5b0] sm:$0xff] %v2717
      %2974 = vst [vmem:[%s163 + $0x5b8] sm:$0xff] %v2718
      %2975 = vst [vmem:[%s163 + $0x5c0] sm:$0xff] %v2719
      %2976 = vst [vmem:[%s163 + $0x5c8] sm:$0xff] %v2720
      %2977 = vst [vmem:[%s163 + $0x5d0] sm:$0xff] %v2721
      %2978 = vst [vmem:[%s163 + $0x5d8] sm:$0xff] %v2722
      %2979 = vst [vmem:[%s163 + $0x5e0] sm:$0xff] %v2723
      %2980 = vst [vmem:[%s163 + $0x5e8] sm:$0xff] %v2724
      %2981 = vst [vmem:[%s163 + $0x5f0] sm:$0xff] %v2725
      %2982 = vst [vmem:[%s163 + $0x5f8] sm:$0xff] %v2726
      %2983 = vst [vmem:[%s163 + $0x600] sm:$0xff] %v2727
      %2984 = vst [vmem:[%s163 + $0x608] sm:$0xff] %v2728
      %2985 = vst [vmem:[%s163 + $0x610] sm:$0xff] %v2729
      %2986 = vst [vmem:[%s163 + $0x618] sm:$0xff] %v2730
      %2987 = vst [vmem:[%s163 + $0x620] sm:$0xff] %v2731
      %2988 = vst [vmem:[%s163 + $0x628] sm:$0xff] %v2732
      %2989 = vst [vmem:[%s163 + $0x630] sm:$0xff] %v2733
      %2990 = vst [vmem:[%s163 + $0x638] sm:$0xff] %v2734
      %2991 = vst [vmem:[%s163 + $0x640] sm:$0xff] %v2735
      %2992 = vst [vmem:[%s163 + $0x648] sm:$0xff] %v2736
      %2993 = vst [vmem:[%s163 + $0x650] sm:$0xff] %v2737
      %2994 = vst [vmem:[%s163 + $0x658] sm:$0xff] %v2738
      %2995 = vst [vmem:[%s163 + $0x660] sm:$0xff] %v2739
      %2996 = vst [vmem:[%s163 + $0x668] sm:$0xff] %v2740
      %2997 = vst [vmem:[%s163 + $0x670] sm:$0xff] %v2741
      %2998 = vst [vmem:[%s163 + $0x678] sm:$0xff] %v2742
      %2999 = vst [vmem:[%s163 + $0x680] sm:$0xff] %v2743
      %3000 = vst [vmem:[%s163 + $0x688] sm:$0xff] %v2744
      %3001 = vst [vmem:[%s163 + $0x690] sm:$0xff] %v2745
      %3002 = vst [vmem:[%s163 + $0x698] sm:$0xff] %v2746
      %3003 = vst [vmem:[%s163 + $0x6a0] sm:$0xff] %v2747
      %3004 = vst [vmem:[%s163 + $0x6a8] sm:$0xff] %v2748
      %3005 = vst [vmem:[%s163 + $0x6b0] sm:$0xff] %v2749
      %3006 = vst [vmem:[%s163 + $0x6b8] sm:$0xff] %v2750
      %3007 = vst [vmem:[%s163 + $0x6c0] sm:$0xff] %v2751
      %3008 = vst [vmem:[%s163 + $0x6c8] sm:$0xff] %v2752
      %3009 = vst [vmem:[%s163 + $0x6d0] sm:$0xff] %v2753
      %3010 = vst [vmem:[%s163 + $0x6d8] sm:$0xff] %v2754
      %3011 = vst [vmem:[%s163 + $0x6e0] sm:$0xff] %v2755
      %3012 = vst [vmem:[%s163 + $0x6e8] sm:$0xff] %v2756
      %3013 = vst [vmem:[%s163 + $0x6f0] sm:$0xff] %v2757
      %3014 = vst [vmem:[%s163 + $0x6f8] sm:$0xff] %v2758
      %3015 = vst [vmem:[%s163 + $0x700] sm:$0xff] %v2759
      %3016 = vst [vmem:[%s163 + $0x708] sm:$0xff] %v2760
      %3017 = vst [vmem:[%s163 + $0x710] sm:$0xff] %v2761
      %3018 = vst [vmem:[%s163 + $0x718] sm:$0xff] %v2762
      %3019 = vst [vmem:[%s163 + $0x720] sm:$0xff] %v2763
      %3020 = vst [vmem:[%s163 + $0x728] sm:$0xff] %v2764
      %3021 = vst [vmem:[%s163 + $0x730] sm:$0xff] %v2765
      %3022 = vst [vmem:[%s163 + $0x738] sm:$0xff] %v2766
      %3023 = vst [vmem:[%s163 + $0x740] sm:$0xff] %v2767
      %3024 = vst [vmem:[%s163 + $0x748] sm:$0xff] %v2768
      %3025 = vst [vmem:[%s163 + $0x750] sm:$0xff] %v2769
      %3026 = vst [vmem:[%s163 + $0x758] sm:$0xff] %v2770
      %3027 = vst [vmem:[%s163 + $0x760] sm:$0xff] %v2771
      %3028 = vst [vmem:[%s163 + $0x768] sm:$0xff] %v2772
      %3029 = vst [vmem:[%s163 + $0x770] sm:$0xff] %v2773
      %3030 = vst [vmem:[%s163 + $0x778] sm:$0xff] %v2774
      %3031 = vst [vmem:[%s163 + $0x780] sm:$0xff] %v2775
      %3032 = vst [vmem:[%s163 + $0x788] sm:$0xff] %v2776
      %3033 = vst [vmem:[%s163 + $0x790] sm:$0xff] %v2777
      %3034 = vst [vmem:[%s163 + $0x798] sm:$0xff] %v2778
      %3035 = vst [vmem:[%s163 + $0x7a0] sm:$0xff] %v2779
      %3036 = vst [vmem:[%s163 + $0x7a8] sm:$0xff] %v2780
      %3037 = vst [vmem:[%s163 + $0x7b0] sm:$0xff] %v2781
      %3038 = vst [vmem:[%s163 + $0x7b8] sm:$0xff] %v2782
      %3039 = vst [vmem:[%s163 + $0x7c0] sm:$0xff] %v2783
      %3040 = vst [vmem:[%s163 + $0x7c8] sm:$0xff] %v2784
      %3041 = vst [vmem:[%s163 + $0x7d0] sm:$0xff] %v2785
      %3042 = vst [vmem:[%s163 + $0x7d8] sm:$0xff] %v2786
      %3043 = vst [vmem:[%s163 + $0x7e0] sm:$0xff] %v2787
      %3044 = vst [vmem:[%s163 + $0x7e8] sm:$0xff] %v2788
      %3045 = vst [vmem:[%s163 + $0x7f0] sm:$0xff] %v2789
      %3046 = vst [vmem:[%s163 + $0x7f8] sm:$0xff] %v2790
      %p3047 = scmp.lt.s32.totalorder %s13, 3
      %s3048 = scalar_select %p3047, %s13, 3
      %s3049 = smul.addr %s3048, 256
      %s3050 = smul.addr %s3049, 8
      %s3051 = scalar_lea.vmem %s2, %s3050
      // Predicated region
      $region29: #{_lambda_.9} parent=27 // pred_check
        %p3052 = pneg %p83
      $region30: #{_lambda_.9} parent=27 // pred_check_branch
        %3054 = sbr.rel (%p3052) target = $region32
      $region31: #{_lambda_.9} parent=27 // pred_region
        _
      $region32: #{_lambda_.9} parent=27 // pred_fallthru
        _
    $region28: #{_lambda_.9} parent=5 // pred_fallthru
      _
    %p3055 = scmp.le.s32.totalorder 2, %s8
    // Predicated region
    $region33: #{_lambda_.9} parent=5 // pred_check
      %p3056 = pneg %p3055
    $region34: #{_lambda_.9} parent=5 // pred_check_branch
      %3058 = sbr.rel (%p3056) target = $region36
    $region35: #{_lambda_.9} parent=5 // pred_region
      %s3059 = ssub.s32 %s8, 2
      // Predicated region
      $region37: #{_lambda_.9} parent=35 // pred_check
        %p3060 = pneg %p89
      $region38: #{_lambda_.9} parent=35 // pred_check_branch
        %3062 = sbr.rel (%p3060) target = $region40
      $region39: #{_lambda_.9} parent=35 // pred_region
        %p3063 = scmp.lt.s32.totalorder %s14, 3
        %s3064 = scalar_select %p3063, %s14, 3
        %s3065 = smul.addr %s3064, 256
        %s3066 = smul.addr %s3065, 8
        %s3067 = scalar_lea.vmem %s2, %s3066
      $region40: #{_lambda_.9} parent=35 // pred_fallthru
        _
    $region36: #{_lambda_.9} parent=5 // pred_fallthru
      _
  $region6: #{_lambda_.9} parent=0 // loop_footer
    %s12 = sadd.s32 1, %s8
  $region7: #{_lambda_.9} parent=0 // loop_footer_branch
    %7 = sbr.rel target = $region3
  $region8: #{_lambda_.9} parent=0 // loop_exit
    _

</llo_original>
